<compile_context>
chip_gen: v7x
topology: tpu7x:2x2x1
jax: 0.10.0
libtpu: 0.0.40
codegen_flags: <defaults>
</compile_context>

<pallas_src>
import functools

import jax
import jax.numpy as jnp
from jax.experimental import pallas as pl
from jax.experimental.pallas import tpu as pltpu


def _round_up(n, m):
    return ((n + m - 1) // m) * m


# ----------------------------------------------------------------------------
# Pallas kernels
# ----------------------------------------------------------------------------
def _fc_fused_kernel(z_ref, w1_ref, b1_ref, w2_ref, b2_ref, o_ref):
    """o = relu(relu(z @ w1 + b1) @ w2 + b2); bf16 MXU inputs, f32 accumulation."""
    h = jnp.dot(z_ref[...], w1_ref[...], preferred_element_type=jnp.float32)
    h = jnp.maximum(h + b1_ref[...], 0.0)
    y = jnp.dot(h.astype(jnp.bfloat16), w2_ref[...],
                preferred_element_type=jnp.float32)
    y = jnp.maximum(y + b2_ref[...], 0.0)
    o_ref[...] = y.astype(o_ref.dtype)


def _deconv_subpixel_kernel(a_cur_ref, a_nxt_ref, w_ref, b_ref, o_ref, *,
                            offsets, act):
    """One M-tile of the subpixel deconv matmul.

    a_cur/a_nxt are two consecutive row-blocks of the flattened padded NHWC
    input; the 4 taps are static row-shifted views of their concatenation, so
    no patch matrix is ever materialized.  acc = sum_t A[tap_t] @ W[t] + b.
    """
    tm = o_ref.shape[0]
    a2 = jnp.concatenate([a_cur_ref[...], a_nxt_ref[...]], axis=0)  # [2*tm, Cin] f32
    acc = jnp.zeros(o_ref.shape, jnp.float32)
    for t, off in enumerate(offsets):                 # 4 static taps (di, dj)
        a_t = a2[off:off + tm, :]
        acc = acc + jnp.dot(a_t.astype(jnp.bfloat16), w_ref[t],
                            preferred_element_type=jnp.float32)
    acc = acc + b_ref[...]
    if act == "relu":
        acc = jnp.maximum(acc, 0.0)
    elif act == "sigmoid":
        acc = jax.nn.sigmoid(acc)
    o_ref[...] = acc.astype(o_ref.dtype)


# ----------------------------------------------------------------------------
# ConvTranspose2d(k=3, s=2, p=1, op=1)  ==  2x2 stride-1 conv + depth-to-space
# ----------------------------------------------------------------------------
# (output-row parity r, input-row delta di) -> which kh of the 3x3 kernel is used
_TAP_K = {(0, 0): 1, (1, 0): 2, (1, 1): 0}   # (r=0, di=1) contributes nothing


def _subpixel_weights(w, b, n_pad):
    """torch ConvTranspose2d weight [Cin, Cout, 3, 3] -> per-tap 1x1 weights.

    Returns wm [4, Cin, n_pad] (bf16) with output column ((r*2+c)*Cout + o) and
    bias bm [1, n_pad] (f32); zero-padded to n_pad lanes.
    """
    cin, cout = w.shape[0], w.shape[1]
    taps = []
    for di, dj in ((0, 0), (0, 1), (1, 0), (1, 1)):
        cols = []
        for r in (0, 1):
            for c in (0, 1):
                if (r, di) in _TAP_K and (c, dj) in _TAP_K:
                    cols.append(w[:, :, _TAP_K[(r, di)], _TAP_K[(c, dj)]])
                else:
                    cols.append(jnp.zeros((cin, cout), w.dtype))
        taps.append(jnp.concatenate(cols, axis=1))                 # [Cin, 4*Cout]
    wm = jnp.stack(taps, axis=0)                                   # [4, Cin, 4*Cout]
    wm = jnp.pad(wm, ((0, 0), (0, 0), (0, n_pad - 4 * cout)))
    bm = jnp.pad(jnp.tile(b, 4), (0, n_pad - 4 * cout)).reshape(1, n_pad)
    return wm.astype(jnp.bfloat16), bm.astype(jnp.float32)


def deconv2x_subpixel(x_nhwc, w, b, act, num_blocks=2):
    """PyTorch ConvTranspose2d(Cin, Cout, 3, stride=2, padding=1, output_padding=1)
    on an NHWC input, returning NHWC [B, 2H, 2W, Cout]."""
    B, H, W, Cin = x_nhwc.shape
    Cout = w.shape[1]
    Hp, Wp = H + 1, W + 1
    Npad = _round_up(4 * Cout, 128)
    offsets = (0, 1, Wp, Wp + 1)                  # (di, dj) -> di*Wp + dj row shift

    x_pad = jnp.pad(x_nhwc, ((0, 0), (0, 1), (0, 1), (0, 0)))   # bottom/right pad 1
    M = B * Hp * Wp
    tm = _round_up(max(-(-M // num_blocks), Wp + 2), 16)
    a = x_pad.reshape(M, Cin)                                    # f32, no im2col
    a = jnp.pad(a, ((0, (num_blocks + 1) * tm - M), (0, 0)))     # block i+1 must exist

    wm, bm = _subpixel_weights(w, b, Npad)

    out = pl.pallas_call(
        functools.partial(_deconv_subpixel_kernel, offsets=offsets, act=act),
        out_shape=jax.ShapeDtypeStruct((num_blocks * tm, Npad), jnp.float32),
        grid_spec=pltpu.PrefetchScalarGridSpec(
            num_scalar_prefetch=0,
            grid=(num_blocks,),
            in_specs=[
                pl.BlockSpec((tm, Cin), lambda i: (i, 0)),       # current row block
                pl.BlockSpec((tm, Cin), lambda i: (i + 1, 0)),   # next row block (overlap)
                pl.BlockSpec((4, Cin, Npad), lambda i: (0, 0, 0)),
                pl.BlockSpec((1, Npad), lambda i: (0, 0)),
            ],
            out_specs=pl.BlockSpec((tm, Npad), lambda i: (i, 0)),
        ),
        compiler_params=pltpu.CompilerParams(
            dimension_semantics=("parallel",)),
    )(a, a, wm, bm)

    # depth-to-space (pixel shuffle) + drop the pad row/col and pad lanes
    y = out[:M, :4 * Cout].reshape(B, Hp, Wp, 2, 2, Cout)[:, :H, :W]
    y = y.transpose(0, 1, 3, 2, 4, 5).reshape(B, 2 * H, 2 * W, Cout)
    return y


# ----------------------------------------------------------------------------
# Decoder forward (matches torch Decoder.forward)
# ----------------------------------------------------------------------------
def decoder_forward(params, z):
    p = params
    B = z.shape[0]

    # fc2's output features are permuted from torch's (c, h, w) flatten order to
    # (h, w, c) so the reshape after the FC stack is directly NHWC (no transpose).
    w2p = p["fc2_w"].reshape(64, 8, 8, 128).transpose(1, 2, 0, 3).reshape(64 * 8 * 8, 128)
    b2p = p["fc2_b"].reshape(64, 8, 8).transpose(1, 2, 0).reshape(64 * 8 * 8)

    Bp = _round_up(B, 8)
    z_p = z if Bp == B else jnp.pad(z, ((0, Bp - B), (0, 0)))
    h = pl.pallas_call(
        _fc_fused_kernel,
        out_shape=jax.ShapeDtypeStruct((Bp, 64 * 8 * 8), jnp.float32),
    )(z_p.astype(jnp.bfloat16),
      p["fc1_w"].T.astype(jnp.bfloat16),
      p["fc1_b"].reshape(1, -1).astype(jnp.float32),
      w2p.T.astype(jnp.bfloat16),
      b2p.reshape(1, -1).astype(jnp.float32))

    x = h[:B].reshape(B, 8, 8, 64)                                # NHWC
    x = deconv2x_subpixel(x, p["d1_w"], p["d1_b"], "relu")        # [B,16,16,32]
    x = deconv2x_subpixel(x, p["d2_w"], p["d2_b"], "relu")        # [B,32,32,16]
    x = deconv2x_subpixel(x, p["d3_w"], p["d3_b"], "sigmoid")     # [B,64,64,Cout]
    return x.transpose(0, 3, 1, 2)                                # NCHW at boundary


# ----------------------------------------------------------------------------
# Pure-JAX f32 reference (independent lowering of ConvTranspose2d)
# ----------------------------------------------------------------------------
def _ref_deconv(x_nchw, w, b):
    # transposed conv == lhs-dilated conv with flipped kernel, pad (k-1-p, k-1-p+op)
    w_eq = jnp.transpose(w, (1, 0, 2, 3))[:, :, ::-1, ::-1]
    y = jax.lax.conv_general_dilated(
        x_nchw, w_eq, window_strides=(1, 1), padding=((1, 2), (1, 2)),
        lhs_dilation=(2, 2), dimension_numbers=("NCHW", "OIHW", "NCHW"))
    return y + b.reshape(1, -1, 1, 1)


def decoder_reference(params, z):
    p = params
    h = jax.nn.relu(z @ p["fc1_w"].T + p["fc1_b"])
    h = jax.nn.relu(h @ p["fc2_w"].T + p["fc2_b"])
    x = h.reshape(z.shape[0], 64, 8, 8)
    x = jax.nn.relu(_ref_deconv(x, p["d1_w"], p["d1_b"]))
    x = jax.nn.relu(_ref_deconv(x, p["d2_w"], p["d2_b"]))
    return jax.nn.sigmoid(_ref_deconv(x, p["d3_w"], p["d3_b"]))


# ----------------------------------------------------------------------------
# Demo
# ----------------------------------------------------------------------------
if __name__ == "__main__":
    B, latent_dim, out_ch = 2, 8, 3

    key = jax.random.PRNGKey(0)
    ks = jax.random.split(key, 12)

    def init(k, shape, scale=0.05):
        return jax.random.normal(k, shape, jnp.float32) * scale

    params = {
        # torch layouts: Linear [out, in]; ConvTranspose2d [Cin, Cout, kH, kW]
        "fc1_w": init(ks[0], (128, latent_dim)),  "fc1_b": init(ks[1], (128,)),
        "fc2_w": init(ks[2], (64 * 8 * 8, 128)),  "fc2_b": init(ks[3], (64 * 8 * 8,)),
        "d1_w": init(ks[4], (64, 32, 3, 3)),      "d1_b": init(ks[5], (32,)),
        "d2_w": init(ks[6], (32, 16, 3, 3)),      "d2_b": init(ks[7], (16,)),
        "d3_w": init(ks[8], (16, out_ch, 3, 3)),  "d3_b": init(ks[9], (out_ch,)),
    }
    z = jax.random.normal(ks[10], (B, latent_dim), jnp.float32)

    y = jax.jit(decoder_forward)(params, z)
    jax.block_until_ready(y)

    assert y.shape == (B, out_ch, 64, 64)
    assert bool(jnp.all((y >= 0.0) & (y <= 1.0)))

    # bf16 MXU inputs with f32 accumulation -> loose tolerance vs f32 reference
    y_ref = decoder_reference(params, z)
    err = float(jnp.max(jnp.abs(y - y_ref)))
    assert err < 3e-2, f"max abs err vs f32 reference: {err}"

    print("KERNEL_OK")
</pallas_src>

<mosaic_0001>
module attributes {stable_mosaic.version = 11 : i64} {
  func.func @_fc_fused_kernel(%arg0: memref<8x8xbf16, #tpu.memory_space<vmem>>, %arg1: memref<8x128xbf16, #tpu.memory_space<vmem>>, %arg2: memref<1x128xf32, #tpu.memory_space<vmem>>, %arg3: memref<128x4096xbf16, #tpu.memory_space<vmem>>, %arg4: memref<1x4096xf32, #tpu.memory_space<vmem>>, %arg5: memref<8x4096xf32, #tpu.memory_space<vmem>>) attributes {dimension_semantics = [], scalar_prefetch = 0 : i64, scratch_operands = 0 : i64, tpu.core_type = #tpu.core_type<tc>} {
    %c0 = arith.constant 0 : index
    %c0_0 = arith.constant 0 : index
    %0 = vector.load %arg0[%c0, %c0_0] : memref<8x8xbf16, #tpu.memory_space<vmem>>, vector<8x8xbf16>
    %c0_1 = arith.constant 0 : index
    %c0_2 = arith.constant 0 : index
    %1 = vector.load %arg1[%c0_1, %c0_2] : memref<8x128xbf16, #tpu.memory_space<vmem>>, vector<8x128xbf16>
    %cst = arith.constant dense<0.000000e+00> : vector<8x128xf32>
    %2 = tpu.matmul %0, %1, %cst {dimension_numbers = #tpu.dot_dimension_numbers<[1], [0], [0], [1], [0, 0, 1, 1], [], []>} : vector<8x8xbf16>, vector<8x128xbf16>, vector<8x128xf32> -> vector<8x128xf32>
    %c0_3 = arith.constant 0 : index
    %c0_4 = arith.constant 0 : index
    %3 = vector.load %arg2[%c0_3, %c0_4] : memref<1x128xf32, #tpu.memory_space<vmem>>, vector<1x128xf32>
    %4 = vector.broadcast %3 : vector<1x128xf32> to vector<8x128xf32>
    %5 = arith.addf %2, %4 : vector<8x128xf32>
    %cst_5 = arith.constant 0.000000e+00 : f32
    %6 = vector.broadcast %cst_5 : f32 to vector<8x128xf32>
    %7 = arith.maximumf %5, %6 : vector<8x128xf32>
    %8 = arith.truncf %7 : vector<8x128xf32> to vector<8x128xbf16>
    %c0_6 = arith.constant 0 : index
    %c0_7 = arith.constant 0 : index
    %9 = vector.load %arg3[%c0_6, %c0_7] : memref<128x4096xbf16, #tpu.memory_space<vmem>>, vector<128x4096xbf16>
    %cst_8 = arith.constant dense<0.000000e+00> : vector<8x4096xf32>
    %10 = tpu.matmul %8, %9, %cst_8 {dimension_numbers = #tpu.dot_dimension_numbers<[1], [0], [0], [1], [0, 0, 1, 1], [], []>} : vector<8x128xbf16>, vector<128x4096xbf16>, vector<8x4096xf32> -> vector<8x4096xf32>
    %c0_9 = arith.constant 0 : index
    %c0_10 = arith.constant 0 : index
    %11 = vector.load %arg4[%c0_9, %c0_10] : memref<1x4096xf32, #tpu.memory_space<vmem>>, vector<1x4096xf32>
    %12 = vector.broadcast %11 : vector<1x4096xf32> to vector<8x4096xf32>
    %13 = arith.addf %10, %12 : vector<8x4096xf32>
    %cst_11 = arith.constant 0.000000e+00 : f32
    %14 = vector.broadcast %cst_11 : f32 to vector<8x4096xf32>
    %15 = arith.maximumf %13, %14 : vector<8x4096xf32>
    %c0_12 = arith.constant 0 : index
    %c0_13 = arith.constant 0 : index
    %16 = vector.load %arg5[%c0_12, %c0_13] : memref<8x4096xf32, #tpu.memory_space<vmem>>, vector<8x4096xf32>
    tpu.vector_store %arg5[%c0_12, %c0_13], %15 {strides = array<i32>} : memref<8x4096xf32, #tpu.memory_space<vmem>>, vector<8x4096xf32>,
    return
  }
}

module attributes {stable_mosaic.version = 11 : i64} {
  func.func @_deconv_subpixel_kernel(%arg0: i32, %arg1: memref<96x64xf32, #tpu.memory_space<vmem>>, %arg2: memref<96x64xf32, #tpu.memory_space<vmem>>, %arg3: memref<4x64x128xbf16, #tpu.memory_space<vmem>>, %arg4: memref<1x128xf32, #tpu.memory_space<vmem>>, %arg5: memref<96x128xf32, #tpu.memory_space<vmem>>) attributes {dimension_semantics = [#tpu.dimension_semantics<parallel>], iteration_bounds = array<i64: 2>, scalar_prefetch = 0 : i64, scratch_operands = 0 : i64, tpu.core_type = #tpu.core_type<tc>, window_params = [{transform_indices = @transform_0, window_bounds = array<i64: 96, 64>}, {transform_indices = @transform_1, window_bounds = array<i64: 96, 64>}, {pipeline_mode = #tpu.pipeline_mode<synchronous>, transform_indices = @transform_2, window_bounds = array<i64: 4, 64, 128>}, {pipeline_mode = #tpu.pipeline_mode<synchronous>, transform_indices = @transform_3, window_bounds = array<i64: 1, 128>}, {transform_indices = @transform_4, window_bounds = array<i64: 96, 128>}]} {
    %c0 = arith.constant 0 : index
    %c0_0 = arith.constant 0 : index
    %0 = vector.load %arg1[%c0, %c0_0] : memref<96x64xf32, #tpu.memory_space<vmem>>, vector<96x64xf32>
    %c0_1 = arith.constant 0 : index
    %c0_2 = arith.constant 0 : index
    %1 = vector.load %arg2[%c0_1, %c0_2] : memref<96x64xf32, #tpu.memory_space<vmem>>, vector<96x64xf32>
    %2 = tpu.concatenate %0, %1 in 0 : vector<96x64xf32>, vector<96x64xf32> -> vector<192x64xf32>
    %cst = arith.constant 0.000000e+00 : f32
    %3 = vector.broadcast %cst : f32 to vector<96x128xf32>
    %4 = vector.extract_strided_slice %2 {offsets = [0, 0], sizes = [96, 64], strides = [1, 1]} : vector<192x64xf32> to vector<96x64xf32>
    %5 = arith.truncf %4 : vector<96x64xf32> to vector<96x64xbf16>
    %c0_3 = arith.constant 0 : index
    %c0_4 = arith.constant 0 : index
    %c0_5 = arith.constant 0 : index
    %6 = vector.load %arg3[%c0_3, %c0_4, %c0_5] : memref<4x64x128xbf16, #tpu.memory_space<vmem>>, vector<1x64x128xbf16>
    %7 = vector.shape_cast %6 : vector<1x64x128xbf16> to vector<64x128xbf16>
    %cst_6 = arith.constant dense<0.000000e+00> : vector<96x128xf32>
    %8 = tpu.matmul %5, %7, %cst_6 {dimension_numbers = #tpu.dot_dimension_numbers<[1], [0], [0], [1], [0, 0, 1, 1], [], []>} : vector<96x64xbf16>, vector<64x128xbf16>, vector<96x128xf32> -> vector<96x128xf32>
    %9 = arith.addf %3, %8 : vector<96x128xf32>
    %10 = vector.extract_strided_slice %2 {offsets = [1, 0], sizes = [96, 64], strides = [1, 1]} : vector<192x64xf32> to vector<96x64xf32>
    %11 = arith.truncf %10 : vector<96x64xf32> to vector<96x64xbf16>
    %c1 = arith.constant 1 : index
    %c0_7 = arith.constant 0 : index
    %c0_8 = arith.constant 0 : index
    %12 = vector.load %arg3[%c1, %c0_7, %c0_8] : memref<4x64x128xbf16, #tpu.memory_space<vmem>>, vector<1x64x128xbf16>
    %13 = vector.shape_cast %12 : vector<1x64x128xbf16> to vector<64x128xbf16>
    %cst_9 = arith.constant dense<0.000000e+00> : vector<96x128xf32>
    %14 = tpu.matmul %11, %13, %cst_9 {dimension_numbers = #tpu.dot_dimension_numbers<[1], [0], [0], [1], [0, 0, 1, 1], [], []>} : vector<96x64xbf16>, vector<64x128xbf16>, vector<96x128xf32> -> vector<96x128xf32>
    %15 = arith.addf %9, %14 : vector<96x128xf32>
    %16 = vector.extract_strided_slice %2 {offsets = [9, 0], sizes = [96, 64], strides = [1, 1]} : vector<192x64xf32> to vector<96x64xf32>
    %17 = arith.truncf %16 : vector<96x64xf32> to vector<96x64xbf16>
    %c2 = arith.constant 2 : index
    %c0_10 = arith.constant 0 : index
    %c0_11 = arith.constant 0 : index
    %18 = vector.load %arg3[%c2, %c0_10, %c0_11] : memref<4x64x128xbf16, #tpu.memory_space<vmem>>, vector<1x64x128xbf16>
    %19 = vector.shape_cast %18 : vector<1x64x128xbf16> to vector<64x128xbf16>
    %cst_12 = arith.constant dense<0.000000e+00> : vector<96x128xf32>
    %20 = tpu.matmul %17, %19, %cst_12 {dimension_numbers = #tpu.dot_dimension_numbers<[1], [0], [0], [1], [0, 0, 1, 1], [], []>} : vector<96x64xbf16>, vector<64x128xbf16>, vector<96x128xf32> -> vector<96x128xf32>
    %21 = arith.addf %15, %20 : vector<96x128xf32>
    %22 = vector.extract_strided_slice %2 {offsets = [10, 0], sizes = [96, 64], strides = [1, 1]} : vector<192x64xf32> to vector<96x64xf32>
    %23 = arith.truncf %22 : vector<96x64xf32> to vector<96x64xbf16>
    %c3 = arith.constant 3 : index
    %c0_13 = arith.constant 0 : index
    %c0_14 = arith.constant 0 : index
    %24 = vector.load %arg3[%c3, %c0_13, %c0_14] : memref<4x64x128xbf16, #tpu.memory_space<vmem>>, vector<1x64x128xbf16>
    %25 = vector.shape_cast %24 : vector<1x64x128xbf16> to vector<64x128xbf16>
    %cst_15 = arith.constant dense<0.000000e+00> : vector<96x128xf32>
    %26 = tpu.matmul %23, %25, %cst_15 {dimension_numbers = #tpu.dot_dimension_numbers<[1], [0], [0], [1], [0, 0, 1, 1], [], []>} : vector<96x64xbf16>, vector<64x128xbf16>, vector<96x128xf32> -> vector<96x128xf32>
    %27 = arith.addf %21, %26 : vector<96x128xf32>
    %c0_16 = arith.constant 0 : index
    %c0_17 = arith.constant 0 : index
    %28 = vector.load %arg4[%c0_16, %c0_17] : memref<1x128xf32, #tpu.memory_space<vmem>>, vector<1x128xf32>
    %29 = vector.broadcast %28 : vector<1x128xf32> to vector<96x128xf32>
    %30 = arith.addf %27, %29 : vector<96x128xf32>
    %cst_18 = arith.constant 0.000000e+00 : f32
    %31 = vector.broadcast %cst_18 : f32 to vector<96x128xf32>
    %32 = arith.maximumf %30, %31 : vector<96x128xf32>
    %c0_19 = arith.constant 0 : index
    %c0_20 = arith.constant 0 : index
    %33 = vector.load %arg5[%c0_19, %c0_20] : memref<96x128xf32, #tpu.memory_space<vmem>>, vector<96x128xf32>
    tpu.vector_store %arg5[%c0_19, %c0_20], %32 {strides = array<i32>} : memref<96x128xf32, #tpu.memory_space<vmem>>, vector<96x128xf32>,
    return
  }
  func.func @transform_0(%arg0: i32) -> (i32, i32) {
    %c0_i32 = arith.constant 0 : i32
    %c0_i32_0 = arith.constant 0 : i32
    return %arg0, %c0_i32 : i32, i32
  }
  func.func @transform_1(%arg0: i32) -> (i32, i32) {
    %c1_i32 = arith.constant 1 : i32
    %0 = arith.addi %arg0, %c1_i32 : i32
    %c0_i32 = arith.constant 0 : i32
    %c0_i32_0 = arith.constant 0 : i32
    return %0, %c0_i32 : i32, i32
  }
  func.func @transform_2(%arg0: i32) -> (i32, i32, i32) {
    %c0_i32 = arith.constant 0 : i32
    %c0_i32_0 = arith.constant 0 : i32
    %c0_i32_1 = arith.constant 0 : i32
    %c0_i32_2 = arith.constant 0 : i32
    return %c0_i32, %c0_i32_0, %c0_i32_1 : i32, i32, i32
  }
  func.func @transform_3(%arg0: i32) -> (i32, i32) {
    %c0_i32 = arith.constant 0 : i32
    %c0_i32_0 = arith.constant 0 : i32
    %c0_i32_1 = arith.constant 0 : i32
    return %c0_i32, %c0_i32_0 : i32, i32
  }
  func.func @transform_4(%arg0: i32) -> (i32, i32) {
    %c0_i32 = arith.constant 0 : i32
    %c0_i32_0 = arith.constant 0 : i32
    return %arg0, %c0_i32 : i32, i32
  }
}

module attributes {stable_mosaic.version = 11 : i64} {
  func.func @_deconv_subpixel_kernel(%arg0: i32, %arg1: memref<304x32xf32, #tpu.memory_space<vmem>>, %arg2: memref<304x32xf32, #tpu.memory_space<vmem>>, %arg3: memref<4x32x128xbf16, #tpu.memory_space<vmem>>, %arg4: memref<1x128xf32, #tpu.memory_space<vmem>>, %arg5: memref<304x128xf32, #tpu.memory_space<vmem>>) attributes {dimension_semantics = [#tpu.dimension_semantics<parallel>], iteration_bounds = array<i64: 2>, scalar_prefetch = 0 : i64, scratch_operands = 0 : i64, tpu.core_type = #tpu.core_type<tc>, window_params = [{transform_indices = @transform_0, window_bounds = array<i64: 304, 32>}, {transform_indices = @transform_1, window_bounds = array<i64: 304, 32>}, {pipeline_mode = #tpu.pipeline_mode<synchronous>, transform_indices = @transform_2, window_bounds = array<i64: 4, 32, 128>}, {pipeline_mode = #tpu.pipeline_mode<synchronous>, transform_indices = @transform_3, window_bounds = array<i64: 1, 128>}, {transform_indices = @transform_4, window_bounds = array<i64: 304, 128>}]} {
    %c0 = arith.constant 0 : index
    %c0_0 = arith.constant 0 : index
    %0 = vector.load %arg1[%c0, %c0_0] : memref<304x32xf32, #tpu.memory_space<vmem>>, vector<304x32xf32>
    %c0_1 = arith.constant 0 : index
    %c0_2 = arith.constant 0 : index
    %1 = vector.load %arg2[%c0_1, %c0_2] : memref<304x32xf32, #tpu.memory_space<vmem>>, vector<304x32xf32>
    %2 = tpu.concatenate %0, %1 in 0 : vector<304x32xf32>, vector<304x32xf32> -> vector<608x32xf32>
    %cst = arith.constant 0.000000e+00 : f32
    %3 = vector.broadcast %cst : f32 to vector<304x128xf32>
    %4 = vector.extract_strided_slice %2 {offsets = [0, 0], sizes = [304, 32], strides = [1, 1]} : vector<608x32xf32> to vector<304x32xf32>
    %5 = arith.truncf %4 : vector<304x32xf32> to vector<304x32xbf16>
    %c0_3 = arith.constant 0 : index
    %c0_4 = arith.constant 0 : index
    %c0_5 = arith.constant 0 : index
    %6 = vector.load %arg3[%c0_3, %c0_4, %c0_5] : memref<4x32x128xbf16, #tpu.memory_space<vmem>>, vector<1x32x128xbf16>
    %7 = vector.shape_cast %6 : vector<1x32x128xbf16> to vector<32x128xbf16>
    %cst_6 = arith.constant dense<0.000000e+00> : vector<304x128xf32>
    %8 = tpu.matmul %5, %7, %cst_6 {dimension_numbers = #tpu.dot_dimension_numbers<[1], [0], [0], [1], [0, 0, 1, 1], [], []>} : vector<304x32xbf16>, vector<32x128xbf16>, vector<304x128xf32> -> vector<304x128xf32>
    %9 = arith.addf %3, %8 : vector<304x128xf32>
    %10 = vector.extract_strided_slice %2 {offsets = [1, 0], sizes = [304, 32], strides = [1, 1]} : vector<608x32xf32> to vector<304x32xf32>
    %11 = arith.truncf %10 : vector<304x32xf32> to vector<304x32xbf16>
    %c1 = arith.constant 1 : index
    %c0_7 = arith.constant 0 : index
    %c0_8 = arith.constant 0 : index
    %12 = vector.load %arg3[%c1, %c0_7, %c0_8] : memref<4x32x128xbf16, #tpu.memory_space<vmem>>, vector<1x32x128xbf16>
    %13 = vector.shape_cast %12 : vector<1x32x128xbf16> to vector<32x128xbf16>
    %cst_9 = arith.constant dense<0.000000e+00> : vector<304x128xf32>
    %14 = tpu.matmul %11, %13, %cst_9 {dimension_numbers = #tpu.dot_dimension_numbers<[1], [0], [0], [1], [0, 0, 1, 1], [], []>} : vector<304x32xbf16>, vector<32x128xbf16>, vector<304x128xf32> -> vector<304x128xf32>
    %15 = arith.addf %9, %14 : vector<304x128xf32>
    %16 = vector.extract_strided_slice %2 {offsets = [17, 0], sizes = [304, 32], strides = [1, 1]} : vector<608x32xf32> to vector<304x32xf32>
    %17 = arith.truncf %16 : vector<304x32xf32> to vector<304x32xbf16>
    %c2 = arith.constant 2 : index
    %c0_10 = arith.constant 0 : index
    %c0_11 = arith.constant 0 : index
    %18 = vector.load %arg3[%c2, %c0_10, %c0_11] : memref<4x32x128xbf16, #tpu.memory_space<vmem>>, vector<1x32x128xbf16>
    %19 = vector.shape_cast %18 : vector<1x32x128xbf16> to vector<32x128xbf16>
    %cst_12 = arith.constant dense<0.000000e+00> : vector<304x128xf32>
    %20 = tpu.matmul %17, %19, %cst_12 {dimension_numbers = #tpu.dot_dimension_numbers<[1], [0], [0], [1], [0, 0, 1, 1], [], []>} : vector<304x32xbf16>, vector<32x128xbf16>, vector<304x128xf32> -> vector<304x128xf32>
    %21 = arith.addf %15, %20 : vector<304x128xf32>
    %22 = vector.extract_strided_slice %2 {offsets = [18, 0], sizes = [304, 32], strides = [1, 1]} : vector<608x32xf32> to vector<304x32xf32>
    %23 = arith.truncf %22 : vector<304x32xf32> to vector<304x32xbf16>
    %c3 = arith.constant 3 : index
    %c0_13 = arith.constant 0 : index
    %c0_14 = arith.constant 0 : index
    %24 = vector.load %arg3[%c3, %c0_13, %c0_14] : memref<4x32x128xbf16, #tpu.memory_space<vmem>>, vector<1x32x128xbf16>
    %25 = vector.shape_cast %24 : vector<1x32x128xbf16> to vector<32x128xbf16>
    %cst_15 = arith.constant dense<0.000000e+00> : vector<304x128xf32>
    %26 = tpu.matmul %23, %25, %cst_15 {dimension_numbers = #tpu.dot_dimension_numbers<[1], [0], [0], [1], [0, 0, 1, 1], [], []>} : vector<304x32xbf16>, vector<32x128xbf16>, vector<304x128xf32> -> vector<304x128xf32>
    %27 = arith.addf %21, %26 : vector<304x128xf32>
    %c0_16 = arith.constant 0 : index
    %c0_17 = arith.constant 0 : index
    %28 = vector.load %arg4[%c0_16, %c0_17] : memref<1x128xf32, #tpu.memory_space<vmem>>, vector<1x128xf32>
    %29 = vector.broadcast %28 : vector<1x128xf32> to vector<304x128xf32>
    %30 = arith.addf %27, %29 : vector<304x128xf32>
    %cst_18 = arith.constant 0.000000e+00 : f32
    %31 = vector.broadcast %cst_18 : f32 to vector<304x128xf32>
    %32 = arith.maximumf %30, %31 : vector<304x128xf32>
    %c0_19 = arith.constant 0 : index
    %c0_20 = arith.constant 0 : index
    %33 = vector.load %arg5[%c0_19, %c0_20] : memref<304x128xf32, #tpu.memory_space<vmem>>, vector<304x128xf32>
    tpu.vector_store %arg5[%c0_19, %c0_20], %32 {strides = array<i32>} : memref<304x128xf32, #tpu.memory_space<vmem>>, vector<304x128xf32>,
    return
  }
  func.func @transform_0(%arg0: i32) -> (i32, i32) {
    %c0_i32 = arith.constant 0 : i32
    %c0_i32_0 = arith.constant 0 : i32
    return %arg0, %c0_i32 : i32, i32
  }
  func.func @transform_1(%arg0: i32) -> (i32, i32) {
    %c1_i32 = arith.constant 1 : i32
    %0 = arith.addi %arg0, %c1_i32 : i32
    %c0_i32 = arith.constant 0 : i32
    %c0_i32_0 = arith.constant 0 : i32
    return %0, %c0_i32 : i32, i32
  }
  func.func @transform_2(%arg0: i32) -> (i32, i32, i32) {
    %c0_i32 = arith.constant 0 : i32
    %c0_i32_0 = arith.constant 0 : i32
    %c0_i32_1 = arith.constant 0 : i32
    %c0_i32_2 = arith.constant 0 : i32
    return %c0_i32, %c0_i32_0, %c0_i32_1 : i32, i32, i32
  }
  func.func @transform_3(%arg0: i32) -> (i32, i32) {
    %c0_i32 = arith.constant 0 : i32
    %c0_i32_0 = arith.constant 0 : i32
    %c0_i32_1 = arith.constant 0 : i32
    return %c0_i32, %c0_i32_0 : i32, i32
  }
  func.func @transform_4(%arg0: i32) -> (i32, i32) {
    %c0_i32 = arith.constant 0 : i32
    %c0_i32_0 = arith.constant 0 : i32
    return %arg0, %c0_i32 : i32, i32
  }
}

module attributes {stable_mosaic.version = 11 : i64} {
  func.func @_deconv_subpixel_kernel(%arg0: i32, %arg1: memref<1104x16xf32, #tpu.memory_space<vmem>>, %arg2: memref<1104x16xf32, #tpu.memory_space<vmem>>, %arg3: memref<4x16x128xbf16, #tpu.memory_space<vmem>>, %arg4: memref<1x128xf32, #tpu.memory_space<vmem>>, %arg5: memref<1104x128xf32, #tpu.memory_space<vmem>>) attributes {dimension_semantics = [#tpu.dimension_semantics<parallel>], iteration_bounds = array<i64: 2>, scalar_prefetch = 0 : i64, scratch_operands = 0 : i64, tpu.core_type = #tpu.core_type<tc>, window_params = [{transform_indices = @transform_0, window_bounds = array<i64: 1104, 16>}, {transform_indices = @transform_1, window_bounds = array<i64: 1104, 16>}, {pipeline_mode = #tpu.pipeline_mode<synchronous>, transform_indices = @transform_2, window_bounds = array<i64: 4, 16, 128>}, {pipeline_mode = #tpu.pipeline_mode<synchronous>, transform_indices = @transform_3, window_bounds = array<i64: 1, 128>}, {transform_indices = @transform_4, window_bounds = array<i64: 1104, 128>}]} {
    %c0 = arith.constant 0 : index
    %c0_0 = arith.constant 0 : index
    %0 = vector.load %arg1[%c0, %c0_0] : memref<1104x16xf32, #tpu.memory_space<vmem>>, vector<1104x16xf32>
    %c0_1 = arith.constant 0 : index
    %c0_2 = arith.constant 0 : index
    %1 = vector.load %arg2[%c0_1, %c0_2] : memref<1104x16xf32, #tpu.memory_space<vmem>>, vector<1104x16xf32>
    %2 = tpu.concatenate %0, %1 in 0 : vector<1104x16xf32>, vector<1104x16xf32> -> vector<2208x16xf32>
    %cst = arith.constant 0.000000e+00 : f32
    %3 = vector.broadcast %cst : f32 to vector<1104x128xf32>
    %4 = vector.extract_strided_slice %2 {offsets = [0, 0], sizes = [1104, 16], strides = [1, 1]} : vector<2208x16xf32> to vector<1104x16xf32>
    %5 = arith.truncf %4 : vector<1104x16xf32> to vector<1104x16xbf16>
    %c0_3 = arith.constant 0 : index
    %c0_4 = arith.constant 0 : index
    %c0_5 = arith.constant 0 : index
    %6 = vector.load %arg3[%c0_3, %c0_4, %c0_5] : memref<4x16x128xbf16, #tpu.memory_space<vmem>>, vector<1x16x128xbf16>
    %7 = vector.shape_cast %6 : vector<1x16x128xbf16> to vector<16x128xbf16>
    %cst_6 = arith.constant dense<0.000000e+00> : vector<1104x128xf32>
    %8 = tpu.matmul %5, %7, %cst_6 {dimension_numbers = #tpu.dot_dimension_numbers<[1], [0], [0], [1], [0, 0, 1, 1], [], []>} : vector<1104x16xbf16>, vector<16x128xbf16>, vector<1104x128xf32> -> vector<1104x128xf32>
    %9 = arith.addf %3, %8 : vector<1104x128xf32>
    %10 = vector.extract_strided_slice %2 {offsets = [1, 0], sizes = [1104, 16], strides = [1, 1]} : vector<2208x16xf32> to vector<1104x16xf32>
    %11 = arith.truncf %10 : vector<1104x16xf32> to vector<1104x16xbf16>
    %c1 = arith.constant 1 : index
    %c0_7 = arith.constant 0 : index
    %c0_8 = arith.constant 0 : index
    %12 = vector.load %arg3[%c1, %c0_7, %c0_8] : memref<4x16x128xbf16, #tpu.memory_space<vmem>>, vector<1x16x128xbf16>
    %13 = vector.shape_cast %12 : vector<1x16x128xbf16> to vector<16x128xbf16>
    %cst_9 = arith.constant dense<0.000000e+00> : vector<1104x128xf32>
    %14 = tpu.matmul %11, %13, %cst_9 {dimension_numbers = #tpu.dot_dimension_numbers<[1], [0], [0], [1], [0, 0, 1, 1], [], []>} : vector<1104x16xbf16>, vector<16x128xbf16>, vector<1104x128xf32> -> vector<1104x128xf32>
    %15 = arith.addf %9, %14 : vector<1104x128xf32>
    %16 = vector.extract_strided_slice %2 {offsets = [33, 0], sizes = [1104, 16], strides = [1, 1]} : vector<2208x16xf32> to vector<1104x16xf32>
    %17 = arith.truncf %16 : vector<1104x16xf32> to vector<1104x16xbf16>
    %c2 = arith.constant 2 : index
    %c0_10 = arith.constant 0 : index
    %c0_11 = arith.constant 0 : index
    %18 = vector.load %arg3[%c2, %c0_10, %c0_11] : memref<4x16x128xbf16, #tpu.memory_space<vmem>>, vector<1x16x128xbf16>
    %19 = vector.shape_cast %18 : vector<1x16x128xbf16> to vector<16x128xbf16>
    %cst_12 = arith.constant dense<0.000000e+00> : vector<1104x128xf32>
    %20 = tpu.matmul %17, %19, %cst_12 {dimension_numbers = #tpu.dot_dimension_numbers<[1], [0], [0], [1], [0, 0, 1, 1], [], []>} : vector<1104x16xbf16>, vector<16x128xbf16>, vector<1104x128xf32> -> vector<1104x128xf32>
    %21 = arith.addf %15, %20 : vector<1104x128xf32>
    %22 = vector.extract_strided_slice %2 {offsets = [34, 0], sizes = [1104, 16], strides = [1, 1]} : vector<2208x16xf32> to vector<1104x16xf32>
    %23 = arith.truncf %22 : vector<1104x16xf32> to vector<1104x16xbf16>
    %c3 = arith.constant 3 : index
    %c0_13 = arith.constant 0 : index
    %c0_14 = arith.constant 0 : index
    %24 = vector.load %arg3[%c3, %c0_13, %c0_14] : memref<4x16x128xbf16, #tpu.memory_space<vmem>>, vector<1x16x128xbf16>
    %25 = vector.shape_cast %24 : vector<1x16x128xbf16> to vector<16x128xbf16>
    %cst_15 = arith.constant dense<0.000000e+00> : vector<1104x128xf32>
    %26 = tpu.matmul %23, %25, %cst_15 {dimension_numbers = #tpu.dot_dimension_numbers<[1], [0], [0], [1], [0, 0, 1, 1], [], []>} : vector<1104x16xbf16>, vector<16x128xbf16>, vector<1104x128xf32> -> vector<1104x128xf32>
    %27 = arith.addf %21, %26 : vector<1104x128xf32>
    %c0_16 = arith.constant 0 : index
    %c0_17 = arith.constant 0 : index
    %28 = vector.load %arg4[%c0_16, %c0_17] : memref<1x128xf32, #tpu.memory_space<vmem>>, vector<1x128xf32>
    %29 = vector.broadcast %28 : vector<1x128xf32> to vector<1104x128xf32>
    %30 = arith.addf %27, %29 : vector<1104x128xf32>
    %31 = arith.negf %30 : vector<1104x128xf32>
    %32 = math.exp %31 : vector<1104x128xf32>
    %cst_18 = arith.constant 1.000000e+00 : f32
    %33 = vector.broadcast %cst_18 : f32 to vector<1104x128xf32>
    %34 = arith.addf %33, %32 : vector<1104x128xf32>
    %35 = arith.divf %33, %34 : vector<1104x128xf32>
    %c0_19 = arith.constant 0 : index
    %c0_20 = arith.constant 0 : index
    %36 = vector.load %arg5[%c0_19, %c0_20] : memref<1104x128xf32, #tpu.memory_space<vmem>>, vector<1104x128xf32>
    tpu.vector_store %arg5[%c0_19, %c0_20], %35 {strides = array<i32>} : memref<1104x128xf32, #tpu.memory_space<vmem>>, vector<1104x128xf32>,
    return
  }
  func.func @transform_0(%arg0: i32) -> (i32, i32) {
    %c0_i32 = arith.constant 0 : i32
    %c0_i32_0 = arith.constant 0 : i32
    return %arg0, %c0_i32 : i32, i32
  }
  func.func @transform_1(%arg0: i32) -> (i32, i32) {
    %c1_i32 = arith.constant 1 : i32
    %0 = arith.addi %arg0, %c1_i32 : i32
    %c0_i32 = arith.constant 0 : i32
    %c0_i32_0 = arith.constant 0 : i32
    return %0, %c0_i32 : i32, i32
  }
  func.func @transform_2(%arg0: i32) -> (i32, i32, i32) {
    %c0_i32 = arith.constant 0 : i32
    %c0_i32_0 = arith.constant 0 : i32
    %c0_i32_1 = arith.constant 0 : i32
    %c0_i32_2 = arith.constant 0 : i32
    return %c0_i32, %c0_i32_0, %c0_i32_1 : i32, i32, i32
  }
  func.func @transform_3(%arg0: i32) -> (i32, i32) {
    %c0_i32 = arith.constant 0 : i32
    %c0_i32_0 = arith.constant 0 : i32
    %c0_i32_1 = arith.constant 0 : i32
    return %c0_i32, %c0_i32_0 : i32, i32
  }
  func.func @transform_4(%arg0: i32) -> (i32, i32) {
    %c0_i32 = arith.constant 0 : i32
    %c0_i32_0 = arith.constant 0 : i32
    return %arg0, %c0_i32 : i32, i32
  }
}

</mosaic_0001>

<llo_original>
// kernel: tile.18
$region0: #{tile.18}
  #allocation2 [shape = 's32[1]{0}', space=sflag, size = 0x4, scoped, tag = 'scoped memory for tile.18']
  %s0 = inlined_call_operand.hbm [shape: f32[32], index: 0, kind: input, shape index: {}]
  %s1 = inlined_call_operand.vmem [shape: f32[4,32], index: 1, kind: output, shape index: {}]
  $region1: #{tile.18} parent=0
    #allocation0 [shape = 'u8[512]{0}', space=vmem, size = 0x400, scoped, tag = 'operand span for operand 0']
    #allocation1 [shape = 's32[1]{0}', space=sflag, size = 0x4, scoped, tag = 'scoped memory for tile.18']
    %2 = vsyncpa [#allocation1], 0
    // Predicated region
    $region2: #{tile.18} parent=1 // pred_check
      _
    $region3: #{tile.18} parent=1 // pred_check_branch
      %4 = sbr.rel (0) target = $region5
    $region4: #{tile.18} parent=1 // pred_region
      %s6 = ssub.s32 16, 16
      %7 = vsyncadd [#allocation1], %s6
      %s9 = sshll.u32 [#allocation0], 4
      %s10 = int_to_ptr.vmem [resolvable:$true] %s9
      %12 = dma.hbm_to_vmem [thread:$0]  %s0, 16, %s10, [#allocation1]
    $region5: #{tile.18} parent=1 // pred_fallthru
      _
    // Predicated region
    $region6: #{tile.18} parent=1 // pred_check
      _
    $region7: #{tile.18} parent=1 // pred_check_branch
      %14 = sbr.rel (0) target = $region9
    $region8: #{tile.18} parent=1 // pred_region
      %15 = dma.done [#allocation1], 16
    $region9: #{tile.18} parent=1 // pred_fallthru
      _
    %v16 = vld [vmem:[#allocation0] ss:$0 sm:$0xff]
    %17 = vst [vmem:[%s1] sm:$0xf] %v16
    %18 = vsyncpa [#allocation1], 1

// kernel: tile.24
$region0: #{tile.24}
  %s0 = inlined_call_operand.vmem [shape: f32[4,16], index: 0, kind: input, shape index: {}]
  %s1 = inlined_call_operand.vmem [shape: f32[64], index: 1, kind: output, shape index: {}]
  $region1: #{tile.24} parent=0
    #allocation0 [shape = 'u8[4096]{0}', space=vmem, size = 0x1000, scoped, tag = 'scoped mem for output reshape']
    #allocation1 [shape = 'u8[4096]{0}', space=vmem, size = 0x1000, scoped, tag = 'scoped mem for input reshape']
    %s3 = sshllo.u32 0, 4
    %v4 = vld [vmem:[%s0] sm:%s3]
    %5 = vst [vmem:[#allocation1] sm:%s3] %v4
    %v6 = vld [vmem:[#allocation1] sm:$0x1]
    %vm7 = vcmask 130048
    %8 = vst.msk [vmem:[#allocation0] sm:$0x1] %vm7, %v6
    %s9 = scalar_lea.vmem [#allocation1], 3
    %v10 = vld [vmem:[%s9] sm:$0x1]
    %11 = vrot.lane.b32.xlu0 %v10, 48
    %v12 = vpop.permute.xlu0 %11
    %vm13 = vcmask 523648
    %14 = vst.msk [vmem:[#allocation0] sm:$0x1] %vm13, %v12
    %s15 = scalar_lea.vmem [#allocation1], 2
    %v16 = vld [vmem:[%s15] sm:$0x1]
    %17 = vrot.lane.b32.xlu0 %v16, 32
    %v18 = vpop.permute.xlu0 %17
    %vm19 = vcmask 392448
    %20 = vst.msk [vmem:[#allocation0] sm:$0x1] %vm19, %v18
    %s21 = scalar_lea.vmem [#allocation1], 1
    %v22 = vld [vmem:[%s21] sm:$0x1]
    %23 = vrot.lane.b32.xlu0 %v22, 16
    %v24 = vpop.permute.xlu0 %23
    %vm25 = vcmask 261248
    %26 = vst.msk [vmem:[#allocation0] sm:$0x1] %vm25, %v24
    %s28 = sshllo.u32 0, 1
    %v30 = vld [vmem:[#allocation0] sm:%s28]
    %s31 = sshllo.u32 0, 1
    %32 = vst [vmem:[%s1] sm:%s31] %v30

// kernel: tile.23
$region0: #{tile.23}
  #allocation2 [shape = 's32[1]{0}', space=sflag, size = 0x4, scoped, tag = 'scoped memory for tile.23']
  %s0 = inlined_call_operand.hbm [shape: f32[16], index: 0, kind: input, shape index: {}]
  %s1 = inlined_call_operand.vmem [shape: f32[4,16], index: 1, kind: output, shape index: {}]
  $region1: #{tile.23} parent=0
    #allocation0 [shape = 'u8[512]{0}', space=vmem, size = 0x400, scoped, tag = 'operand span for operand 0']
    #allocation1 [shape = 's32[1]{0}', space=sflag, size = 0x4, scoped, tag = 'scoped memory for tile.23']
    %2 = vsyncpa [#allocation1], 0
    // Predicated region
    $region2: #{tile.23} parent=1 // pred_check
      _
    $region3: #{tile.23} parent=1 // pred_check_branch
      %4 = sbr.rel (0) target = $region5
    $region4: #{tile.23} parent=1 // pred_region
      %s6 = ssub.s32 16, 16
      %7 = vsyncadd [#allocation1], %s6
      %s9 = sshll.u32 [#allocation0], 4
      %s10 = int_to_ptr.vmem [resolvable:$true] %s9
      %12 = dma.hbm_to_vmem [thread:$0]  %s0, 16, %s10, [#allocation1]
    $region5: #{tile.23} parent=1 // pred_fallthru
      _
    // Predicated region
    $region6: #{tile.23} parent=1 // pred_check
      _
    $region7: #{tile.23} parent=1 // pred_check_branch
      %14 = sbr.rel (0) target = $region9
    $region8: #{tile.23} parent=1 // pred_region
      %15 = dma.done [#allocation1], 16
    $region9: #{tile.23} parent=1 // pred_fallthru
      _
    %v16 = vld [vmem:[#allocation0] ss:$0 sm:$0xff]
    %17 = vst [vmem:[%s1] sm:$0xf] %v16
    %18 = vsyncpa [#allocation1], 1

// kernel: tile.28
$region0: #{tile.28}
  #allocation2 [shape = 's32[1]{0}', space=sflag, size = 0x4, scoped, tag = 'scoped memory for tile.28']
  %s0 = inlined_call_operand.hbm [shape: f32[3], index: 0, kind: input, shape index: {}]
  %s1 = inlined_call_operand.vmem [shape: f32[4,3], index: 1, kind: output, shape index: {}]
  $region1: #{tile.28} parent=0
    #allocation0 [shape = 'u8[512]{0}', space=vmem, size = 0x400, scoped, tag = 'operand span for operand 0']
    #allocation1 [shape = 's32[1]{0}', space=sflag, size = 0x4, scoped, tag = 'scoped memory for tile.28']
    %2 = vsyncpa [#allocation1], 0
    // Predicated region
    $region2: #{tile.28} parent=1 // pred_check
      _
    $region3: #{tile.28} parent=1 // pred_check_branch
      %4 = sbr.rel (0) target = $region5
    $region4: #{tile.28} parent=1 // pred_region
      %s6 = ssub.s32 16, 16
      %7 = vsyncadd [#allocation1], %s6
      %s9 = sshll.u32 [#allocation0], 4
      %s10 = int_to_ptr.vmem [resolvable:$true] %s9
      %12 = dma.hbm_to_vmem [thread:$0]  %s0, 16, %s10, [#allocation1]
    $region5: #{tile.28} parent=1 // pred_fallthru
      _
    // Predicated region
    $region6: #{tile.28} parent=1 // pred_check
      _
    $region7: #{tile.28} parent=1 // pred_check_branch
      %14 = sbr.rel (0) target = $region9
    $region8: #{tile.28} parent=1 // pred_region
      %15 = dma.done [#allocation1], 16
    $region9: #{tile.28} parent=1 // pred_fallthru
      _
    %v16 = vld [vmem:[#allocation0] ss:$0 sm:$0xff]
    %17 = vst [vmem:[%s1] sm:$0xf] %v16
    %18 = vsyncpa [#allocation1], 1

// kernel: tile.29
$region0: #{tile.29}
  %s0 = inlined_call_operand.vmem [shape: f32[4,3], index: 0, kind: input, shape index: {}]
  %s1 = inlined_call_operand.vmem [shape: f32[12], index: 1, kind: output, shape index: {}]
  $region1: #{tile.29} parent=0
    #allocation0 [shape = 'u8[4096]{0}', space=vmem, size = 0x1000, scoped, tag = 'scoped mem for output reshape']
    #allocation1 [shape = 'u8[4096]{0}', space=vmem, size = 0x1000, scoped, tag = 'scoped mem for input reshape']
    %s3 = sshllo.u32 0, 4
    %v4 = vld [vmem:[%s0] sm:%s3]
    %5 = vst [vmem:[#allocation1] sm:%s3] %v4
    %v6 = vld [vmem:[#allocation1] sm:$0x1]
    %vm7 = vcmask 23552
    %8 = vst.msk [vmem:[#allocation0] sm:$0x1] %vm7, %v6
    %s9 = scalar_lea.vmem [#allocation1], 3
    %v10 = vld [vmem:[%s9] sm:$0x1]
    %11 = vrot.lane.b32.xlu0 %v10, 9
    %v12 = vpop.permute.xlu0 %11
    %vm13 = vcmask 97352
    %14 = vst.msk [vmem:[#allocation0] sm:$0x1] %vm13, %v12
    %s15 = scalar_lea.vmem [#allocation1], 2
    %v16 = vld [vmem:[%s15] sm:$0x1]
    %17 = vrot.lane.b32.xlu0 %v16, 6
    %v18 = vpop.permute.xlu0 %17
    %vm19 = vcmask 72752
    %20 = vst.msk [vmem:[#allocation0] sm:$0x1] %vm19, %v18
    %s21 = scalar_lea.vmem [#allocation1], 1
    %v22 = vld [vmem:[%s21] sm:$0x1]
    %23 = vrot.lane.b32.xlu0 %v22, 3
    %v24 = vpop.permute.xlu0 %23
    %vm25 = vcmask 48152
    %26 = vst.msk [vmem:[#allocation0] sm:$0x1] %vm25, %v24
    %s28 = sshllo.u32 0, 1
    %v30 = vld [vmem:[#allocation0] sm:%s28]
    %s31 = sshllo.u32 0, 1
    %32 = vst [vmem:[%s1] sm:%s31] %v30

// kernel: decoder_forward.4
$region0: #{decoder_forward.4}
  #allocation0 [shape = 'u32[]', space=smem, size = 0x4, offset = 0x4, fixed_abs, tag = 'smem constant byte address 0x4 - core index']
  #allocation1 [shape = 'u32[144,128]{1,0:T(1,128)}', space=vmem, size = 0x12000, scoped, tag = 'internal scratch']
  %s0 = inlined_call_operand.vmem [shape: bf16[8,8], index: 0, kind: input, shape index: {}]
  %s1 = inlined_call_operand.vmem [shape: bf16[8,128], index: 1, kind: input, shape index: {}]
  %s2 = inlined_call_operand.vmem [shape: f32[1,128], index: 2, kind: input, shape index: {}]
  %s3 = inlined_call_operand.vmem [shape: bf16[128,4096], index: 3, kind: input, shape index: {}]
  %s4 = inlined_call_operand.vmem [shape: f32[1,4096], index: 4, kind: input, shape index: {}]
  %s5 = inlined_call_operand.vmem [shape: f32[8,4096], index: 5, kind: output, shape index: {}]
  %s6 = sld [smem:[#allocation0]]
  $region30: #{decoder_forward.4} parent=0
    _
  %s8 = ssub.s32 1, %s6
  %s9 = scalar_select 0, %s8, %s6
  // Predicated region
  $region2: #{decoder_forward.4} parent=0 // pred_check
    _
  $region3: #{decoder_forward.4} parent=0 // pred_check_branch
    %11 = sbr.rel (0) target = $region5
  $region4: #{decoder_forward.4} parent=0 // pred_region
    _
  $region5: #{decoder_forward.4} parent=0 // pred_fallthru
    _
  // Predicated region
  $region6: #{decoder_forward.4} parent=0 // pred_check
    _
  $region7: #{decoder_forward.4} parent=0 // pred_check_branch
    %13 = sbr.rel (0) target = $region9
  $region8: #{decoder_forward.4} parent=0 // pred_region
    _
  $region9: #{decoder_forward.4} parent=0 // pred_fallthru
    _
  // Predicated region
  $region10: #{decoder_forward.4} parent=0 // pred_check
    _
  $region11: #{decoder_forward.4} parent=0 // pred_check_branch
    %15 = sbr.rel (0) target = $region13
  $region12: #{decoder_forward.4} parent=0 // pred_region
    _
  $region13: #{decoder_forward.4} parent=0 // pred_fallthru
    _
  // Predicated region
  $region14: #{decoder_forward.4} parent=0 // pred_check
    _
  $region15: #{decoder_forward.4} parent=0 // pred_check_branch
    %17 = sbr.rel (0) target = $region17
  $region16: #{decoder_forward.4} parent=0 // pred_region
    _
  $region17: #{decoder_forward.4} parent=0 // pred_fallthru
    _
  // Predicated region
  $region18: #{decoder_forward.4} parent=0 // pred_check
    _
  $region19: #{decoder_forward.4} parent=0 // pred_check_branch
    %19 = sbr.rel (0) target = $region21
  $region20: #{decoder_forward.4} parent=0 // pred_region
    _
  $region21: #{decoder_forward.4} parent=0 // pred_fallthru
    _
  %v21 = vld [vmem:[%s0] sm:$0xf]
  %v22 = vld [vmem:[%s1] sm:$0xf]
  %v23 = vld [vmem:[%s2] sm:$0x1]
  %v25 = vlaneseq
  %v26 = vshrl.u32 %v25, 7
  %v27 = vsub.s32 0, %v26
  %v28 = vrot.slane %v23, %v27
  %vm30 = vcmask 64512
  %v32 = vsel %vm30, %v21, 0
  %vm34 = vcmask 1043456
  %v36 = vsel %vm34, %v22, 0
  %38 = vmatprep.subr.bf16.mxu0 0
  %39 = vmatpush1.bf16.msra.mxu0 %v36
  %40 = vmatprep.subr.bf16.mxu0 0
  %41 = vmatpush1.bf16.msra.mxu0 0
  %42 = vmatprep.subr.bf16.mxu0 0
  %43 = vmatpush1.bf16.msra.mxu0 0
  %44 = vmatprep.subr.bf16.mxu0 0
  %45 = vmatpush1.bf16.msra.mxu0 0
  %46 = vmatprep.subr.bf16.mxu0 0
  %47 = vmatpush1.bf16.msra.mxu0 0
  %48 = vmatprep.subr.bf16.mxu0 0
  %49 = vmatpush1.bf16.msra.mxu0 0
  %50 = vmatprep.subr.bf16.mxu0 0
  %51 = vmatpush1.bf16.msra.mxu0 0
  %52 = vmatprep.subr.bf16.mxu0 0
  %53 = vmatpush1.bf16.msra.mxu0 0
  %54 = vmatprep.subr.bf16.mxu0 0
  %55 = vmatpush1.bf16.msra.mxu0 0
  %56 = vmatprep.subr.bf16.mxu0 0
  %57 = vmatpush1.bf16.msra.mxu0 0
  %58 = vmatprep.subr.bf16.mxu0 0
  %59 = vmatpush1.bf16.msra.mxu0 0
  %60 = vmatprep.subr.bf16.mxu0 0
  %61 = vmatpush1.bf16.msra.mxu0 0
  %62 = vmatprep.subr.bf16.mxu0 0
  %63 = vmatpush1.bf16.msra.mxu0 0
  %64 = vmatprep.subr.bf16.mxu0 0
  %65 = vmatpush1.bf16.msra.mxu0 0
  %66 = vmatprep.subr.bf16.mxu0 0
  %67 = vmatpush1.bf16.msra.mxu0 0
  %68 = vmatprep.subr.bf16.mxu0 0
  %69 = vmatpush1.bf16.msra.mxu0 0
  %70 = vmatprep.mubr.bf16.mxu0 0
  %71 = vmatmul.mubr.bf16.gmra.mrb[0].mxu0 %v32
  %v72 = vpop.f32.mrb[0].mxu0
  %v73 = vadd.f32 %v28, %v72
  %v74 = vpop.f32.mrb[0].mxu0
  %v75 = vpop.f32.mrb[0].mxu0
  %v76 = vpop.f32.mrb[0].mxu0
  %77 = vdwg.mxu0
  %v78 = vmax.f32 %v73, 0.0
  %v79 = vpack.c.bf16 %v78, %v78
  %v80 = vld [vmem:[%s3] sm:$0xff]
  %v81 = vld [vmem:[%s3 + $0x8] sm:$0xff]
  %v82 = vld [vmem:[%s3 + $0x10] sm:$0xff]
  %v83 = vld [vmem:[%s3 + $0x18] sm:$0xff]
  %v84 = vld [vmem:[%s3 + $0x20] sm:$0xff]
  %v85 = vld [vmem:[%s3 + $0x28] sm:$0xff]
  %v86 = vld [vmem:[%s3 + $0x30] sm:$0xff]
  %v87 = vld [vmem:[%s3 + $0x38] sm:$0xff]
  %v88 = vld [vmem:[%s3 + $0x40] sm:$0xff]
  %v89 = vld [vmem:[%s3 + $0x48] sm:$0xff]
  %v90 = vld [vmem:[%s3 + $0x50] sm:$0xff]
  %v91 = vld [vmem:[%s3 + $0x58] sm:$0xff]
  %v92 = vld [vmem:[%s3 + $0x60] sm:$0xff]
  %v93 = vld [vmem:[%s3 + $0x68] sm:$0xff]
  %v94 = vld [vmem:[%s3 + $0x70] sm:$0xff]
  %v95 = vld [vmem:[%s3 + $0x78] sm:$0xff]
  %v96 = vld [vmem:[%s3 + $0x80] sm:$0xff]
  %v97 = vld [vmem:[%s3 + $0x88] sm:$0xff]
  %v98 = vld [vmem:[%s3 + $0x90] sm:$0xff]
  %v99 = vld [vmem:[%s3 + $0x98] sm:$0xff]
  %v100 = vld [vmem:[%s3 + $0xa0] sm:$0xff]
  %v101 = vld [vmem:[%s3 + $0xa8] sm:$0xff]
  %v102 = vld [vmem:[%s3 + $0xb0] sm:$0xff]
  %v103 = vld [vmem:[%s3 + $0xb8] sm:$0xff]
  %v104 = vld [vmem:[%s3 + $0xc0] sm:$0xff]
  %v105 = vld [vmem:[%s3 + $0xc8] sm:$0xff]
  %v106 = vld [vmem:[%s3 + $0xd0] sm:$0xff]
  %v107 = vld [vmem:[%s3 + $0xd8] sm:$0xff]
  %v108 = vld [vmem:[%s3 + $0xe0] sm:$0xff]
  %v109 = vld [vmem:[%s3 + $0xe8] sm:$0xff]
  %v110 = vld [vmem:[%s3 + $0xf0] sm:$0xff]
  %v111 = vld [vmem:[%s3 + $0xf8] sm:$0xff]
  %v112 = vld [vmem:[%s3 + $0x100] sm:$0xff]
  %v113 = vld [vmem:[%s3 + $0x108] sm:$0xff]
  %v114 = vld [vmem:[%s3 + $0x110] sm:$0xff]
  %v115 = vld [vmem:[%s3 + $0x118] sm:$0xff]
  %v116 = vld [vmem:[%s3 + $0x120] sm:$0xff]
  %v117 = vld [vmem:[%s3 + $0x128] sm:$0xff]
  %v118 = vld [vmem:[%s3 + $0x130] sm:$0xff]
  %v119 = vld [vmem:[%s3 + $0x138] sm:$0xff]
  %v120 = vld [vmem:[%s3 + $0x140] sm:$0xff]
  %v121 = vld [vmem:[%s3 + $0x148] sm:$0xff]
  %v122 = vld [vmem:[%s3 + $0x150] sm:$0xff]
  %v123 = vld [vmem:[%s3 + $0x158] sm:$0xff]
  %v124 = vld [vmem:[%s3 + $0x160] sm:$0xff]
  %v125 = vld [vmem:[%s3 + $0x168] sm:$0xff]
  %v126 = vld [vmem:[%s3 + $0x170] sm:$0xff]
  %v127 = vld [vmem:[%s3 + $0x178] sm:$0xff]
  %v128 = vld [vmem:[%s3 + $0x180] sm:$0xff]
  %v129 = vld [vmem:[%s3 + $0x188] sm:$0xff]
  %v130 = vld [vmem:[%s3 + $0x190] sm:$0xff]
  %v131 = vld [vmem:[%s3 + $0x198] sm:$0xff]
  %v132 = vld [vmem:[%s3 + $0x1a0] sm:$0xff]
  %v133 = vld [vmem:[%s3 + $0x1a8] sm:$0xff]
  %v134 = vld [vmem:[%s3 + $0x1b0] sm:$0xff]
  %v135 = vld [vmem:[%s3 + $0x1b8] sm:$0xff]
  %v136 = vld [vmem:[%s3 + $0x1c0] sm:$0xff]
  %v137 = vld [vmem:[%s3 + $0x1c8] sm:$0xff]
  %v138 = vld [vmem:[%s3 + $0x1d0] sm:$0xff]
  %v139 = vld [vmem:[%s3 + $0x1d8] sm:$0xff]
  %v140 = vld [vmem:[%s3 + $0x1e0] sm:$0xff]
  %v141 = vld [vmem:[%s3 + $0x1e8] sm:$0xff]
  %v142 = vld [vmem:[%s3 + $0x1f0] sm:$0xff]
  %v143 = vld [vmem:[%s3 + $0x1f8] sm:$0xff]
  %v144 = vld [vmem:[%s3 + $0x200] sm:$0xff]
  %v145 = vld [vmem:[%s3 + $0x208] sm:$0xff]
  %v146 = vld [vmem:[%s3 + $0x210] sm:$0xff]
  %v147 = vld [vmem:[%s3 + $0x218] sm:$0xff]
  %v148 = vld [vmem:[%s3 + $0x220] sm:$0xff]
  %v149 = vld [vmem:[%s3 + $0x228] sm:$0xff]
  %v150 = vld [vmem:[%s3 + $0x230] sm:$0xff]
  %v151 = vld [vmem:[%s3 + $0x238] sm:$0xff]
  %v152 = vld [vmem:[%s3 + $0x240] sm:$0xff]
  %v153 = vld [vmem:[%s3 + $0x248] sm:$0xff]
  %v154 = vld [vmem:[%s3 + $0x250] sm:$0xff]
  %v155 = vld [vmem:[%s3 + $0x258] sm:$0xff]
  %v156 = vld [vmem:[%s3 + $0x260] sm:$0xff]
  %v157 = vld [vmem:[%s3 + $0x268] sm:$0xff]
  %v158 = vld [vmem:[%s3 + $0x270] sm:$0xff]
  %v159 = vld [vmem:[%s3 + $0x278] sm:$0xff]
  %v160 = vld [vmem:[%s3 + $0x280] sm:$0xff]
  %v161 = vld [vmem:[%s3 + $0x288] sm:$0xff]
  %v162 = vld [vmem:[%s3 + $0x290] sm:$0xff]
  %v163 = vld [vmem:[%s3 + $0x298] sm:$0xff]
  %v164 = vld [vmem:[%s3 + $0x2a0] sm:$0xff]
  %v165 = vld [vmem:[%s3 + $0x2a8] sm:$0xff]
  %v166 = vld [vmem:[%s3 + $0x2b0] sm:$0xff]
  %v167 = vld [vmem:[%s3 + $0x2b8] sm:$0xff]
  %v168 = vld [vmem:[%s3 + $0x2c0] sm:$0xff]
  %v169 = vld [vmem:[%s3 + $0x2c8] sm:$0xff]
  %v170 = vld [vmem:[%s3 + $0x2d0] sm:$0xff]
  %v171 = vld [vmem:[%s3 + $0x2d8] sm:$0xff]
  %v172 = vld [vmem:[%s3 + $0x2e0] sm:$0xff]
  %v173 = vld [vmem:[%s3 + $0x2e8] sm:$0xff]
  %v174 = vld [vmem:[%s3 + $0x2f0] sm:$0xff]
  %v175 = vld [vmem:[%s3 + $0x2f8] sm:$0xff]
  %v176 = vld [vmem:[%s3 + $0x300] sm:$0xff]
  %v177 = vld [vmem:[%s3 + $0x308] sm:$0xff]
  %v178 = vld [vmem:[%s3 + $0x310] sm:$0xff]
  %v179 = vld [vmem:[%s3 + $0x318] sm:$0xff]
  %v180 = vld [vmem:[%s3 + $0x320] sm:$0xff]
  %v181 = vld [vmem:[%s3 + $0x328] sm:$0xff]
  %v182 = vld [vmem:[%s3 + $0x330] sm:$0xff]
  %v183 = vld [vmem:[%s3 + $0x338] sm:$0xff]
  %v184 = vld [vmem:[%s3 + $0x340] sm:$0xff]
  %v185 = vld [vmem:[%s3 + $0x348] sm:$0xff]
  %v186 = vld [vmem:[%s3 + $0x350] sm:$0xff]
  %v187 = vld [vmem:[%s3 + $0x358] sm:$0xff]
  %v188 = vld [vmem:[%s3 + $0x360] sm:$0xff]
  %v189 = vld [vmem:[%s3 + $0x368] sm:$0xff]
  %v190 = vld [vmem:[%s3 + $0x370] sm:$0xff]
  %v191 = vld [vmem:[%s3 + $0x378] sm:$0xff]
  %v192 = vld [vmem:[%s3 + $0x380] sm:$0xff]
  %v193 = vld [vmem:[%s3 + $0x388] sm:$0xff]
  %v194 = vld [vmem:[%s3 + $0x390] sm:$0xff]
  %v195 = vld [vmem:[%s3 + $0x398] sm:$0xff]
  %v196 = vld [vmem:[%s3 + $0x3a0] sm:$0xff]
  %v197 = vld [vmem:[%s3 + $0x3a8] sm:$0xff]
  %v198 = vld [vmem:[%s3 + $0x3b0] sm:$0xff]
  %v199 = vld [vmem:[%s3 + $0x3b8] sm:$0xff]
  %v200 = vld [vmem:[%s3 + $0x3c0] sm:$0xff]
  %v201 = vld [vmem:[%s3 + $0x3c8] sm:$0xff]
  %v202 = vld [vmem:[%s3 + $0x3d0] sm:$0xff]
  %v203 = vld [vmem:[%s3 + $0x3d8] sm:$0xff]
  %v204 = vld [vmem:[%s3 + $0x3e0] sm:$0xff]
  %v205 = vld [vmem:[%s3 + $0x3e8] sm:$0xff]
  %v206 = vld [vmem:[%s3 + $0x3f0] sm:$0xff]
  %v207 = vld [vmem:[%s3 + $0x3f8] sm:$0xff]
  %v208 = vld [vmem:[%s3 + $0x400] sm:$0xff]
  %v209 = vld [vmem:[%s3 + $0x408] sm:$0xff]
  %v210 = vld [vmem:[%s3 + $0x410] sm:$0xff]
  %v211 = vld [vmem:[%s3 + $0x418] sm:$0xff]
  %v212 = vld [vmem:[%s3 + $0x420] sm:$0xff]
  %v213 = vld [vmem:[%s3 + $0x428] sm:$0xff]
  %v214 = vld [vmem:[%s3 + $0x430] sm:$0xff]
  %v215 = vld [vmem:[%s3 + $0x438] sm:$0xff]
  %v216 = vld [vmem:[%s3 + $0x440] sm:$0xff]
  %v217 = vld [vmem:[%s3 + $0x448] sm:$0xff]
  %v218 = vld [vmem:[%s3 + $0x450] sm:$0xff]
  %v219 = vld [vmem:[%s3 + $0x458] sm:$0xff]
  %v220 = vld [vmem:[%s3 + $0x460] sm:$0xff]
  %v221 = vld [vmem:[%s3 + $0x468] sm:$0xff]
  %v222 = vld [vmem:[%s3 + $0x470] sm:$0xff]
  %v223 = vld [vmem:[%s3 + $0x478] sm:$0xff]
  %v224 = vld [vmem:[%s3 + $0x480] sm:$0xff]
  %v225 = vld [vmem:[%s3 + $0x488] sm:$0xff]
  %v226 = vld [vmem:[%s3 + $0x490] sm:$0xff]
  %v227 = vld [vmem:[%s3 + $0x498] sm:$0xff]
  %v228 = vld [vmem:[%s3 + $0x4a0] sm:$0xff]
  %v229 = vld [vmem:[%s3 + $0x4a8] sm:$0xff]
  %v230 = vld [vmem:[%s3 + $0x4b0] sm:$0xff]
  %v231 = vld [vmem:[%s3 + $0x4b8] sm:$0xff]
  %v232 = vld [vmem:[%s3 + $0x4c0] sm:$0xff]
  %v233 = vld [vmem:[%s3 + $0x4c8] sm:$0xff]
  %v234 = vld [vmem:[%s3 + $0x4d0] sm:$0xff]
  %v235 = vld [vmem:[%s3 + $0x4d8] sm:$0xff]
  %v236 = vld [vmem:[%s3 + $0x4e0] sm:$0xff]
  %v237 = vld [vmem:[%s3 + $0x4e8] sm:$0xff]
  %v238 = vld [vmem:[%s3 + $0x4f0] sm:$0xff]
  %v239 = vld [vmem:[%s3 + $0x4f8] sm:$0xff]
  %v240 = vld [vmem:[%s3 + $0x500] sm:$0xff]
  %v241 = vld [vmem:[%s3 + $0x508] sm:$0xff]
  %v242 = vld [vmem:[%s3 + $0x510] sm:$0xff]
  %v243 = vld [vmem:[%s3 + $0x518] sm:$0xff]
  %v244 = vld [vmem:[%s3 + $0x520] sm:$0xff]
  %v245 = vld [vmem:[%s3 + $0x528] sm:$0xff]
  %v246 = vld [vmem:[%s3 + $0x530] sm:$0xff]
  %v247 = vld [vmem:[%s3 + $0x538] sm:$0xff]
  %v248 = vld [vmem:[%s3 + $0x540] sm:$0xff]
  %v249 = vld [vmem:[%s3 + $0x548] sm:$0xff]
  %v250 = vld [vmem:[%s3 + $0x550] sm:$0xff]
  %v251 = vld [vmem:[%s3 + $0x558] sm:$0xff]
  %v252 = vld [vmem:[%s3 + $0x560] sm:$0xff]
  %v253 = vld [vmem:[%s3 + $0x568] sm:$0xff]
  %v254 = vld [vmem:[%s3 + $0x570] sm:$0xff]
  %v255 = vld [vmem:[%s3 + $0x578] sm:$0xff]
  %v256 = vld [vmem:[%s3 + $0x580] sm:$0xff]
  %v257 = vld [vmem:[%s3 + $0x588] sm:$0xff]
  %v258 = vld [vmem:[%s3 + $0x590] sm:$0xff]
  %v259 = vld [vmem:[%s3 + $0x598] sm:$0xff]
  %v260 = vld [vmem:[%s3 + $0x5a0] sm:$0xff]
  %v261 = vld [vmem:[%s3 + $0x5a8] sm:$0xff]
  %v262 = vld [vmem:[%s3 + $0x5b0] sm:$0xff]
  %v263 = vld [vmem:[%s3 + $0x5b8] sm:$0xff]
  %v264 = vld [vmem:[%s3 + $0x5c0] sm:$0xff]
  %v265 = vld [vmem:[%s3 + $0x5c8] sm:$0xff]
  %v266 = vld [vmem:[%s3 + $0x5d0] sm:$0xff]
  %v267 = vld [vmem:[%s3 + $0x5d8] sm:$0xff]
  %v268 = vld [vmem:[%s3 + $0x5e0] sm:$0xff]
  %v269 = vld [vmem:[%s3 + $0x5e8] sm:$0xff]
  %v270 = vld [vmem:[%s3 + $0x5f0] sm:$0xff]
  %v271 = vld [vmem:[%s3 + $0x5f8] sm:$0xff]
  %v272 = vld [vmem:[%s3 + $0x600] sm:$0xff]
  %v273 = vld [vmem:[%s3 + $0x608] sm:$0xff]
  %v274 = vld [vmem:[%s3 + $0x610] sm:$0xff]
  %v275 = vld [vmem:[%s3 + $0x618] sm:$0xff]
  %v276 = vld [vmem:[%s3 + $0x620] sm:$0xff]
  %v277 = vld [vmem:[%s3 + $0x628] sm:$0xff]
  %v278 = vld [vmem:[%s3 + $0x630] sm:$0xff]
  %v279 = vld [vmem:[%s3 + $0x638] sm:$0xff]
  %v280 = vld [vmem:[%s3 + $0x640] sm:$0xff]
  %v281 = vld [vmem:[%s3 + $0x648] sm:$0xff]
  %v282 = vld [vmem:[%s3 + $0x650] sm:$0xff]
  %v283 = vld [vmem:[%s3 + $0x658] sm:$0xff]
  %v284 = vld [vmem:[%s3 + $0x660] sm:$0xff]
  %v285 = vld [vmem:[%s3 + $0x668] sm:$0xff]
  %v286 = vld [vmem:[%s3 + $0x670] sm:$0xff]
  %v287 = vld [vmem:[%s3 + $0x678] sm:$0xff]
  %v288 = vld [vmem:[%s3 + $0x680] sm:$0xff]
  %v289 = vld [vmem:[%s3 + $0x688] sm:$0xff]
  %v290 = vld [vmem:[%s3 + $0x690] sm:$0xff]
  %v291 = vld [vmem:[%s3 + $0x698] sm:$0xff]
  %v292 = vld [vmem:[%s3 + $0x6a0] sm:$0xff]
  %v293 = vld [vmem:[%s3 + $0x6a8] sm:$0xff]
  %v294 = vld [vmem:[%s3 + $0x6b0] sm:$0xff]
  %v295 = vld [vmem:[%s3 + $0x6b8] sm:$0xff]
  %v296 = vld [vmem:[%s3 + $0x6c0] sm:$0xff]
  %v297 = vld [vmem:[%s3 + $0x6c8] sm:$0xff]
  %v298 = vld [vmem:[%s3 + $0x6d0] sm:$0xff]
  %v299 = vld [vmem:[%s3 + $0x6d8] sm:$0xff]
  %v300 = vld [vmem:[%s3 + $0x6e0] sm:$0xff]
  %v301 = vld [vmem:[%s3 + $0x6e8] sm:$0xff]
  %v302 = vld [vmem:[%s3 + $0x6f0] sm:$0xff]
  %v303 = vld [vmem:[%s3 + $0x6f8] sm:$0xff]
  %v304 = vld [vmem:[%s3 + $0x700] sm:$0xff]
  %v305 = vld [vmem:[%s3 + $0x708] sm:$0xff]
  %v306 = vld [vmem:[%s3 + $0x710] sm:$0xff]
  %v307 = vld [vmem:[%s3 + $0x718] sm:$0xff]
  %v308 = vld [vmem:[%s3 + $0x720] sm:$0xff]
  %v309 = vld [vmem:[%s3 + $0x728] sm:$0xff]
  %v310 = vld [vmem:[%s3 + $0x730] sm:$0xff]
  %v311 = vld [vmem:[%s3 + $0x738] sm:$0xff]
  %v312 = vld [vmem:[%s3 + $0x740] sm:$0xff]
  %v313 = vld [vmem:[%s3 + $0x748] sm:$0xff]
  %v314 = vld [vmem:[%s3 + $0x750] sm:$0xff]
  %v315 = vld [vmem:[%s3 + $0x758] sm:$0xff]
  %v316 = vld [vmem:[%s3 + $0x760] sm:$0xff]
  %v317 = vld [vmem:[%s3 + $0x768] sm:$0xff]
  %v318 = vld [vmem:[%s3 + $0x770] sm:$0xff]
  %v319 = vld [vmem:[%s3 + $0x778] sm:$0xff]
  %v320 = vld [vmem:[%s3 + $0x780] sm:$0xff]
  %v321 = vld [vmem:[%s3 + $0x788] sm:$0xff]
  %v322 = vld [vmem:[%s3 + $0x790] sm:$0xff]
  %v323 = vld [vmem:[%s3 + $0x798] sm:$0xff]
  %v324 = vld [vmem:[%s3 + $0x7a0] sm:$0xff]
  %v325 = vld [vmem:[%s3 + $0x7a8] sm:$0xff]
  %v326 = vld [vmem:[%s3 + $0x7b0] sm:$0xff]
  %v327 = vld [vmem:[%s3 + $0x7b8] sm:$0xff]
  %v328 = vld [vmem:[%s3 + $0x7c0] sm:$0xff]
  %v329 = vld [vmem:[%s3 + $0x7c8] sm:$0xff]
  %v330 = vld [vmem:[%s3 + $0x7d0] sm:$0xff]
  %v331 = vld [vmem:[%s3 + $0x7d8] sm:$0xff]
  %v332 = vld [vmem:[%s3 + $0x7e0] sm:$0xff]
  %v333 = vld [vmem:[%s3 + $0x7e8] sm:$0xff]
  %v334 = vld [vmem:[%s3 + $0x7f0] sm:$0xff]
  %v335 = vld [vmem:[%s3 + $0x7f8] sm:$0xff]
  %v336 = vld [vmem:[%s4] sm:$0xff]
  %v337 = vld [vmem:[%s4 + $0x8] sm:$0xff]
  %v338 = vld [vmem:[%s4 + $0x10] sm:$0xff]
  %v339 = vld [vmem:[%s4 + $0x18] sm:$0xff]
  %v344 = vlaneseq
  %v345 = vshrl.u32 %v344, 7
  %v346 = vsub.s32 0, %v345
  %v347 = vrot.slane %v336, %v346
  %v348 = vlaneseq
  %v349 = vshrl.u32 %v348, 7
  %v350 = vsub.s32 1, %v349
  %v351 = vrot.slane %v336, %v350
  %v352 = vlaneseq
  %v353 = vshrl.u32 %v352, 7
  %v354 = vsub.s32 2, %v353
  %v355 = vrot.slane %v336, %v354
  %v356 = vlaneseq
  %v357 = vshrl.u32 %v356, 7
  %v358 = vsub.s32 3, %v357
  %v359 = vrot.slane %v336, %v358
  %v360 = vlaneseq
  %v361 = vshrl.u32 %v360, 7
  %v362 = vsub.s32 4, %v361
  %v363 = vrot.slane %v336, %v362
  %v364 = vlaneseq
  %v365 = vshrl.u32 %v364, 7
  %v366 = vsub.s32 5, %v365
  %v367 = vrot.slane %v336, %v366
  %v368 = vlaneseq
  %v369 = vshrl.u32 %v368, 7
  %v370 = vsub.s32 6, %v369
  %v371 = vrot.slane %v336, %v370
  %v372 = vlaneseq
  %v373 = vshrl.u32 %v372, 7
  %v374 = vsub.s32 7, %v373
  %v375 = vrot.slane %v336, %v374
  %v376 = vlaneseq
  %v377 = vshrl.u32 %v376, 7
  %v378 = vsub.s32 0, %v377
  %v379 = vrot.slane %v337, %v378
  %v380 = vlaneseq
  %v381 = vshrl.u32 %v380, 7
  %v382 = vsub.s32 1, %v381
  %v383 = vrot.slane %v337, %v382
  %v384 = vlaneseq
  %v385 = vshrl.u32 %v384, 7
  %v386 = vsub.s32 2, %v385
  %v387 = vrot.slane %v337, %v386
  %v388 = vlaneseq
  %v389 = vshrl.u32 %v388, 7
  %v390 = vsub.s32 3, %v389
  %v391 = vrot.slane %v337, %v390
  %v392 = vlaneseq
  %v393 = vshrl.u32 %v392, 7
  %v394 = vsub.s32 4, %v393
  %v395 = vrot.slane %v337, %v394
  %v396 = vlaneseq
  %v397 = vshrl.u32 %v396, 7
  %v398 = vsub.s32 5, %v397
  %v399 = vrot.slane %v337, %v398
  %v400 = vlaneseq
  %v401 = vshrl.u32 %v400, 7
  %v402 = vsub.s32 6, %v401
  %v403 = vrot.slane %v337, %v402
  %v404 = vlaneseq
  %v405 = vshrl.u32 %v404, 7
  %v406 = vsub.s32 7, %v405
  %v407 = vrot.slane %v337, %v406
  %v408 = vlaneseq
  %v409 = vshrl.u32 %v408, 7
  %v410 = vsub.s32 0, %v409
  %v411 = vrot.slane %v338, %v410
  %v412 = vlaneseq
  %v413 = vshrl.u32 %v412, 7
  %v414 = vsub.s32 1, %v413
  %v415 = vrot.slane %v338, %v414
  %v416 = vlaneseq
  %v417 = vshrl.u32 %v416, 7
  %v418 = vsub.s32 2, %v417
  %v419 = vrot.slane %v338, %v418
  %v420 = vlaneseq
  %v421 = vshrl.u32 %v420, 7
  %v422 = vsub.s32 3, %v421
  %v423 = vrot.slane %v338, %v422
  %v424 = vlaneseq
  %v425 = vshrl.u32 %v424, 7
  %v426 = vsub.s32 4, %v425
  %v427 = vrot.slane %v338, %v426
  %v428 = vlaneseq
  %v429 = vshrl.u32 %v428, 7
  %v430 = vsub.s32 5, %v429
  %v431 = vrot.slane %v338, %v430
  %v432 = vlaneseq
  %v433 = vshrl.u32 %v432, 7
  %v434 = vsub.s32 6, %v433
  %v435 = vrot.slane %v338, %v434
  %v436 = vlaneseq
  %v437 = vshrl.u32 %v436, 7
  %v438 = vsub.s32 7, %v437
  %v439 = vrot.slane %v338, %v438
  %v440 = vlaneseq
  %v441 = vshrl.u32 %v440, 7
  %v442 = vsub.s32 0, %v441
  %v443 = vrot.slane %v339, %v442
  %v444 = vlaneseq
  %v445 = vshrl.u32 %v444, 7
  %v446 = vsub.s32 1, %v445
  %v447 = vrot.slane %v339, %v446
  %v448 = vlaneseq
  %v449 = vshrl.u32 %v448, 7
  %v450 = vsub.s32 2, %v449
  %v451 = vrot.slane %v339, %v450
  %v452 = vlaneseq
  %v453 = vshrl.u32 %v452, 7
  %v454 = vsub.s32 3, %v453
  %v455 = vrot.slane %v339, %v454
  %v456 = vlaneseq
  %v457 = vshrl.u32 %v456, 7
  %v458 = vsub.s32 4, %v457
  %v459 = vrot.slane %v339, %v458
  %v460 = vlaneseq
  %v461 = vshrl.u32 %v460, 7
  %v462 = vsub.s32 5, %v461
  %v463 = vrot.slane %v339, %v462
  %v464 = vlaneseq
  %v465 = vshrl.u32 %v464, 7
  %v466 = vsub.s32 6, %v465
  %v467 = vrot.slane %v339, %v466
  %v468 = vlaneseq
  %v469 = vshrl.u32 %v468, 7
  %v470 = vsub.s32 7, %v469
  %v471 = vrot.slane %v339, %v470
  %v760 = vunpack.c.l.b16 %v80
  %v761 = vunpack.c.h.b16 %v80
  %v762 = vunpack.c.l.b16 %v81
  %v763 = vunpack.c.h.b16 %v81
  %v764 = vunpack.c.l.b16 %v82
  %v765 = vunpack.c.h.b16 %v82
  %v766 = vunpack.c.l.b16 %v83
  %v767 = vunpack.c.h.b16 %v83
  %v768 = vunpack.c.l.b16 %v84
  %v769 = vunpack.c.h.b16 %v84
  %v770 = vunpack.c.l.b16 %v85
  %v771 = vunpack.c.h.b16 %v85
  %v772 = vunpack.c.l.b16 %v86
  %v773 = vunpack.c.h.b16 %v86
  %v774 = vunpack.c.l.b16 %v87
  %v775 = vunpack.c.h.b16 %v87
  %v776 = vunpack.c.l.b16 %v88
  %v777 = vunpack.c.h.b16 %v88
  %v778 = vunpack.c.l.b16 %v89
  %v779 = vunpack.c.h.b16 %v89
  %v780 = vunpack.c.l.b16 %v90
  %v781 = vunpack.c.h.b16 %v90
  %v782 = vunpack.c.l.b16 %v91
  %v783 = vunpack.c.h.b16 %v91
  %v784 = vunpack.c.l.b16 %v92
  %v785 = vunpack.c.h.b16 %v92
  %v786 = vunpack.c.l.b16 %v93
  %v787 = vunpack.c.h.b16 %v93
  %v788 = vunpack.c.l.b16 %v94
  %v789 = vunpack.c.h.b16 %v94
  %v790 = vunpack.c.l.b16 %v95
  %v791 = vunpack.c.h.b16 %v95
  %v792 = vunpack.c.l.b16 %v96
  %v793 = vunpack.c.h.b16 %v96
  %v794 = vunpack.c.l.b16 %v97
  %v795 = vunpack.c.h.b16 %v97
  %v796 = vunpack.c.l.b16 %v98
  %v797 = vunpack.c.h.b16 %v98
  %v798 = vunpack.c.l.b16 %v99
  %v799 = vunpack.c.h.b16 %v99
  %v800 = vunpack.c.l.b16 %v100
  %v801 = vunpack.c.h.b16 %v100
  %v802 = vunpack.c.l.b16 %v101
  %v803 = vunpack.c.h.b16 %v101
  %v804 = vunpack.c.l.b16 %v102
  %v805 = vunpack.c.h.b16 %v102
  %v806 = vunpack.c.l.b16 %v103
  %v807 = vunpack.c.h.b16 %v103
  %v808 = vunpack.c.l.b16 %v104
  %v809 = vunpack.c.h.b16 %v104
  %v810 = vunpack.c.l.b16 %v105
  %v811 = vunpack.c.h.b16 %v105
  %v812 = vunpack.c.l.b16 %v106
  %v813 = vunpack.c.h.b16 %v106
  %v814 = vunpack.c.l.b16 %v107
  %v815 = vunpack.c.h.b16 %v107
  %v816 = vunpack.c.l.b16 %v108
  %v817 = vunpack.c.h.b16 %v108
  %v818 = vunpack.c.l.b16 %v109
  %v819 = vunpack.c.h.b16 %v109
  %v820 = vunpack.c.l.b16 %v110
  %v821 = vunpack.c.h.b16 %v110
  %v822 = vunpack.c.l.b16 %v111
  %v823 = vunpack.c.h.b16 %v111
  %v824 = vunpack.c.l.b16 %v112
  %v825 = vunpack.c.h.b16 %v112
  %v826 = vunpack.c.l.b16 %v113
  %v827 = vunpack.c.h.b16 %v113
  %v828 = vunpack.c.l.b16 %v114
  %v829 = vunpack.c.h.b16 %v114
  %v830 = vunpack.c.l.b16 %v115
  %v831 = vunpack.c.h.b16 %v115
  %v832 = vunpack.c.l.b16 %v116
  %v833 = vunpack.c.h.b16 %v116
  %v834 = vunpack.c.l.b16 %v117
  %v835 = vunpack.c.h.b16 %v117
  %v836 = vunpack.c.l.b16 %v118
  %v837 = vunpack.c.h.b16 %v118
  %v838 = vunpack.c.l.b16 %v119
  %v839 = vunpack.c.h.b16 %v119
  %v840 = vunpack.c.l.b16 %v120
  %v841 = vunpack.c.h.b16 %v120
  %v842 = vunpack.c.l.b16 %v121
  %v843 = vunpack.c.h.b16 %v121
  %v844 = vunpack.c.l.b16 %v122
  %v845 = vunpack.c.h.b16 %v122
  %v846 = vunpack.c.l.b16 %v123
  %v847 = vunpack.c.h.b16 %v123
  %v848 = vunpack.c.l.b16 %v124
  %v849 = vunpack.c.h.b16 %v124
  %v850 = vunpack.c.l.b16 %v125
  %v851 = vunpack.c.h.b16 %v125
  %v852 = vunpack.c.l.b16 %v126
  %v853 = vunpack.c.h.b16 %v126
  %v854 = vunpack.c.l.b16 %v127
  %v855 = vunpack.c.h.b16 %v127
  %v856 = vunpack.c.l.b16 %v128
  %v857 = vunpack.c.h.b16 %v128
  %v858 = vunpack.c.l.b16 %v129
  %v859 = vunpack.c.h.b16 %v129
  %v860 = vunpack.c.l.b16 %v130
  %v861 = vunpack.c.h.b16 %v130
  %v862 = vunpack.c.l.b16 %v131
  %v863 = vunpack.c.h.b16 %v131
  %v864 = vunpack.c.l.b16 %v132
  %v865 = vunpack.c.h.b16 %v132
  %v866 = vunpack.c.l.b16 %v133
  %v867 = vunpack.c.h.b16 %v133
  %v868 = vunpack.c.l.b16 %v134
  %v869 = vunpack.c.h.b16 %v134
  %v870 = vunpack.c.l.b16 %v135
  %v871 = vunpack.c.h.b16 %v135
  %v872 = vunpack.c.l.b16 %v136
  %v873 = vunpack.c.h.b16 %v136
  %v874 = vunpack.c.l.b16 %v137
  %v875 = vunpack.c.h.b16 %v137
  %v876 = vunpack.c.l.b16 %v138
  %v877 = vunpack.c.h.b16 %v138
  %v878 = vunpack.c.l.b16 %v139
  %v879 = vunpack.c.h.b16 %v139
  %v880 = vunpack.c.l.b16 %v140
  %v881 = vunpack.c.h.b16 %v140
  %v882 = vunpack.c.l.b16 %v141
  %v883 = vunpack.c.h.b16 %v141
  %v884 = vunpack.c.l.b16 %v142
  %v885 = vunpack.c.h.b16 %v142
  %v886 = vunpack.c.l.b16 %v143
  %v887 = vunpack.c.h.b16 %v143
  %v888 = vunpack.c.l.b16 %v144
  %v889 = vunpack.c.h.b16 %v144
  %v890 = vunpack.c.l.b16 %v145
  %v891 = vunpack.c.h.b16 %v145
  %v892 = vunpack.c.l.b16 %v146
  %v893 = vunpack.c.h.b16 %v146
  %v894 = vunpack.c.l.b16 %v147
  %v895 = vunpack.c.h.b16 %v147
  %v896 = vunpack.c.l.b16 %v148
  %v897 = vunpack.c.h.b16 %v148
  %v898 = vunpack.c.l.b16 %v149
  %v899 = vunpack.c.h.b16 %v149
  %v900 = vunpack.c.l.b16 %v150
  %v901 = vunpack.c.h.b16 %v150
  %v902 = vunpack.c.l.b16 %v151
  %v903 = vunpack.c.h.b16 %v151
  %v904 = vunpack.c.l.b16 %v152
  %v905 = vunpack.c.h.b16 %v152
  %v906 = vunpack.c.l.b16 %v153
  %v907 = vunpack.c.h.b16 %v153
  %v908 = vunpack.c.l.b16 %v154
  %v909 = vunpack.c.h.b16 %v154
  %v910 = vunpack.c.l.b16 %v155
  %v911 = vunpack.c.h.b16 %v155
  %v912 = vunpack.c.l.b16 %v156
  %v913 = vunpack.c.h.b16 %v156
  %v914 = vunpack.c.l.b16 %v157
  %v915 = vunpack.c.h.b16 %v157
  %v916 = vunpack.c.l.b16 %v158
  %v917 = vunpack.c.h.b16 %v158
  %v918 = vunpack.c.l.b16 %v159
  %v919 = vunpack.c.h.b16 %v159
  %v920 = vunpack.c.l.b16 %v160
  %v921 = vunpack.c.h.b16 %v160
  %v922 = vunpack.c.l.b16 %v161
  %v923 = vunpack.c.h.b16 %v161
  %v924 = vunpack.c.l.b16 %v162
  %v925 = vunpack.c.h.b16 %v162
  %v926 = vunpack.c.l.b16 %v163
  %v927 = vunpack.c.h.b16 %v163
  %v928 = vunpack.c.l.b16 %v164
  %v929 = vunpack.c.h.b16 %v164
  %v930 = vunpack.c.l.b16 %v165
  %v931 = vunpack.c.h.b16 %v165
  %v932 = vunpack.c.l.b16 %v166
  %v933 = vunpack.c.h.b16 %v166
  %v934 = vunpack.c.l.b16 %v167
  %v935 = vunpack.c.h.b16 %v167
  %v936 = vunpack.c.l.b16 %v168
  %v937 = vunpack.c.h.b16 %v168
  %v938 = vunpack.c.l.b16 %v169
  %v939 = vunpack.c.h.b16 %v169
  %v940 = vunpack.c.l.b16 %v170
  %v941 = vunpack.c.h.b16 %v170
  %v942 = vunpack.c.l.b16 %v171
  %v943 = vunpack.c.h.b16 %v171
  %v944 = vunpack.c.l.b16 %v172
  %v945 = vunpack.c.h.b16 %v172
  %v946 = vunpack.c.l.b16 %v173
  %v947 = vunpack.c.h.b16 %v173
  %v948 = vunpack.c.l.b16 %v174
  %v949 = vunpack.c.h.b16 %v174
  %v950 = vunpack.c.l.b16 %v175
  %v951 = vunpack.c.h.b16 %v175
  %v952 = vunpack.c.l.b16 %v176
  %v953 = vunpack.c.h.b16 %v176
  %v954 = vunpack.c.l.b16 %v177
  %v955 = vunpack.c.h.b16 %v177
  %v956 = vunpack.c.l.b16 %v178
  %v957 = vunpack.c.h.b16 %v178
  %v958 = vunpack.c.l.b16 %v179
  %v959 = vunpack.c.h.b16 %v179
  %v960 = vunpack.c.l.b16 %v180
  %v961 = vunpack.c.h.b16 %v180
  %v962 = vunpack.c.l.b16 %v181
  %v963 = vunpack.c.h.b16 %v181
  %v964 = vunpack.c.l.b16 %v182
  %v965 = vunpack.c.h.b16 %v182
  %v966 = vunpack.c.l.b16 %v183
  %v967 = vunpack.c.h.b16 %v183
  %v968 = vunpack.c.l.b16 %v184
  %v969 = vunpack.c.h.b16 %v184
  %v970 = vunpack.c.l.b16 %v185
  %v971 = vunpack.c.h.b16 %v185
  %v972 = vunpack.c.l.b16 %v186
  %v973 = vunpack.c.h.b16 %v186
  %v974 = vunpack.c.l.b16 %v187
  %v975 = vunpack.c.h.b16 %v187
  %v976 = vunpack.c.l.b16 %v188
  %v977 = vunpack.c.h.b16 %v188
  %v978 = vunpack.c.l.b16 %v189
  %v979 = vunpack.c.h.b16 %v189
  %v980 = vunpack.c.l.b16 %v190
  %v981 = vunpack.c.h.b16 %v190
  %v982 = vunpack.c.l.b16 %v191
  %v983 = vunpack.c.h.b16 %v191
  %v984 = vunpack.c.l.b16 %v192
  %v985 = vunpack.c.h.b16 %v192
  %v986 = vunpack.c.l.b16 %v193
  %v987 = vunpack.c.h.b16 %v193
  %v988 = vunpack.c.l.b16 %v194
  %v989 = vunpack.c.h.b16 %v194
  %v990 = vunpack.c.l.b16 %v195
  %v991 = vunpack.c.h.b16 %v195
  %v992 = vunpack.c.l.b16 %v196
  %v993 = vunpack.c.h.b16 %v196
  %v994 = vunpack.c.l.b16 %v197
  %v995 = vunpack.c.h.b16 %v197
  %v996 = vunpack.c.l.b16 %v198
  %v997 = vunpack.c.h.b16 %v198
  %v998 = vunpack.c.l.b16 %v199
  %v999 = vunpack.c.h.b16 %v199
  %v1000 = vunpack.c.l.b16 %v200
  %v1001 = vunpack.c.h.b16 %v200
  %v1002 = vunpack.c.l.b16 %v201
  %v1003 = vunpack.c.h.b16 %v201
  %v1004 = vunpack.c.l.b16 %v202
  %v1005 = vunpack.c.h.b16 %v202
  %v1006 = vunpack.c.l.b16 %v203
  %v1007 = vunpack.c.h.b16 %v203
  %v1008 = vunpack.c.l.b16 %v204
  %v1009 = vunpack.c.h.b16 %v204
  %v1010 = vunpack.c.l.b16 %v205
  %v1011 = vunpack.c.h.b16 %v205
  %v1012 = vunpack.c.l.b16 %v206
  %v1013 = vunpack.c.h.b16 %v206
  %v1014 = vunpack.c.l.b16 %v207
  %v1015 = vunpack.c.h.b16 %v207
  %v1016 = vunpack.c.l.b16 %v208
  %v1017 = vunpack.c.h.b16 %v208
  %v1018 = vunpack.c.l.b16 %v209
  %v1019 = vunpack.c.h.b16 %v209
  %v1020 = vunpack.c.l.b16 %v210
  %v1021 = vunpack.c.h.b16 %v210
  %v1022 = vunpack.c.l.b16 %v211
  %v1023 = vunpack.c.h.b16 %v211
  %v1024 = vunpack.c.l.b16 %v212
  %v1025 = vunpack.c.h.b16 %v212
  %v1026 = vunpack.c.l.b16 %v213
  %v1027 = vunpack.c.h.b16 %v213
  %v1028 = vunpack.c.l.b16 %v214
  %v1029 = vunpack.c.h.b16 %v214
  %v1030 = vunpack.c.l.b16 %v215
  %v1031 = vunpack.c.h.b16 %v215
  %v1032 = vunpack.c.l.b16 %v216
  %v1033 = vunpack.c.h.b16 %v216
  %v1034 = vunpack.c.l.b16 %v217
  %v1035 = vunpack.c.h.b16 %v217
  %v1036 = vunpack.c.l.b16 %v218
  %v1037 = vunpack.c.h.b16 %v218
  %v1038 = vunpack.c.l.b16 %v219
  %v1039 = vunpack.c.h.b16 %v219
  %v1040 = vunpack.c.l.b16 %v220
  %v1041 = vunpack.c.h.b16 %v220
  %v1042 = vunpack.c.l.b16 %v221
  %v1043 = vunpack.c.h.b16 %v221
  %v1044 = vunpack.c.l.b16 %v222
  %v1045 = vunpack.c.h.b16 %v222
  %v1046 = vunpack.c.l.b16 %v223
  %v1047 = vunpack.c.h.b16 %v223
  %v1048 = vunpack.c.l.b16 %v224
  %v1049 = vunpack.c.h.b16 %v224
  %v1050 = vunpack.c.l.b16 %v225
  %v1051 = vunpack.c.h.b16 %v225
  %v1052 = vunpack.c.l.b16 %v226
  %v1053 = vunpack.c.h.b16 %v226
  %v1054 = vunpack.c.l.b16 %v227
  %v1055 = vunpack.c.h.b16 %v227
  %v1056 = vunpack.c.l.b16 %v228
  %v1057 = vunpack.c.h.b16 %v228
  %v1058 = vunpack.c.l.b16 %v229
  %v1059 = vunpack.c.h.b16 %v229
  %v1060 = vunpack.c.l.b16 %v230
  %v1061 = vunpack.c.h.b16 %v230
  %v1062 = vunpack.c.l.b16 %v231
  %v1063 = vunpack.c.h.b16 %v231
  %v1064 = vunpack.c.l.b16 %v232
  %v1065 = vunpack.c.h.b16 %v232
  %v1066 = vunpack.c.l.b16 %v233
  %v1067 = vunpack.c.h.b16 %v233
  %v1068 = vunpack.c.l.b16 %v234
  %v1069 = vunpack.c.h.b16 %v234
  %v1070 = vunpack.c.l.b16 %v235
  %v1071 = vunpack.c.h.b16 %v235
  %v1072 = vunpack.c.l.b16 %v236
  %v1073 = vunpack.c.h.b16 %v236
  %v1074 = vunpack.c.l.b16 %v237
  %v1075 = vunpack.c.h.b16 %v237
  %v1076 = vunpack.c.l.b16 %v238
  %v1077 = vunpack.c.h.b16 %v238
  %v1078 = vunpack.c.l.b16 %v239
  %v1079 = vunpack.c.h.b16 %v239
  %v1080 = vunpack.c.l.b16 %v240
  %v1081 = vunpack.c.h.b16 %v240
  %v1082 = vunpack.c.l.b16 %v241
  %v1083 = vunpack.c.h.b16 %v241
  %v1084 = vunpack.c.l.b16 %v242
  %v1085 = vunpack.c.h.b16 %v242
  %v1086 = vunpack.c.l.b16 %v243
  %v1087 = vunpack.c.h.b16 %v243
  %v1088 = vunpack.c.l.b16 %v244
  %v1089 = vunpack.c.h.b16 %v244
  %v1090 = vunpack.c.l.b16 %v245
  %v1091 = vunpack.c.h.b16 %v245
  %v1092 = vunpack.c.l.b16 %v246
  %v1093 = vunpack.c.h.b16 %v246
  %v1094 = vunpack.c.l.b16 %v247
  %v1095 = vunpack.c.h.b16 %v247
  %v1096 = vunpack.c.l.b16 %v248
  %v1097 = vunpack.c.h.b16 %v248
  %v1098 = vunpack.c.l.b16 %v249
  %v1099 = vunpack.c.h.b16 %v249
  %v1100 = vunpack.c.l.b16 %v250
  %v1101 = vunpack.c.h.b16 %v250
  %v1102 = vunpack.c.l.b16 %v251
  %v1103 = vunpack.c.h.b16 %v251
  %v1104 = vunpack.c.l.b16 %v252
  %v1105 = vunpack.c.h.b16 %v252
  %v1106 = vunpack.c.l.b16 %v253
  %v1107 = vunpack.c.h.b16 %v253
  %v1108 = vunpack.c.l.b16 %v254
  %v1109 = vunpack.c.h.b16 %v254
  %v1110 = vunpack.c.l.b16 %v255
  %v1111 = vunpack.c.h.b16 %v255
  %v1112 = vunpack.c.l.b16 %v256
  %v1113 = vunpack.c.h.b16 %v256
  %v1114 = vunpack.c.l.b16 %v257
  %v1115 = vunpack.c.h.b16 %v257
  %v1116 = vunpack.c.l.b16 %v258
  %v1117 = vunpack.c.h.b16 %v258
  %v1118 = vunpack.c.l.b16 %v259
  %v1119 = vunpack.c.h.b16 %v259
  %v1120 = vunpack.c.l.b16 %v260
  %v1121 = vunpack.c.h.b16 %v260
  %v1122 = vunpack.c.l.b16 %v261
  %v1123 = vunpack.c.h.b16 %v261
  %v1124 = vunpack.c.l.b16 %v262
  %v1125 = vunpack.c.h.b16 %v262
  %v1126 = vunpack.c.l.b16 %v263
  %v1127 = vunpack.c.h.b16 %v263
  %v1128 = vunpack.c.l.b16 %v264
  %v1129 = vunpack.c.h.b16 %v264
  %v1130 = vunpack.c.l.b16 %v265
  %v1131 = vunpack.c.h.b16 %v265
  %v1132 = vunpack.c.l.b16 %v266
  %v1133 = vunpack.c.h.b16 %v266
  %v1134 = vunpack.c.l.b16 %v267
  %v1135 = vunpack.c.h.b16 %v267
  %v1136 = vunpack.c.l.b16 %v268
  %v1137 = vunpack.c.h.b16 %v268
  %v1138 = vunpack.c.l.b16 %v269
  %v1139 = vunpack.c.h.b16 %v269
  %v1140 = vunpack.c.l.b16 %v270
  %v1141 = vunpack.c.h.b16 %v270
  %v1142 = vunpack.c.l.b16 %v271
  %v1143 = vunpack.c.h.b16 %v271
  %v1144 = vunpack.c.l.b16 %v272
  %v1145 = vunpack.c.h.b16 %v272
  %v1146 = vunpack.c.l.b16 %v273
  %v1147 = vunpack.c.h.b16 %v273
  %v1148 = vunpack.c.l.b16 %v274
  %v1149 = vunpack.c.h.b16 %v274
  %v1150 = vunpack.c.l.b16 %v275
  %v1151 = vunpack.c.h.b16 %v275
  %v1152 = vunpack.c.l.b16 %v276
  %v1153 = vunpack.c.h.b16 %v276
  %v1154 = vunpack.c.l.b16 %v277
  %v1155 = vunpack.c.h.b16 %v277
  %v1156 = vunpack.c.l.b16 %v278
  %v1157 = vunpack.c.h.b16 %v278
  %v1158 = vunpack.c.l.b16 %v279
  %v1159 = vunpack.c.h.b16 %v279
  %v1160 = vunpack.c.l.b16 %v280
  %v1161 = vunpack.c.h.b16 %v280
  %v1162 = vunpack.c.l.b16 %v281
  %v1163 = vunpack.c.h.b16 %v281
  %v1164 = vunpack.c.l.b16 %v282
  %v1165 = vunpack.c.h.b16 %v282
  %v1166 = vunpack.c.l.b16 %v283
  %v1167 = vunpack.c.h.b16 %v283
  %v1168 = vunpack.c.l.b16 %v284
  %v1169 = vunpack.c.h.b16 %v284
  %v1170 = vunpack.c.l.b16 %v285
  %v1171 = vunpack.c.h.b16 %v285
  %v1172 = vunpack.c.l.b16 %v286
  %v1173 = vunpack.c.h.b16 %v286
  %v1174 = vunpack.c.l.b16 %v287
  %v1175 = vunpack.c.h.b16 %v287
  %v1176 = vunpack.c.l.b16 %v288
  %v1177 = vunpack.c.h.b16 %v288
  %v1178 = vunpack.c.l.b16 %v289
  %v1179 = vunpack.c.h.b16 %v289
  %v1180 = vunpack.c.l.b16 %v290
  %v1181 = vunpack.c.h.b16 %v290
  %v1182 = vunpack.c.l.b16 %v291
  %v1183 = vunpack.c.h.b16 %v291
  %v1184 = vunpack.c.l.b16 %v292
  %v1185 = vunpack.c.h.b16 %v292
  %v1186 = vunpack.c.l.b16 %v293
  %v1187 = vunpack.c.h.b16 %v293
  %v1188 = vunpack.c.l.b16 %v294
  %v1189 = vunpack.c.h.b16 %v294
  %v1190 = vunpack.c.l.b16 %v295
  %v1191 = vunpack.c.h.b16 %v295
  %v1192 = vunpack.c.l.b16 %v296
  %v1193 = vunpack.c.h.b16 %v296
  %v1194 = vunpack.c.l.b16 %v297
  %v1195 = vunpack.c.h.b16 %v297
  %v1196 = vunpack.c.l.b16 %v298
  %v1197 = vunpack.c.h.b16 %v298
  %v1198 = vunpack.c.l.b16 %v299
  %v1199 = vunpack.c.h.b16 %v299
  %v1200 = vunpack.c.l.b16 %v300
  %v1201 = vunpack.c.h.b16 %v300
  %v1202 = vunpack.c.l.b16 %v301
  %v1203 = vunpack.c.h.b16 %v301
  %v1204 = vunpack.c.l.b16 %v302
  %v1205 = vunpack.c.h.b16 %v302
  %v1206 = vunpack.c.l.b16 %v303
  %v1207 = vunpack.c.h.b16 %v303
  %v1208 = vunpack.c.l.b16 %v304
  %v1209 = vunpack.c.h.b16 %v304
  %v1210 = vunpack.c.l.b16 %v305
  %v1211 = vunpack.c.h.b16 %v305
  %v1212 = vunpack.c.l.b16 %v306
  %v1213 = vunpack.c.h.b16 %v306
  %v1214 = vunpack.c.l.b16 %v307
  %v1215 = vunpack.c.h.b16 %v307
  %v1216 = vunpack.c.l.b16 %v308
  %v1217 = vunpack.c.h.b16 %v308
  %v1218 = vunpack.c.l.b16 %v309
  %v1219 = vunpack.c.h.b16 %v309
  %v1220 = vunpack.c.l.b16 %v310
  %v1221 = vunpack.c.h.b16 %v310
  %v1222 = vunpack.c.l.b16 %v311
  %v1223 = vunpack.c.h.b16 %v311
  %v1224 = vunpack.c.l.b16 %v312
  %v1225 = vunpack.c.h.b16 %v312
  %v1226 = vunpack.c.l.b16 %v313
  %v1227 = vunpack.c.h.b16 %v313
  %v1228 = vunpack.c.l.b16 %v314
  %v1229 = vunpack.c.h.b16 %v314
  %v1230 = vunpack.c.l.b16 %v315
  %v1231 = vunpack.c.h.b16 %v315
  %v1232 = vunpack.c.l.b16 %v316
  %v1233 = vunpack.c.h.b16 %v316
  %v1234 = vunpack.c.l.b16 %v317
  %v1235 = vunpack.c.h.b16 %v317
  %v1236 = vunpack.c.l.b16 %v318
  %v1237 = vunpack.c.h.b16 %v318
  %v1238 = vunpack.c.l.b16 %v319
  %v1239 = vunpack.c.h.b16 %v319
  %v1240 = vunpack.c.l.b16 %v320
  %v1241 = vunpack.c.h.b16 %v320
  %v1242 = vunpack.c.l.b16 %v321
  %v1243 = vunpack.c.h.b16 %v321
  %v1244 = vunpack.c.l.b16 %v322
  %v1245 = vunpack.c.h.b16 %v322
  %v1246 = vunpack.c.l.b16 %v323
  %v1247 = vunpack.c.h.b16 %v323
  %v1248 = vunpack.c.l.b16 %v324
  %v1249 = vunpack.c.h.b16 %v324
  %v1250 = vunpack.c.l.b16 %v325
  %v1251 = vunpack.c.h.b16 %v325
  %v1252 = vunpack.c.l.b16 %v326
  %v1253 = vunpack.c.h.b16 %v326
  %v1254 = vunpack.c.l.b16 %v327
  %v1255 = vunpack.c.h.b16 %v327
  %v1256 = vunpack.c.l.b16 %v328
  %v1257 = vunpack.c.h.b16 %v328
  %v1258 = vunpack.c.l.b16 %v329
  %v1259 = vunpack.c.h.b16 %v329
  %v1260 = vunpack.c.l.b16 %v330
  %v1261 = vunpack.c.h.b16 %v330
  %v1262 = vunpack.c.l.b16 %v331
  %v1263 = vunpack.c.h.b16 %v331
  %v1264 = vunpack.c.l.b16 %v332
  %v1265 = vunpack.c.h.b16 %v332
  %v1266 = vunpack.c.l.b16 %v333
  %v1267 = vunpack.c.h.b16 %v333
  %v1268 = vunpack.c.l.b16 %v334
  %v1269 = vunpack.c.h.b16 %v334
  %v1270 = vunpack.c.l.b16 %v335
  %v1271 = vunpack.c.h.b16 %v335
  %v1272 = vpack.c.b16 %v792, %v760
  %v1273 = vpack.c.b16 %v793, %v761
  %v1274 = vpack.c.b16 %v794, %v762
  %v1275 = vpack.c.b16 %v795, %v763
  %v1276 = vpack.c.b16 %v796, %v764
  %v1277 = vpack.c.b16 %v797, %v765
  %v1278 = vpack.c.b16 %v798, %v766
  %v1279 = vpack.c.b16 %v799, %v767
  %v1280 = vpack.c.b16 %v800, %v768
  %v1281 = vpack.c.b16 %v801, %v769
  %v1282 = vpack.c.b16 %v802, %v770
  %v1283 = vpack.c.b16 %v803, %v771
  %v1284 = vpack.c.b16 %v804, %v772
  %v1285 = vpack.c.b16 %v805, %v773
  %v1286 = vpack.c.b16 %v806, %v774
  %v1287 = vpack.c.b16 %v807, %v775
  %v1288 = vpack.c.b16 %v808, %v776
  %v1289 = vpack.c.b16 %v809, %v777
  %v1290 = vpack.c.b16 %v810, %v778
  %v1291 = vpack.c.b16 %v811, %v779
  %v1292 = vpack.c.b16 %v812, %v780
  %v1293 = vpack.c.b16 %v813, %v781
  %v1294 = vpack.c.b16 %v814, %v782
  %v1295 = vpack.c.b16 %v815, %v783
  %v1296 = vpack.c.b16 %v816, %v784
  %v1297 = vpack.c.b16 %v817, %v785
  %v1298 = vpack.c.b16 %v818, %v786
  %v1299 = vpack.c.b16 %v819, %v787
  %v1300 = vpack.c.b16 %v820, %v788
  %v1301 = vpack.c.b16 %v821, %v789
  %v1302 = vpack.c.b16 %v822, %v790
  %v1303 = vpack.c.b16 %v823, %v791
  %v1304 = vpack.c.b16 %v856, %v824
  %v1305 = vpack.c.b16 %v857, %v825
  %v1306 = vpack.c.b16 %v858, %v826
  %v1307 = vpack.c.b16 %v859, %v827
  %v1308 = vpack.c.b16 %v860, %v828
  %v1309 = vpack.c.b16 %v861, %v829
  %v1310 = vpack.c.b16 %v862, %v830
  %v1311 = vpack.c.b16 %v863, %v831
  %v1312 = vpack.c.b16 %v864, %v832
  %v1313 = vpack.c.b16 %v865, %v833
  %v1314 = vpack.c.b16 %v866, %v834
  %v1315 = vpack.c.b16 %v867, %v835
  %v1316 = vpack.c.b16 %v868, %v836
  %v1317 = vpack.c.b16 %v869, %v837
  %v1318 = vpack.c.b16 %v870, %v838
  %v1319 = vpack.c.b16 %v871, %v839
  %v1320 = vpack.c.b16 %v872, %v840
  %v1321 = vpack.c.b16 %v873, %v841
  %v1322 = vpack.c.b16 %v874, %v842
  %v1323 = vpack.c.b16 %v875, %v843
  %v1324 = vpack.c.b16 %v876, %v844
  %v1325 = vpack.c.b16 %v877, %v845
  %v1326 = vpack.c.b16 %v878, %v846
  %v1327 = vpack.c.b16 %v879, %v847
  %v1328 = vpack.c.b16 %v880, %v848
  %v1329 = vpack.c.b16 %v881, %v849
  %v1330 = vpack.c.b16 %v882, %v850
  %v1331 = vpack.c.b16 %v883, %v851
  %v1332 = vpack.c.b16 %v884, %v852
  %v1333 = vpack.c.b16 %v885, %v853
  %v1334 = vpack.c.b16 %v886, %v854
  %v1335 = vpack.c.b16 %v887, %v855
  %v1336 = vpack.c.b16 %v920, %v888
  %v1337 = vpack.c.b16 %v921, %v889
  %v1338 = vpack.c.b16 %v922, %v890
  %v1339 = vpack.c.b16 %v923, %v891
  %v1340 = vpack.c.b16 %v924, %v892
  %v1341 = vpack.c.b16 %v925, %v893
  %v1342 = vpack.c.b16 %v926, %v894
  %v1343 = vpack.c.b16 %v927, %v895
  %v1344 = vpack.c.b16 %v928, %v896
  %v1345 = vpack.c.b16 %v929, %v897
  %v1346 = vpack.c.b16 %v930, %v898
  %v1347 = vpack.c.b16 %v931, %v899
  %v1348 = vpack.c.b16 %v932, %v900
  %v1349 = vpack.c.b16 %v933, %v901
  %v1350 = vpack.c.b16 %v934, %v902
  %v1351 = vpack.c.b16 %v935, %v903
  %v1352 = vpack.c.b16 %v936, %v904
  %v1353 = vpack.c.b16 %v937, %v905
  %v1354 = vpack.c.b16 %v938, %v906
  %v1355 = vpack.c.b16 %v939, %v907
  %v1356 = vpack.c.b16 %v940, %v908
  %v1357 = vpack.c.b16 %v941, %v909
  %v1358 = vpack.c.b16 %v942, %v910
  %v1359 = vpack.c.b16 %v943, %v911
  %v1360 = vpack.c.b16 %v944, %v912
  %v1361 = vpack.c.b16 %v945, %v913
  %v1362 = vpack.c.b16 %v946, %v914
  %v1363 = vpack.c.b16 %v947, %v915
  %v1364 = vpack.c.b16 %v948, %v916
  %v1365 = vpack.c.b16 %v949, %v917
  %v1366 = vpack.c.b16 %v950, %v918
  %v1367 = vpack.c.b16 %v951, %v919
  %v1368 = vpack.c.b16 %v984, %v952
  %v1369 = vpack.c.b16 %v985, %v953
  %v1370 = vpack.c.b16 %v986, %v954
  %v1371 = vpack.c.b16 %v987, %v955
  %v1372 = vpack.c.b16 %v988, %v956
  %v1373 = vpack.c.b16 %v989, %v957
  %v1374 = vpack.c.b16 %v990, %v958
  %v1375 = vpack.c.b16 %v991, %v959
  %v1376 = vpack.c.b16 %v992, %v960
  %v1377 = vpack.c.b16 %v993, %v961
  %v1378 = vpack.c.b16 %v994, %v962
  %v1379 = vpack.c.b16 %v995, %v963
  %v1380 = vpack.c.b16 %v996, %v964
  %v1381 = vpack.c.b16 %v997, %v965
  %v1382 = vpack.c.b16 %v998, %v966
  %v1383 = vpack.c.b16 %v999, %v967
  %v1384 = vpack.c.b16 %v1000, %v968
  %v1385 = vpack.c.b16 %v1001, %v969
  %v1386 = vpack.c.b16 %v1002, %v970
  %v1387 = vpack.c.b16 %v1003, %v971
  %v1388 = vpack.c.b16 %v1004, %v972
  %v1389 = vpack.c.b16 %v1005, %v973
  %v1390 = vpack.c.b16 %v1006, %v974
  %v1391 = vpack.c.b16 %v1007, %v975
  %v1392 = vpack.c.b16 %v1008, %v976
  %v1393 = vpack.c.b16 %v1009, %v977
  %v1394 = vpack.c.b16 %v1010, %v978
  %v1395 = vpack.c.b16 %v1011, %v979
  %v1396 = vpack.c.b16 %v1012, %v980
  %v1397 = vpack.c.b16 %v1013, %v981
  %v1398 = vpack.c.b16 %v1014, %v982
  %v1399 = vpack.c.b16 %v1015, %v983
  %v1400 = vpack.c.b16 %v1048, %v1016
  %v1401 = vpack.c.b16 %v1049, %v1017
  %v1402 = vpack.c.b16 %v1050, %v1018
  %v1403 = vpack.c.b16 %v1051, %v1019
  %v1404 = vpack.c.b16 %v1052, %v1020
  %v1405 = vpack.c.b16 %v1053, %v1021
  %v1406 = vpack.c.b16 %v1054, %v1022
  %v1407 = vpack.c.b16 %v1055, %v1023
  %v1408 = vpack.c.b16 %v1056, %v1024
  %v1409 = vpack.c.b16 %v1057, %v1025
  %v1410 = vpack.c.b16 %v1058, %v1026
  %v1411 = vpack.c.b16 %v1059, %v1027
  %v1412 = vpack.c.b16 %v1060, %v1028
  %v1413 = vpack.c.b16 %v1061, %v1029
  %v1414 = vpack.c.b16 %v1062, %v1030
  %v1415 = vpack.c.b16 %v1063, %v1031
  %v1416 = vpack.c.b16 %v1064, %v1032
  %v1417 = vpack.c.b16 %v1065, %v1033
  %v1418 = vpack.c.b16 %v1066, %v1034
  %v1419 = vpack.c.b16 %v1067, %v1035
  %v1420 = vpack.c.b16 %v1068, %v1036
  %v1421 = vpack.c.b16 %v1069, %v1037
  %v1422 = vpack.c.b16 %v1070, %v1038
  %v1423 = vpack.c.b16 %v1071, %v1039
  %v1424 = vpack.c.b16 %v1072, %v1040
  %v1425 = vpack.c.b16 %v1073, %v1041
  %v1426 = vpack.c.b16 %v1074, %v1042
  %v1427 = vpack.c.b16 %v1075, %v1043
  %v1428 = vpack.c.b16 %v1076, %v1044
  %v1429 = vpack.c.b16 %v1077, %v1045
  %v1430 = vpack.c.b16 %v1078, %v1046
  %v1431 = vpack.c.b16 %v1079, %v1047
  %v1432 = vpack.c.b16 %v1112, %v1080
  %v1433 = vpack.c.b16 %v1113, %v1081
  %v1434 = vpack.c.b16 %v1114, %v1082
  %v1435 = vpack.c.b16 %v1115, %v1083
  %v1436 = vpack.c.b16 %v1116, %v1084
  %v1437 = vpack.c.b16 %v1117, %v1085
  %v1438 = vpack.c.b16 %v1118, %v1086
  %v1439 = vpack.c.b16 %v1119, %v1087
  %v1440 = vpack.c.b16 %v1120, %v1088
  %v1441 = vpack.c.b16 %v1121, %v1089
  %v1442 = vpack.c.b16 %v1122, %v1090
  %v1443 = vpack.c.b16 %v1123, %v1091
  %v1444 = vpack.c.b16 %v1124, %v1092
  %v1445 = vpack.c.b16 %v1125, %v1093
  %v1446 = vpack.c.b16 %v1126, %v1094
  %v1447 = vpack.c.b16 %v1127, %v1095
  %v1448 = vpack.c.b16 %v1128, %v1096
  %v1449 = vpack.c.b16 %v1129, %v1097
  %v1450 = vpack.c.b16 %v1130, %v1098
  %v1451 = vpack.c.b16 %v1131, %v1099
  %v1452 = vpack.c.b16 %v1132, %v1100
  %v1453 = vpack.c.b16 %v1133, %v1101
  %v1454 = vpack.c.b16 %v1134, %v1102
  %v1455 = vpack.c.b16 %v1135, %v1103
  %v1456 = vpack.c.b16 %v1136, %v1104
  %v1457 = vpack.c.b16 %v1137, %v1105
  %v1458 = vpack.c.b16 %v1138, %v1106
  %v1459 = vpack.c.b16 %v1139, %v1107
  %v1460 = vpack.c.b16 %v1140, %v1108
  %v1461 = vpack.c.b16 %v1141, %v1109
  %v1462 = vpack.c.b16 %v1142, %v1110
  %v1463 = vpack.c.b16 %v1143, %v1111
  %v1464 = vpack.c.b16 %v1176, %v1144
  %v1465 = vpack.c.b16 %v1177, %v1145
  %v1466 = vpack.c.b16 %v1178, %v1146
  %v1467 = vpack.c.b16 %v1179, %v1147
  %v1468 = vpack.c.b16 %v1180, %v1148
  %v1469 = vpack.c.b16 %v1181, %v1149
  %v1470 = vpack.c.b16 %v1182, %v1150
  %v1471 = vpack.c.b16 %v1183, %v1151
  %v1472 = vpack.c.b16 %v1184, %v1152
  %v1473 = vpack.c.b16 %v1185, %v1153
  %v1474 = vpack.c.b16 %v1186, %v1154
  %v1475 = vpack.c.b16 %v1187, %v1155
  %v1476 = vpack.c.b16 %v1188, %v1156
  %v1477 = vpack.c.b16 %v1189, %v1157
  %v1478 = vpack.c.b16 %v1190, %v1158
  %v1479 = vpack.c.b16 %v1191, %v1159
  %v1480 = vpack.c.b16 %v1192, %v1160
  %v1481 = vpack.c.b16 %v1193, %v1161
  %v1482 = vpack.c.b16 %v1194, %v1162
  %v1483 = vpack.c.b16 %v1195, %v1163
  %v1484 = vpack.c.b16 %v1196, %v1164
  %v1485 = vpack.c.b16 %v1197, %v1165
  %v1486 = vpack.c.b16 %v1198, %v1166
  %v1487 = vpack.c.b16 %v1199, %v1167
  %v1488 = vpack.c.b16 %v1200, %v1168
  %v1489 = vpack.c.b16 %v1201, %v1169
  %v1490 = vpack.c.b16 %v1202, %v1170
  %v1491 = vpack.c.b16 %v1203, %v1171
  %v1492 = vpack.c.b16 %v1204, %v1172
  %v1493 = vpack.c.b16 %v1205, %v1173
  %v1494 = vpack.c.b16 %v1206, %v1174
  %v1495 = vpack.c.b16 %v1207, %v1175
  %v1496 = vpack.c.b16 %v1240, %v1208
  %v1497 = vpack.c.b16 %v1241, %v1209
  %v1498 = vpack.c.b16 %v1242, %v1210
  %v1499 = vpack.c.b16 %v1243, %v1211
  %v1500 = vpack.c.b16 %v1244, %v1212
  %v1501 = vpack.c.b16 %v1245, %v1213
  %v1502 = vpack.c.b16 %v1246, %v1214
  %v1503 = vpack.c.b16 %v1247, %v1215
  %v1504 = vpack.c.b16 %v1248, %v1216
  %v1505 = vpack.c.b16 %v1249, %v1217
  %v1506 = vpack.c.b16 %v1250, %v1218
  %v1507 = vpack.c.b16 %v1251, %v1219
  %v1508 = vpack.c.b16 %v1252, %v1220
  %v1509 = vpack.c.b16 %v1253, %v1221
  %v1510 = vpack.c.b16 %v1254, %v1222
  %v1511 = vpack.c.b16 %v1255, %v1223
  %v1512 = vpack.c.b16 %v1256, %v1224
  %v1513 = vpack.c.b16 %v1257, %v1225
  %v1514 = vpack.c.b16 %v1258, %v1226
  %v1515 = vpack.c.b16 %v1259, %v1227
  %v1516 = vpack.c.b16 %v1260, %v1228
  %v1517 = vpack.c.b16 %v1261, %v1229
  %v1518 = vpack.c.b16 %v1262, %v1230
  %v1519 = vpack.c.b16 %v1263, %v1231
  %v1520 = vpack.c.b16 %v1264, %v1232
  %v1521 = vpack.c.b16 %v1265, %v1233
  %v1522 = vpack.c.b16 %v1266, %v1234
  %v1523 = vpack.c.b16 %v1267, %v1235
  %v1524 = vpack.c.b16 %v1268, %v1236
  %v1525 = vpack.c.b16 %v1269, %v1237
  %v1526 = vpack.c.b16 %v1270, %v1238
  %v1527 = vpack.c.b16 %v1271, %v1239
  %1784 = vmatprep.subr.bf16.mxu0 %v1273
  %1785 = vmatpush1.bf16.msra.mxu0 %v1272
  %1786 = vmatprep.subr.bf16.mxu0 %v1305
  %1787 = vmatpush1.bf16.msra.mxu0 %v1304
  %1788 = vmatprep.subr.bf16.mxu0 %v1337
  %1789 = vmatpush1.bf16.msra.mxu0 %v1336
  %1790 = vmatprep.subr.bf16.mxu0 %v1369
  %1791 = vmatpush1.bf16.msra.mxu0 %v1368
  %1792 = vmatprep.subr.bf16.mxu0 %v1401
  %1793 = vmatpush1.bf16.msra.mxu0 %v1400
  %1794 = vmatprep.subr.bf16.mxu0 %v1433
  %1795 = vmatpush1.bf16.msra.mxu0 %v1432
  %1796 = vmatprep.subr.bf16.mxu0 %v1465
  %1797 = vmatpush1.bf16.msra.mxu0 %v1464
  %1798 = vmatprep.subr.bf16.mxu0 %v1497
  %1799 = vmatpush1.bf16.msra.mxu0 %v1496
  %1800 = vmatprep.subr.bf16.mxu0 0
  %1801 = vmatpush1.bf16.msra.mxu0 0
  %1802 = vmatprep.subr.bf16.mxu0 0
  %1803 = vmatpush1.bf16.msra.mxu0 0
  %1804 = vmatprep.subr.bf16.mxu0 0
  %1805 = vmatpush1.bf16.msra.mxu0 0
  %1806 = vmatprep.subr.bf16.mxu0 0
  %1807 = vmatpush1.bf16.msra.mxu0 0
  %1808 = vmatprep.subr.bf16.mxu0 0
  %1809 = vmatpush1.bf16.msra.mxu0 0
  %1810 = vmatprep.subr.bf16.mxu0 0
  %1811 = vmatpush1.bf16.msra.mxu0 0
  %1812 = vmatprep.subr.bf16.mxu0 0
  %1813 = vmatpush1.bf16.msra.mxu0 0
  %1814 = vmatprep.subr.bf16.mxu0 0
  %1815 = vmatpush1.bf16.msra.mxu0 0
  %1816 = vmatprep.mubr.bf16.mxu0 0
  %1817 = vmatmul.mubr.bf16.gmra.mrb[0].mxu0 %v79
  %v1818 = vpop.f32.mrb[0].mxu0
  %v1819 = vadd.f32 %v347, %v1818
  %v1820 = vpop.f32.mrb[0].mxu0
  %v1821 = vadd.f32 %v351, %v1820
  %v1822 = vpop.f32.mrb[0].mxu0
  %v1823 = vpop.f32.mrb[0].mxu0
  %1824 = vdwg.mxu0
  %1825 = vmatprep.subr.bf16.mxu0 %v1275
  %1826 = vmatpush1.bf16.msra.mxu0 %v1274
  %1827 = vmatprep.subr.bf16.mxu0 %v1307
  %1828 = vmatpush1.bf16.msra.mxu0 %v1306
  %1829 = vmatprep.subr.bf16.mxu0 %v1339
  %1830 = vmatpush1.bf16.msra.mxu0 %v1338
  %1831 = vmatprep.subr.bf16.mxu0 %v1371
  %1832 = vmatpush1.bf16.msra.mxu0 %v1370
  %1833 = vmatprep.subr.bf16.mxu0 %v1403
  %1834 = vmatpush1.bf16.msra.mxu0 %v1402
  %1835 = vmatprep.subr.bf16.mxu0 %v1435
  %1836 = vmatpush1.bf16.msra.mxu0 %v1434
  %1837 = vmatprep.subr.bf16.mxu0 %v1467
  %1838 = vmatpush1.bf16.msra.mxu0 %v1466
  %1839 = vmatprep.subr.bf16.mxu0 %v1499
  %1840 = vmatpush1.bf16.msra.mxu0 %v1498
  %1841 = vmatprep.subr.bf16.mxu0 0
  %1842 = vmatpush1.bf16.msra.mxu0 0
  %1843 = vmatprep.subr.bf16.mxu0 0
  %1844 = vmatpush1.bf16.msra.mxu0 0
  %1845 = vmatprep.subr.bf16.mxu0 0
  %1846 = vmatpush1.bf16.msra.mxu0 0
  %1847 = vmatprep.subr.bf16.mxu0 0
  %1848 = vmatpush1.bf16.msra.mxu0 0
  %1849 = vmatprep.subr.bf16.mxu0 0
  %1850 = vmatpush1.bf16.msra.mxu0 0
  %1851 = vmatprep.subr.bf16.mxu0 0
  %1852 = vmatpush1.bf16.msra.mxu0 0
  %1853 = vmatprep.subr.bf16.mxu0 0
  %1854 = vmatpush1.bf16.msra.mxu0 0
  %1855 = vmatprep.subr.bf16.mxu0 0
  %1856 = vmatpush1.bf16.msra.mxu0 0
  %1857 = vmatprep.mubr.bf16.mxu0 0
  %1858 = vmatmul.mubr.bf16.gmra.mrb[0].mxu0 %v79
  %v1859 = vpop.f32.mrb[0].mxu0
  %v1860 = vadd.f32 %v355, %v1859
  %v1861 = vpop.f32.mrb[0].mxu0
  %v1862 = vadd.f32 %v359, %v1861
  %v1863 = vpop.f32.mrb[0].mxu0
  %v1864 = vpop.f32.mrb[0].mxu0
  %1865 = vdwg.mxu0
  %1866 = vmatprep.subr.bf16.mxu0 %v1277
  %1867 = vmatpush1.bf16.msra.mxu0 %v1276
  %1868 = vmatprep.subr.bf16.mxu0 %v1309
  %1869 = vmatpush1.bf16.msra.mxu0 %v1308
  %1870 = vmatprep.subr.bf16.mxu0 %v1341
  %1871 = vmatpush1.bf16.msra.mxu0 %v1340
  %1872 = vmatprep.subr.bf16.mxu0 %v1373
  %1873 = vmatpush1.bf16.msra.mxu0 %v1372
  %1874 = vmatprep.subr.bf16.mxu0 %v1405
  %1875 = vmatpush1.bf16.msra.mxu0 %v1404
  %1876 = vmatprep.subr.bf16.mxu0 %v1437
  %1877 = vmatpush1.bf16.msra.mxu0 %v1436
  %1878 = vmatprep.subr.bf16.mxu0 %v1469
  %1879 = vmatpush1.bf16.msra.mxu0 %v1468
  %1880 = vmatprep.subr.bf16.mxu0 %v1501
  %1881 = vmatpush1.bf16.msra.mxu0 %v1500
  %1882 = vmatprep.subr.bf16.mxu0 0
  %1883 = vmatpush1.bf16.msra.mxu0 0
  %1884 = vmatprep.subr.bf16.mxu0 0
  %1885 = vmatpush1.bf16.msra.mxu0 0
  %1886 = vmatprep.subr.bf16.mxu0 0
  %1887 = vmatpush1.bf16.msra.mxu0 0
  %1888 = vmatprep.subr.bf16.mxu0 0
  %1889 = vmatpush1.bf16.msra.mxu0 0
  %1890 = vmatprep.subr.bf16.mxu0 0
  %1891 = vmatpush1.bf16.msra.mxu0 0
  %1892 = vmatprep.subr.bf16.mxu0 0
  %1893 = vmatpush1.bf16.msra.mxu0 0
  %1894 = vmatprep.subr.bf16.mxu0 0
  %1895 = vmatpush1.bf16.msra.mxu0 0
  %1896 = vmatprep.subr.bf16.mxu0 0
  %1897 = vmatpush1.bf16.msra.mxu0 0
  %1898 = vmatprep.mubr.bf16.mxu0 0
  %1899 = vmatmul.mubr.bf16.gmra.mrb[0].mxu0 %v79
  %v1900 = vpop.f32.mrb[0].mxu0
  %v1901 = vadd.f32 %v363, %v1900
  %v1902 = vpop.f32.mrb[0].mxu0
  %v1903 = vadd.f32 %v367, %v1902
  %v1904 = vpop.f32.mrb[0].mxu0
  %v1905 = vpop.f32.mrb[0].mxu0
  %1906 = vdwg.mxu0
  %1907 = vmatprep.subr.bf16.mxu0 %v1279
  %1908 = vmatpush1.bf16.msra.mxu0 %v1278
  %1909 = vmatprep.subr.bf16.mxu0 %v1311
  %1910 = vmatpush1.bf16.msra.mxu0 %v1310
  %1911 = vmatprep.subr.bf16.mxu0 %v1343
  %1912 = vmatpush1.bf16.msra.mxu0 %v1342
  %1913 = vmatprep.subr.bf16.mxu0 %v1375
  %1914 = vmatpush1.bf16.msra.mxu0 %v1374
  %1915 = vmatprep.subr.bf16.mxu0 %v1407
  %1916 = vmatpush1.bf16.msra.mxu0 %v1406
  %1917 = vmatprep.subr.bf16.mxu0 %v1439
  %1918 = vmatpush1.bf16.msra.mxu0 %v1438
  %1919 = vmatprep.subr.bf16.mxu0 %v1471
  %1920 = vmatpush1.bf16.msra.mxu0 %v1470
  %1921 = vmatprep.subr.bf16.mxu0 %v1503
  %1922 = vmatpush1.bf16.msra.mxu0 %v1502
  %1923 = vmatprep.subr.bf16.mxu0 0
  %1924 = vmatpush1.bf16.msra.mxu0 0
  %1925 = vmatprep.subr.bf16.mxu0 0
  %1926 = vmatpush1.bf16.msra.mxu0 0
  %1927 = vmatprep.subr.bf16.mxu0 0
  %1928 = vmatpush1.bf16.msra.mxu0 0
  %1929 = vmatprep.subr.bf16.mxu0 0
  %1930 = vmatpush1.bf16.msra.mxu0 0
  %1931 = vmatprep.subr.bf16.mxu0 0
  %1932 = vmatpush1.bf16.msra.mxu0 0
  %1933 = vmatprep.subr.bf16.mxu0 0
  %1934 = vmatpush1.bf16.msra.mxu0 0
  %1935 = vmatprep.subr.bf16.mxu0 0
  %1936 = vmatpush1.bf16.msra.mxu0 0
  %1937 = vmatprep.subr.bf16.mxu0 0
  %1938 = vmatpush1.bf16.msra.mxu0 0
  %1939 = vmatprep.mubr.bf16.mxu0 0
  %1940 = vmatmul.mubr.bf16.gmra.mrb[0].mxu0 %v79
  %v1941 = vpop.f32.mrb[0].mxu0
  %v1942 = vadd.f32 %v371, %v1941
  %v1943 = vpop.f32.mrb[0].mxu0
  %v1944 = vadd.f32 %v375, %v1943
  %v1945 = vpop.f32.mrb[0].mxu0
  %v1946 = vpop.f32.mrb[0].mxu0
  %1947 = vdwg.mxu0
  %1948 = vmatprep.subr.bf16.mxu0 %v1281
  %1949 = vmatpush1.bf16.msra.mxu0 %v1280
  %1950 = vmatprep.subr.bf16.mxu0 %v1313
  %1951 = vmatpush1.bf16.msra.mxu0 %v1312
  %1952 = vmatprep.subr.bf16.mxu0 %v1345
  %1953 = vmatpush1.bf16.msra.mxu0 %v1344
  %1954 = vmatprep.subr.bf16.mxu0 %v1377
  %1955 = vmatpush1.bf16.msra.mxu0 %v1376
  %1956 = vmatprep.subr.bf16.mxu0 %v1409
  %1957 = vmatpush1.bf16.msra.mxu0 %v1408
  %1958 = vmatprep.subr.bf16.mxu0 %v1441
  %1959 = vmatpush1.bf16.msra.mxu0 %v1440
  %1960 = vmatprep.subr.bf16.mxu0 %v1473
  %1961 = vmatpush1.bf16.msra.mxu0 %v1472
  %1962 = vmatprep.subr.bf16.mxu0 %v1505
  %1963 = vmatpush1.bf16.msra.mxu0 %v1504
  %1964 = vmatprep.subr.bf16.mxu0 0
  %1965 = vmatpush1.bf16.msra.mxu0 0
  %1966 = vmatprep.subr.bf16.mxu0 0
  %1967 = vmatpush1.bf16.msra.mxu0 0
  %1968 = vmatprep.subr.bf16.mxu0 0
  %1969 = vmatpush1.bf16.msra.mxu0 0
  %1970 = vmatprep.subr.bf16.mxu0 0
  %1971 = vmatpush1.bf16.msra.mxu0 0
  %1972 = vmatprep.subr.bf16.mxu0 0
  %1973 = vmatpush1.bf16.msra.mxu0 0
  %1974 = vmatprep.subr.bf16.mxu0 0
  %1975 = vmatpush1.bf16.msra.mxu0 0
  %1976 = vmatprep.subr.bf16.mxu0 0
  %1977 = vmatpush1.bf16.msra.mxu0 0
  %1978 = vmatprep.subr.bf16.mxu0 0
  %1979 = vmatpush1.bf16.msra.mxu0 0
  %1980 = vmatprep.mubr.bf16.mxu0 0
  %1981 = vmatmul.mubr.bf16.gmra.mrb[0].mxu0 %v79
  %v1982 = vpop.f32.mrb[0].mxu0
  %v1983 = vadd.f32 %v379, %v1982
  %v1984 = vpop.f32.mrb[0].mxu0
  %v1985 = vadd.f32 %v383, %v1984
  %v1986 = vpop.f32.mrb[0].mxu0
  %v1987 = vpop.f32.mrb[0].mxu0
  %1988 = vdwg.mxu0
  %1989 = vmatprep.subr.bf16.mxu0 %v1283
  %1990 = vmatpush1.bf16.msra.mxu0 %v1282
  %1991 = vmatprep.subr.bf16.mxu0 %v1315
  %1992 = vmatpush1.bf16.msra.mxu0 %v1314
  %1993 = vmatprep.subr.bf16.mxu0 %v1347
  %1994 = vmatpush1.bf16.msra.mxu0 %v1346
  %1995 = vmatprep.subr.bf16.mxu0 %v1379
  %1996 = vmatpush1.bf16.msra.mxu0 %v1378
  %1997 = vmatprep.subr.bf16.mxu0 %v1411
  %1998 = vmatpush1.bf16.msra.mxu0 %v1410
  %1999 = vmatprep.subr.bf16.mxu0 %v1443
  %2000 = vmatpush1.bf16.msra.mxu0 %v1442
  %2001 = vmatprep.subr.bf16.mxu0 %v1475
  %2002 = vmatpush1.bf16.msra.mxu0 %v1474
  %2003 = vmatprep.subr.bf16.mxu0 %v1507
  %2004 = vmatpush1.bf16.msra.mxu0 %v1506
  %2005 = vmatprep.subr.bf16.mxu0 0
  %2006 = vmatpush1.bf16.msra.mxu0 0
  %2007 = vmatprep.subr.bf16.mxu0 0
  %2008 = vmatpush1.bf16.msra.mxu0 0
  %2009 = vmatprep.subr.bf16.mxu0 0
  %2010 = vmatpush1.bf16.msra.mxu0 0
  %2011 = vmatprep.subr.bf16.mxu0 0
  %2012 = vmatpush1.bf16.msra.mxu0 0
  %2013 = vmatprep.subr.bf16.mxu0 0
  %2014 = vmatpush1.bf16.msra.mxu0 0
  %2015 = vmatprep.subr.bf16.mxu0 0
  %2016 = vmatpush1.bf16.msra.mxu0 0
  %2017 = vmatprep.subr.bf16.mxu0 0
  %2018 = vmatpush1.bf16.msra.mxu0 0
  %2019 = vmatprep.subr.bf16.mxu0 0
  %2020 = vmatpush1.bf16.msra.mxu0 0
  %2021 = vmatprep.mubr.bf16.mxu0 0
  %2022 = vmatmul.mubr.bf16.gmra.mrb[0].mxu0 %v79
  %v2023 = vpop.f32.mrb[0].mxu0
  %v2024 = vadd.f32 %v387, %v2023
  %v2025 = vpop.f32.mrb[0].mxu0
  %v2026 = vadd.f32 %v391, %v2025
  %v2027 = vpop.f32.mrb[0].mxu0
  %v2028 = vpop.f32.mrb[0].mxu0
  %2029 = vdwg.mxu0
  %2030 = vmatprep.subr.bf16.mxu0 %v1285
  %2031 = vmatpush1.bf16.msra.mxu0 %v1284
  %2032 = vmatprep.subr.bf16.mxu0 %v1317
  %2033 = vmatpush1.bf16.msra.mxu0 %v1316
  %2034 = vmatprep.subr.bf16.mxu0 %v1349
  %2035 = vmatpush1.bf16.msra.mxu0 %v1348
  %2036 = vmatprep.subr.bf16.mxu0 %v1381
  %2037 = vmatpush1.bf16.msra.mxu0 %v1380
  %2038 = vmatprep.subr.bf16.mxu0 %v1413
  %2039 = vmatpush1.bf16.msra.mxu0 %v1412
  %2040 = vmatprep.subr.bf16.mxu0 %v1445
  %2041 = vmatpush1.bf16.msra.mxu0 %v1444
  %2042 = vmatprep.subr.bf16.mxu0 %v1477
  %2043 = vmatpush1.bf16.msra.mxu0 %v1476
  %2044 = vmatprep.subr.bf16.mxu0 %v1509
  %2045 = vmatpush1.bf16.msra.mxu0 %v1508
  %2046 = vmatprep.subr.bf16.mxu0 0
  %2047 = vmatpush1.bf16.msra.mxu0 0
  %2048 = vmatprep.subr.bf16.mxu0 0
  %2049 = vmatpush1.bf16.msra.mxu0 0
  %2050 = vmatprep.subr.bf16.mxu0 0
  %2051 = vmatpush1.bf16.msra.mxu0 0
  %2052 = vmatprep.subr.bf16.mxu0 0
  %2053 = vmatpush1.bf16.msra.mxu0 0
  %2054 = vmatprep.subr.bf16.mxu0 0
  %2055 = vmatpush1.bf16.msra.mxu0 0
  %2056 = vmatprep.subr.bf16.mxu0 0
  %2057 = vmatpush1.bf16.msra.mxu0 0
  %2058 = vmatprep.subr.bf16.mxu0 0
  %2059 = vmatpush1.bf16.msra.mxu0 0
  %2060 = vmatprep.subr.bf16.mxu0 0
  %2061 = vmatpush1.bf16.msra.mxu0 0
  %2062 = vmatprep.mubr.bf16.mxu0 0
  %2063 = vmatmul.mubr.bf16.gmra.mrb[0].mxu0 %v79
  %v2064 = vpop.f32.mrb[0].mxu0
  %v2065 = vadd.f32 %v395, %v2064
  %v2066 = vpop.f32.mrb[0].mxu0
  %v2067 = vadd.f32 %v399, %v2066
  %v2068 = vpop.f32.mrb[0].mxu0
  %v2069 = vpop.f32.mrb[0].mxu0
  %2070 = vdwg.mxu0
  %2071 = vmatprep.subr.bf16.mxu0 %v1287
  %2072 = vmatpush1.bf16.msra.mxu0 %v1286
  %2073 = vmatprep.subr.bf16.mxu0 %v1319
  %2074 = vmatpush1.bf16.msra.mxu0 %v1318
  %2075 = vmatprep.subr.bf16.mxu0 %v1351
  %2076 = vmatpush1.bf16.msra.mxu0 %v1350
  %2077 = vmatprep.subr.bf16.mxu0 %v1383
  %2078 = vmatpush1.bf16.msra.mxu0 %v1382
  %2079 = vmatprep.subr.bf16.mxu0 %v1415
  %2080 = vmatpush1.bf16.msra.mxu0 %v1414
  %2081 = vmatprep.subr.bf16.mxu0 %v1447
  %2082 = vmatpush1.bf16.msra.mxu0 %v1446
  %2083 = vmatprep.subr.bf16.mxu0 %v1479
  %2084 = vmatpush1.bf16.msra.mxu0 %v1478
  %2085 = vmatprep.subr.bf16.mxu0 %v1511
  %2086 = vmatpush1.bf16.msra.mxu0 %v1510
  %2087 = vmatprep.subr.bf16.mxu0 0
  %2088 = vmatpush1.bf16.msra.mxu0 0
  %2089 = vmatprep.subr.bf16.mxu0 0
  %2090 = vmatpush1.bf16.msra.mxu0 0
  %2091 = vmatprep.subr.bf16.mxu0 0
  %2092 = vmatpush1.bf16.msra.mxu0 0
  %2093 = vmatprep.subr.bf16.mxu0 0
  %2094 = vmatpush1.bf16.msra.mxu0 0
  %2095 = vmatprep.subr.bf16.mxu0 0
  %2096 = vmatpush1.bf16.msra.mxu0 0
  %2097 = vmatprep.subr.bf16.mxu0 0
  %2098 = vmatpush1.bf16.msra.mxu0 0
  %2099 = vmatprep.subr.bf16.mxu0 0
  %2100 = vmatpush1.bf16.msra.mxu0 0
  %2101 = vmatprep.subr.bf16.mxu0 0
  %2102 = vmatpush1.bf16.msra.mxu0 0
  %2103 = vmatprep.mubr.bf16.mxu0 0
  %2104 = vmatmul.mubr.bf16.gmra.mrb[0].mxu0 %v79
  %v2105 = vpop.f32.mrb[0].mxu0
  %v2106 = vadd.f32 %v403, %v2105
  %v2107 = vpop.f32.mrb[0].mxu0
  %v2108 = vadd.f32 %v407, %v2107
  %v2109 = vpop.f32.mrb[0].mxu0
  %v2110 = vpop.f32.mrb[0].mxu0
  %2111 = vdwg.mxu0
  %2112 = vmatprep.subr.bf16.mxu0 %v1289
  %2113 = vmatpush1.bf16.msra.mxu0 %v1288
  %2114 = vmatprep.subr.bf16.mxu0 %v1321
  %2115 = vmatpush1.bf16.msra.mxu0 %v1320
  %2116 = vmatprep.subr.bf16.mxu0 %v1353
  %2117 = vmatpush1.bf16.msra.mxu0 %v1352
  %2118 = vmatprep.subr.bf16.mxu0 %v1385
  %2119 = vmatpush1.bf16.msra.mxu0 %v1384
  %2120 = vmatprep.subr.bf16.mxu0 %v1417
  %2121 = vmatpush1.bf16.msra.mxu0 %v1416
  %2122 = vmatprep.subr.bf16.mxu0 %v1449
  %2123 = vmatpush1.bf16.msra.mxu0 %v1448
  %2124 = vmatprep.subr.bf16.mxu0 %v1481
  %2125 = vmatpush1.bf16.msra.mxu0 %v1480
  %2126 = vmatprep.subr.bf16.mxu0 %v1513
  %2127 = vmatpush1.bf16.msra.mxu0 %v1512
  %2128 = vmatprep.subr.bf16.mxu0 0
  %2129 = vmatpush1.bf16.msra.mxu0 0
  %2130 = vmatprep.subr.bf16.mxu0 0
  %2131 = vmatpush1.bf16.msra.mxu0 0
  %2132 = vmatprep.subr.bf16.mxu0 0
  %2133 = vmatpush1.bf16.msra.mxu0 0
  %2134 = vmatprep.subr.bf16.mxu0 0
  %2135 = vmatpush1.bf16.msra.mxu0 0
  %2136 = vmatprep.subr.bf16.mxu0 0
  %2137 = vmatpush1.bf16.msra.mxu0 0
  %2138 = vmatprep.subr.bf16.mxu0 0
  %2139 = vmatpush1.bf16.msra.mxu0 0
  %2140 = vmatprep.subr.bf16.mxu0 0
  %2141 = vmatpush1.bf16.msra.mxu0 0
  %2142 = vmatprep.subr.bf16.mxu0 0
  %2143 = vmatpush1.bf16.msra.mxu0 0
  %2144 = vmatprep.mubr.bf16.mxu0 0
  %2145 = vmatmul.mubr.bf16.gmra.mrb[0].mxu0 %v79
  %v2146 = vpop.f32.mrb[0].mxu0
  %v2147 = vadd.f32 %v411, %v2146
  %v2148 = vpop.f32.mrb[0].mxu0
  %v2149 = vadd.f32 %v415, %v2148
  %v2150 = vpop.f32.mrb[0].mxu0
  %v2151 = vpop.f32.mrb[0].mxu0
  %2152 = vdwg.mxu0
  %2153 = vmatprep.subr.bf16.mxu0 %v1291
  %2154 = vmatpush1.bf16.msra.mxu0 %v1290
  %2155 = vmatprep.subr.bf16.mxu0 %v1323
  %2156 = vmatpush1.bf16.msra.mxu0 %v1322
  %2157 = vmatprep.subr.bf16.mxu0 %v1355
  %2158 = vmatpush1.bf16.msra.mxu0 %v1354
  %2159 = vmatprep.subr.bf16.mxu0 %v1387
  %2160 = vmatpush1.bf16.msra.mxu0 %v1386
  %2161 = vmatprep.subr.bf16.mxu0 %v1419
  %2162 = vmatpush1.bf16.msra.mxu0 %v1418
  %2163 = vmatprep.subr.bf16.mxu0 %v1451
  %2164 = vmatpush1.bf16.msra.mxu0 %v1450
  %2165 = vmatprep.subr.bf16.mxu0 %v1483
  %2166 = vmatpush1.bf16.msra.mxu0 %v1482
  %2167 = vmatprep.subr.bf16.mxu0 %v1515
  %2168 = vmatpush1.bf16.msra.mxu0 %v1514
  %2169 = vmatprep.subr.bf16.mxu0 0
  %2170 = vmatpush1.bf16.msra.mxu0 0
  %2171 = vmatprep.subr.bf16.mxu0 0
  %2172 = vmatpush1.bf16.msra.mxu0 0
  %2173 = vmatprep.subr.bf16.mxu0 0
  %2174 = vmatpush1.bf16.msra.mxu0 0
  %2175 = vmatprep.subr.bf16.mxu0 0
  %2176 = vmatpush1.bf16.msra.mxu0 0
  %2177 = vmatprep.subr.bf16.mxu0 0
  %2178 = vmatpush1.bf16.msra.mxu0 0
  %2179 = vmatprep.subr.bf16.mxu0 0
  %2180 = vmatpush1.bf16.msra.mxu0 0
  %2181 = vmatprep.subr.bf16.mxu0 0
  %2182 = vmatpush1.bf16.msra.mxu0 0
  %2183 = vmatprep.subr.bf16.mxu0 0
  %2184 = vmatpush1.bf16.msra.mxu0 0
  %2185 = vmatprep.mubr.bf16.mxu0 0
  %2186 = vmatmul.mubr.bf16.gmra.mrb[0].mxu0 %v79
  %v2187 = vpop.f32.mrb[0].mxu0
  %v2188 = vadd.f32 %v419, %v2187
  %v2189 = vpop.f32.mrb[0].mxu0
  %v2190 = vadd.f32 %v423, %v2189
  %v2191 = vpop.f32.mrb[0].mxu0
  %v2192 = vpop.f32.mrb[0].mxu0
  %2193 = vdwg.mxu0
  %2194 = vmatprep.subr.bf16.mxu0 %v1293
  %2195 = vmatpush1.bf16.msra.mxu0 %v1292
  %2196 = vmatprep.subr.bf16.mxu0 %v1325
  %2197 = vmatpush1.bf16.msra.mxu0 %v1324
  %2198 = vmatprep.subr.bf16.mxu0 %v1357
  %2199 = vmatpush1.bf16.msra.mxu0 %v1356
  %2200 = vmatprep.subr.bf16.mxu0 %v1389
  %2201 = vmatpush1.bf16.msra.mxu0 %v1388
  %2202 = vmatprep.subr.bf16.mxu0 %v1421
  %2203 = vmatpush1.bf16.msra.mxu0 %v1420
  %2204 = vmatprep.subr.bf16.mxu0 %v1453
  %2205 = vmatpush1.bf16.msra.mxu0 %v1452
  %2206 = vmatprep.subr.bf16.mxu0 %v1485
  %2207 = vmatpush1.bf16.msra.mxu0 %v1484
  %2208 = vmatprep.subr.bf16.mxu0 %v1517
  %2209 = vmatpush1.bf16.msra.mxu0 %v1516
  %2210 = vmatprep.subr.bf16.mxu0 0
  %2211 = vmatpush1.bf16.msra.mxu0 0
  %2212 = vmatprep.subr.bf16.mxu0 0
  %2213 = vmatpush1.bf16.msra.mxu0 0
  %2214 = vmatprep.subr.bf16.mxu0 0
  %2215 = vmatpush1.bf16.msra.mxu0 0
  %2216 = vmatprep.subr.bf16.mxu0 0
  %2217 = vmatpush1.bf16.msra.mxu0 0
  %2218 = vmatprep.subr.bf16.mxu0 0
  %2219 = vmatpush1.bf16.msra.mxu0 0
  %2220 = vmatprep.subr.bf16.mxu0 0
  %2221 = vmatpush1.bf16.msra.mxu0 0
  %2222 = vmatprep.subr.bf16.mxu0 0
  %2223 = vmatpush1.bf16.msra.mxu0 0
  %2224 = vmatprep.subr.bf16.mxu0 0
  %2225 = vmatpush1.bf16.msra.mxu0 0
  %2226 = vmatprep.mubr.bf16.mxu0 0
  %2227 = vmatmul.mubr.bf16.gmra.mrb[0].mxu0 %v79
  %v2228 = vpop.f32.mrb[0].mxu0
  %v2229 = vadd.f32 %v427, %v2228
  %v2230 = vpop.f32.mrb[0].mxu0
  %v2231 = vadd.f32 %v431, %v2230
  %v2232 = vpop.f32.mrb[0].mxu0
  %v2233 = vpop.f32.mrb[0].mxu0
  %2234 = vdwg.mxu0
  %2235 = vmatprep.subr.bf16.mxu0 %v1295
  %2236 = vmatpush1.bf16.msra.mxu0 %v1294
  %2237 = vmatprep.subr.bf16.mxu0 %v1327
  %2238 = vmatpush1.bf16.msra.mxu0 %v1326
  %2239 = vmatprep.subr.bf16.mxu0 %v1359
  %2240 = vmatpush1.bf16.msra.mxu0 %v1358
  %2241 = vmatprep.subr.bf16.mxu0 %v1391
  %2242 = vmatpush1.bf16.msra.mxu0 %v1390
  %2243 = vmatprep.subr.bf16.mxu0 %v1423
  %2244 = vmatpush1.bf16.msra.mxu0 %v1422
  %2245 = vmatprep.subr.bf16.mxu0 %v1455
  %2246 = vmatpush1.bf16.msra.mxu0 %v1454
  %2247 = vmatprep.subr.bf16.mxu0 %v1487
  %2248 = vmatpush1.bf16.msra.mxu0 %v1486
  %2249 = vmatprep.subr.bf16.mxu0 %v1519
  %2250 = vmatpush1.bf16.msra.mxu0 %v1518
  %2251 = vmatprep.subr.bf16.mxu0 0
  %2252 = vmatpush1.bf16.msra.mxu0 0
  %2253 = vmatprep.subr.bf16.mxu0 0
  %2254 = vmatpush1.bf16.msra.mxu0 0
  %2255 = vmatprep.subr.bf16.mxu0 0
  %2256 = vmatpush1.bf16.msra.mxu0 0
  %2257 = vmatprep.subr.bf16.mxu0 0
  %2258 = vmatpush1.bf16.msra.mxu0 0
  %2259 = vmatprep.subr.bf16.mxu0 0
  %2260 = vmatpush1.bf16.msra.mxu0 0
  %2261 = vmatprep.subr.bf16.mxu0 0
  %2262 = vmatpush1.bf16.msra.mxu0 0
  %2263 = vmatprep.subr.bf16.mxu0 0
  %2264 = vmatpush1.bf16.msra.mxu0 0
  %2265 = vmatprep.subr.bf16.mxu0 0
  %2266 = vmatpush1.bf16.msra.mxu0 0
  %2267 = vmatprep.mubr.bf16.mxu0 0
  %2268 = vmatmul.mubr.bf16.gmra.mrb[0].mxu0 %v79
  %v2269 = vpop.f32.mrb[0].mxu0
  %v2270 = vadd.f32 %v435, %v2269
  %v2271 = vpop.f32.mrb[0].mxu0
  %v2272 = vadd.f32 %v439, %v2271
  %v2273 = vpop.f32.mrb[0].mxu0
  %v2274 = vpop.f32.mrb[0].mxu0
  %2275 = vdwg.mxu0
  %2276 = vmatprep.subr.bf16.mxu0 %v1297
  %2277 = vmatpush1.bf16.msra.mxu0 %v1296
  %2278 = vmatprep.subr.bf16.mxu0 %v1329
  %2279 = vmatpush1.bf16.msra.mxu0 %v1328
  %2280 = vmatprep.subr.bf16.mxu0 %v1361
  %2281 = vmatpush1.bf16.msra.mxu0 %v1360
  %2282 = vmatprep.subr.bf16.mxu0 %v1393
  %2283 = vmatpush1.bf16.msra.mxu0 %v1392
  %2284 = vmatprep.subr.bf16.mxu0 %v1425
  %2285 = vmatpush1.bf16.msra.mxu0 %v1424
  %2286 = vmatprep.subr.bf16.mxu0 %v1457
  %2287 = vmatpush1.bf16.msra.mxu0 %v1456
  %2288 = vmatprep.subr.bf16.mxu0 %v1489
  %2289 = vmatpush1.bf16.msra.mxu0 %v1488
  %2290 = vmatprep.subr.bf16.mxu0 %v1521
  %2291 = vmatpush1.bf16.msra.mxu0 %v1520
  %2292 = vmatprep.subr.bf16.mxu0 0
  %2293 = vmatpush1.bf16.msra.mxu0 0
  %2294 = vmatprep.subr.bf16.mxu0 0
  %2295 = vmatpush1.bf16.msra.mxu0 0
  %2296 = vmatprep.subr.bf16.mxu0 0
  %2297 = vmatpush1.bf16.msra.mxu0 0
  %2298 = vmatprep.subr.bf16.mxu0 0
  %2299 = vmatpush1.bf16.msra.mxu0 0
  %2300 = vmatprep.subr.bf16.mxu0 0
  %2301 = vmatpush1.bf16.msra.mxu0 0
  %2302 = vmatprep.subr.bf16.mxu0 0
  %2303 = vmatpush1.bf16.msra.mxu0 0
  %2304 = vmatprep.subr.bf16.mxu0 0
  %2305 = vmatpush1.bf16.msra.mxu0 0
  %2306 = vmatprep.subr.bf16.mxu0 0
  %2307 = vmatpush1.bf16.msra.mxu0 0
  %2308 = vmatprep.mubr.bf16.mxu0 0
  %2309 = vmatmul.mubr.bf16.gmra.mrb[0].mxu0 %v79
  %v2310 = vpop.f32.mrb[0].mxu0
  %v2311 = vadd.f32 %v443, %v2310
  %v2312 = vpop.f32.mrb[0].mxu0
  %v2313 = vadd.f32 %v447, %v2312
  %v2314 = vpop.f32.mrb[0].mxu0
  %v2315 = vpop.f32.mrb[0].mxu0
  %2316 = vdwg.mxu0
  %2317 = vmatprep.subr.bf16.mxu0 %v1299
  %2318 = vmatpush1.bf16.msra.mxu0 %v1298
  %2319 = vmatprep.subr.bf16.mxu0 %v1331
  %2320 = vmatpush1.bf16.msra.mxu0 %v1330
  %2321 = vmatprep.subr.bf16.mxu0 %v1363
  %2322 = vmatpush1.bf16.msra.mxu0 %v1362
  %2323 = vmatprep.subr.bf16.mxu0 %v1395
  %2324 = vmatpush1.bf16.msra.mxu0 %v1394
  %2325 = vmatprep.subr.bf16.mxu0 %v1427
  %2326 = vmatpush1.bf16.msra.mxu0 %v1426
  %2327 = vmatprep.subr.bf16.mxu0 %v1459
  %2328 = vmatpush1.bf16.msra.mxu0 %v1458
  %2329 = vmatprep.subr.bf16.mxu0 %v1491
  %2330 = vmatpush1.bf16.msra.mxu0 %v1490
  %2331 = vmatprep.subr.bf16.mxu0 %v1523
  %2332 = vmatpush1.bf16.msra.mxu0 %v1522
  %2333 = vmatprep.subr.bf16.mxu0 0
  %2334 = vmatpush1.bf16.msra.mxu0 0
  %2335 = vmatprep.subr.bf16.mxu0 0
  %2336 = vmatpush1.bf16.msra.mxu0 0
  %2337 = vmatprep.subr.bf16.mxu0 0
  %2338 = vmatpush1.bf16.msra.mxu0 0
  %2339 = vmatprep.subr.bf16.mxu0 0
  %2340 = vmatpush1.bf16.msra.mxu0 0
  %2341 = vmatprep.subr.bf16.mxu0 0
  %2342 = vmatpush1.bf16.msra.mxu0 0
  %2343 = vmatprep.subr.bf16.mxu0 0
  %2344 = vmatpush1.bf16.msra.mxu0 0
  %2345 = vmatprep.subr.bf16.mxu0 0
  %2346 = vmatpush1.bf16.msra.mxu0 0
  %2347 = vmatprep.subr.bf16.mxu0 0
  %2348 = vmatpush1.bf16.msra.mxu0 0
  %2349 = vmatprep.mubr.bf16.mxu0 0
  %2350 = vmatmul.mubr.bf16.gmra.mrb[0].mxu0 %v79
  %v2351 = vpop.f32.mrb[0].mxu0
  %v2352 = vadd.f32 %v451, %v2351
  %v2353 = vpop.f32.mrb[0].mxu0
  %v2354 = vadd.f32 %v455, %v2353
  %v2355 = vpop.f32.mrb[0].mxu0
  %v2356 = vpop.f32.mrb[0].mxu0
  %2357 = vdwg.mxu0
  %2358 = vmatprep.subr.bf16.mxu0 %v1301
  %2359 = vmatpush1.bf16.msra.mxu0 %v1300
  %2360 = vmatprep.subr.bf16.mxu0 %v1333
  %2361 = vmatpush1.bf16.msra.mxu0 %v1332
  %2362 = vmatprep.subr.bf16.mxu0 %v1365
  %2363 = vmatpush1.bf16.msra.mxu0 %v1364
  %2364 = vmatprep.subr.bf16.mxu0 %v1397
  %2365 = vmatpush1.bf16.msra.mxu0 %v1396
  %2366 = vmatprep.subr.bf16.mxu0 %v1429
  %2367 = vmatpush1.bf16.msra.mxu0 %v1428
  %2368 = vmatprep.subr.bf16.mxu0 %v1461
  %2369 = vmatpush1.bf16.msra.mxu0 %v1460
  %2370 = vmatprep.subr.bf16.mxu0 %v1493
  %2371 = vmatpush1.bf16.msra.mxu0 %v1492
  %2372 = vmatprep.subr.bf16.mxu0 %v1525
  %2373 = vmatpush1.bf16.msra.mxu0 %v1524
  %2374 = vmatprep.subr.bf16.mxu0 0
  %2375 = vmatpush1.bf16.msra.mxu0 0
  %2376 = vmatprep.subr.bf16.mxu0 0
  %2377 = vmatpush1.bf16.msra.mxu0 0
  %2378 = vmatprep.subr.bf16.mxu0 0
  %2379 = vmatpush1.bf16.msra.mxu0 0
  %2380 = vmatprep.subr.bf16.mxu0 0
  %2381 = vmatpush1.bf16.msra.mxu0 0
  %2382 = vmatprep.subr.bf16.mxu0 0
  %2383 = vmatpush1.bf16.msra.mxu0 0
  %2384 = vmatprep.subr.bf16.mxu0 0
  %2385 = vmatpush1.bf16.msra.mxu0 0
  %2386 = vmatprep.subr.bf16.mxu0 0
  %2387 = vmatpush1.bf16.msra.mxu0 0
  %2388 = vmatprep.subr.bf16.mxu0 0
  %2389 = vmatpush1.bf16.msra.mxu0 0
  %2390 = vmatprep.mubr.bf16.mxu0 0
  %2391 = vmatmul.mubr.bf16.gmra.mrb[0].mxu0 %v79
  %v2392 = vpop.f32.mrb[0].mxu0
  %v2393 = vadd.f32 %v459, %v2392
  %v2394 = vpop.f32.mrb[0].mxu0
  %v2395 = vadd.f32 %v463, %v2394
  %v2396 = vpop.f32.mrb[0].mxu0
  %v2397 = vpop.f32.mrb[0].mxu0
  %2398 = vdwg.mxu0
  %2399 = vmatprep.subr.bf16.mxu0 %v1303
  %2400 = vmatpush1.bf16.msra.mxu0 %v1302
  %2401 = vmatprep.subr.bf16.mxu0 %v1335
  %2402 = vmatpush1.bf16.msra.mxu0 %v1334
  %2403 = vmatprep.subr.bf16.mxu0 %v1367
  %2404 = vmatpush1.bf16.msra.mxu0 %v1366
  %2405 = vmatprep.subr.bf16.mxu0 %v1399
  %2406 = vmatpush1.bf16.msra.mxu0 %v1398
  %2407 = vmatprep.subr.bf16.mxu0 %v1431
  %2408 = vmatpush1.bf16.msra.mxu0 %v1430
  %2409 = vmatprep.subr.bf16.mxu0 %v1463
  %2410 = vmatpush1.bf16.msra.mxu0 %v1462
  %2411 = vmatprep.subr.bf16.mxu0 %v1495
  %2412 = vmatpush1.bf16.msra.mxu0 %v1494
  %2413 = vmatprep.subr.bf16.mxu0 %v1527
  %2414 = vmatpush1.bf16.msra.mxu0 %v1526
  %2415 = vmatprep.subr.bf16.mxu0 0
  %2416 = vmatpush1.bf16.msra.mxu0 0
  %2417 = vmatprep.subr.bf16.mxu0 0
  %2418 = vmatpush1.bf16.msra.mxu0 0
  %2419 = vmatprep.subr.bf16.mxu0 0
  %2420 = vmatpush1.bf16.msra.mxu0 0
  %2421 = vmatprep.subr.bf16.mxu0 0
  %2422 = vmatpush1.bf16.msra.mxu0 0
  %2423 = vmatprep.subr.bf16.mxu0 0
  %2424 = vmatpush1.bf16.msra.mxu0 0
  %2425 = vmatprep.subr.bf16.mxu0 0
  %2426 = vmatpush1.bf16.msra.mxu0 0
  %2427 = vmatprep.subr.bf16.mxu0 0
  %2428 = vmatpush1.bf16.msra.mxu0 0
  %2429 = vmatprep.subr.bf16.mxu0 0
  %2430 = vmatpush1.bf16.msra.mxu0 0
  %2431 = vmatprep.mubr.bf16.mxu0 0
  %2432 = vmatmul.mubr.bf16.gmra.mrb[0].mxu0 %v79
  %v2433 = vpop.f32.mrb[0].mxu0
  %v2434 = vadd.f32 %v467, %v2433
  %v2435 = vpop.f32.mrb[0].mxu0
  %v2436 = vadd.f32 %v471, %v2435
  %v2437 = vpop.f32.mrb[0].mxu0
  %v2438 = vpop.f32.mrb[0].mxu0
  %2439 = vdwg.mxu0
  %v2440 = vmax.f32 %v1819, 0.0
  %v2441 = vmax.f32 %v1821, 0.0
  %v2442 = vmax.f32 %v1860, 0.0
  %v2443 = vmax.f32 %v1862, 0.0
  %v2444 = vmax.f32 %v1901, 0.0
  %v2445 = vmax.f32 %v1903, 0.0
  %v2446 = vmax.f32 %v1942, 0.0
  %v2447 = vmax.f32 %v1944, 0.0
  %v2448 = vmax.f32 %v1983, 0.0
  %v2449 = vmax.f32 %v1985, 0.0
  %v2450 = vmax.f32 %v2024, 0.0
  %v2451 = vmax.f32 %v2026, 0.0
  %v2452 = vmax.f32 %v2065, 0.0
  %v2453 = vmax.f32 %v2067, 0.0
  %v2454 = vmax.f32 %v2106, 0.0
  %v2455 = vmax.f32 %v2108, 0.0
  %v2456 = vmax.f32 %v2147, 0.0
  %v2457 = vmax.f32 %v2149, 0.0
  %v2458 = vmax.f32 %v2188, 0.0
  %v2459 = vmax.f32 %v2190, 0.0
  %v2460 = vmax.f32 %v2229, 0.0
  %v2461 = vmax.f32 %v2231, 0.0
  %v2462 = vmax.f32 %v2270, 0.0
  %v2463 = vmax.f32 %v2272, 0.0
  %v2464 = vmax.f32 %v2311, 0.0
  %v2465 = vmax.f32 %v2313, 0.0
  %v2466 = vmax.f32 %v2352, 0.0
  %v2467 = vmax.f32 %v2354, 0.0
  %v2468 = vmax.f32 %v2393, 0.0
  %v2469 = vmax.f32 %v2395, 0.0
  %v2470 = vmax.f32 %v2434, 0.0
  %v2471 = vmax.f32 %v2436, 0.0
  %2472 = vst [vmem:[%s5] sm:$0xff] %v2440
  %2473 = vst [vmem:[%s5 + $0x8] sm:$0xff] %v2441
  %2474 = vst [vmem:[%s5 + $0x10] sm:$0xff] %v2442
  %2475 = vst [vmem:[%s5 + $0x18] sm:$0xff] %v2443
  %2476 = vst [vmem:[%s5 + $0x20] sm:$0xff] %v2444
  %2477 = vst [vmem:[%s5 + $0x28] sm:$0xff] %v2445
  %2478 = vst [vmem:[%s5 + $0x30] sm:$0xff] %v2446
  %2479 = vst [vmem:[%s5 + $0x38] sm:$0xff] %v2447
  %2480 = vst [vmem:[%s5 + $0x40] sm:$0xff] %v2448
  %2481 = vst [vmem:[%s5 + $0x48] sm:$0xff] %v2449
  %2482 = vst [vmem:[%s5 + $0x50] sm:$0xff] %v2450
  %2483 = vst [vmem:[%s5 + $0x58] sm:$0xff] %v2451
  %2484 = vst [vmem:[%s5 + $0x60] sm:$0xff] %v2452
  %2485 = vst [vmem:[%s5 + $0x68] sm:$0xff] %v2453
  %2486 = vst [vmem:[%s5 + $0x70] sm:$0xff] %v2454
  %2487 = vst [vmem:[%s5 + $0x78] sm:$0xff] %v2455
  %2488 = vst [vmem:[%s5 + $0x80] sm:$0xff] %v2456
  %2489 = vst [vmem:[%s5 + $0x88] sm:$0xff] %v2457
  %2490 = vst [vmem:[%s5 + $0x90] sm:$0xff] %v2458
  %2491 = vst [vmem:[%s5 + $0x98] sm:$0xff] %v2459
  %2492 = vst [vmem:[%s5 + $0xa0] sm:$0xff] %v2460
  %2493 = vst [vmem:[%s5 + $0xa8] sm:$0xff] %v2461
  %2494 = vst [vmem:[%s5 + $0xb0] sm:$0xff] %v2462
  %2495 = vst [vmem:[%s5 + $0xb8] sm:$0xff] %v2463
  %2496 = vst [vmem:[%s5 + $0xc0] sm:$0xff] %v2464
  %2497 = vst [vmem:[%s5 + $0xc8] sm:$0xff] %v2465
  %2498 = vst [vmem:[%s5 + $0xd0] sm:$0xff] %v2466
  %2499 = vst [vmem:[%s5 + $0xd8] sm:$0xff] %v2467
  %2500 = vst [vmem:[%s5 + $0xe0] sm:$0xff] %v2468
  %2501 = vst [vmem:[%s5 + $0xe8] sm:$0xff] %v2469
  %2502 = vst [vmem:[%s5 + $0xf0] sm:$0xff] %v2470
  %2503 = vst [vmem:[%s5 + $0xf8] sm:$0xff] %v2471
  // Predicated region
  $region22: #{decoder_forward.4} parent=0 // pred_check
    _
  $region23: #{decoder_forward.4} parent=0 // pred_check_branch
    %2505 = sbr.rel (0) target = $region25
  $region24: #{decoder_forward.4} parent=0 // pred_region
    _
  $region25: #{decoder_forward.4} parent=0 // pred_fallthru
    _
  // Predicated region
  $region26: #{decoder_forward.4} parent=0 // pred_check
    _
  $region27: #{decoder_forward.4} parent=0 // pred_check_branch
    %2507 = sbr.rel (0) target = $region29
  $region28: #{decoder_forward.4} parent=0 // pred_region
    _
  $region29: #{decoder_forward.4} parent=0 // pred_fallthru
    _

// kernel: decoder_forward.5
$region0: #{decoder_forward.5}
  #allocation0 [shape = 'u32[]', space=smem, size = 0x4, offset = 0x4, fixed_abs, tag = 'smem constant byte address 0x4 - core index']
  #allocation1 [shape = 'u32[144,128]{1,0:T(1,128)}', space=vmem, size = 0x12000, scoped, tag = 'internal scratch']
  %s0 = inlined_call_operand.vmem [shape: f32[288,64], index: 0, kind: input, shape index: {}, may-alias: {0,1}]
  %s1 = inlined_call_operand.vmem [shape: f32[288,64], index: 1, kind: input, shape index: {}, may-alias: {0,1}]
  %s2 = inlined_call_operand.vmem [shape: bf16[4,64,128], index: 2, kind: input, shape index: {}]
  %s3 = inlined_call_operand.vmem [shape: f32[1,128], index: 3, kind: input, shape index: {}]
  %s4 = inlined_call_operand.vmem [shape: f32[192,128], index: 4, kind: output, shape index: {}]
  %s5 = sld [smem:[#allocation0]]
  $region49: #{decoder_forward.5} parent=0
    _
  %s7 = ssub.s32 1, %s5
  %s8 = scalar_select 0, %s7, %s5
  loop: start=0, step=1, limit=4
  $region2: #{decoder_forward.5} parent=0 // loop_pre_header
    _
  $region3: #{decoder_forward.5} parent=0 // loop_header
    %s10 = sphi 0, %s14
    %p11 = scmp.ge.s32.totalorder %s10, 4
    %s20 = sphi 0, %s22
    %s23 = sphi 0, %s20
    %s24 = sphi 0, %s23
    %s40 = sphi 0, %s24
    %s48 = sphi 0, %s50
    %s51 = sphi 0, %s48
    %s52 = sphi 0, %s51
    %s68 = sphi 0, %s52
    %s72 = sphi 0, %s72
    %s74 = sphi 0, %s72
    %s75 = sphi 0, %s74
    %s89 = sphi 0, %s75
    %s93 = sphi 0, %s93
    %s95 = sphi 0, %s93
    %s96 = sphi 0, %s95
    %s110 = sphi 0, %s96
    %s116 = sphi 0, %s118
    %s119 = sphi 0, %s116
    %s120 = sphi 0, %s119
    %s136 = sphi 0, %s120
  $region4: #{decoder_forward.5} parent=0 // loop_header_branch
    %13 = sbr.rel (%p11) target = $region8
  $region5: #{decoder_forward.5} parent=0 // loop_body
    %s15 = ssub.s32 %s10, 1
    %s16 = ssub.s32 %s10, 2
    %s17 = sadd.s32 %s10, 1
    %s18 = ssub.s32 %s10, %s17
    %p19 = scmp.eq.s32.totalorder %s18, 0
    %s21 = sadd.s32 %s20, 1
    %s22 = scalar_select %p19, %s20, %s21
    %p25 = pneg %p19
    %p26 = scmp.eq.s32.totalorder %s10, 1
    %p27 = por %p25, %p26
    %p28 = scmp.ne.s32.totalorder %s20, %s23
    %p29 = scmp.eq.s32.totalorder %s10, 0
    %p30 = por %p28, %p29
    %p31 = scmp.ne.s32.totalorder %s20, %s23
    %p32 = scmp.eq.s32.totalorder %s15, 1
    %p33 = por %p31, %p32
    %p34 = scmp.ne.s32.totalorder %s23, %s24
    %p35 = scmp.eq.s32.totalorder %s15, 0
    %p36 = por %p34, %p35
    %p37 = scmp.ne.s32.totalorder %s23, %s24
    %p38 = scmp.eq.s32.totalorder %s16, 1
    %p39 = por %p37, %p38
    %p41 = scmp.ne.s32.totalorder %s24, %s40
    %p42 = scmp.eq.s32.totalorder %s16, 0
    %p43 = por %p41, %p42
    %s44 = sadd.s32 %s10, 1
    %s45 = sadd.s32 %s17, 1
    %s46 = ssub.s32 %s44, %s45
    %p47 = scmp.eq.s32.totalorder %s46, 0
    %s49 = sadd.s32 %s48, 1
    %s50 = scalar_select %p47, %s48, %s49
    %p53 = pneg %p47
    %p54 = scmp.eq.s32.totalorder %s10, 1
    %p55 = por %p53, %p54
    %p56 = scmp.ne.s32.totalorder %s48, %s51
    %p57 = scmp.eq.s32.totalorder %s10, 0
    %p58 = por %p56, %p57
    %p59 = scmp.ne.s32.totalorder %s48, %s51
    %p60 = scmp.eq.s32.totalorder %s15, 1
    %p61 = por %p59, %p60
    %p62 = scmp.ne.s32.totalorder %s51, %s52
    %p63 = scmp.eq.s32.totalorder %s15, 0
    %p64 = por %p62, %p63
    %p65 = scmp.ne.s32.totalorder %s51, %s52
    %p66 = scmp.eq.s32.totalorder %s16, 1
    %p67 = por %p65, %p66
    %p69 = scmp.ne.s32.totalorder %s52, %s68
    %p70 = scmp.eq.s32.totalorder %s16, 0
    %p71 = por %p69, %p70
    %s73 = sadd.s32 %s72, 1
    %p76 = scmp.eq.s32.totalorder %s10, 1
    %p77 = scmp.ne.s32.totalorder %s72, %s74
    %p78 = scmp.eq.s32.totalorder %s10, 0
    %p79 = por %p77, %p78
    %p80 = scmp.ne.s32.totalorder %s72, %s74
    %p81 = scmp.eq.s32.totalorder %s15, 1
    %p82 = por %p80, %p81
    %p83 = scmp.ne.s32.totalorder %s74, %s75
    %p84 = scmp.eq.s32.totalorder %s15, 0
    %p85 = por %p83, %p84
    %p86 = scmp.ne.s32.totalorder %s74, %s75
    %p87 = scmp.eq.s32.totalorder %s16, 1
    %p88 = por %p86, %p87
    %p90 = scmp.ne.s32.totalorder %s75, %s89
    %p91 = scmp.eq.s32.totalorder %s16, 0
    %p92 = por %p90, %p91
    %s94 = sadd.s32 %s93, 1
    %p97 = scmp.eq.s32.totalorder %s10, 1
    %p98 = scmp.ne.s32.totalorder %s93, %s95
    %p99 = scmp.eq.s32.totalorder %s10, 0
    %p100 = por %p98, %p99
    %p101 = scmp.ne.s32.totalorder %s93, %s95
    %p102 = scmp.eq.s32.totalorder %s15, 1
    %p103 = por %p101, %p102
    %p104 = scmp.ne.s32.totalorder %s95, %s96
    %p105 = scmp.eq.s32.totalorder %s15, 0
    %p106 = por %p104, %p105
    %p107 = scmp.ne.s32.totalorder %s95, %s96
    %p108 = scmp.eq.s32.totalorder %s16, 1
    %p109 = por %p107, %p108
    %p111 = scmp.ne.s32.totalorder %s96, %s110
    %p112 = scmp.eq.s32.totalorder %s16, 0
    %p113 = por %p111, %p112
    %s114 = ssub.s32 %s10, %s17
    %p115 = scmp.eq.s32.totalorder %s114, 0
    %s117 = sadd.s32 %s116, 1
    %s118 = scalar_select %p115, %s116, %s117
    %p121 = pneg %p115
    %p122 = scmp.eq.s32.totalorder %s10, 1
    %p123 = por %p121, %p122
    %p124 = scmp.ne.s32.totalorder %s116, %s119
    %p125 = scmp.eq.s32.totalorder %s10, 0
    %p126 = por %p124, %p125
    %p127 = scmp.ne.s32.totalorder %s116, %s119
    %p128 = scmp.eq.s32.totalorder %s15, 1
    %p129 = por %p127, %p128
    %p130 = scmp.ne.s32.totalorder %s119, %s120
    %p131 = scmp.eq.s32.totalorder %s15, 0
    %p132 = por %p130, %p131
    %p133 = scmp.ne.s32.totalorder %s119, %s120
    %p134 = scmp.eq.s32.totalorder %s16, 1
    %p135 = por %p133, %p134
    %p137 = scmp.ne.s32.totalorder %s120, %s136
    %p138 = scmp.eq.s32.totalorder %s16, 0
    %p139 = por %p137, %p138
    %p140 = scmp.le.s32.totalorder 1, %s10
    %p141 = scmp.lt.s32.totalorder %s10, 3
    %p142 = pnand %p140, %p141
    %p143 = pneg %p142
    // Predicated region
    $region9: #{decoder_forward.5} parent=5 // pred_check
      _
    $region10: #{decoder_forward.5} parent=5 // pred_check_branch
      %145 = sbr.rel (%p142) target = $region12
    $region11: #{decoder_forward.5} parent=5 // pred_region
      %s146 = ssub.s32 %s10, 1
      // Predicated region
      $region13: #{decoder_forward.5} parent=11 // pred_check
        %p147 = pneg %p85
      $region14: #{decoder_forward.5} parent=11 // pred_check_branch
        %149 = sbr.rel (%p147) target = $region16
      $region15: #{decoder_forward.5} parent=11 // pred_region
        _
      $region16: #{decoder_forward.5} parent=11 // pred_fallthru
        _
      // Predicated region
      $region17: #{decoder_forward.5} parent=11 // pred_check
        %p150 = pneg %p106
      $region18: #{decoder_forward.5} parent=11 // pred_check_branch
        %152 = sbr.rel (%p150) target = $region20
      $region19: #{decoder_forward.5} parent=11 // pred_region
        _
      $region20: #{decoder_forward.5} parent=11 // pred_fallthru
        _
    $region12: #{decoder_forward.5} parent=5 // pred_fallthru
      _
    %p153 = scmp.lt.s32.totalorder %s10, 2
    // Predicated region
    $region21: #{decoder_forward.5} parent=5 // pred_check
      %p154 = pneg %p153
    $region22: #{decoder_forward.5} parent=5 // pred_check_branch
      %156 = sbr.rel (%p154) target = $region24
    $region23: #{decoder_forward.5} parent=5 // pred_region
      // Predicated region
      $region25: #{decoder_forward.5} parent=23 // pred_check
        %p157 = pneg %p30
      $region26: #{decoder_forward.5} parent=23 // pred_check_branch
        %159 = sbr.rel (%p157) target = $region28
      $region27: #{decoder_forward.5} parent=23 // pred_region
        %s160 = smul.u32 12, %s10
        %p161 = scmp.lt.s32.totalorder %s160, 35
        %s162 = scalar_select %p161, %s160, 35
        %s163 = smul.addr %s162, 8
        %s164 = scalar_lea.vmem %s0, %s163
        %s165 = smul.u32 12, %s10
      $region28: #{decoder_forward.5} parent=23 // pred_fallthru
        _
      // Predicated region
      $region29: #{decoder_forward.5} parent=23 // pred_check
        %p166 = pneg %p58
      $region30: #{decoder_forward.5} parent=23 // pred_check_branch
        %168 = sbr.rel (%p166) target = $region32
      $region31: #{decoder_forward.5} parent=23 // pred_region
        %s169 = sadd.s32 %s10, 1
        %s170 = smul.u32 12, %s169
        %p171 = scmp.lt.s32.totalorder %s170, 35
        %s172 = scalar_select %p171, %s170, 35
        %s173 = smul.addr %s172, 8
        %s174 = scalar_lea.vmem %s1, %s173
        %s175 = sadd.s32 %s10, 1
        %s176 = smul.u32 12, %s175
      $region32: #{decoder_forward.5} parent=23 // pred_fallthru
        _
    $region24: #{decoder_forward.5} parent=5 // pred_fallthru
      _
    %p177 = scmp.le.s32.totalorder 1, %s10
    %p178 = scmp.lt.s32.totalorder %s10, 3
    %p179 = pnand %p177, %p178
    %p180 = pneg %p179
    // Predicated region
    $region33: #{decoder_forward.5} parent=5 // pred_check
      _
    $region34: #{decoder_forward.5} parent=5 // pred_check_branch
      %182 = sbr.rel (%p179) target = $region36
    $region35: #{decoder_forward.5} parent=5 // pred_region
      %s183 = ssub.s32 %s10, 1
      %s184 = smul.u32 12, %s15
      %p185 = scmp.lt.s32.totalorder %s184, 35
      %s186 = scalar_select %p185, %s184, 35
      %s187 = smul.addr %s186, 8
      %s188 = scalar_lea.vmem %s0, %s187
      %p189 = pneg %p36
      %p190 = pneg %p33
      %s191 = sadd.s32 %s15, 1
      %s192 = smul.u32 12, %s191
      %p193 = scmp.lt.s32.totalorder %s192, 35
      %s194 = scalar_select %p193, %s192, 35
      %s195 = smul.addr %s194, 8
      %s196 = scalar_lea.vmem %s1, %s195
      %p197 = pneg %p64
      %p198 = pneg %p61
      %p199 = pneg %p85
      %p200 = pneg %p82
      %p201 = pneg %p106
      %p202 = pneg %p103
      %p203 = pneg %p132
      %p204 = pneg %p129
      %s205 = smul.u32 12, %s15
      %p206 = scmp.lt.s32.totalorder %s205, 23
      %s207 = scalar_select %p206, %s205, 23
      %s208 = smul.addr %s207, 8
      %s209 = scalar_lea.vmem %s4, %s208
      %s210 = smul.u32 12, %s15
      %p211 = scmp.lt.s32.totalorder %s210, 35
      %s212 = scalar_select %p211, %s210, 35
      %s213 = smul.addr %s212, 8
      %s214 = scalar_lea.vmem %s0, %s213
      %s215 = smul.u32 12, %s15
      %s216 = sadd.s32 %s15, 1
      %s217 = smul.u32 12, %s216
      %p218 = scmp.lt.s32.totalorder %s217, 35
      %s219 = scalar_select %p218, %s217, 35
      %s220 = smul.addr %s219, 8
      %s221 = scalar_lea.vmem %s1, %s220
      %s222 = sadd.s32 %s15, 1
      %s223 = smul.u32 12, %s222
      %s224 = smul.u32 12, %s15
      %p225 = scmp.lt.s32.totalorder %s224, 23
      %s226 = scalar_select %p225, %s224, 23
      %s227 = smul.addr %s226, 8
      %s228 = scalar_lea.vmem %s4, %s227
      %s229 = smul.u32 12, %s15
      %v231 = vld [vmem:[%s214] sm:$0xff]
      %v232 = vld [vmem:[%s214 + $0x8] sm:$0xff]
      %v233 = vld [vmem:[%s214 + $0x10] sm:$0xff]
      %v234 = vld [vmem:[%s214 + $0x18] sm:$0xff]
      %v235 = vld [vmem:[%s214 + $0x20] sm:$0xff]
      %v236 = vld [vmem:[%s214 + $0x28] sm:$0xff]
      %v237 = vld [vmem:[%s214 + $0x30] sm:$0xff]
      %v238 = vld [vmem:[%s214 + $0x38] sm:$0xff]
      %v239 = vld [vmem:[%s214 + $0x40] sm:$0xff]
      %v240 = vld [vmem:[%s214 + $0x48] sm:$0xff]
      %v241 = vld [vmem:[%s214 + $0x50] sm:$0xff]
      %v242 = vld [vmem:[%s214 + $0x58] sm:$0xff]
      %v243 = vld [vmem:[%s221] sm:$0xff]
      %v244 = vld [vmem:[%s221 + $0x8] sm:$0xff]
      %v245 = vpack.c.bf16 %v232, %v231
      %v246 = vpack.c.bf16 %v234, %v233
      %v247 = vpack.c.bf16 %v236, %v235
      %v248 = vpack.c.bf16 %v238, %v237
      %v249 = vpack.c.bf16 %v240, %v239
      %v250 = vpack.c.bf16 %v242, %v241
      %v251 = vld [vmem:[%s2] sm:$0xf]
      %v252 = vld [vmem:[%s2 + $0x4] sm:$0xf]
      %v253 = vld [vmem:[%s2 + $0x8] sm:$0xf]
      %v254 = vld [vmem:[%s2 + $0xc] sm:$0xf]
      %v255 = vld [vmem:[%s2 + $0x10] sm:$0xf]
      %v256 = vld [vmem:[%s2 + $0x14] sm:$0xf]
      %v257 = vld [vmem:[%s2 + $0x18] sm:$0xf]
      %v258 = vld [vmem:[%s2 + $0x1c] sm:$0xf]
      %v259 = vpack.c.bf16 %v243, %v243
      %s260 = scalar_lea.vmem %s2, 32
      %v261 = vld [vmem:[%s260] sm:$0xf]
      %v262 = vld [vmem:[%s260 + $0x4] sm:$0xf]
      %v263 = vld [vmem:[%s260 + $0x8] sm:$0xf]
      %v264 = vld [vmem:[%s260 + $0xc] sm:$0xf]
      %v265 = vld [vmem:[%s260 + $0x10] sm:$0xf]
      %v266 = vld [vmem:[%s260 + $0x14] sm:$0xf]
      %v267 = vld [vmem:[%s260 + $0x18] sm:$0xf]
      %v268 = vld [vmem:[%s260 + $0x1c] sm:$0xf]
      %vm269 = vsmask.f32 7424
      %v271 = vshrl.u32 %v245, 16
      %v273 = vshll.u32 %v245, 16
      %v275 = vrot.slane %v273, 1
      %v276 = vor.u32 %v271, %v275
      %v278 = vshll.u32 %v246, 16
      %v280 = vrot.slane %v278, 1
      %v281 = vsel %vm269, %v276, %v280
      %v282 = vshrl.u32 %v246, 16
      %v284 = vor.u32 %v282, %v280
      %v286 = vshll.u32 %v247, 16
      %v288 = vrot.slane %v286, 1
      %v289 = vsel %vm269, %v284, %v288
      %v290 = vshrl.u32 %v247, 16
      %v292 = vor.u32 %v290, %v288
      %v294 = vshll.u32 %v248, 16
      %v296 = vrot.slane %v294, 1
      %v297 = vsel %vm269, %v292, %v296
      %v298 = vshrl.u32 %v248, 16
      %v300 = vor.u32 %v298, %v296
      %v302 = vshll.u32 %v249, 16
      %v304 = vrot.slane %v302, 1
      %v305 = vsel %vm269, %v300, %v304
      %v306 = vshrl.u32 %v249, 16
      %v308 = vor.u32 %v306, %v304
      %v310 = vshll.u32 %v250, 16
      %v312 = vrot.slane %v310, 1
      %v313 = vsel %vm269, %v308, %v312
      %v314 = vshrl.u32 %v250, 16
      %v316 = vor.u32 %v314, %v312
      %v318 = vshll.u32 %v259, 16
      %v320 = vrot.slane %v318, 1
      %v321 = vsel %vm269, %v316, %v320
      %v330 = vunpack.c.l.b16 %v261
      %v331 = vunpack.c.l.b16 %v262
      %v332 = vunpack.c.l.b16 %v263
      %v333 = vunpack.c.l.b16 %v264
      %v334 = vunpack.c.l.b16 %v265
      %v335 = vunpack.c.l.b16 %v266
      %v336 = vunpack.c.l.b16 %v267
      %v337 = vunpack.c.l.b16 %v268
      %v338 = vpack.c.b16 %v331, %v330
      %v339 = vpack.c.b16 %v333, %v332
      %v340 = vpack.c.b16 %v335, %v334
      %v341 = vpack.c.b16 %v337, %v336
      %vm346 = vcmask 523264
      %v348 = vsel %vm346, %v281, 0
      %v351 = vsel %vm346, %v289, 0
      %v354 = vsel %vm346, %v297, 0
      %v357 = vsel %vm346, %v305, 0
      %v360 = vsel %vm346, %v313, 0
      %v363 = vsel %vm346, %v321, 0
      %365 = vmatprep.subr.bf16.mxu0 0
      %366 = vmatpush1.bf16.msra.mxu0 %v338
      %367 = vmatprep.subr.bf16.mxu0 0
      %368 = vmatpush1.bf16.msra.mxu0 %v339
      %369 = vmatprep.subr.bf16.mxu0 0
      %370 = vmatpush1.bf16.msra.mxu0 %v340
      %371 = vmatprep.subr.bf16.mxu0 0
      %372 = vmatpush1.bf16.msra.mxu0 %v341
      %373 = vmatprep.subr.bf16.mxu0 0
      %374 = vmatpush1.bf16.msra.mxu0 0
      %375 = vmatprep.subr.bf16.mxu0 0
      %376 = vmatpush1.bf16.msra.mxu0 0
      %377 = vmatprep.subr.bf16.mxu0 0
      %378 = vmatpush1.bf16.msra.mxu0 0
      %379 = vmatprep.subr.bf16.mxu0 0
      %380 = vmatpush1.bf16.msra.mxu0 0
      %381 = vmatprep.subr.bf16.mxu0 0
      %382 = vmatpush1.bf16.msra.mxu0 0
      %383 = vmatprep.subr.bf16.mxu0 0
      %384 = vmatpush1.bf16.msra.mxu0 0
      %385 = vmatprep.subr.bf16.mxu0 0
      %386 = vmatpush1.bf16.msra.mxu0 0
      %387 = vmatprep.subr.bf16.mxu0 0
      %388 = vmatpush1.bf16.msra.mxu0 0
      %389 = vmatprep.subr.bf16.mxu0 0
      %390 = vmatpush1.bf16.msra.mxu0 0
      %391 = vmatprep.subr.bf16.mxu0 0
      %392 = vmatpush1.bf16.msra.mxu0 0
      %393 = vmatprep.subr.bf16.mxu0 0
      %394 = vmatpush1.bf16.msra.mxu0 0
      %395 = vmatprep.subr.bf16.mxu0 0
      %396 = vmatpush1.bf16.msra.mxu0 0
      %397 = vmatprep.mubr.bf16.mxu0 0
      %398 = vmatmul.mubr.bf16.gmra.mrb[0].mxu0 %v348
      %v399 = vpop.f32.mrb[0].mxu0
      %v400 = vadd.f32 0.0, %v399
      %v401 = vpop.f32.mrb[0].mxu0
      %v402 = vpop.f32.mrb[0].mxu0
      %v403 = vadd.f32 0.0, %v402
      %v404 = vpop.f32.mrb[0].mxu0
      %405 = vmatprep.mubr.bf16.mxu0 0
      %406 = vmatmul.mubr.bf16.gmra.mrb[0].mxu0 %v351
      %v407 = vpop.f32.mrb[0].mxu0
      %v408 = vadd.f32 0.0, %v407
      %v409 = vpop.f32.mrb[0].mxu0
      %v410 = vpop.f32.mrb[0].mxu0
      %v411 = vadd.f32 0.0, %v410
      %v412 = vpop.f32.mrb[0].mxu0
      %413 = vmatprep.mubr.bf16.mxu0 0
      %414 = vmatmul.mubr.bf16.gmra.mrb[0].mxu0 %v354
      %v415 = vpop.f32.mrb[0].mxu0
      %v416 = vadd.f32 0.0, %v415
      %v417 = vpop.f32.mrb[0].mxu0
      %v418 = vpop.f32.mrb[0].mxu0
      %v419 = vadd.f32 0.0, %v418
      %v420 = vpop.f32.mrb[0].mxu0
      %421 = vmatprep.mubr.bf16.mxu0 0
      %422 = vmatmul.mubr.bf16.gmra.mrb[0].mxu0 %v357
      %v423 = vpop.f32.mrb[0].mxu0
      %v424 = vadd.f32 0.0, %v423
      %v425 = vpop.f32.mrb[0].mxu0
      %v426 = vpop.f32.mrb[0].mxu0
      %v427 = vadd.f32 0.0, %v426
      %v428 = vpop.f32.mrb[0].mxu0
      %429 = vmatprep.mubr.bf16.mxu0 0
      %430 = vmatmul.mubr.bf16.gmra.mrb[0].mxu0 %v360
      %v431 = vpop.f32.mrb[0].mxu0
      %v432 = vadd.f32 0.0, %v431
      %v433 = vpop.f32.mrb[0].mxu0
      %v434 = vpop.f32.mrb[0].mxu0
      %v435 = vadd.f32 0.0, %v434
      %v436 = vpop.f32.mrb[0].mxu0
      %437 = vmatprep.mubr.bf16.mxu0 0
      %438 = vmatmul.mubr.bf16.gmra.mrb[0].mxu0 %v363
      %v439 = vpop.f32.mrb[0].mxu0
      %v440 = vadd.f32 0.0, %v439
      %v441 = vpop.f32.mrb[0].mxu0
      %v442 = vpop.f32.mrb[0].mxu0
      %v443 = vadd.f32 0.0, %v442
      %v444 = vpop.f32.mrb[0].mxu0
      %445 = vdwg.mxu0
      %v454 = vunpack.c.l.b16 %v251
      %v455 = vunpack.c.l.b16 %v252
      %v456 = vunpack.c.l.b16 %v253
      %v457 = vunpack.c.l.b16 %v254
      %v458 = vunpack.c.l.b16 %v255
      %v459 = vunpack.c.l.b16 %v256
      %v460 = vunpack.c.l.b16 %v257
      %v461 = vunpack.c.l.b16 %v258
      %v462 = vpack.c.b16 %v455, %v454
      %v463 = vpack.c.b16 %v457, %v456
      %v464 = vpack.c.b16 %v459, %v458
      %v465 = vpack.c.b16 %v461, %v460
      %v470 = vsel %vm346, %v245, 0
      %v472 = vsel %vm346, %v246, 0
      %v474 = vsel %vm346, %v247, 0
      %v476 = vsel %vm346, %v248, 0
      %v478 = vsel %vm346, %v249, 0
      %v480 = vsel %vm346, %v250, 0
      %482 = vmatprep.subr.bf16.mxu0 0
      %483 = vmatpush1.bf16.msra.mxu0 %v462
      %484 = vmatprep.subr.bf16.mxu0 0
      %485 = vmatpush1.bf16.msra.mxu0 %v463
      %486 = vmatprep.subr.bf16.mxu0 0
      %487 = vmatpush1.bf16.msra.mxu0 %v464
      %488 = vmatprep.subr.bf16.mxu0 0
      %489 = vmatpush1.bf16.msra.mxu0 %v465
      %490 = vmatprep.subr.bf16.mxu0 0
      %491 = vmatpush1.bf16.msra.mxu0 0
      %492 = vmatprep.subr.bf16.mxu0 0
      %493 = vmatpush1.bf16.msra.mxu0 0
      %494 = vmatprep.subr.bf16.mxu0 0
      %495 = vmatpush1.bf16.msra.mxu0 0
      %496 = vmatprep.subr.bf16.mxu0 0
      %497 = vmatpush1.bf16.msra.mxu0 0
      %498 = vmatprep.subr.bf16.mxu0 0
      %499 = vmatpush1.bf16.msra.mxu0 0
      %500 = vmatprep.subr.bf16.mxu0 0
      %501 = vmatpush1.bf16.msra.mxu0 0
      %502 = vmatprep.subr.bf16.mxu0 0
      %503 = vmatpush1.bf16.msra.mxu0 0
      %504 = vmatprep.subr.bf16.mxu0 0
      %505 = vmatpush1.bf16.msra.mxu0 0
      %506 = vmatprep.subr.bf16.mxu0 0
      %507 = vmatpush1.bf16.msra.mxu0 0
      %508 = vmatprep.subr.bf16.mxu0 0
      %509 = vmatpush1.bf16.msra.mxu0 0
      %510 = vmatprep.subr.bf16.mxu0 0
      %511 = vmatpush1.bf16.msra.mxu0 0
      %512 = vmatprep.subr.bf16.mxu0 0
      %513 = vmatpush1.bf16.msra.mxu0 0
      %514 = vmatprep.mubr.bf16.mxu0 0
      %515 = vmatmul.mubr.bf16.gmra.mrb[0].mxu0 %v470
      %v516 = vpop.f32.mrb[0].mxu0
      %v517 = vadd.f32 %v400, %v516
      %v518 = vpop.f32.mrb[0].mxu0
      %v519 = vpop.f32.mrb[0].mxu0
      %v520 = vadd.f32 %v403, %v519
      %v521 = vpop.f32.mrb[0].mxu0
      %522 = vmatprep.mubr.bf16.mxu0 0
      %523 = vmatmul.mubr.bf16.gmra.mrb[0].mxu0 %v472
      %v524 = vpop.f32.mrb[0].mxu0
      %v525 = vadd.f32 %v408, %v524
      %v526 = vpop.f32.mrb[0].mxu0
      %v527 = vpop.f32.mrb[0].mxu0
      %v528 = vadd.f32 %v411, %v527
      %v529 = vpop.f32.mrb[0].mxu0
      %530 = vmatprep.mubr.bf16.mxu0 0
      %531 = vmatmul.mubr.bf16.gmra.mrb[0].mxu0 %v474
      %v532 = vpop.f32.mrb[0].mxu0
      %v533 = vadd.f32 %v416, %v532
      %v534 = vpop.f32.mrb[0].mxu0
      %v535 = vpop.f32.mrb[0].mxu0
      %v536 = vadd.f32 %v419, %v535
      %v537 = vpop.f32.mrb[0].mxu0
      %538 = vmatprep.mubr.bf16.mxu0 0
      %539 = vmatmul.mubr.bf16.gmra.mrb[0].mxu0 %v476
      %v540 = vpop.f32.mrb[0].mxu0
      %v541 = vadd.f32 %v424, %v540
      %v542 = vpop.f32.mrb[0].mxu0
      %v543 = vpop.f32.mrb[0].mxu0
      %v544 = vadd.f32 %v427, %v543
      %v545 = vpop.f32.mrb[0].mxu0
      %546 = vmatprep.mubr.bf16.mxu0 0
      %547 = vmatmul.mubr.bf16.gmra.mrb[0].mxu0 %v478
      %v548 = vpop.f32.mrb[0].mxu0
      %v549 = vadd.f32 %v432, %v548
      %v550 = vpop.f32.mrb[0].mxu0
      %v551 = vpop.f32.mrb[0].mxu0
      %v552 = vadd.f32 %v435, %v551
      %v553 = vpop.f32.mrb[0].mxu0
      %554 = vmatprep.mubr.bf16.mxu0 0
      %555 = vmatmul.mubr.bf16.gmra.mrb[0].mxu0 %v480
      %v556 = vpop.f32.mrb[0].mxu0
      %v557 = vadd.f32 %v440, %v556
      %v558 = vpop.f32.mrb[0].mxu0
      %v559 = vpop.f32.mrb[0].mxu0
      %v560 = vadd.f32 %v443, %v559
      %v561 = vpop.f32.mrb[0].mxu0
      %562 = vdwg.mxu0
      %v563 = vpack.c.bf16 %v233, %v232
      %v564 = vpack.c.bf16 %v235, %v234
      %v565 = vpack.c.bf16 %v237, %v236
      %v566 = vpack.c.bf16 %v239, %v238
      %v567 = vpack.c.bf16 %v241, %v240
      %v568 = vpack.c.bf16 %v243, %v242
      %v569 = vpack.c.bf16 %v244, %v244
      %s570 = scalar_lea.vmem %s2, 64
      %v571 = vld [vmem:[%s570] sm:$0xf]
      %v572 = vld [vmem:[%s570 + $0x4] sm:$0xf]
      %v573 = vld [vmem:[%s570 + $0x8] sm:$0xf]
      %v574 = vld [vmem:[%s570 + $0xc] sm:$0xf]
      %v575 = vld [vmem:[%s570 + $0x10] sm:$0xf]
      %v576 = vld [vmem:[%s570 + $0x14] sm:$0xf]
      %v577 = vld [vmem:[%s570 + $0x18] sm:$0xf]
      %v578 = vld [vmem:[%s570 + $0x1c] sm:$0xf]
      %v580 = vshrl.u32 %v563, 16
      %v582 = vshll.u32 %v563, 16
      %v584 = vrot.slane %v582, 1
      %v585 = vor.u32 %v580, %v584
      %v587 = vshll.u32 %v564, 16
      %v589 = vrot.slane %v587, 1
      %v590 = vsel %vm269, %v585, %v589
      %v591 = vshrl.u32 %v564, 16
      %v593 = vor.u32 %v591, %v589
      %v595 = vshll.u32 %v565, 16
      %v597 = vrot.slane %v595, 1
      %v598 = vsel %vm269, %v593, %v597
      %v599 = vshrl.u32 %v565, 16
      %v601 = vor.u32 %v599, %v597
      %v603 = vshll.u32 %v566, 16
      %v605 = vrot.slane %v603, 1
      %v606 = vsel %vm269, %v601, %v605
      %v607 = vshrl.u32 %v566, 16
      %v609 = vor.u32 %v607, %v605
      %v611 = vshll.u32 %v567, 16
      %v613 = vrot.slane %v611, 1
      %v614 = vsel %vm269, %v609, %v613
      %v615 = vshrl.u32 %v567, 16
      %v617 = vor.u32 %v615, %v613
      %v619 = vshll.u32 %v568, 16
      %v621 = vrot.slane %v619, 1
      %v622 = vsel %vm269, %v617, %v621
      %v623 = vshrl.u32 %v568, 16
      %v625 = vor.u32 %v623, %v621
      %v627 = vshll.u32 %v569, 16
      %v629 = vrot.slane %v627, 1
      %v630 = vsel %vm269, %v625, %v629
      %v639 = vunpack.c.l.b16 %v571
      %v640 = vunpack.c.l.b16 %v572
      %v641 = vunpack.c.l.b16 %v573
      %v642 = vunpack.c.l.b16 %v574
      %v643 = vunpack.c.l.b16 %v575
      %v644 = vunpack.c.l.b16 %v576
      %v645 = vunpack.c.l.b16 %v577
      %v646 = vunpack.c.l.b16 %v578
      %v647 = vpack.c.b16 %v640, %v639
      %v648 = vpack.c.b16 %v642, %v641
      %v649 = vpack.c.b16 %v644, %v643
      %v650 = vpack.c.b16 %v646, %v645
      %v656 = vsel %vm346, %v590, 0
      %v659 = vsel %vm346, %v598, 0
      %v662 = vsel %vm346, %v606, 0
      %v665 = vsel %vm346, %v614, 0
      %v668 = vsel %vm346, %v622, 0
      %v671 = vsel %vm346, %v630, 0
      %673 = vmatprep.subr.bf16.mxu0 0
      %674 = vmatpush1.bf16.msra.mxu0 %v647
      %675 = vmatprep.subr.bf16.mxu0 0
      %676 = vmatpush1.bf16.msra.mxu0 %v648
      %677 = vmatprep.subr.bf16.mxu0 0
      %678 = vmatpush1.bf16.msra.mxu0 %v649
      %679 = vmatprep.subr.bf16.mxu0 0
      %680 = vmatpush1.bf16.msra.mxu0 %v650
      %681 = vmatprep.subr.bf16.mxu0 0
      %682 = vmatpush1.bf16.msra.mxu0 0
      %683 = vmatprep.subr.bf16.mxu0 0
      %684 = vmatpush1.bf16.msra.mxu0 0
      %685 = vmatprep.subr.bf16.mxu0 0
      %686 = vmatpush1.bf16.msra.mxu0 0
      %687 = vmatprep.subr.bf16.mxu0 0
      %688 = vmatpush1.bf16.msra.mxu0 0
      %689 = vmatprep.subr.bf16.mxu0 0
      %690 = vmatpush1.bf16.msra.mxu0 0
      %691 = vmatprep.subr.bf16.mxu0 0
      %692 = vmatpush1.bf16.msra.mxu0 0
      %693 = vmatprep.subr.bf16.mxu0 0
      %694 = vmatpush1.bf16.msra.mxu0 0
      %695 = vmatprep.subr.bf16.mxu0 0
      %696 = vmatpush1.bf16.msra.mxu0 0
      %697 = vmatprep.subr.bf16.mxu0 0
      %698 = vmatpush1.bf16.msra.mxu0 0
      %699 = vmatprep.subr.bf16.mxu0 0
      %700 = vmatpush1.bf16.msra.mxu0 0
      %701 = vmatprep.subr.bf16.mxu0 0
      %702 = vmatpush1.bf16.msra.mxu0 0
      %703 = vmatprep.subr.bf16.mxu0 0
      %704 = vmatpush1.bf16.msra.mxu0 0
      %705 = vmatprep.mubr.bf16.mxu0 0
      %706 = vmatmul.mubr.bf16.gmra.mrb[0].mxu0 %v656
      %v707 = vpop.f32.mrb[0].mxu0
      %v708 = vadd.f32 0.0, %v707
      %v709 = vpop.f32.mrb[0].mxu0
      %v710 = vpop.f32.mrb[0].mxu0
      %v711 = vadd.f32 0.0, %v710
      %v712 = vpop.f32.mrb[0].mxu0
      %713 = vmatprep.mubr.bf16.mxu0 0
      %714 = vmatmul.mubr.bf16.gmra.mrb[0].mxu0 %v659
      %v715 = vpop.f32.mrb[0].mxu0
      %v716 = vadd.f32 0.0, %v715
      %v717 = vpop.f32.mrb[0].mxu0
      %v718 = vpop.f32.mrb[0].mxu0
      %v719 = vadd.f32 0.0, %v718
      %v720 = vpop.f32.mrb[0].mxu0
      %721 = vmatprep.mubr.bf16.mxu0 0
      %722 = vmatmul.mubr.bf16.gmra.mrb[0].mxu0 %v662
      %v723 = vpop.f32.mrb[0].mxu0
      %v724 = vadd.f32 0.0, %v723
      %v725 = vpop.f32.mrb[0].mxu0
      %v726 = vpop.f32.mrb[0].mxu0
      %v727 = vadd.f32 0.0, %v726
      %v728 = vpop.f32.mrb[0].mxu0
      %729 = vmatprep.mubr.bf16.mxu0 0
      %730 = vmatmul.mubr.bf16.gmra.mrb[0].mxu0 %v665
      %v731 = vpop.f32.mrb[0].mxu0
      %v732 = vadd.f32 0.0, %v731
      %v733 = vpop.f32.mrb[0].mxu0
      %v734 = vpop.f32.mrb[0].mxu0
      %v735 = vadd.f32 0.0, %v734
      %v736 = vpop.f32.mrb[0].mxu0
      %737 = vmatprep.mubr.bf16.mxu0 0
      %738 = vmatmul.mubr.bf16.gmra.mrb[0].mxu0 %v668
      %v739 = vpop.f32.mrb[0].mxu0
      %v740 = vadd.f32 0.0, %v739
      %v741 = vpop.f32.mrb[0].mxu0
      %v742 = vpop.f32.mrb[0].mxu0
      %v743 = vadd.f32 0.0, %v742
      %v744 = vpop.f32.mrb[0].mxu0
      %745 = vmatprep.mubr.bf16.mxu0 0
      %746 = vmatmul.mubr.bf16.gmra.mrb[0].mxu0 %v671
      %v747 = vpop.f32.mrb[0].mxu0
      %v748 = vadd.f32 0.0, %v747
      %v749 = vpop.f32.mrb[0].mxu0
      %v750 = vpop.f32.mrb[0].mxu0
      %v751 = vadd.f32 0.0, %v750
      %v752 = vpop.f32.mrb[0].mxu0
      %753 = vdwg.mxu0
      %v754 = vadd.f32 %v517, %v708
      %v755 = vadd.f32 %v520, %v711
      %v756 = vadd.f32 %v525, %v716
      %v757 = vadd.f32 %v528, %v719
      %v758 = vadd.f32 %v533, %v724
      %v759 = vadd.f32 %v536, %v727
      %v760 = vadd.f32 %v541, %v732
      %v761 = vadd.f32 %v544, %v735
      %v762 = vadd.f32 %v549, %v740
      %v763 = vadd.f32 %v552, %v743
      %v764 = vadd.f32 %v557, %v748
      %v765 = vadd.f32 %v560, %v751
      %s766 = scalar_lea.vmem %s2, 96
      %v767 = vld [vmem:[%s766] sm:$0xf]
      %v768 = vld [vmem:[%s766 + $0x4] sm:$0xf]
      %v769 = vld [vmem:[%s766 + $0x8] sm:$0xf]
      %v770 = vld [vmem:[%s766 + $0xc] sm:$0xf]
      %v771 = vld [vmem:[%s766 + $0x10] sm:$0xf]
      %v772 = vld [vmem:[%s766 + $0x14] sm:$0xf]
      %v773 = vld [vmem:[%s766 + $0x18] sm:$0xf]
      %v774 = vld [vmem:[%s766 + $0x1c] sm:$0xf]
      %vm782 = vcmask 1046528
      %v783 = vrot.slane %v563, 1
      %v784 = vrot.slane %v564, 1
      %v785 = vsel %vm782, %v783, %v784
      %v786 = vrot.slane %v565, 1
      %v787 = vsel %vm782, %v784, %v786
      %v788 = vrot.slane %v566, 1
      %v789 = vsel %vm782, %v786, %v788
      %v790 = vrot.slane %v567, 1
      %v791 = vsel %vm782, %v788, %v790
      %v792 = vrot.slane %v568, 1
      %v793 = vsel %vm782, %v790, %v792
      %v794 = vrot.slane %v569, 1
      %v795 = vsel %vm782, %v792, %v794
      %v804 = vunpack.c.l.b16 %v767
      %v805 = vunpack.c.l.b16 %v768
      %v806 = vunpack.c.l.b16 %v769
      %v807 = vunpack.c.l.b16 %v770
      %v808 = vunpack.c.l.b16 %v771
      %v809 = vunpack.c.l.b16 %v772
      %v810 = vunpack.c.l.b16 %v773
      %v811 = vunpack.c.l.b16 %v774
      %v812 = vpack.c.b16 %v805, %v804
      %v813 = vpack.c.b16 %v807, %v806
      %v814 = vpack.c.b16 %v809, %v808
      %v815 = vpack.c.b16 %v811, %v810
      %v821 = vsel %vm346, %v785, 0
      %v824 = vsel %vm346, %v787, 0
      %v827 = vsel %vm346, %v789, 0
      %v830 = vsel %vm346, %v791, 0
      %v833 = vsel %vm346, %v793, 0
      %v836 = vsel %vm346, %v795, 0
      %838 = vmatprep.subr.bf16.mxu0 0
      %839 = vmatpush1.bf16.msra.mxu0 %v812
      %840 = vmatprep.subr.bf16.mxu0 0
      %841 = vmatpush1.bf16.msra.mxu0 %v813
      %842 = vmatprep.subr.bf16.mxu0 0
      %843 = vmatpush1.bf16.msra.mxu0 %v814
      %844 = vmatprep.subr.bf16.mxu0 0
      %845 = vmatpush1.bf16.msra.mxu0 %v815
      %846 = vmatprep.subr.bf16.mxu0 0
      %847 = vmatpush1.bf16.msra.mxu0 0
      %848 = vmatprep.subr.bf16.mxu0 0
      %849 = vmatpush1.bf16.msra.mxu0 0
      %850 = vmatprep.subr.bf16.mxu0 0
      %851 = vmatpush1.bf16.msra.mxu0 0
      %852 = vmatprep.subr.bf16.mxu0 0
      %853 = vmatpush1.bf16.msra.mxu0 0
      %854 = vmatprep.subr.bf16.mxu0 0
      %855 = vmatpush1.bf16.msra.mxu0 0
      %856 = vmatprep.subr.bf16.mxu0 0
      %857 = vmatpush1.bf16.msra.mxu0 0
      %858 = vmatprep.subr.bf16.mxu0 0
      %859 = vmatpush1.bf16.msra.mxu0 0
      %860 = vmatprep.subr.bf16.mxu0 0
      %861 = vmatpush1.bf16.msra.mxu0 0
      %862 = vmatprep.subr.bf16.mxu0 0
      %863 = vmatpush1.bf16.msra.mxu0 0
      %864 = vmatprep.subr.bf16.mxu0 0
      %865 = vmatpush1.bf16.msra.mxu0 0
      %866 = vmatprep.subr.bf16.mxu0 0
      %867 = vmatpush1.bf16.msra.mxu0 0
      %868 = vmatprep.subr.bf16.mxu0 0
      %869 = vmatpush1.bf16.msra.mxu0 0
      %870 = vmatprep.mubr.bf16.mxu0 0
      %871 = vmatmul.mubr.bf16.gmra.mrb[0].mxu0 %v821
      %v872 = vpop.f32.mrb[0].mxu0
      %v873 = vadd.f32 0.0, %v872
      %v874 = vpop.f32.mrb[0].mxu0
      %v875 = vpop.f32.mrb[0].mxu0
      %v876 = vadd.f32 0.0, %v875
      %v877 = vpop.f32.mrb[0].mxu0
      %878 = vmatprep.mubr.bf16.mxu0 0
      %879 = vmatmul.mubr.bf16.gmra.mrb[0].mxu0 %v824
      %v880 = vpop.f32.mrb[0].mxu0
      %v881 = vadd.f32 0.0, %v880
      %v882 = vpop.f32.mrb[0].mxu0
      %v883 = vpop.f32.mrb[0].mxu0
      %v884 = vadd.f32 0.0, %v883
      %v885 = vpop.f32.mrb[0].mxu0
      %886 = vmatprep.mubr.bf16.mxu0 0
      %887 = vmatmul.mubr.bf16.gmra.mrb[0].mxu0 %v827
      %v888 = vpop.f32.mrb[0].mxu0
      %v889 = vadd.f32 0.0, %v888
      %v890 = vpop.f32.mrb[0].mxu0
      %v891 = vpop.f32.mrb[0].mxu0
      %v892 = vadd.f32 0.0, %v891
      %v893 = vpop.f32.mrb[0].mxu0
      %894 = vmatprep.mubr.bf16.mxu0 0
      %895 = vmatmul.mubr.bf16.gmra.mrb[0].mxu0 %v830
      %v896 = vpop.f32.mrb[0].mxu0
      %v897 = vadd.f32 0.0, %v896
      %v898 = vpop.f32.mrb[0].mxu0
      %v899 = vpop.f32.mrb[0].mxu0
      %v900 = vadd.f32 0.0, %v899
      %v901 = vpop.f32.mrb[0].mxu0
      %902 = vmatprep.mubr.bf16.mxu0 0
      %903 = vmatmul.mubr.bf16.gmra.mrb[0].mxu0 %v833
      %v904 = vpop.f32.mrb[0].mxu0
      %v905 = vadd.f32 0.0, %v904
      %v906 = vpop.f32.mrb[0].mxu0
      %v907 = vpop.f32.mrb[0].mxu0
      %v908 = vadd.f32 0.0, %v907
      %v909 = vpop.f32.mrb[0].mxu0
      %910 = vmatprep.mubr.bf16.mxu0 0
      %911 = vmatmul.mubr.bf16.gmra.mrb[0].mxu0 %v836
      %v912 = vpop.f32.mrb[0].mxu0
      %v913 = vadd.f32 0.0, %v912
      %v914 = vpop.f32.mrb[0].mxu0
      %v915 = vpop.f32.mrb[0].mxu0
      %v916 = vadd.f32 0.0, %v915
      %v917 = vpop.f32.mrb[0].mxu0
      %918 = vdwg.mxu0
      %v919 = vadd.f32 %v754, %v873
      %v920 = vadd.f32 %v755, %v876
      %v921 = vadd.f32 %v756, %v881
      %v922 = vadd.f32 %v757, %v884
      %v923 = vadd.f32 %v758, %v889
      %v924 = vadd.f32 %v759, %v892
      %v925 = vadd.f32 %v760, %v897
      %v926 = vadd.f32 %v761, %v900
      %v927 = vadd.f32 %v762, %v905
      %v928 = vadd.f32 %v763, %v908
      %v929 = vadd.f32 %v764, %v913
      %v930 = vadd.f32 %v765, %v916
      %v931 = vld [vmem:[%s3] sm:$0x1]
      %v933 = vlaneseq
      %v934 = vshrl.u32 %v933, 7
      %v935 = vsub.s32 0, %v934
      %v936 = vrot.slane %v931, %v935
      %v938 = vadd.f32 %v919, %v936
      %v939 = vadd.f32 %v920, %v936
      %v940 = vadd.f32 %v921, %v936
      %v941 = vadd.f32 %v922, %v936
      %v942 = vadd.f32 %v923, %v936
      %v943 = vadd.f32 %v924, %v936
      %v944 = vadd.f32 %v925, %v936
      %v945 = vadd.f32 %v926, %v936
      %v946 = vadd.f32 %v927, %v936
      %v947 = vadd.f32 %v928, %v936
      %v948 = vadd.f32 %v929, %v936
      %v949 = vadd.f32 %v930, %v936
      %v950 = vmax.f32 %v938, 0.0
      %v951 = vmax.f32 %v939, 0.0
      %v952 = vmax.f32 %v940, 0.0
      %v953 = vmax.f32 %v941, 0.0
      %v954 = vmax.f32 %v942, 0.0
      %v955 = vmax.f32 %v943, 0.0
      %v956 = vmax.f32 %v944, 0.0
      %v957 = vmax.f32 %v945, 0.0
      %v958 = vmax.f32 %v946, 0.0
      %v959 = vmax.f32 %v947, 0.0
      %v960 = vmax.f32 %v948, 0.0
      %v961 = vmax.f32 %v949, 0.0
      %962 = vst [vmem:[%s228] sm:$0xff] %v950
      %963 = vst [vmem:[%s228 + $0x8] sm:$0xff] %v951
      %964 = vst [vmem:[%s228 + $0x10] sm:$0xff] %v952
      %965 = vst [vmem:[%s228 + $0x18] sm:$0xff] %v953
      %966 = vst [vmem:[%s228 + $0x20] sm:$0xff] %v954
      %967 = vst [vmem:[%s228 + $0x28] sm:$0xff] %v955
      %968 = vst [vmem:[%s228 + $0x30] sm:$0xff] %v956
      %969 = vst [vmem:[%s228 + $0x38] sm:$0xff] %v957
      %970 = vst [vmem:[%s228 + $0x40] sm:$0xff] %v958
      %971 = vst [vmem:[%s228 + $0x48] sm:$0xff] %v959
      %972 = vst [vmem:[%s228 + $0x50] sm:$0xff] %v960
      %973 = vst [vmem:[%s228 + $0x58] sm:$0xff] %v961
      %s974 = smul.u32 12, %s15
      %p975 = scmp.lt.s32.totalorder %s974, 23
      %s976 = scalar_select %p975, %s974, 23
      %s977 = smul.addr %s976, 8
      %s978 = scalar_lea.vmem %s4, %s977
      // Predicated region
      $region37: #{decoder_forward.5} parent=35 // pred_check
        %p979 = pneg %p129
      $region38: #{decoder_forward.5} parent=35 // pred_check_branch
        %981 = sbr.rel (%p979) target = $region40
      $region39: #{decoder_forward.5} parent=35 // pred_region
        %s982 = smul.u32 12, %s15
      $region40: #{decoder_forward.5} parent=35 // pred_fallthru
        _
    $region36: #{decoder_forward.5} parent=5 // pred_fallthru
      _
    %p983 = scmp.le.s32.totalorder 2, %s10
    // Predicated region
    $region41: #{decoder_forward.5} parent=5 // pred_check
      %p984 = pneg %p983
    $region42: #{decoder_forward.5} parent=5 // pred_check_branch
      %986 = sbr.rel (%p984) target = $region44
    $region43: #{decoder_forward.5} parent=5 // pred_region
      %s987 = ssub.s32 %s10, 2
      // Predicated region
      $region45: #{decoder_forward.5} parent=43 // pred_check
        %p988 = pneg %p135
      $region46: #{decoder_forward.5} parent=43 // pred_check_branch
        %990 = sbr.rel (%p988) target = $region48
      $region47: #{decoder_forward.5} parent=43 // pred_region
        %s991 = smul.u32 12, %s16
        %p992 = scmp.lt.s32.totalorder %s991, 23
        %s993 = scalar_select %p992, %s991, 23
        %s994 = smul.addr %s993, 8
        %s995 = scalar_lea.vmem %s4, %s994
      $region48: #{decoder_forward.5} parent=43 // pred_fallthru
        _
    $region44: #{decoder_forward.5} parent=5 // pred_fallthru
      _
  $region6: #{decoder_forward.5} parent=0 // loop_footer
    %s14 = sadd.s32 1, %s10
  $region7: #{decoder_forward.5} parent=0 // loop_footer_branch
    %9 = sbr.rel target = $region3
  $region8: #{decoder_forward.5} parent=0 // loop_exit
    _

// kernel: decoder_forward.6
$region0: #{decoder_forward.6}
  #allocation0 [shape = 'u32[]', space=smem, size = 0x4, offset = 0x4, fixed_abs, tag = 'smem constant byte address 0x4 - core index']
  #allocation1 [shape = 'u32[144,128]{1,0:T(1,128)}', space=vmem, size = 0x12000, scoped, tag = 'internal scratch']
  %s0 = inlined_call_operand.vmem [shape: f32[912,32], index: 0, kind: input, shape index: {}, may-alias: {0,1}]
  %s1 = inlined_call_operand.vmem [shape: f32[912,32], index: 1, kind: input, shape index: {}, may-alias: {0,1}]
  %s2 = inlined_call_operand.vmem [shape: bf16[4,32,128], index: 2, kind: input, shape index: {}]
  %s3 = inlined_call_operand.vmem [shape: f32[1,128], index: 3, kind: input, shape index: {}]
  %s4 = inlined_call_operand.vmem [shape: f32[608,128], index: 4, kind: output, shape index: {}]
  %s5 = sld [smem:[#allocation0]]
  $region49: #{decoder_forward.6} parent=0
    _
  %s7 = ssub.s32 1, %s5
  %s8 = scalar_select 0, %s7, %s5
  loop: start=0, step=1, limit=4
  $region2: #{decoder_forward.6} parent=0 // loop_pre_header
    _
  $region3: #{decoder_forward.6} parent=0 // loop_header
    %s10 = sphi 0, %s14
    %p11 = scmp.ge.s32.totalorder %s10, 4
    %s20 = sphi 0, %s22
    %s23 = sphi 0, %s20
    %s24 = sphi 0, %s23
    %s40 = sphi 0, %s24
    %s48 = sphi 0, %s50
    %s51 = sphi 0, %s48
    %s52 = sphi 0, %s51
    %s68 = sphi 0, %s52
    %s72 = sphi 0, %s72
    %s74 = sphi 0, %s72
    %s75 = sphi 0, %s74
    %s89 = sphi 0, %s75
    %s93 = sphi 0, %s93
    %s95 = sphi 0, %s93
    %s96 = sphi 0, %s95
    %s110 = sphi 0, %s96
    %s116 = sphi 0, %s118
    %s119 = sphi 0, %s116
    %s120 = sphi 0, %s119
    %s136 = sphi 0, %s120
  $region4: #{decoder_forward.6} parent=0 // loop_header_branch
    %13 = sbr.rel (%p11) target = $region8
  $region5: #{decoder_forward.6} parent=0 // loop_body
    %s15 = ssub.s32 %s10, 1
    %s16 = ssub.s32 %s10, 2
    %s17 = sadd.s32 %s10, 1
    %s18 = ssub.s32 %s10, %s17
    %p19 = scmp.eq.s32.totalorder %s18, 0
    %s21 = sadd.s32 %s20, 1
    %s22 = scalar_select %p19, %s20, %s21
    %p25 = pneg %p19
    %p26 = scmp.eq.s32.totalorder %s10, 1
    %p27 = por %p25, %p26
    %p28 = scmp.ne.s32.totalorder %s20, %s23
    %p29 = scmp.eq.s32.totalorder %s10, 0
    %p30 = por %p28, %p29
    %p31 = scmp.ne.s32.totalorder %s20, %s23
    %p32 = scmp.eq.s32.totalorder %s15, 1
    %p33 = por %p31, %p32
    %p34 = scmp.ne.s32.totalorder %s23, %s24
    %p35 = scmp.eq.s32.totalorder %s15, 0
    %p36 = por %p34, %p35
    %p37 = scmp.ne.s32.totalorder %s23, %s24
    %p38 = scmp.eq.s32.totalorder %s16, 1
    %p39 = por %p37, %p38
    %p41 = scmp.ne.s32.totalorder %s24, %s40
    %p42 = scmp.eq.s32.totalorder %s16, 0
    %p43 = por %p41, %p42
    %s44 = sadd.s32 %s10, 1
    %s45 = sadd.s32 %s17, 1
    %s46 = ssub.s32 %s44, %s45
    %p47 = scmp.eq.s32.totalorder %s46, 0
    %s49 = sadd.s32 %s48, 1
    %s50 = scalar_select %p47, %s48, %s49
    %p53 = pneg %p47
    %p54 = scmp.eq.s32.totalorder %s10, 1
    %p55 = por %p53, %p54
    %p56 = scmp.ne.s32.totalorder %s48, %s51
    %p57 = scmp.eq.s32.totalorder %s10, 0
    %p58 = por %p56, %p57
    %p59 = scmp.ne.s32.totalorder %s48, %s51
    %p60 = scmp.eq.s32.totalorder %s15, 1
    %p61 = por %p59, %p60
    %p62 = scmp.ne.s32.totalorder %s51, %s52
    %p63 = scmp.eq.s32.totalorder %s15, 0
    %p64 = por %p62, %p63
    %p65 = scmp.ne.s32.totalorder %s51, %s52
    %p66 = scmp.eq.s32.totalorder %s16, 1
    %p67 = por %p65, %p66
    %p69 = scmp.ne.s32.totalorder %s52, %s68
    %p70 = scmp.eq.s32.totalorder %s16, 0
    %p71 = por %p69, %p70
    %s73 = sadd.s32 %s72, 1
    %p76 = scmp.eq.s32.totalorder %s10, 1
    %p77 = scmp.ne.s32.totalorder %s72, %s74
    %p78 = scmp.eq.s32.totalorder %s10, 0
    %p79 = por %p77, %p78
    %p80 = scmp.ne.s32.totalorder %s72, %s74
    %p81 = scmp.eq.s32.totalorder %s15, 1
    %p82 = por %p80, %p81
    %p83 = scmp.ne.s32.totalorder %s74, %s75
    %p84 = scmp.eq.s32.totalorder %s15, 0
    %p85 = por %p83, %p84
    %p86 = scmp.ne.s32.totalorder %s74, %s75
    %p87 = scmp.eq.s32.totalorder %s16, 1
    %p88 = por %p86, %p87
    %p90 = scmp.ne.s32.totalorder %s75, %s89
    %p91 = scmp.eq.s32.totalorder %s16, 0
    %p92 = por %p90, %p91
    %s94 = sadd.s32 %s93, 1
    %p97 = scmp.eq.s32.totalorder %s10, 1
    %p98 = scmp.ne.s32.totalorder %s93, %s95
    %p99 = scmp.eq.s32.totalorder %s10, 0
    %p100 = por %p98, %p99
    %p101 = scmp.ne.s32.totalorder %s93, %s95
    %p102 = scmp.eq.s32.totalorder %s15, 1
    %p103 = por %p101, %p102
    %p104 = scmp.ne.s32.totalorder %s95, %s96
    %p105 = scmp.eq.s32.totalorder %s15, 0
    %p106 = por %p104, %p105
    %p107 = scmp.ne.s32.totalorder %s95, %s96
    %p108 = scmp.eq.s32.totalorder %s16, 1
    %p109 = por %p107, %p108
    %p111 = scmp.ne.s32.totalorder %s96, %s110
    %p112 = scmp.eq.s32.totalorder %s16, 0
    %p113 = por %p111, %p112
    %s114 = ssub.s32 %s10, %s17
    %p115 = scmp.eq.s32.totalorder %s114, 0
    %s117 = sadd.s32 %s116, 1
    %s118 = scalar_select %p115, %s116, %s117
    %p121 = pneg %p115
    %p122 = scmp.eq.s32.totalorder %s10, 1
    %p123 = por %p121, %p122
    %p124 = scmp.ne.s32.totalorder %s116, %s119
    %p125 = scmp.eq.s32.totalorder %s10, 0
    %p126 = por %p124, %p125
    %p127 = scmp.ne.s32.totalorder %s116, %s119
    %p128 = scmp.eq.s32.totalorder %s15, 1
    %p129 = por %p127, %p128
    %p130 = scmp.ne.s32.totalorder %s119, %s120
    %p131 = scmp.eq.s32.totalorder %s15, 0
    %p132 = por %p130, %p131
    %p133 = scmp.ne.s32.totalorder %s119, %s120
    %p134 = scmp.eq.s32.totalorder %s16, 1
    %p135 = por %p133, %p134
    %p137 = scmp.ne.s32.totalorder %s120, %s136
    %p138 = scmp.eq.s32.totalorder %s16, 0
    %p139 = por %p137, %p138
    %p140 = scmp.le.s32.totalorder 1, %s10
    %p141 = scmp.lt.s32.totalorder %s10, 3
    %p142 = pnand %p140, %p141
    %p143 = pneg %p142
    // Predicated region
    $region9: #{decoder_forward.6} parent=5 // pred_check
      _
    $region10: #{decoder_forward.6} parent=5 // pred_check_branch
      %145 = sbr.rel (%p142) target = $region12
    $region11: #{decoder_forward.6} parent=5 // pred_region
      %s146 = ssub.s32 %s10, 1
      // Predicated region
      $region13: #{decoder_forward.6} parent=11 // pred_check
        %p147 = pneg %p85
      $region14: #{decoder_forward.6} parent=11 // pred_check_branch
        %149 = sbr.rel (%p147) target = $region16
      $region15: #{decoder_forward.6} parent=11 // pred_region
        _
      $region16: #{decoder_forward.6} parent=11 // pred_fallthru
        _
      // Predicated region
      $region17: #{decoder_forward.6} parent=11 // pred_check
        %p150 = pneg %p106
      $region18: #{decoder_forward.6} parent=11 // pred_check_branch
        %152 = sbr.rel (%p150) target = $region20
      $region19: #{decoder_forward.6} parent=11 // pred_region
        _
      $region20: #{decoder_forward.6} parent=11 // pred_fallthru
        _
    $region12: #{decoder_forward.6} parent=5 // pred_fallthru
      _
    %p153 = scmp.lt.s32.totalorder %s10, 2
    // Predicated region
    $region21: #{decoder_forward.6} parent=5 // pred_check
      %p154 = pneg %p153
    $region22: #{decoder_forward.6} parent=5 // pred_check_branch
      %156 = sbr.rel (%p154) target = $region24
    $region23: #{decoder_forward.6} parent=5 // pred_region
      // Predicated region
      $region25: #{decoder_forward.6} parent=23 // pred_check
        %p157 = pneg %p30
      $region26: #{decoder_forward.6} parent=23 // pred_check_branch
        %159 = sbr.rel (%p157) target = $region28
      $region27: #{decoder_forward.6} parent=23 // pred_region
        %s160 = smul.u32 38, %s10
        %p161 = scmp.lt.s32.totalorder %s160, 113
        %s162 = scalar_select %p161, %s160, 113
        %s163 = smul.addr %s162, 8
        %s164 = scalar_lea.vmem %s0, %s163
        %s165 = smul.u32 38, %s10
      $region28: #{decoder_forward.6} parent=23 // pred_fallthru
        _
      // Predicated region
      $region29: #{decoder_forward.6} parent=23 // pred_check
        %p166 = pneg %p58
      $region30: #{decoder_forward.6} parent=23 // pred_check_branch
        %168 = sbr.rel (%p166) target = $region32
      $region31: #{decoder_forward.6} parent=23 // pred_region
        %s169 = sadd.s32 %s10, 1
        %s170 = smul.u32 38, %s169
        %p171 = scmp.lt.s32.totalorder %s170, 113
        %s172 = scalar_select %p171, %s170, 113
        %s173 = smul.addr %s172, 8
        %s174 = scalar_lea.vmem %s1, %s173
        %s175 = sadd.s32 %s10, 1
        %s176 = smul.u32 38, %s175
      $region32: #{decoder_forward.6} parent=23 // pred_fallthru
        _
    $region24: #{decoder_forward.6} parent=5 // pred_fallthru
      _
    %p177 = scmp.le.s32.totalorder 1, %s10
    %p178 = scmp.lt.s32.totalorder %s10, 3
    %p179 = pnand %p177, %p178
    %p180 = pneg %p179
    // Predicated region
    $region33: #{decoder_forward.6} parent=5 // pred_check
      _
    $region34: #{decoder_forward.6} parent=5 // pred_check_branch
      %182 = sbr.rel (%p179) target = $region36
    $region35: #{decoder_forward.6} parent=5 // pred_region
      %s183 = ssub.s32 %s10, 1
      %s184 = smul.u32 38, %s15
      %p185 = scmp.lt.s32.totalorder %s184, 113
      %s186 = scalar_select %p185, %s184, 113
      %s187 = smul.addr %s186, 8
      %s188 = scalar_lea.vmem %s0, %s187
      %p189 = pneg %p36
      %p190 = pneg %p33
      %s191 = sadd.s32 %s15, 1
      %s192 = smul.u32 38, %s191
      %p193 = scmp.lt.s32.totalorder %s192, 113
      %s194 = scalar_select %p193, %s192, 113
      %s195 = smul.addr %s194, 8
      %s196 = scalar_lea.vmem %s1, %s195
      %p197 = pneg %p64
      %p198 = pneg %p61
      %p199 = pneg %p85
      %p200 = pneg %p82
      %p201 = pneg %p106
      %p202 = pneg %p103
      %p203 = pneg %p132
      %p204 = pneg %p129
      %s205 = smul.u32 38, %s15
      %p206 = scmp.lt.s32.totalorder %s205, 75
      %s207 = scalar_select %p206, %s205, 75
      %s208 = smul.addr %s207, 8
      %s209 = scalar_lea.vmem %s4, %s208
      %s210 = smul.u32 38, %s15
      %p211 = scmp.lt.s32.totalorder %s210, 113
      %s212 = scalar_select %p211, %s210, 113
      %s213 = smul.addr %s212, 8
      %s214 = scalar_lea.vmem %s0, %s213
      %s215 = smul.u32 38, %s15
      %s216 = sadd.s32 %s15, 1
      %s217 = smul.u32 38, %s216
      %p218 = scmp.lt.s32.totalorder %s217, 113
      %s219 = scalar_select %p218, %s217, 113
      %s220 = smul.addr %s219, 8
      %s221 = scalar_lea.vmem %s1, %s220
      %s222 = sadd.s32 %s15, 1
      %s223 = smul.u32 38, %s222
      %s224 = smul.u32 38, %s15
      %p225 = scmp.lt.s32.totalorder %s224, 75
      %s226 = scalar_select %p225, %s224, 75
      %s227 = smul.addr %s226, 8
      %s228 = scalar_lea.vmem %s4, %s227
      %s229 = smul.u32 38, %s15
      %v231 = vld [vmem:[%s214] sm:$0xff]
      %v232 = vld [vmem:[%s214 + $0x8] sm:$0xff]
      %v233 = vld [vmem:[%s214 + $0x10] sm:$0xff]
      %v234 = vld [vmem:[%s214 + $0x18] sm:$0xff]
      %v235 = vld [vmem:[%s214 + $0x20] sm:$0xff]
      %v236 = vld [vmem:[%s214 + $0x28] sm:$0xff]
      %v237 = vld [vmem:[%s214 + $0x30] sm:$0xff]
      %v238 = vld [vmem:[%s214 + $0x38] sm:$0xff]
      %v239 = vld [vmem:[%s214 + $0x40] sm:$0xff]
      %v240 = vld [vmem:[%s214 + $0x48] sm:$0xff]
      %v241 = vld [vmem:[%s214 + $0x50] sm:$0xff]
      %v242 = vld [vmem:[%s214 + $0x58] sm:$0xff]
      %v243 = vld [vmem:[%s214 + $0x60] sm:$0xff]
      %v244 = vld [vmem:[%s214 + $0x68] sm:$0xff]
      %v245 = vld [vmem:[%s214 + $0x70] sm:$0xff]
      %v246 = vld [vmem:[%s214 + $0x78] sm:$0xff]
      %v247 = vld [vmem:[%s214 + $0x80] sm:$0xff]
      %v248 = vld [vmem:[%s214 + $0x88] sm:$0xff]
      %v249 = vld [vmem:[%s214 + $0x90] sm:$0xff]
      %v250 = vld [vmem:[%s214 + $0x98] sm:$0xff]
      %v251 = vld [vmem:[%s214 + $0xa0] sm:$0xff]
      %v252 = vld [vmem:[%s214 + $0xa8] sm:$0xff]
      %v253 = vld [vmem:[%s214 + $0xb0] sm:$0xff]
      %v254 = vld [vmem:[%s214 + $0xb8] sm:$0xff]
      %v255 = vld [vmem:[%s214 + $0xc0] sm:$0xff]
      %v256 = vld [vmem:[%s214 + $0xc8] sm:$0xff]
      %v257 = vld [vmem:[%s214 + $0xd0] sm:$0xff]
      %v258 = vld [vmem:[%s214 + $0xd8] sm:$0xff]
      %v259 = vld [vmem:[%s214 + $0xe0] sm:$0xff]
      %v260 = vld [vmem:[%s214 + $0xe8] sm:$0xff]
      %v261 = vld [vmem:[%s214 + $0xf0] sm:$0xff]
      %v262 = vld [vmem:[%s214 + $0xf8] sm:$0xff]
      %v263 = vld [vmem:[%s214 + $0x100] sm:$0xff]
      %v264 = vld [vmem:[%s214 + $0x108] sm:$0xff]
      %v265 = vld [vmem:[%s214 + $0x110] sm:$0xff]
      %v266 = vld [vmem:[%s214 + $0x118] sm:$0xff]
      %v267 = vld [vmem:[%s214 + $0x120] sm:$0xff]
      %v268 = vld [vmem:[%s214 + $0x128] sm:$0xff]
      %v269 = vld [vmem:[%s221] sm:$0xff]
      %v270 = vld [vmem:[%s221 + $0x8] sm:$0xff]
      %v271 = vld [vmem:[%s221 + $0x10] sm:$0xff]
      %v272 = vpack.c.bf16 %v232, %v231
      %v273 = vpack.c.bf16 %v234, %v233
      %v274 = vpack.c.bf16 %v236, %v235
      %v275 = vpack.c.bf16 %v238, %v237
      %v276 = vpack.c.bf16 %v240, %v239
      %v277 = vpack.c.bf16 %v242, %v241
      %v278 = vpack.c.bf16 %v244, %v243
      %v279 = vpack.c.bf16 %v246, %v245
      %v280 = vpack.c.bf16 %v248, %v247
      %v281 = vpack.c.bf16 %v250, %v249
      %v282 = vpack.c.bf16 %v252, %v251
      %v283 = vpack.c.bf16 %v254, %v253
      %v284 = vpack.c.bf16 %v256, %v255
      %v285 = vpack.c.bf16 %v258, %v257
      %v286 = vpack.c.bf16 %v260, %v259
      %v287 = vpack.c.bf16 %v262, %v261
      %v288 = vpack.c.bf16 %v264, %v263
      %v289 = vpack.c.bf16 %v266, %v265
      %v290 = vpack.c.bf16 %v268, %v267
      %v291 = vld [vmem:[%s2] sm:$0xf]
      %v292 = vld [vmem:[%s2 + $0x4] sm:$0xf]
      %v293 = vld [vmem:[%s2 + $0x8] sm:$0xf]
      %v294 = vld [vmem:[%s2 + $0xc] sm:$0xf]
      %v295 = vpack.c.bf16 %v269, %v269
      %s296 = scalar_lea.vmem %s2, 16
      %v297 = vld [vmem:[%s296] sm:$0xf]
      %v298 = vld [vmem:[%s296 + $0x4] sm:$0xf]
      %v299 = vld [vmem:[%s296 + $0x8] sm:$0xf]
      %v300 = vld [vmem:[%s296 + $0xc] sm:$0xf]
      %vm301 = vsmask.f32 7424
      %v303 = vshrl.u32 %v272, 16
      %v305 = vshll.u32 %v272, 16
      %v307 = vrot.slane %v305, 1
      %v308 = vor.u32 %v303, %v307
      %v310 = vshll.u32 %v273, 16
      %v312 = vrot.slane %v310, 1
      %v313 = vsel %vm301, %v308, %v312
      %v314 = vshrl.u32 %v273, 16
      %v316 = vor.u32 %v314, %v312
      %v318 = vshll.u32 %v274, 16
      %v320 = vrot.slane %v318, 1
      %v321 = vsel %vm301, %v316, %v320
      %v322 = vshrl.u32 %v274, 16
      %v324 = vor.u32 %v322, %v320
      %v326 = vshll.u32 %v275, 16
      %v328 = vrot.slane %v326, 1
      %v329 = vsel %vm301, %v324, %v328
      %v330 = vshrl.u32 %v275, 16
      %v332 = vor.u32 %v330, %v328
      %v334 = vshll.u32 %v276, 16
      %v336 = vrot.slane %v334, 1
      %v337 = vsel %vm301, %v332, %v336
      %v338 = vshrl.u32 %v276, 16
      %v340 = vor.u32 %v338, %v336
      %v342 = vshll.u32 %v277, 16
      %v344 = vrot.slane %v342, 1
      %v345 = vsel %vm301, %v340, %v344
      %v346 = vshrl.u32 %v277, 16
      %v348 = vor.u32 %v346, %v344
      %v350 = vshll.u32 %v278, 16
      %v352 = vrot.slane %v350, 1
      %v353 = vsel %vm301, %v348, %v352
      %v354 = vshrl.u32 %v278, 16
      %v356 = vor.u32 %v354, %v352
      %v358 = vshll.u32 %v279, 16
      %v360 = vrot.slane %v358, 1
      %v361 = vsel %vm301, %v356, %v360
      %v362 = vshrl.u32 %v279, 16
      %v364 = vor.u32 %v362, %v360
      %v366 = vshll.u32 %v280, 16
      %v368 = vrot.slane %v366, 1
      %v369 = vsel %vm301, %v364, %v368
      %v370 = vshrl.u32 %v280, 16
      %v372 = vor.u32 %v370, %v368
      %v374 = vshll.u32 %v281, 16
      %v376 = vrot.slane %v374, 1
      %v377 = vsel %vm301, %v372, %v376
      %v378 = vshrl.u32 %v281, 16
      %v380 = vor.u32 %v378, %v376
      %v382 = vshll.u32 %v282, 16
      %v384 = vrot.slane %v382, 1
      %v385 = vsel %vm301, %v380, %v384
      %v386 = vshrl.u32 %v282, 16
      %v388 = vor.u32 %v386, %v384
      %v390 = vshll.u32 %v283, 16
      %v392 = vrot.slane %v390, 1
      %v393 = vsel %vm301, %v388, %v392
      %v394 = vshrl.u32 %v283, 16
      %v396 = vor.u32 %v394, %v392
      %v398 = vshll.u32 %v284, 16
      %v400 = vrot.slane %v398, 1
      %v401 = vsel %vm301, %v396, %v400
      %v402 = vshrl.u32 %v284, 16
      %v404 = vor.u32 %v402, %v400
      %v406 = vshll.u32 %v285, 16
      %v408 = vrot.slane %v406, 1
      %v409 = vsel %vm301, %v404, %v408
      %v410 = vshrl.u32 %v285, 16
      %v412 = vor.u32 %v410, %v408
      %v414 = vshll.u32 %v286, 16
      %v416 = vrot.slane %v414, 1
      %v417 = vsel %vm301, %v412, %v416
      %v418 = vshrl.u32 %v286, 16
      %v420 = vor.u32 %v418, %v416
      %v422 = vshll.u32 %v287, 16
      %v424 = vrot.slane %v422, 1
      %v425 = vsel %vm301, %v420, %v424
      %v426 = vshrl.u32 %v287, 16
      %v428 = vor.u32 %v426, %v424
      %v430 = vshll.u32 %v288, 16
      %v432 = vrot.slane %v430, 1
      %v433 = vsel %vm301, %v428, %v432
      %v434 = vshrl.u32 %v288, 16
      %v436 = vor.u32 %v434, %v432
      %v438 = vshll.u32 %v289, 16
      %v440 = vrot.slane %v438, 1
      %v441 = vsel %vm301, %v436, %v440
      %v442 = vshrl.u32 %v289, 16
      %v444 = vor.u32 %v442, %v440
      %v446 = vshll.u32 %v290, 16
      %v448 = vrot.slane %v446, 1
      %v449 = vsel %vm301, %v444, %v448
      %v450 = vshrl.u32 %v290, 16
      %v452 = vor.u32 %v450, %v448
      %v454 = vshll.u32 %v295, 16
      %v456 = vrot.slane %v454, 1
      %v457 = vsel %vm301, %v452, %v456
      %v462 = vunpack.c.l.b16 %v297
      %v463 = vunpack.c.l.b16 %v298
      %v464 = vunpack.c.l.b16 %v299
      %v465 = vunpack.c.l.b16 %v300
      %v466 = vpack.c.b16 %v463, %v462
      %v467 = vpack.c.b16 %v465, %v464
      %vm470 = vcmask 261120
      %v472 = vsel %vm470, %v313, 0
      %v475 = vsel %vm470, %v321, 0
      %v478 = vsel %vm470, %v329, 0
      %v481 = vsel %vm470, %v337, 0
      %v484 = vsel %vm470, %v345, 0
      %v487 = vsel %vm470, %v353, 0
      %v490 = vsel %vm470, %v361, 0
      %v493 = vsel %vm470, %v369, 0
      %v496 = vsel %vm470, %v377, 0
      %v499 = vsel %vm470, %v385, 0
      %v502 = vsel %vm470, %v393, 0
      %v505 = vsel %vm470, %v401, 0
      %v508 = vsel %vm470, %v409, 0
      %v511 = vsel %vm470, %v417, 0
      %v514 = vsel %vm470, %v425, 0
      %v517 = vsel %vm470, %v433, 0
      %v520 = vsel %vm470, %v441, 0
      %v523 = vsel %vm470, %v449, 0
      %v526 = vsel %vm470, %v457, 0
      %528 = vmatprep.subr.bf16.mxu0 0
      %529 = vmatpush1.bf16.msra.mxu0 %v466
      %530 = vmatprep.subr.bf16.mxu0 0
      %531 = vmatpush1.bf16.msra.mxu0 %v467
      %532 = vmatprep.subr.bf16.mxu0 0
      %533 = vmatpush1.bf16.msra.mxu0 0
      %534 = vmatprep.subr.bf16.mxu0 0
      %535 = vmatpush1.bf16.msra.mxu0 0
      %536 = vmatprep.subr.bf16.mxu0 0
      %537 = vmatpush1.bf16.msra.mxu0 0
      %538 = vmatprep.subr.bf16.mxu0 0
      %539 = vmatpush1.bf16.msra.mxu0 0
      %540 = vmatprep.subr.bf16.mxu0 0
      %541 = vmatpush1.bf16.msra.mxu0 0
      %542 = vmatprep.subr.bf16.mxu0 0
      %543 = vmatpush1.bf16.msra.mxu0 0
      %544 = vmatprep.subr.bf16.mxu0 0
      %545 = vmatpush1.bf16.msra.mxu0 0
      %546 = vmatprep.subr.bf16.mxu0 0
      %547 = vmatpush1.bf16.msra.mxu0 0
      %548 = vmatprep.subr.bf16.mxu0 0
      %549 = vmatpush1.bf16.msra.mxu0 0
      %550 = vmatprep.subr.bf16.mxu0 0
      %551 = vmatpush1.bf16.msra.mxu0 0
      %552 = vmatprep.subr.bf16.mxu0 0
      %553 = vmatpush1.bf16.msra.mxu0 0
      %554 = vmatprep.subr.bf16.mxu0 0
      %555 = vmatpush1.bf16.msra.mxu0 0
      %556 = vmatprep.subr.bf16.mxu0 0
      %557 = vmatpush1.bf16.msra.mxu0 0
      %558 = vmatprep.subr.bf16.mxu0 0
      %559 = vmatpush1.bf16.msra.mxu0 0
      %560 = vmatprep.mubr.bf16.mxu0 0
      %561 = vmatmul.mubr.bf16.gmra.mrb[0].mxu0 %v472
      %v562 = vpop.f32.mrb[0].mxu0
      %v563 = vadd.f32 0.0, %v562
      %v564 = vpop.f32.mrb[0].mxu0
      %v565 = vpop.f32.mrb[0].mxu0
      %v566 = vadd.f32 0.0, %v565
      %v567 = vpop.f32.mrb[0].mxu0
      %568 = vmatprep.mubr.bf16.mxu0 0
      %569 = vmatmul.mubr.bf16.gmra.mrb[0].mxu0 %v475
      %v570 = vpop.f32.mrb[0].mxu0
      %v571 = vadd.f32 0.0, %v570
      %v572 = vpop.f32.mrb[0].mxu0
      %v573 = vpop.f32.mrb[0].mxu0
      %v574 = vadd.f32 0.0, %v573
      %v575 = vpop.f32.mrb[0].mxu0
      %576 = vmatprep.mubr.bf16.mxu0 0
      %577 = vmatmul.mubr.bf16.gmra.mrb[0].mxu0 %v478
      %v578 = vpop.f32.mrb[0].mxu0
      %v579 = vadd.f32 0.0, %v578
      %v580 = vpop.f32.mrb[0].mxu0
      %v581 = vpop.f32.mrb[0].mxu0
      %v582 = vadd.f32 0.0, %v581
      %v583 = vpop.f32.mrb[0].mxu0
      %584 = vmatprep.mubr.bf16.mxu0 0
      %585 = vmatmul.mubr.bf16.gmra.mrb[0].mxu0 %v481
      %v586 = vpop.f32.mrb[0].mxu0
      %v587 = vadd.f32 0.0, %v586
      %v588 = vpop.f32.mrb[0].mxu0
      %v589 = vpop.f32.mrb[0].mxu0
      %v590 = vadd.f32 0.0, %v589
      %v591 = vpop.f32.mrb[0].mxu0
      %592 = vmatprep.mubr.bf16.mxu0 0
      %593 = vmatmul.mubr.bf16.gmra.mrb[0].mxu0 %v484
      %v594 = vpop.f32.mrb[0].mxu0
      %v595 = vadd.f32 0.0, %v594
      %v596 = vpop.f32.mrb[0].mxu0
      %v597 = vpop.f32.mrb[0].mxu0
      %v598 = vadd.f32 0.0, %v597
      %v599 = vpop.f32.mrb[0].mxu0
      %600 = vmatprep.mubr.bf16.mxu0 0
      %601 = vmatmul.mubr.bf16.gmra.mrb[0].mxu0 %v487
      %v602 = vpop.f32.mrb[0].mxu0
      %v603 = vadd.f32 0.0, %v602
      %v604 = vpop.f32.mrb[0].mxu0
      %v605 = vpop.f32.mrb[0].mxu0
      %v606 = vadd.f32 0.0, %v605
      %v607 = vpop.f32.mrb[0].mxu0
      %608 = vmatprep.mubr.bf16.mxu0 0
      %609 = vmatmul.mubr.bf16.gmra.mrb[0].mxu0 %v490
      %v610 = vpop.f32.mrb[0].mxu0
      %v611 = vadd.f32 0.0, %v610
      %v612 = vpop.f32.mrb[0].mxu0
      %v613 = vpop.f32.mrb[0].mxu0
      %v614 = vadd.f32 0.0, %v613
      %v615 = vpop.f32.mrb[0].mxu0
      %616 = vmatprep.mubr.bf16.mxu0 0
      %617 = vmatmul.mubr.bf16.gmra.mrb[0].mxu0 %v493
      %v618 = vpop.f32.mrb[0].mxu0
      %v619 = vadd.f32 0.0, %v618
      %v620 = vpop.f32.mrb[0].mxu0
      %v621 = vpop.f32.mrb[0].mxu0
      %v622 = vadd.f32 0.0, %v621
      %v623 = vpop.f32.mrb[0].mxu0
      %624 = vmatprep.mubr.bf16.mxu0 0
      %625 = vmatmul.mubr.bf16.gmra.mrb[0].mxu0 %v496
      %v626 = vpop.f32.mrb[0].mxu0
      %v627 = vadd.f32 0.0, %v626
      %v628 = vpop.f32.mrb[0].mxu0
      %v629 = vpop.f32.mrb[0].mxu0
      %v630 = vadd.f32 0.0, %v629
      %v631 = vpop.f32.mrb[0].mxu0
      %632 = vmatprep.mubr.bf16.mxu0 0
      %633 = vmatmul.mubr.bf16.gmra.mrb[0].mxu0 %v499
      %v634 = vpop.f32.mrb[0].mxu0
      %v635 = vadd.f32 0.0, %v634
      %v636 = vpop.f32.mrb[0].mxu0
      %v637 = vpop.f32.mrb[0].mxu0
      %v638 = vadd.f32 0.0, %v637
      %v639 = vpop.f32.mrb[0].mxu0
      %640 = vmatprep.mubr.bf16.mxu0 0
      %641 = vmatmul.mubr.bf16.gmra.mrb[0].mxu0 %v502
      %v642 = vpop.f32.mrb[0].mxu0
      %v643 = vadd.f32 0.0, %v642
      %v644 = vpop.f32.mrb[0].mxu0
      %v645 = vpop.f32.mrb[0].mxu0
      %v646 = vadd.f32 0.0, %v645
      %v647 = vpop.f32.mrb[0].mxu0
      %648 = vmatprep.mubr.bf16.mxu0 0
      %649 = vmatmul.mubr.bf16.gmra.mrb[0].mxu0 %v505
      %v650 = vpop.f32.mrb[0].mxu0
      %v651 = vadd.f32 0.0, %v650
      %v652 = vpop.f32.mrb[0].mxu0
      %v653 = vpop.f32.mrb[0].mxu0
      %v654 = vadd.f32 0.0, %v653
      %v655 = vpop.f32.mrb[0].mxu0
      %656 = vmatprep.mubr.bf16.mxu0 0
      %657 = vmatmul.mubr.bf16.gmra.mrb[0].mxu0 %v508
      %v658 = vpop.f32.mrb[0].mxu0
      %v659 = vadd.f32 0.0, %v658
      %v660 = vpop.f32.mrb[0].mxu0
      %v661 = vpop.f32.mrb[0].mxu0
      %v662 = vadd.f32 0.0, %v661
      %v663 = vpop.f32.mrb[0].mxu0
      %664 = vmatprep.mubr.bf16.mxu0 0
      %665 = vmatmul.mubr.bf16.gmra.mrb[0].mxu0 %v511
      %v666 = vpop.f32.mrb[0].mxu0
      %v667 = vadd.f32 0.0, %v666
      %v668 = vpop.f32.mrb[0].mxu0
      %v669 = vpop.f32.mrb[0].mxu0
      %v670 = vadd.f32 0.0, %v669
      %v671 = vpop.f32.mrb[0].mxu0
      %672 = vmatprep.mubr.bf16.mxu0 0
      %673 = vmatmul.mubr.bf16.gmra.mrb[0].mxu0 %v514
      %v674 = vpop.f32.mrb[0].mxu0
      %v675 = vadd.f32 0.0, %v674
      %v676 = vpop.f32.mrb[0].mxu0
      %v677 = vpop.f32.mrb[0].mxu0
      %v678 = vadd.f32 0.0, %v677
      %v679 = vpop.f32.mrb[0].mxu0
      %680 = vmatprep.mubr.bf16.mxu0 0
      %681 = vmatmul.mubr.bf16.gmra.mrb[0].mxu0 %v517
      %v682 = vpop.f32.mrb[0].mxu0
      %v683 = vadd.f32 0.0, %v682
      %v684 = vpop.f32.mrb[0].mxu0
      %v685 = vpop.f32.mrb[0].mxu0
      %v686 = vadd.f32 0.0, %v685
      %v687 = vpop.f32.mrb[0].mxu0
      %688 = vmatprep.mubr.bf16.mxu0 0
      %689 = vmatmul.mubr.bf16.gmra.mrb[0].mxu0 %v520
      %v690 = vpop.f32.mrb[0].mxu0
      %v691 = vadd.f32 0.0, %v690
      %v692 = vpop.f32.mrb[0].mxu0
      %v693 = vpop.f32.mrb[0].mxu0
      %v694 = vadd.f32 0.0, %v693
      %v695 = vpop.f32.mrb[0].mxu0
      %696 = vmatprep.mubr.bf16.mxu0 0
      %697 = vmatmul.mubr.bf16.gmra.mrb[0].mxu0 %v523
      %v698 = vpop.f32.mrb[0].mxu0
      %v699 = vadd.f32 0.0, %v698
      %v700 = vpop.f32.mrb[0].mxu0
      %v701 = vpop.f32.mrb[0].mxu0
      %v702 = vadd.f32 0.0, %v701
      %v703 = vpop.f32.mrb[0].mxu0
      %704 = vmatprep.mubr.bf16.mxu0 0
      %705 = vmatmul.mubr.bf16.gmra.mrb[0].mxu0 %v526
      %v706 = vpop.f32.mrb[0].mxu0
      %v707 = vadd.f32 0.0, %v706
      %v708 = vpop.f32.mrb[0].mxu0
      %v709 = vpop.f32.mrb[0].mxu0
      %v710 = vadd.f32 0.0, %v709
      %v711 = vpop.f32.mrb[0].mxu0
      %712 = vdwg.mxu0
      %v717 = vunpack.c.l.b16 %v291
      %v718 = vunpack.c.l.b16 %v292
      %v719 = vunpack.c.l.b16 %v293
      %v720 = vunpack.c.l.b16 %v294
      %v721 = vpack.c.b16 %v718, %v717
      %v722 = vpack.c.b16 %v720, %v719
      %v725 = vsel %vm470, %v272, 0
      %v727 = vsel %vm470, %v273, 0
      %v729 = vsel %vm470, %v274, 0
      %v731 = vsel %vm470, %v275, 0
      %v733 = vsel %vm470, %v276, 0
      %v735 = vsel %vm470, %v277, 0
      %v737 = vsel %vm470, %v278, 0
      %v739 = vsel %vm470, %v279, 0
      %v741 = vsel %vm470, %v280, 0
      %v743 = vsel %vm470, %v281, 0
      %v745 = vsel %vm470, %v282, 0
      %v747 = vsel %vm470, %v283, 0
      %v749 = vsel %vm470, %v284, 0
      %v751 = vsel %vm470, %v285, 0
      %v753 = vsel %vm470, %v286, 0
      %v755 = vsel %vm470, %v287, 0
      %v757 = vsel %vm470, %v288, 0
      %v759 = vsel %vm470, %v289, 0
      %v761 = vsel %vm470, %v290, 0
      %763 = vmatprep.subr.bf16.mxu0 0
      %764 = vmatpush1.bf16.msra.mxu0 %v721
      %765 = vmatprep.subr.bf16.mxu0 0
      %766 = vmatpush1.bf16.msra.mxu0 %v722
      %767 = vmatprep.subr.bf16.mxu0 0
      %768 = vmatpush1.bf16.msra.mxu0 0
      %769 = vmatprep.subr.bf16.mxu0 0
      %770 = vmatpush1.bf16.msra.mxu0 0
      %771 = vmatprep.subr.bf16.mxu0 0
      %772 = vmatpush1.bf16.msra.mxu0 0
      %773 = vmatprep.subr.bf16.mxu0 0
      %774 = vmatpush1.bf16.msra.mxu0 0
      %775 = vmatprep.subr.bf16.mxu0 0
      %776 = vmatpush1.bf16.msra.mxu0 0
      %777 = vmatprep.subr.bf16.mxu0 0
      %778 = vmatpush1.bf16.msra.mxu0 0
      %779 = vmatprep.subr.bf16.mxu0 0
      %780 = vmatpush1.bf16.msra.mxu0 0
      %781 = vmatprep.subr.bf16.mxu0 0
      %782 = vmatpush1.bf16.msra.mxu0 0
      %783 = vmatprep.subr.bf16.mxu0 0
      %784 = vmatpush1.bf16.msra.mxu0 0
      %785 = vmatprep.subr.bf16.mxu0 0
      %786 = vmatpush1.bf16.msra.mxu0 0
      %787 = vmatprep.subr.bf16.mxu0 0
      %788 = vmatpush1.bf16.msra.mxu0 0
      %789 = vmatprep.subr.bf16.mxu0 0
      %790 = vmatpush1.bf16.msra.mxu0 0
      %791 = vmatprep.subr.bf16.mxu0 0
      %792 = vmatpush1.bf16.msra.mxu0 0
      %793 = vmatprep.subr.bf16.mxu0 0
      %794 = vmatpush1.bf16.msra.mxu0 0
      %795 = vmatprep.mubr.bf16.mxu0 0
      %796 = vmatmul.mubr.bf16.gmra.mrb[0].mxu0 %v725
      %v797 = vpop.f32.mrb[0].mxu0
      %v798 = vadd.f32 %v563, %v797
      %v799 = vpop.f32.mrb[0].mxu0
      %v800 = vpop.f32.mrb[0].mxu0
      %v801 = vadd.f32 %v566, %v800
      %v802 = vpop.f32.mrb[0].mxu0
      %803 = vmatprep.mubr.bf16.mxu0 0
      %804 = vmatmul.mubr.bf16.gmra.mrb[0].mxu0 %v727
      %v805 = vpop.f32.mrb[0].mxu0
      %v806 = vadd.f32 %v571, %v805
      %v807 = vpop.f32.mrb[0].mxu0
      %v808 = vpop.f32.mrb[0].mxu0
      %v809 = vadd.f32 %v574, %v808
      %v810 = vpop.f32.mrb[0].mxu0
      %811 = vmatprep.mubr.bf16.mxu0 0
      %812 = vmatmul.mubr.bf16.gmra.mrb[0].mxu0 %v729
      %v813 = vpop.f32.mrb[0].mxu0
      %v814 = vadd.f32 %v579, %v813
      %v815 = vpop.f32.mrb[0].mxu0
      %v816 = vpop.f32.mrb[0].mxu0
      %v817 = vadd.f32 %v582, %v816
      %v818 = vpop.f32.mrb[0].mxu0
      %819 = vmatprep.mubr.bf16.mxu0 0
      %820 = vmatmul.mubr.bf16.gmra.mrb[0].mxu0 %v731
      %v821 = vpop.f32.mrb[0].mxu0
      %v822 = vadd.f32 %v587, %v821
      %v823 = vpop.f32.mrb[0].mxu0
      %v824 = vpop.f32.mrb[0].mxu0
      %v825 = vadd.f32 %v590, %v824
      %v826 = vpop.f32.mrb[0].mxu0
      %827 = vmatprep.mubr.bf16.mxu0 0
      %828 = vmatmul.mubr.bf16.gmra.mrb[0].mxu0 %v733
      %v829 = vpop.f32.mrb[0].mxu0
      %v830 = vadd.f32 %v595, %v829
      %v831 = vpop.f32.mrb[0].mxu0
      %v832 = vpop.f32.mrb[0].mxu0
      %v833 = vadd.f32 %v598, %v832
      %v834 = vpop.f32.mrb[0].mxu0
      %835 = vmatprep.mubr.bf16.mxu0 0
      %836 = vmatmul.mubr.bf16.gmra.mrb[0].mxu0 %v735
      %v837 = vpop.f32.mrb[0].mxu0
      %v838 = vadd.f32 %v603, %v837
      %v839 = vpop.f32.mrb[0].mxu0
      %v840 = vpop.f32.mrb[0].mxu0
      %v841 = vadd.f32 %v606, %v840
      %v842 = vpop.f32.mrb[0].mxu0
      %843 = vmatprep.mubr.bf16.mxu0 0
      %844 = vmatmul.mubr.bf16.gmra.mrb[0].mxu0 %v737
      %v845 = vpop.f32.mrb[0].mxu0
      %v846 = vadd.f32 %v611, %v845
      %v847 = vpop.f32.mrb[0].mxu0
      %v848 = vpop.f32.mrb[0].mxu0
      %v849 = vadd.f32 %v614, %v848
      %v850 = vpop.f32.mrb[0].mxu0
      %851 = vmatprep.mubr.bf16.mxu0 0
      %852 = vmatmul.mubr.bf16.gmra.mrb[0].mxu0 %v739
      %v853 = vpop.f32.mrb[0].mxu0
      %v854 = vadd.f32 %v619, %v853
      %v855 = vpop.f32.mrb[0].mxu0
      %v856 = vpop.f32.mrb[0].mxu0
      %v857 = vadd.f32 %v622, %v856
      %v858 = vpop.f32.mrb[0].mxu0
      %859 = vmatprep.mubr.bf16.mxu0 0
      %860 = vmatmul.mubr.bf16.gmra.mrb[0].mxu0 %v741
      %v861 = vpop.f32.mrb[0].mxu0
      %v862 = vadd.f32 %v627, %v861
      %v863 = vpop.f32.mrb[0].mxu0
      %v864 = vpop.f32.mrb[0].mxu0
      %v865 = vadd.f32 %v630, %v864
      %v866 = vpop.f32.mrb[0].mxu0
      %867 = vmatprep.mubr.bf16.mxu0 0
      %868 = vmatmul.mubr.bf16.gmra.mrb[0].mxu0 %v743
      %v869 = vpop.f32.mrb[0].mxu0
      %v870 = vadd.f32 %v635, %v869
      %v871 = vpop.f32.mrb[0].mxu0
      %v872 = vpop.f32.mrb[0].mxu0
      %v873 = vadd.f32 %v638, %v872
      %v874 = vpop.f32.mrb[0].mxu0
      %875 = vmatprep.mubr.bf16.mxu0 0
      %876 = vmatmul.mubr.bf16.gmra.mrb[0].mxu0 %v745
      %v877 = vpop.f32.mrb[0].mxu0
      %v878 = vadd.f32 %v643, %v877
      %v879 = vpop.f32.mrb[0].mxu0
      %v880 = vpop.f32.mrb[0].mxu0
      %v881 = vadd.f32 %v646, %v880
      %v882 = vpop.f32.mrb[0].mxu0
      %883 = vmatprep.mubr.bf16.mxu0 0
      %884 = vmatmul.mubr.bf16.gmra.mrb[0].mxu0 %v747
      %v885 = vpop.f32.mrb[0].mxu0
      %v886 = vadd.f32 %v651, %v885
      %v887 = vpop.f32.mrb[0].mxu0
      %v888 = vpop.f32.mrb[0].mxu0
      %v889 = vadd.f32 %v654, %v888
      %v890 = vpop.f32.mrb[0].mxu0
      %891 = vmatprep.mubr.bf16.mxu0 0
      %892 = vmatmul.mubr.bf16.gmra.mrb[0].mxu0 %v749
      %v893 = vpop.f32.mrb[0].mxu0
      %v894 = vadd.f32 %v659, %v893
      %v895 = vpop.f32.mrb[0].mxu0
      %v896 = vpop.f32.mrb[0].mxu0
      %v897 = vadd.f32 %v662, %v896
      %v898 = vpop.f32.mrb[0].mxu0
      %899 = vmatprep.mubr.bf16.mxu0 0
      %900 = vmatmul.mubr.bf16.gmra.mrb[0].mxu0 %v751
      %v901 = vpop.f32.mrb[0].mxu0
      %v902 = vadd.f32 %v667, %v901
      %v903 = vpop.f32.mrb[0].mxu0
      %v904 = vpop.f32.mrb[0].mxu0
      %v905 = vadd.f32 %v670, %v904
      %v906 = vpop.f32.mrb[0].mxu0
      %907 = vmatprep.mubr.bf16.mxu0 0
      %908 = vmatmul.mubr.bf16.gmra.mrb[0].mxu0 %v753
      %v909 = vpop.f32.mrb[0].mxu0
      %v910 = vadd.f32 %v675, %v909
      %v911 = vpop.f32.mrb[0].mxu0
      %v912 = vpop.f32.mrb[0].mxu0
      %v913 = vadd.f32 %v678, %v912
      %v914 = vpop.f32.mrb[0].mxu0
      %915 = vmatprep.mubr.bf16.mxu0 0
      %916 = vmatmul.mubr.bf16.gmra.mrb[0].mxu0 %v755
      %v917 = vpop.f32.mrb[0].mxu0
      %v918 = vadd.f32 %v683, %v917
      %v919 = vpop.f32.mrb[0].mxu0
      %v920 = vpop.f32.mrb[0].mxu0
      %v921 = vadd.f32 %v686, %v920
      %v922 = vpop.f32.mrb[0].mxu0
      %923 = vmatprep.mubr.bf16.mxu0 0
      %924 = vmatmul.mubr.bf16.gmra.mrb[0].mxu0 %v757
      %v925 = vpop.f32.mrb[0].mxu0
      %v926 = vadd.f32 %v691, %v925
      %v927 = vpop.f32.mrb[0].mxu0
      %v928 = vpop.f32.mrb[0].mxu0
      %v929 = vadd.f32 %v694, %v928
      %v930 = vpop.f32.mrb[0].mxu0
      %931 = vmatprep.mubr.bf16.mxu0 0
      %932 = vmatmul.mubr.bf16.gmra.mrb[0].mxu0 %v759
      %v933 = vpop.f32.mrb[0].mxu0
      %v934 = vadd.f32 %v699, %v933
      %v935 = vpop.f32.mrb[0].mxu0
      %v936 = vpop.f32.mrb[0].mxu0
      %v937 = vadd.f32 %v702, %v936
      %v938 = vpop.f32.mrb[0].mxu0
      %939 = vmatprep.mubr.bf16.mxu0 0
      %940 = vmatmul.mubr.bf16.gmra.mrb[0].mxu0 %v761
      %v941 = vpop.f32.mrb[0].mxu0
      %v942 = vadd.f32 %v707, %v941
      %v943 = vpop.f32.mrb[0].mxu0
      %v944 = vpop.f32.mrb[0].mxu0
      %v945 = vadd.f32 %v710, %v944
      %v946 = vpop.f32.mrb[0].mxu0
      %947 = vdwg.mxu0
      %v948 = vpack.c.bf16 %v270, %v269
      %v949 = vpack.c.bf16 %v271, %v271
      %s950 = scalar_lea.vmem %s2, 32
      %v951 = vld [vmem:[%s950] sm:$0xf]
      %v952 = vld [vmem:[%s950 + $0x4] sm:$0xf]
      %v953 = vld [vmem:[%s950 + $0x8] sm:$0xf]
      %v954 = vld [vmem:[%s950 + $0xc] sm:$0xf]
      %v956 = vshll.u32 %v948, 16
      %v958 = vrot.slane %v956, 1
      %v959 = vsel %vm301, %v452, %v958
      %v960 = vshrl.u32 %v948, 16
      %v962 = vor.u32 %v960, %v958
      %v964 = vshll.u32 %v949, 16
      %v966 = vrot.slane %v964, 1
      %v967 = vsel %vm301, %v962, %v966
      %v972 = vunpack.c.l.b16 %v951
      %v973 = vunpack.c.l.b16 %v952
      %v974 = vunpack.c.l.b16 %v953
      %v975 = vunpack.c.l.b16 %v954
      %v976 = vpack.c.b16 %v973, %v972
      %v977 = vpack.c.b16 %v975, %v974
      %v981 = vsel %vm470, %v959, 0
      %v984 = vsel %vm470, %v967, 0
      %986 = vmatprep.subr.bf16.mxu0 0
      %987 = vmatpush1.bf16.msra.mxu0 %v976
      %988 = vmatprep.subr.bf16.mxu0 0
      %989 = vmatpush1.bf16.msra.mxu0 %v977
      %990 = vmatprep.subr.bf16.mxu0 0
      %991 = vmatpush1.bf16.msra.mxu0 0
      %992 = vmatprep.subr.bf16.mxu0 0
      %993 = vmatpush1.bf16.msra.mxu0 0
      %994 = vmatprep.subr.bf16.mxu0 0
      %995 = vmatpush1.bf16.msra.mxu0 0
      %996 = vmatprep.subr.bf16.mxu0 0
      %997 = vmatpush1.bf16.msra.mxu0 0
      %998 = vmatprep.subr.bf16.mxu0 0
      %999 = vmatpush1.bf16.msra.mxu0 0
      %1000 = vmatprep.subr.bf16.mxu0 0
      %1001 = vmatpush1.bf16.msra.mxu0 0
      %1002 = vmatprep.subr.bf16.mxu0 0
      %1003 = vmatpush1.bf16.msra.mxu0 0
      %1004 = vmatprep.subr.bf16.mxu0 0
      %1005 = vmatpush1.bf16.msra.mxu0 0
      %1006 = vmatprep.subr.bf16.mxu0 0
      %1007 = vmatpush1.bf16.msra.mxu0 0
      %1008 = vmatprep.subr.bf16.mxu0 0
      %1009 = vmatpush1.bf16.msra.mxu0 0
      %1010 = vmatprep.subr.bf16.mxu0 0
      %1011 = vmatpush1.bf16.msra.mxu0 0
      %1012 = vmatprep.subr.bf16.mxu0 0
      %1013 = vmatpush1.bf16.msra.mxu0 0
      %1014 = vmatprep.subr.bf16.mxu0 0
      %1015 = vmatpush1.bf16.msra.mxu0 0
      %1016 = vmatprep.subr.bf16.mxu0 0
      %1017 = vmatpush1.bf16.msra.mxu0 0
      %1018 = vmatprep.mubr.bf16.mxu0 0
      %1019 = vmatmul.mubr.bf16.gmra.mrb[0].mxu0 %v475
      %v1020 = vpop.f32.mrb[0].mxu0
      %v1021 = vadd.f32 0.0, %v1020
      %v1022 = vpop.f32.mrb[0].mxu0
      %v1023 = vpop.f32.mrb[0].mxu0
      %v1024 = vadd.f32 0.0, %v1023
      %v1025 = vpop.f32.mrb[0].mxu0
      %1026 = vmatprep.mubr.bf16.mxu0 0
      %1027 = vmatmul.mubr.bf16.gmra.mrb[0].mxu0 %v478
      %v1028 = vpop.f32.mrb[0].mxu0
      %v1029 = vadd.f32 0.0, %v1028
      %v1030 = vpop.f32.mrb[0].mxu0
      %v1031 = vpop.f32.mrb[0].mxu0
      %v1032 = vadd.f32 0.0, %v1031
      %v1033 = vpop.f32.mrb[0].mxu0
      %1034 = vmatprep.mubr.bf16.mxu0 0
      %1035 = vmatmul.mubr.bf16.gmra.mrb[0].mxu0 %v481
      %v1036 = vpop.f32.mrb[0].mxu0
      %v1037 = vadd.f32 0.0, %v1036
      %v1038 = vpop.f32.mrb[0].mxu0
      %v1039 = vpop.f32.mrb[0].mxu0
      %v1040 = vadd.f32 0.0, %v1039
      %v1041 = vpop.f32.mrb[0].mxu0
      %1042 = vmatprep.mubr.bf16.mxu0 0
      %1043 = vmatmul.mubr.bf16.gmra.mrb[0].mxu0 %v484
      %v1044 = vpop.f32.mrb[0].mxu0
      %v1045 = vadd.f32 0.0, %v1044
      %v1046 = vpop.f32.mrb[0].mxu0
      %v1047 = vpop.f32.mrb[0].mxu0
      %v1048 = vadd.f32 0.0, %v1047
      %v1049 = vpop.f32.mrb[0].mxu0
      %1050 = vmatprep.mubr.bf16.mxu0 0
      %1051 = vmatmul.mubr.bf16.gmra.mrb[0].mxu0 %v487
      %v1052 = vpop.f32.mrb[0].mxu0
      %v1053 = vadd.f32 0.0, %v1052
      %v1054 = vpop.f32.mrb[0].mxu0
      %v1055 = vpop.f32.mrb[0].mxu0
      %v1056 = vadd.f32 0.0, %v1055
      %v1057 = vpop.f32.mrb[0].mxu0
      %1058 = vmatprep.mubr.bf16.mxu0 0
      %1059 = vmatmul.mubr.bf16.gmra.mrb[0].mxu0 %v490
      %v1060 = vpop.f32.mrb[0].mxu0
      %v1061 = vadd.f32 0.0, %v1060
      %v1062 = vpop.f32.mrb[0].mxu0
      %v1063 = vpop.f32.mrb[0].mxu0
      %v1064 = vadd.f32 0.0, %v1063
      %v1065 = vpop.f32.mrb[0].mxu0
      %1066 = vmatprep.mubr.bf16.mxu0 0
      %1067 = vmatmul.mubr.bf16.gmra.mrb[0].mxu0 %v493
      %v1068 = vpop.f32.mrb[0].mxu0
      %v1069 = vadd.f32 0.0, %v1068
      %v1070 = vpop.f32.mrb[0].mxu0
      %v1071 = vpop.f32.mrb[0].mxu0
      %v1072 = vadd.f32 0.0, %v1071
      %v1073 = vpop.f32.mrb[0].mxu0
      %1074 = vmatprep.mubr.bf16.mxu0 0
      %1075 = vmatmul.mubr.bf16.gmra.mrb[0].mxu0 %v496
      %v1076 = vpop.f32.mrb[0].mxu0
      %v1077 = vadd.f32 0.0, %v1076
      %v1078 = vpop.f32.mrb[0].mxu0
      %v1079 = vpop.f32.mrb[0].mxu0
      %v1080 = vadd.f32 0.0, %v1079
      %v1081 = vpop.f32.mrb[0].mxu0
      %1082 = vmatprep.mubr.bf16.mxu0 0
      %1083 = vmatmul.mubr.bf16.gmra.mrb[0].mxu0 %v499
      %v1084 = vpop.f32.mrb[0].mxu0
      %v1085 = vadd.f32 0.0, %v1084
      %v1086 = vpop.f32.mrb[0].mxu0
      %v1087 = vpop.f32.mrb[0].mxu0
      %v1088 = vadd.f32 0.0, %v1087
      %v1089 = vpop.f32.mrb[0].mxu0
      %1090 = vmatprep.mubr.bf16.mxu0 0
      %1091 = vmatmul.mubr.bf16.gmra.mrb[0].mxu0 %v502
      %v1092 = vpop.f32.mrb[0].mxu0
      %v1093 = vadd.f32 0.0, %v1092
      %v1094 = vpop.f32.mrb[0].mxu0
      %v1095 = vpop.f32.mrb[0].mxu0
      %v1096 = vadd.f32 0.0, %v1095
      %v1097 = vpop.f32.mrb[0].mxu0
      %1098 = vmatprep.mubr.bf16.mxu0 0
      %1099 = vmatmul.mubr.bf16.gmra.mrb[0].mxu0 %v505
      %v1100 = vpop.f32.mrb[0].mxu0
      %v1101 = vadd.f32 0.0, %v1100
      %v1102 = vpop.f32.mrb[0].mxu0
      %v1103 = vpop.f32.mrb[0].mxu0
      %v1104 = vadd.f32 0.0, %v1103
      %v1105 = vpop.f32.mrb[0].mxu0
      %1106 = vmatprep.mubr.bf16.mxu0 0
      %1107 = vmatmul.mubr.bf16.gmra.mrb[0].mxu0 %v508
      %v1108 = vpop.f32.mrb[0].mxu0
      %v1109 = vadd.f32 0.0, %v1108
      %v1110 = vpop.f32.mrb[0].mxu0
      %v1111 = vpop.f32.mrb[0].mxu0
      %v1112 = vadd.f32 0.0, %v1111
      %v1113 = vpop.f32.mrb[0].mxu0
      %1114 = vmatprep.mubr.bf16.mxu0 0
      %1115 = vmatmul.mubr.bf16.gmra.mrb[0].mxu0 %v511
      %v1116 = vpop.f32.mrb[0].mxu0
      %v1117 = vadd.f32 0.0, %v1116
      %v1118 = vpop.f32.mrb[0].mxu0
      %v1119 = vpop.f32.mrb[0].mxu0
      %v1120 = vadd.f32 0.0, %v1119
      %v1121 = vpop.f32.mrb[0].mxu0
      %1122 = vmatprep.mubr.bf16.mxu0 0
      %1123 = vmatmul.mubr.bf16.gmra.mrb[0].mxu0 %v514
      %v1124 = vpop.f32.mrb[0].mxu0
      %v1125 = vadd.f32 0.0, %v1124
      %v1126 = vpop.f32.mrb[0].mxu0
      %v1127 = vpop.f32.mrb[0].mxu0
      %v1128 = vadd.f32 0.0, %v1127
      %v1129 = vpop.f32.mrb[0].mxu0
      %1130 = vmatprep.mubr.bf16.mxu0 0
      %1131 = vmatmul.mubr.bf16.gmra.mrb[0].mxu0 %v517
      %v1132 = vpop.f32.mrb[0].mxu0
      %v1133 = vadd.f32 0.0, %v1132
      %v1134 = vpop.f32.mrb[0].mxu0
      %v1135 = vpop.f32.mrb[0].mxu0
      %v1136 = vadd.f32 0.0, %v1135
      %v1137 = vpop.f32.mrb[0].mxu0
      %1138 = vmatprep.mubr.bf16.mxu0 0
      %1139 = vmatmul.mubr.bf16.gmra.mrb[0].mxu0 %v520
      %v1140 = vpop.f32.mrb[0].mxu0
      %v1141 = vadd.f32 0.0, %v1140
      %v1142 = vpop.f32.mrb[0].mxu0
      %v1143 = vpop.f32.mrb[0].mxu0
      %v1144 = vadd.f32 0.0, %v1143
      %v1145 = vpop.f32.mrb[0].mxu0
      %1146 = vmatprep.mubr.bf16.mxu0 0
      %1147 = vmatmul.mubr.bf16.gmra.mrb[0].mxu0 %v523
      %v1148 = vpop.f32.mrb[0].mxu0
      %v1149 = vadd.f32 0.0, %v1148
      %v1150 = vpop.f32.mrb[0].mxu0
      %v1151 = vpop.f32.mrb[0].mxu0
      %v1152 = vadd.f32 0.0, %v1151
      %v1153 = vpop.f32.mrb[0].mxu0
      %1154 = vmatprep.mubr.bf16.mxu0 0
      %1155 = vmatmul.mubr.bf16.gmra.mrb[0].mxu0 %v981
      %v1156 = vpop.f32.mrb[0].mxu0
      %v1157 = vadd.f32 0.0, %v1156
      %v1158 = vpop.f32.mrb[0].mxu0
      %v1159 = vpop.f32.mrb[0].mxu0
      %v1160 = vadd.f32 0.0, %v1159
      %v1161 = vpop.f32.mrb[0].mxu0
      %1162 = vmatprep.mubr.bf16.mxu0 0
      %1163 = vmatmul.mubr.bf16.gmra.mrb[0].mxu0 %v984
      %v1164 = vpop.f32.mrb[0].mxu0
      %v1165 = vadd.f32 0.0, %v1164
      %v1166 = vpop.f32.mrb[0].mxu0
      %v1167 = vpop.f32.mrb[0].mxu0
      %v1168 = vadd.f32 0.0, %v1167
      %v1169 = vpop.f32.mrb[0].mxu0
      %1170 = vdwg.mxu0
      %v1171 = vadd.f32 %v798, %v1021
      %v1172 = vadd.f32 %v801, %v1024
      %v1173 = vadd.f32 %v806, %v1029
      %v1174 = vadd.f32 %v809, %v1032
      %v1175 = vadd.f32 %v814, %v1037
      %v1176 = vadd.f32 %v817, %v1040
      %v1177 = vadd.f32 %v822, %v1045
      %v1178 = vadd.f32 %v825, %v1048
      %v1179 = vadd.f32 %v830, %v1053
      %v1180 = vadd.f32 %v833, %v1056
      %v1181 = vadd.f32 %v838, %v1061
      %v1182 = vadd.f32 %v841, %v1064
      %v1183 = vadd.f32 %v846, %v1069
      %v1184 = vadd.f32 %v849, %v1072
      %v1185 = vadd.f32 %v854, %v1077
      %v1186 = vadd.f32 %v857, %v1080
      %v1187 = vadd.f32 %v862, %v1085
      %v1188 = vadd.f32 %v865, %v1088
      %v1189 = vadd.f32 %v870, %v1093
      %v1190 = vadd.f32 %v873, %v1096
      %v1191 = vadd.f32 %v878, %v1101
      %v1192 = vadd.f32 %v881, %v1104
      %v1193 = vadd.f32 %v886, %v1109
      %v1194 = vadd.f32 %v889, %v1112
      %v1195 = vadd.f32 %v894, %v1117
      %v1196 = vadd.f32 %v897, %v1120
      %v1197 = vadd.f32 %v902, %v1125
      %v1198 = vadd.f32 %v905, %v1128
      %v1199 = vadd.f32 %v910, %v1133
      %v1200 = vadd.f32 %v913, %v1136
      %v1201 = vadd.f32 %v918, %v1141
      %v1202 = vadd.f32 %v921, %v1144
      %v1203 = vadd.f32 %v926, %v1149
      %v1204 = vadd.f32 %v929, %v1152
      %v1205 = vadd.f32 %v934, %v1157
      %v1206 = vadd.f32 %v937, %v1160
      %v1207 = vadd.f32 %v942, %v1165
      %v1208 = vadd.f32 %v945, %v1168
      %s1209 = scalar_lea.vmem %s2, 48
      %v1210 = vld [vmem:[%s1209] sm:$0xf]
      %v1211 = vld [vmem:[%s1209 + $0x4] sm:$0xf]
      %v1212 = vld [vmem:[%s1209 + $0x8] sm:$0xf]
      %v1213 = vld [vmem:[%s1209 + $0xc] sm:$0xf]
      %vm1234 = vcmask 1046528
      %v1235 = vrot.slane %v273, 1
      %v1236 = vrot.slane %v274, 1
      %v1237 = vsel %vm1234, %v1235, %v1236
      %v1238 = vrot.slane %v275, 1
      %v1239 = vsel %vm1234, %v1236, %v1238
      %v1240 = vrot.slane %v276, 1
      %v1241 = vsel %vm1234, %v1238, %v1240
      %v1242 = vrot.slane %v277, 1
      %v1243 = vsel %vm1234, %v1240, %v1242
      %v1244 = vrot.slane %v278, 1
      %v1245 = vsel %vm1234, %v1242, %v1244
      %v1246 = vrot.slane %v279, 1
      %v1247 = vsel %vm1234, %v1244, %v1246
      %v1248 = vrot.slane %v280, 1
      %v1249 = vsel %vm1234, %v1246, %v1248
      %v1250 = vrot.slane %v281, 1
      %v1251 = vsel %vm1234, %v1248, %v1250
      %v1252 = vrot.slane %v282, 1
      %v1253 = vsel %vm1234, %v1250, %v1252
      %v1254 = vrot.slane %v283, 1
      %v1255 = vsel %vm1234, %v1252, %v1254
      %v1256 = vrot.slane %v284, 1
      %v1257 = vsel %vm1234, %v1254, %v1256
      %v1258 = vrot.slane %v285, 1
      %v1259 = vsel %vm1234, %v1256, %v1258
      %v1260 = vrot.slane %v286, 1
      %v1261 = vsel %vm1234, %v1258, %v1260
      %v1262 = vrot.slane %v287, 1
      %v1263 = vsel %vm1234, %v1260, %v1262
      %v1264 = vrot.slane %v288, 1
      %v1265 = vsel %vm1234, %v1262, %v1264
      %v1266 = vrot.slane %v289, 1
      %v1267 = vsel %vm1234, %v1264, %v1266
      %v1268 = vrot.slane %v290, 1
      %v1269 = vsel %vm1234, %v1266, %v1268
      %v1270 = vrot.slane %v948, 1
      %v1271 = vsel %vm1234, %v1268, %v1270
      %v1272 = vrot.slane %v949, 1
      %v1273 = vsel %vm1234, %v1270, %v1272
      %v1278 = vunpack.c.l.b16 %v1210
      %v1279 = vunpack.c.l.b16 %v1211
      %v1280 = vunpack.c.l.b16 %v1212
      %v1281 = vunpack.c.l.b16 %v1213
      %v1282 = vpack.c.b16 %v1279, %v1278
      %v1283 = vpack.c.b16 %v1281, %v1280
      %v1287 = vsel %vm470, %v1237, 0
      %v1290 = vsel %vm470, %v1239, 0
      %v1293 = vsel %vm470, %v1241, 0
      %v1296 = vsel %vm470, %v1243, 0
      %v1299 = vsel %vm470, %v1245, 0
      %v1302 = vsel %vm470, %v1247, 0
      %v1305 = vsel %vm470, %v1249, 0
      %v1308 = vsel %vm470, %v1251, 0
      %v1311 = vsel %vm470, %v1253, 0
      %v1314 = vsel %vm470, %v1255, 0
      %v1317 = vsel %vm470, %v1257, 0
      %v1320 = vsel %vm470, %v1259, 0
      %v1323 = vsel %vm470, %v1261, 0
      %v1326 = vsel %vm470, %v1263, 0
      %v1329 = vsel %vm470, %v1265, 0
      %v1332 = vsel %vm470, %v1267, 0
      %v1335 = vsel %vm470, %v1269, 0
      %v1338 = vsel %vm470, %v1271, 0
      %v1341 = vsel %vm470, %v1273, 0
      %1343 = vmatprep.subr.bf16.mxu0 0
      %1344 = vmatpush1.bf16.msra.mxu0 %v1282
      %1345 = vmatprep.subr.bf16.mxu0 0
      %1346 = vmatpush1.bf16.msra.mxu0 %v1283
      %1347 = vmatprep.subr.bf16.mxu0 0
      %1348 = vmatpush1.bf16.msra.mxu0 0
      %1349 = vmatprep.subr.bf16.mxu0 0
      %1350 = vmatpush1.bf16.msra.mxu0 0
      %1351 = vmatprep.subr.bf16.mxu0 0
      %1352 = vmatpush1.bf16.msra.mxu0 0
      %1353 = vmatprep.subr.bf16.mxu0 0
      %1354 = vmatpush1.bf16.msra.mxu0 0
      %1355 = vmatprep.subr.bf16.mxu0 0
      %1356 = vmatpush1.bf16.msra.mxu0 0
      %1357 = vmatprep.subr.bf16.mxu0 0
      %1358 = vmatpush1.bf16.msra.mxu0 0
      %1359 = vmatprep.subr.bf16.mxu0 0
      %1360 = vmatpush1.bf16.msra.mxu0 0
      %1361 = vmatprep.subr.bf16.mxu0 0
      %1362 = vmatpush1.bf16.msra.mxu0 0
      %1363 = vmatprep.subr.bf16.mxu0 0
      %1364 = vmatpush1.bf16.msra.mxu0 0
      %1365 = vmatprep.subr.bf16.mxu0 0
      %1366 = vmatpush1.bf16.msra.mxu0 0
      %1367 = vmatprep.subr.bf16.mxu0 0
      %1368 = vmatpush1.bf16.msra.mxu0 0
      %1369 = vmatprep.subr.bf16.mxu0 0
      %1370 = vmatpush1.bf16.msra.mxu0 0
      %1371 = vmatprep.subr.bf16.mxu0 0
      %1372 = vmatpush1.bf16.msra.mxu0 0
      %1373 = vmatprep.subr.bf16.mxu0 0
      %1374 = vmatpush1.bf16.msra.mxu0 0
      %1375 = vmatprep.mubr.bf16.mxu0 0
      %1376 = vmatmul.mubr.bf16.gmra.mrb[0].mxu0 %v1287
      %v1377 = vpop.f32.mrb[0].mxu0
      %v1378 = vadd.f32 0.0, %v1377
      %v1379 = vpop.f32.mrb[0].mxu0
      %v1380 = vpop.f32.mrb[0].mxu0
      %v1381 = vadd.f32 0.0, %v1380
      %v1382 = vpop.f32.mrb[0].mxu0
      %1383 = vmatprep.mubr.bf16.mxu0 0
      %1384 = vmatmul.mubr.bf16.gmra.mrb[0].mxu0 %v1290
      %v1385 = vpop.f32.mrb[0].mxu0
      %v1386 = vadd.f32 0.0, %v1385
      %v1387 = vpop.f32.mrb[0].mxu0
      %v1388 = vpop.f32.mrb[0].mxu0
      %v1389 = vadd.f32 0.0, %v1388
      %v1390 = vpop.f32.mrb[0].mxu0
      %1391 = vmatprep.mubr.bf16.mxu0 0
      %1392 = vmatmul.mubr.bf16.gmra.mrb[0].mxu0 %v1293
      %v1393 = vpop.f32.mrb[0].mxu0
      %v1394 = vadd.f32 0.0, %v1393
      %v1395 = vpop.f32.mrb[0].mxu0
      %v1396 = vpop.f32.mrb[0].mxu0
      %v1397 = vadd.f32 0.0, %v1396
      %v1398 = vpop.f32.mrb[0].mxu0
      %1399 = vmatprep.mubr.bf16.mxu0 0
      %1400 = vmatmul.mubr.bf16.gmra.mrb[0].mxu0 %v1296
      %v1401 = vpop.f32.mrb[0].mxu0
      %v1402 = vadd.f32 0.0, %v1401
      %v1403 = vpop.f32.mrb[0].mxu0
      %v1404 = vpop.f32.mrb[0].mxu0
      %v1405 = vadd.f32 0.0, %v1404
      %v1406 = vpop.f32.mrb[0].mxu0
      %1407 = vmatprep.mubr.bf16.mxu0 0
      %1408 = vmatmul.mubr.bf16.gmra.mrb[0].mxu0 %v1299
      %v1409 = vpop.f32.mrb[0].mxu0
      %v1410 = vadd.f32 0.0, %v1409
      %v1411 = vpop.f32.mrb[0].mxu0
      %v1412 = vpop.f32.mrb[0].mxu0
      %v1413 = vadd.f32 0.0, %v1412
      %v1414 = vpop.f32.mrb[0].mxu0
      %1415 = vmatprep.mubr.bf16.mxu0 0
      %1416 = vmatmul.mubr.bf16.gmra.mrb[0].mxu0 %v1302
      %v1417 = vpop.f32.mrb[0].mxu0
      %v1418 = vadd.f32 0.0, %v1417
      %v1419 = vpop.f32.mrb[0].mxu0
      %v1420 = vpop.f32.mrb[0].mxu0
      %v1421 = vadd.f32 0.0, %v1420
      %v1422 = vpop.f32.mrb[0].mxu0
      %1423 = vmatprep.mubr.bf16.mxu0 0
      %1424 = vmatmul.mubr.bf16.gmra.mrb[0].mxu0 %v1305
      %v1425 = vpop.f32.mrb[0].mxu0
      %v1426 = vadd.f32 0.0, %v1425
      %v1427 = vpop.f32.mrb[0].mxu0
      %v1428 = vpop.f32.mrb[0].mxu0
      %v1429 = vadd.f32 0.0, %v1428
      %v1430 = vpop.f32.mrb[0].mxu0
      %1431 = vmatprep.mubr.bf16.mxu0 0
      %1432 = vmatmul.mubr.bf16.gmra.mrb[0].mxu0 %v1308
      %v1433 = vpop.f32.mrb[0].mxu0
      %v1434 = vadd.f32 0.0, %v1433
      %v1435 = vpop.f32.mrb[0].mxu0
      %v1436 = vpop.f32.mrb[0].mxu0
      %v1437 = vadd.f32 0.0, %v1436
      %v1438 = vpop.f32.mrb[0].mxu0
      %1439 = vmatprep.mubr.bf16.mxu0 0
      %1440 = vmatmul.mubr.bf16.gmra.mrb[0].mxu0 %v1311
      %v1441 = vpop.f32.mrb[0].mxu0
      %v1442 = vadd.f32 0.0, %v1441
      %v1443 = vpop.f32.mrb[0].mxu0
      %v1444 = vpop.f32.mrb[0].mxu0
      %v1445 = vadd.f32 0.0, %v1444
      %v1446 = vpop.f32.mrb[0].mxu0
      %1447 = vmatprep.mubr.bf16.mxu0 0
      %1448 = vmatmul.mubr.bf16.gmra.mrb[0].mxu0 %v1314
      %v1449 = vpop.f32.mrb[0].mxu0
      %v1450 = vadd.f32 0.0, %v1449
      %v1451 = vpop.f32.mrb[0].mxu0
      %v1452 = vpop.f32.mrb[0].mxu0
      %v1453 = vadd.f32 0.0, %v1452
      %v1454 = vpop.f32.mrb[0].mxu0
      %1455 = vmatprep.mubr.bf16.mxu0 0
      %1456 = vmatmul.mubr.bf16.gmra.mrb[0].mxu0 %v1317
      %v1457 = vpop.f32.mrb[0].mxu0
      %v1458 = vadd.f32 0.0, %v1457
      %v1459 = vpop.f32.mrb[0].mxu0
      %v1460 = vpop.f32.mrb[0].mxu0
      %v1461 = vadd.f32 0.0, %v1460
      %v1462 = vpop.f32.mrb[0].mxu0
      %1463 = vmatprep.mubr.bf16.mxu0 0
      %1464 = vmatmul.mubr.bf16.gmra.mrb[0].mxu0 %v1320
      %v1465 = vpop.f32.mrb[0].mxu0
      %v1466 = vadd.f32 0.0, %v1465
      %v1467 = vpop.f32.mrb[0].mxu0
      %v1468 = vpop.f32.mrb[0].mxu0
      %v1469 = vadd.f32 0.0, %v1468
      %v1470 = vpop.f32.mrb[0].mxu0
      %1471 = vmatprep.mubr.bf16.mxu0 0
      %1472 = vmatmul.mubr.bf16.gmra.mrb[0].mxu0 %v1323
      %v1473 = vpop.f32.mrb[0].mxu0
      %v1474 = vadd.f32 0.0, %v1473
      %v1475 = vpop.f32.mrb[0].mxu0
      %v1476 = vpop.f32.mrb[0].mxu0
      %v1477 = vadd.f32 0.0, %v1476
      %v1478 = vpop.f32.mrb[0].mxu0
      %1479 = vmatprep.mubr.bf16.mxu0 0
      %1480 = vmatmul.mubr.bf16.gmra.mrb[0].mxu0 %v1326
      %v1481 = vpop.f32.mrb[0].mxu0
      %v1482 = vadd.f32 0.0, %v1481
      %v1483 = vpop.f32.mrb[0].mxu0
      %v1484 = vpop.f32.mrb[0].mxu0
      %v1485 = vadd.f32 0.0, %v1484
      %v1486 = vpop.f32.mrb[0].mxu0
      %1487 = vmatprep.mubr.bf16.mxu0 0
      %1488 = vmatmul.mubr.bf16.gmra.mrb[0].mxu0 %v1329
      %v1489 = vpop.f32.mrb[0].mxu0
      %v1490 = vadd.f32 0.0, %v1489
      %v1491 = vpop.f32.mrb[0].mxu0
      %v1492 = vpop.f32.mrb[0].mxu0
      %v1493 = vadd.f32 0.0, %v1492
      %v1494 = vpop.f32.mrb[0].mxu0
      %1495 = vmatprep.mubr.bf16.mxu0 0
      %1496 = vmatmul.mubr.bf16.gmra.mrb[0].mxu0 %v1332
      %v1497 = vpop.f32.mrb[0].mxu0
      %v1498 = vadd.f32 0.0, %v1497
      %v1499 = vpop.f32.mrb[0].mxu0
      %v1500 = vpop.f32.mrb[0].mxu0
      %v1501 = vadd.f32 0.0, %v1500
      %v1502 = vpop.f32.mrb[0].mxu0
      %1503 = vmatprep.mubr.bf16.mxu0 0
      %1504 = vmatmul.mubr.bf16.gmra.mrb[0].mxu0 %v1335
      %v1505 = vpop.f32.mrb[0].mxu0
      %v1506 = vadd.f32 0.0, %v1505
      %v1507 = vpop.f32.mrb[0].mxu0
      %v1508 = vpop.f32.mrb[0].mxu0
      %v1509 = vadd.f32 0.0, %v1508
      %v1510 = vpop.f32.mrb[0].mxu0
      %1511 = vmatprep.mubr.bf16.mxu0 0
      %1512 = vmatmul.mubr.bf16.gmra.mrb[0].mxu0 %v1338
      %v1513 = vpop.f32.mrb[0].mxu0
      %v1514 = vadd.f32 0.0, %v1513
      %v1515 = vpop.f32.mrb[0].mxu0
      %v1516 = vpop.f32.mrb[0].mxu0
      %v1517 = vadd.f32 0.0, %v1516
      %v1518 = vpop.f32.mrb[0].mxu0
      %1519 = vmatprep.mubr.bf16.mxu0 0
      %1520 = vmatmul.mubr.bf16.gmra.mrb[0].mxu0 %v1341
      %v1521 = vpop.f32.mrb[0].mxu0
      %v1522 = vadd.f32 0.0, %v1521
      %v1523 = vpop.f32.mrb[0].mxu0
      %v1524 = vpop.f32.mrb[0].mxu0
      %v1525 = vadd.f32 0.0, %v1524
      %v1526 = vpop.f32.mrb[0].mxu0
      %1527 = vdwg.mxu0
      %v1528 = vadd.f32 %v1171, %v1378
      %v1529 = vadd.f32 %v1172, %v1381
      %v1530 = vadd.f32 %v1173, %v1386
      %v1531 = vadd.f32 %v1174, %v1389
      %v1532 = vadd.f32 %v1175, %v1394
      %v1533 = vadd.f32 %v1176, %v1397
      %v1534 = vadd.f32 %v1177, %v1402
      %v1535 = vadd.f32 %v1178, %v1405
      %v1536 = vadd.f32 %v1179, %v1410
      %v1537 = vadd.f32 %v1180, %v1413
      %v1538 = vadd.f32 %v1181, %v1418
      %v1539 = vadd.f32 %v1182, %v1421
      %v1540 = vadd.f32 %v1183, %v1426
      %v1541 = vadd.f32 %v1184, %v1429
      %v1542 = vadd.f32 %v1185, %v1434
      %v1543 = vadd.f32 %v1186, %v1437
      %v1544 = vadd.f32 %v1187, %v1442
      %v1545 = vadd.f32 %v1188, %v1445
      %v1546 = vadd.f32 %v1189, %v1450
      %v1547 = vadd.f32 %v1190, %v1453
      %v1548 = vadd.f32 %v1191, %v1458
      %v1549 = vadd.f32 %v1192, %v1461
      %v1550 = vadd.f32 %v1193, %v1466
      %v1551 = vadd.f32 %v1194, %v1469
      %v1552 = vadd.f32 %v1195, %v1474
      %v1553 = vadd.f32 %v1196, %v1477
      %v1554 = vadd.f32 %v1197, %v1482
      %v1555 = vadd.f32 %v1198, %v1485
      %v1556 = vadd.f32 %v1199, %v1490
      %v1557 = vadd.f32 %v1200, %v1493
      %v1558 = vadd.f32 %v1201, %v1498
      %v1559 = vadd.f32 %v1202, %v1501
      %v1560 = vadd.f32 %v1203, %v1506
      %v1561 = vadd.f32 %v1204, %v1509
      %v1562 = vadd.f32 %v1205, %v1514
      %v1563 = vadd.f32 %v1206, %v1517
      %v1564 = vadd.f32 %v1207, %v1522
      %v1565 = vadd.f32 %v1208, %v1525
      %v1566 = vld [vmem:[%s3] sm:$0x1]
      %v1568 = vlaneseq
      %v1569 = vshrl.u32 %v1568, 7
      %v1570 = vsub.s32 0, %v1569
      %v1571 = vrot.slane %v1566, %v1570
      %v1573 = vadd.f32 %v1528, %v1571
      %v1574 = vadd.f32 %v1529, %v1571
      %v1575 = vadd.f32 %v1530, %v1571
      %v1576 = vadd.f32 %v1531, %v1571
      %v1577 = vadd.f32 %v1532, %v1571
      %v1578 = vadd.f32 %v1533, %v1571
      %v1579 = vadd.f32 %v1534, %v1571
      %v1580 = vadd.f32 %v1535, %v1571
      %v1581 = vadd.f32 %v1536, %v1571
      %v1582 = vadd.f32 %v1537, %v1571
      %v1583 = vadd.f32 %v1538, %v1571
      %v1584 = vadd.f32 %v1539, %v1571
      %v1585 = vadd.f32 %v1540, %v1571
      %v1586 = vadd.f32 %v1541, %v1571
      %v1587 = vadd.f32 %v1542, %v1571
      %v1588 = vadd.f32 %v1543, %v1571
      %v1589 = vadd.f32 %v1544, %v1571
      %v1590 = vadd.f32 %v1545, %v1571
      %v1591 = vadd.f32 %v1546, %v1571
      %v1592 = vadd.f32 %v1547, %v1571
      %v1593 = vadd.f32 %v1548, %v1571
      %v1594 = vadd.f32 %v1549, %v1571
      %v1595 = vadd.f32 %v1550, %v1571
      %v1596 = vadd.f32 %v1551, %v1571
      %v1597 = vadd.f32 %v1552, %v1571
      %v1598 = vadd.f32 %v1553, %v1571
      %v1599 = vadd.f32 %v1554, %v1571
      %v1600 = vadd.f32 %v1555, %v1571
      %v1601 = vadd.f32 %v1556, %v1571
      %v1602 = vadd.f32 %v1557, %v1571
      %v1603 = vadd.f32 %v1558, %v1571
      %v1604 = vadd.f32 %v1559, %v1571
      %v1605 = vadd.f32 %v1560, %v1571
      %v1606 = vadd.f32 %v1561, %v1571
      %v1607 = vadd.f32 %v1562, %v1571
      %v1608 = vadd.f32 %v1563, %v1571
      %v1609 = vadd.f32 %v1564, %v1571
      %v1610 = vadd.f32 %v1565, %v1571
      %v1611 = vmax.f32 %v1573, 0.0
      %v1612 = vmax.f32 %v1574, 0.0
      %v1613 = vmax.f32 %v1575, 0.0
      %v1614 = vmax.f32 %v1576, 0.0
      %v1615 = vmax.f32 %v1577, 0.0
      %v1616 = vmax.f32 %v1578, 0.0
      %v1617 = vmax.f32 %v1579, 0.0
      %v1618 = vmax.f32 %v1580, 0.0
      %v1619 = vmax.f32 %v1581, 0.0
      %v1620 = vmax.f32 %v1582, 0.0
      %v1621 = vmax.f32 %v1583, 0.0
      %v1622 = vmax.f32 %v1584, 0.0
      %v1623 = vmax.f32 %v1585, 0.0
      %v1624 = vmax.f32 %v1586, 0.0
      %v1625 = vmax.f32 %v1587, 0.0
      %v1626 = vmax.f32 %v1588, 0.0
      %v1627 = vmax.f32 %v1589, 0.0
      %v1628 = vmax.f32 %v1590, 0.0
      %v1629 = vmax.f32 %v1591, 0.0
      %v1630 = vmax.f32 %v1592, 0.0
      %v1631 = vmax.f32 %v1593, 0.0
      %v1632 = vmax.f32 %v1594, 0.0
      %v1633 = vmax.f32 %v1595, 0.0
      %v1634 = vmax.f32 %v1596, 0.0
      %v1635 = vmax.f32 %v1597, 0.0
      %v1636 = vmax.f32 %v1598, 0.0
      %v1637 = vmax.f32 %v1599, 0.0
      %v1638 = vmax.f32 %v1600, 0.0
      %v1639 = vmax.f32 %v1601, 0.0
      %v1640 = vmax.f32 %v1602, 0.0
      %v1641 = vmax.f32 %v1603, 0.0
      %v1642 = vmax.f32 %v1604, 0.0
      %v1643 = vmax.f32 %v1605, 0.0
      %v1644 = vmax.f32 %v1606, 0.0
      %v1645 = vmax.f32 %v1607, 0.0
      %v1646 = vmax.f32 %v1608, 0.0
      %v1647 = vmax.f32 %v1609, 0.0
      %v1648 = vmax.f32 %v1610, 0.0
      %1649 = vst [vmem:[%s228] sm:$0xff] %v1611
      %1650 = vst [vmem:[%s228 + $0x8] sm:$0xff] %v1612
      %1651 = vst [vmem:[%s228 + $0x10] sm:$0xff] %v1613
      %1652 = vst [vmem:[%s228 + $0x18] sm:$0xff] %v1614
      %1653 = vst [vmem:[%s228 + $0x20] sm:$0xff] %v1615
      %1654 = vst [vmem:[%s228 + $0x28] sm:$0xff] %v1616
      %1655 = vst [vmem:[%s228 + $0x30] sm:$0xff] %v1617
      %1656 = vst [vmem:[%s228 + $0x38] sm:$0xff] %v1618
      %1657 = vst [vmem:[%s228 + $0x40] sm:$0xff] %v1619
      %1658 = vst [vmem:[%s228 + $0x48] sm:$0xff] %v1620
      %1659 = vst [vmem:[%s228 + $0x50] sm:$0xff] %v1621
      %1660 = vst [vmem:[%s228 + $0x58] sm:$0xff] %v1622
      %1661 = vst [vmem:[%s228 + $0x60] sm:$0xff] %v1623
      %1662 = vst [vmem:[%s228 + $0x68] sm:$0xff] %v1624
      %1663 = vst [vmem:[%s228 + $0x70] sm:$0xff] %v1625
      %1664 = vst [vmem:[%s228 + $0x78] sm:$0xff] %v1626
      %1665 = vst [vmem:[%s228 + $0x80] sm:$0xff] %v1627
      %1666 = vst [vmem:[%s228 + $0x88] sm:$0xff] %v1628
      %1667 = vst [vmem:[%s228 + $0x90] sm:$0xff] %v1629
      %1668 = vst [vmem:[%s228 + $0x98] sm:$0xff] %v1630
      %1669 = vst [vmem:[%s228 + $0xa0] sm:$0xff] %v1631
      %1670 = vst [vmem:[%s228 + $0xa8] sm:$0xff] %v1632
      %1671 = vst [vmem:[%s228 + $0xb0] sm:$0xff] %v1633
      %1672 = vst [vmem:[%s228 + $0xb8] sm:$0xff] %v1634
      %1673 = vst [vmem:[%s228 + $0xc0] sm:$0xff] %v1635
      %1674 = vst [vmem:[%s228 + $0xc8] sm:$0xff] %v1636
      %1675 = vst [vmem:[%s228 + $0xd0] sm:$0xff] %v1637
      %1676 = vst [vmem:[%s228 + $0xd8] sm:$0xff] %v1638
      %1677 = vst [vmem:[%s228 + $0xe0] sm:$0xff] %v1639
      %1678 = vst [vmem:[%s228 + $0xe8] sm:$0xff] %v1640
      %1679 = vst [vmem:[%s228 + $0xf0] sm:$0xff] %v1641
      %1680 = vst [vmem:[%s228 + $0xf8] sm:$0xff] %v1642
      %1681 = vst [vmem:[%s228 + $0x100] sm:$0xff] %v1643
      %1682 = vst [vmem:[%s228 + $0x108] sm:$0xff] %v1644
      %1683 = vst [vmem:[%s228 + $0x110] sm:$0xff] %v1645
      %1684 = vst [vmem:[%s228 + $0x118] sm:$0xff] %v1646
      %1685 = vst [vmem:[%s228 + $0x120] sm:$0xff] %v1647
      %1686 = vst [vmem:[%s228 + $0x128] sm:$0xff] %v1648
      %s1687 = smul.u32 38, %s15
      %p1688 = scmp.lt.s32.totalorder %s1687, 75
      %s1689 = scalar_select %p1688, %s1687, 75
      %s1690 = smul.addr %s1689, 8
      %s1691 = scalar_lea.vmem %s4, %s1690
      // Predicated region
      $region37: #{decoder_forward.6} parent=35 // pred_check
        %p1692 = pneg %p129
      $region38: #{decoder_forward.6} parent=35 // pred_check_branch
        %1694 = sbr.rel (%p1692) target = $region40
      $region39: #{decoder_forward.6} parent=35 // pred_region
        %s1695 = smul.u32 38, %s15
      $region40: #{decoder_forward.6} parent=35 // pred_fallthru
        _
    $region36: #{decoder_forward.6} parent=5 // pred_fallthru
      _
    %p1696 = scmp.le.s32.totalorder 2, %s10
    // Predicated region
    $region41: #{decoder_forward.6} parent=5 // pred_check
      %p1697 = pneg %p1696
    $region42: #{decoder_forward.6} parent=5 // pred_check_branch
      %1699 = sbr.rel (%p1697) target = $region44
    $region43: #{decoder_forward.6} parent=5 // pred_region
      %s1700 = ssub.s32 %s10, 2
      // Predicated region
      $region45: #{decoder_forward.6} parent=43 // pred_check
        %p1701 = pneg %p135
      $region46: #{decoder_forward.6} parent=43 // pred_check_branch
        %1703 = sbr.rel (%p1701) target = $region48
      $region47: #{decoder_forward.6} parent=43 // pred_region
        %s1704 = smul.u32 38, %s16
        %p1705 = scmp.lt.s32.totalorder %s1704, 75
        %s1706 = scalar_select %p1705, %s1704, 75
        %s1707 = smul.addr %s1706, 8
        %s1708 = scalar_lea.vmem %s4, %s1707
      $region48: #{decoder_forward.6} parent=43 // pred_fallthru
        _
    $region44: #{decoder_forward.6} parent=5 // pred_fallthru
      _
  $region6: #{decoder_forward.6} parent=0 // loop_footer
    %s14 = sadd.s32 1, %s10
  $region7: #{decoder_forward.6} parent=0 // loop_footer_branch
    %9 = sbr.rel target = $region3
  $region8: #{decoder_forward.6} parent=0 // loop_exit
    _

// kernel: decoder_forward.7
$region0: #{decoder_forward.7}
  #allocation0 [shape = 'u32[]', space=smem, size = 0x4, offset = 0x4, fixed_abs, tag = 'smem constant byte address 0x4 - core index']
  #allocation1 [shape = 'u32[144,128]{1,0:T(1,128)}', space=vmem, size = 0x12000, scoped, tag = 'internal scratch']
  %s0 = inlined_call_operand.vmem [shape: f32[3312,16], index: 0, kind: input, shape index: {}, may-alias: {0,1}]
  %s1 = inlined_call_operand.vmem [shape: f32[3312,16], index: 1, kind: input, shape index: {}, may-alias: {0,1}]
  %s2 = inlined_call_operand.vmem [shape: bf16[4,16,128], index: 2, kind: input, shape index: {}]
  %s3 = inlined_call_operand.vmem [shape: f32[1,128], index: 3, kind: input, shape index: {}]
  %s4 = inlined_call_operand.vmem [shape: f32[2208,128], index: 4, kind: output, shape index: {}]
  %s5 = sld [smem:[#allocation0]]
  $region49: #{decoder_forward.7} parent=0
    _
  %s7 = ssub.s32 1, %s5
  %s8 = scalar_select 0, %s7, %s5
  loop: start=0, step=1, limit=4
  $region2: #{decoder_forward.7} parent=0 // loop_pre_header
    _
  $region3: #{decoder_forward.7} parent=0 // loop_header
    %s10 = sphi 0, %s14
    %p11 = scmp.ge.s32.totalorder %s10, 4
    %s20 = sphi 0, %s22
    %s23 = sphi 0, %s20
    %s24 = sphi 0, %s23
    %s40 = sphi 0, %s24
    %s48 = sphi 0, %s50
    %s51 = sphi 0, %s48
    %s52 = sphi 0, %s51
    %s68 = sphi 0, %s52
    %s72 = sphi 0, %s72
    %s74 = sphi 0, %s72
    %s75 = sphi 0, %s74
    %s89 = sphi 0, %s75
    %s93 = sphi 0, %s93
    %s95 = sphi 0, %s93
    %s96 = sphi 0, %s95
    %s110 = sphi 0, %s96
    %s116 = sphi 0, %s118
    %s119 = sphi 0, %s116
    %s120 = sphi 0, %s119
    %s136 = sphi 0, %s120
  $region4: #{decoder_forward.7} parent=0 // loop_header_branch
    %13 = sbr.rel (%p11) target = $region8
  $region5: #{decoder_forward.7} parent=0 // loop_body
    %s15 = ssub.s32 %s10, 1
    %s16 = ssub.s32 %s10, 2
    %s17 = sadd.s32 %s10, 1
    %s18 = ssub.s32 %s10, %s17
    %p19 = scmp.eq.s32.totalorder %s18, 0
    %s21 = sadd.s32 %s20, 1
    %s22 = scalar_select %p19, %s20, %s21
    %p25 = pneg %p19
    %p26 = scmp.eq.s32.totalorder %s10, 1
    %p27 = por %p25, %p26
    %p28 = scmp.ne.s32.totalorder %s20, %s23
    %p29 = scmp.eq.s32.totalorder %s10, 0
    %p30 = por %p28, %p29
    %p31 = scmp.ne.s32.totalorder %s20, %s23
    %p32 = scmp.eq.s32.totalorder %s15, 1
    %p33 = por %p31, %p32
    %p34 = scmp.ne.s32.totalorder %s23, %s24
    %p35 = scmp.eq.s32.totalorder %s15, 0
    %p36 = por %p34, %p35
    %p37 = scmp.ne.s32.totalorder %s23, %s24
    %p38 = scmp.eq.s32.totalorder %s16, 1
    %p39 = por %p37, %p38
    %p41 = scmp.ne.s32.totalorder %s24, %s40
    %p42 = scmp.eq.s32.totalorder %s16, 0
    %p43 = por %p41, %p42
    %s44 = sadd.s32 %s10, 1
    %s45 = sadd.s32 %s17, 1
    %s46 = ssub.s32 %s44, %s45
    %p47 = scmp.eq.s32.totalorder %s46, 0
    %s49 = sadd.s32 %s48, 1
    %s50 = scalar_select %p47, %s48, %s49
    %p53 = pneg %p47
    %p54 = scmp.eq.s32.totalorder %s10, 1
    %p55 = por %p53, %p54
    %p56 = scmp.ne.s32.totalorder %s48, %s51
    %p57 = scmp.eq.s32.totalorder %s10, 0
    %p58 = por %p56, %p57
    %p59 = scmp.ne.s32.totalorder %s48, %s51
    %p60 = scmp.eq.s32.totalorder %s15, 1
    %p61 = por %p59, %p60
    %p62 = scmp.ne.s32.totalorder %s51, %s52
    %p63 = scmp.eq.s32.totalorder %s15, 0
    %p64 = por %p62, %p63
    %p65 = scmp.ne.s32.totalorder %s51, %s52
    %p66 = scmp.eq.s32.totalorder %s16, 1
    %p67 = por %p65, %p66
    %p69 = scmp.ne.s32.totalorder %s52, %s68
    %p70 = scmp.eq.s32.totalorder %s16, 0
    %p71 = por %p69, %p70
    %s73 = sadd.s32 %s72, 1
    %p76 = scmp.eq.s32.totalorder %s10, 1
    %p77 = scmp.ne.s32.totalorder %s72, %s74
    %p78 = scmp.eq.s32.totalorder %s10, 0
    %p79 = por %p77, %p78
    %p80 = scmp.ne.s32.totalorder %s72, %s74
    %p81 = scmp.eq.s32.totalorder %s15, 1
    %p82 = por %p80, %p81
    %p83 = scmp.ne.s32.totalorder %s74, %s75
    %p84 = scmp.eq.s32.totalorder %s15, 0
    %p85 = por %p83, %p84
    %p86 = scmp.ne.s32.totalorder %s74, %s75
    %p87 = scmp.eq.s32.totalorder %s16, 1
    %p88 = por %p86, %p87
    %p90 = scmp.ne.s32.totalorder %s75, %s89
    %p91 = scmp.eq.s32.totalorder %s16, 0
    %p92 = por %p90, %p91
    %s94 = sadd.s32 %s93, 1
    %p97 = scmp.eq.s32.totalorder %s10, 1
    %p98 = scmp.ne.s32.totalorder %s93, %s95
    %p99 = scmp.eq.s32.totalorder %s10, 0
    %p100 = por %p98, %p99
    %p101 = scmp.ne.s32.totalorder %s93, %s95
    %p102 = scmp.eq.s32.totalorder %s15, 1
    %p103 = por %p101, %p102
    %p104 = scmp.ne.s32.totalorder %s95, %s96
    %p105 = scmp.eq.s32.totalorder %s15, 0
    %p106 = por %p104, %p105
    %p107 = scmp.ne.s32.totalorder %s95, %s96
    %p108 = scmp.eq.s32.totalorder %s16, 1
    %p109 = por %p107, %p108
    %p111 = scmp.ne.s32.totalorder %s96, %s110
    %p112 = scmp.eq.s32.totalorder %s16, 0
    %p113 = por %p111, %p112
    %s114 = ssub.s32 %s10, %s17
    %p115 = scmp.eq.s32.totalorder %s114, 0
    %s117 = sadd.s32 %s116, 1
    %s118 = scalar_select %p115, %s116, %s117
    %p121 = pneg %p115
    %p122 = scmp.eq.s32.totalorder %s10, 1
    %p123 = por %p121, %p122
    %p124 = scmp.ne.s32.totalorder %s116, %s119
    %p125 = scmp.eq.s32.totalorder %s10, 0
    %p126 = por %p124, %p125
    %p127 = scmp.ne.s32.totalorder %s116, %s119
    %p128 = scmp.eq.s32.totalorder %s15, 1
    %p129 = por %p127, %p128
    %p130 = scmp.ne.s32.totalorder %s119, %s120
    %p131 = scmp.eq.s32.totalorder %s15, 0
    %p132 = por %p130, %p131
    %p133 = scmp.ne.s32.totalorder %s119, %s120
    %p134 = scmp.eq.s32.totalorder %s16, 1
    %p135 = por %p133, %p134
    %p137 = scmp.ne.s32.totalorder %s120, %s136
    %p138 = scmp.eq.s32.totalorder %s16, 0
    %p139 = por %p137, %p138
    %p140 = scmp.le.s32.totalorder 1, %s10
    %p141 = scmp.lt.s32.totalorder %s10, 3
    %p142 = pnand %p140, %p141
    %p143 = pneg %p142
    // Predicated region
    $region9: #{decoder_forward.7} parent=5 // pred_check
      _
    $region10: #{decoder_forward.7} parent=5 // pred_check_branch
      %145 = sbr.rel (%p142) target = $region12
    $region11: #{decoder_forward.7} parent=5 // pred_region
      %s146 = ssub.s32 %s10, 1
      // Predicated region
      $region13: #{decoder_forward.7} parent=11 // pred_check
        %p147 = pneg %p85
      $region14: #{decoder_forward.7} parent=11 // pred_check_branch
        %149 = sbr.rel (%p147) target = $region16
      $region15: #{decoder_forward.7} parent=11 // pred_region
        _
      $region16: #{decoder_forward.7} parent=11 // pred_fallthru
        _
      // Predicated region
      $region17: #{decoder_forward.7} parent=11 // pred_check
        %p150 = pneg %p106
      $region18: #{decoder_forward.7} parent=11 // pred_check_branch
        %152 = sbr.rel (%p150) target = $region20
      $region19: #{decoder_forward.7} parent=11 // pred_region
        _
      $region20: #{decoder_forward.7} parent=11 // pred_fallthru
        _
    $region12: #{decoder_forward.7} parent=5 // pred_fallthru
      _
    %p153 = scmp.lt.s32.totalorder %s10, 2
    // Predicated region
    $region21: #{decoder_forward.7} parent=5 // pred_check
      %p154 = pneg %p153
    $region22: #{decoder_forward.7} parent=5 // pred_check_branch
      %156 = sbr.rel (%p154) target = $region24
    $region23: #{decoder_forward.7} parent=5 // pred_region
      // Predicated region
      $region25: #{decoder_forward.7} parent=23 // pred_check
        %p157 = pneg %p30
      $region26: #{decoder_forward.7} parent=23 // pred_check_branch
        %159 = sbr.rel (%p157) target = $region28
      $region27: #{decoder_forward.7} parent=23 // pred_region
        %s160 = smul.u32 138, %s10
        %p161 = scmp.lt.s32.totalorder %s160, 413
        %s162 = scalar_select %p161, %s160, 413
        %s163 = smul.addr %s162, 8
        %s164 = scalar_lea.vmem %s0, %s163
        %s165 = smul.u32 138, %s10
      $region28: #{decoder_forward.7} parent=23 // pred_fallthru
        _
      // Predicated region
      $region29: #{decoder_forward.7} parent=23 // pred_check
        %p166 = pneg %p58
      $region30: #{decoder_forward.7} parent=23 // pred_check_branch
        %168 = sbr.rel (%p166) target = $region32
      $region31: #{decoder_forward.7} parent=23 // pred_region
        %s169 = sadd.s32 %s10, 1
        %s170 = smul.u32 138, %s169
        %p171 = scmp.lt.s32.totalorder %s170, 413
        %s172 = scalar_select %p171, %s170, 413
        %s173 = smul.addr %s172, 8
        %s174 = scalar_lea.vmem %s1, %s173
        %s175 = sadd.s32 %s10, 1
        %s176 = smul.u32 138, %s175
      $region32: #{decoder_forward.7} parent=23 // pred_fallthru
        _
    $region24: #{decoder_forward.7} parent=5 // pred_fallthru
      _
    %p177 = scmp.le.s32.totalorder 1, %s10
    %p178 = scmp.lt.s32.totalorder %s10, 3
    %p179 = pnand %p177, %p178
    %p180 = pneg %p179
    // Predicated region
    $region33: #{decoder_forward.7} parent=5 // pred_check
      _
    $region34: #{decoder_forward.7} parent=5 // pred_check_branch
      %182 = sbr.rel (%p179) target = $region36
    $region35: #{decoder_forward.7} parent=5 // pred_region
      %s183 = ssub.s32 %s10, 1
      %s184 = smul.u32 138, %s15
      %p185 = scmp.lt.s32.totalorder %s184, 413
      %s186 = scalar_select %p185, %s184, 413
      %s187 = smul.addr %s186, 8
      %s188 = scalar_lea.vmem %s0, %s187
      %p189 = pneg %p36
      %p190 = pneg %p33
      %s191 = sadd.s32 %s15, 1
      %s192 = smul.u32 138, %s191
      %p193 = scmp.lt.s32.totalorder %s192, 413
      %s194 = scalar_select %p193, %s192, 413
      %s195 = smul.addr %s194, 8
      %s196 = scalar_lea.vmem %s1, %s195
      %p197 = pneg %p64
      %p198 = pneg %p61
      %p199 = pneg %p85
      %p200 = pneg %p82
      %p201 = pneg %p106
      %p202 = pneg %p103
      %p203 = pneg %p132
      %p204 = pneg %p129
      %s205 = smul.u32 138, %s15
      %p206 = scmp.lt.s32.totalorder %s205, 275
      %s207 = scalar_select %p206, %s205, 275
      %s208 = smul.addr %s207, 8
      %s209 = scalar_lea.vmem %s4, %s208
      %s210 = smul.u32 138, %s15
      %p211 = scmp.lt.s32.totalorder %s210, 413
      %s212 = scalar_select %p211, %s210, 413
      %s213 = smul.addr %s212, 8
      %s214 = scalar_lea.vmem %s0, %s213
      %s215 = smul.u32 138, %s15
      %s216 = sadd.s32 %s15, 1
      %s217 = smul.u32 138, %s216
      %p218 = scmp.lt.s32.totalorder %s217, 413
      %s219 = scalar_select %p218, %s217, 413
      %s220 = smul.addr %s219, 8
      %s221 = scalar_lea.vmem %s1, %s220
      %s222 = sadd.s32 %s15, 1
      %s223 = smul.u32 138, %s222
      %s224 = smul.u32 138, %s15
      %p225 = scmp.lt.s32.totalorder %s224, 275
      %s226 = scalar_select %p225, %s224, 275
      %s227 = smul.addr %s226, 8
      %s228 = scalar_lea.vmem %s4, %s227
      %s229 = smul.u32 138, %s15
      %v231 = vld [vmem:[%s214] sm:$0xff]
      %v232 = vld [vmem:[%s214 + $0x8] sm:$0xff]
      %v233 = vld [vmem:[%s214 + $0x10] sm:$0xff]
      %v234 = vld [vmem:[%s214 + $0x18] sm:$0xff]
      %v235 = vld [vmem:[%s214 + $0x20] sm:$0xff]
      %v236 = vld [vmem:[%s214 + $0x28] sm:$0xff]
      %v237 = vld [vmem:[%s214 + $0x30] sm:$0xff]
      %v238 = vld [vmem:[%s214 + $0x38] sm:$0xff]
      %v239 = vld [vmem:[%s214 + $0x40] sm:$0xff]
      %v240 = vld [vmem:[%s214 + $0x48] sm:$0xff]
      %v241 = vld [vmem:[%s214 + $0x50] sm:$0xff]
      %v242 = vld [vmem:[%s214 + $0x58] sm:$0xff]
      %v243 = vld [vmem:[%s214 + $0x60] sm:$0xff]
      %v244 = vld [vmem:[%s214 + $0x68] sm:$0xff]
      %v245 = vld [vmem:[%s214 + $0x70] sm:$0xff]
      %v246 = vld [vmem:[%s214 + $0x78] sm:$0xff]
      %v247 = vld [vmem:[%s214 + $0x80] sm:$0xff]
      %v248 = vld [vmem:[%s214 + $0x88] sm:$0xff]
      %v249 = vld [vmem:[%s214 + $0x90] sm:$0xff]
      %v250 = vld [vmem:[%s214 + $0x98] sm:$0xff]
      %v251 = vld [vmem:[%s214 + $0xa0] sm:$0xff]
      %v252 = vld [vmem:[%s214 + $0xa8] sm:$0xff]
      %v253 = vld [vmem:[%s214 + $0xb0] sm:$0xff]
      %v254 = vld [vmem:[%s214 + $0xb8] sm:$0xff]
      %v255 = vld [vmem:[%s214 + $0xc0] sm:$0xff]
      %v256 = vld [vmem:[%s214 + $0xc8] sm:$0xff]
      %v257 = vld [vmem:[%s214 + $0xd0] sm:$0xff]
      %v258 = vld [vmem:[%s214 + $0xd8] sm:$0xff]
      %v259 = vld [vmem:[%s214 + $0xe0] sm:$0xff]
      %v260 = vld [vmem:[%s214 + $0xe8] sm:$0xff]
      %v261 = vld [vmem:[%s214 + $0xf0] sm:$0xff]
      %v262 = vld [vmem:[%s214 + $0xf8] sm:$0xff]
      %v263 = vld [vmem:[%s214 + $0x100] sm:$0xff]
      %v264 = vld [vmem:[%s214 + $0x108] sm:$0xff]
      %v265 = vld [vmem:[%s214 + $0x110] sm:$0xff]
      %v266 = vld [vmem:[%s214 + $0x118] sm:$0xff]
      %v267 = vld [vmem:[%s214 + $0x120] sm:$0xff]
      %v268 = vld [vmem:[%s214 + $0x128] sm:$0xff]
      %v269 = vld [vmem:[%s214 + $0x130] sm:$0xff]
      %v270 = vld [vmem:[%s214 + $0x138] sm:$0xff]
      %v271 = vld [vmem:[%s214 + $0x140] sm:$0xff]
      %v272 = vld [vmem:[%s214 + $0x148] sm:$0xff]
      %v273 = vld [vmem:[%s214 + $0x150] sm:$0xff]
      %v274 = vld [vmem:[%s214 + $0x158] sm:$0xff]
      %v275 = vld [vmem:[%s214 + $0x160] sm:$0xff]
      %v276 = vld [vmem:[%s214 + $0x168] sm:$0xff]
      %v277 = vld [vmem:[%s214 + $0x170] sm:$0xff]
      %v278 = vld [vmem:[%s214 + $0x178] sm:$0xff]
      %v279 = vld [vmem:[%s214 + $0x180] sm:$0xff]
      %v280 = vld [vmem:[%s214 + $0x188] sm:$0xff]
      %v281 = vld [vmem:[%s214 + $0x190] sm:$0xff]
      %v282 = vld [vmem:[%s214 + $0x198] sm:$0xff]
      %v283 = vld [vmem:[%s214 + $0x1a0] sm:$0xff]
      %v284 = vld [vmem:[%s214 + $0x1a8] sm:$0xff]
      %v285 = vld [vmem:[%s214 + $0x1b0] sm:$0xff]
      %v286 = vld [vmem:[%s214 + $0x1b8] sm:$0xff]
      %v287 = vld [vmem:[%s214 + $0x1c0] sm:$0xff]
      %v288 = vld [vmem:[%s214 + $0x1c8] sm:$0xff]
      %v289 = vld [vmem:[%s214 + $0x1d0] sm:$0xff]
      %v290 = vld [vmem:[%s214 + $0x1d8] sm:$0xff]
      %v291 = vld [vmem:[%s214 + $0x1e0] sm:$0xff]
      %v292 = vld [vmem:[%s214 + $0x1e8] sm:$0xff]
      %v293 = vld [vmem:[%s214 + $0x1f0] sm:$0xff]
      %v294 = vld [vmem:[%s214 + $0x1f8] sm:$0xff]
      %v295 = vld [vmem:[%s214 + $0x200] sm:$0xff]
      %v296 = vld [vmem:[%s214 + $0x208] sm:$0xff]
      %v297 = vld [vmem:[%s214 + $0x210] sm:$0xff]
      %v298 = vld [vmem:[%s214 + $0x218] sm:$0xff]
      %v299 = vld [vmem:[%s214 + $0x220] sm:$0xff]
      %v300 = vld [vmem:[%s214 + $0x228] sm:$0xff]
      %v301 = vld [vmem:[%s214 + $0x230] sm:$0xff]
      %v302 = vld [vmem:[%s214 + $0x238] sm:$0xff]
      %v303 = vld [vmem:[%s214 + $0x240] sm:$0xff]
      %v304 = vld [vmem:[%s214 + $0x248] sm:$0xff]
      %v305 = vld [vmem:[%s214 + $0x250] sm:$0xff]
      %v306 = vld [vmem:[%s214 + $0x258] sm:$0xff]
      %v307 = vld [vmem:[%s214 + $0x260] sm:$0xff]
      %v308 = vld [vmem:[%s214 + $0x268] sm:$0xff]
      %v309 = vld [vmem:[%s214 + $0x270] sm:$0xff]
      %v310 = vld [vmem:[%s214 + $0x278] sm:$0xff]
      %v311 = vld [vmem:[%s214 + $0x280] sm:$0xff]
      %v312 = vld [vmem:[%s214 + $0x288] sm:$0xff]
      %v313 = vld [vmem:[%s214 + $0x290] sm:$0xff]
      %v314 = vld [vmem:[%s214 + $0x298] sm:$0xff]
      %v315 = vld [vmem:[%s214 + $0x2a0] sm:$0xff]
      %v316 = vld [vmem:[%s214 + $0x2a8] sm:$0xff]
      %v317 = vld [vmem:[%s214 + $0x2b0] sm:$0xff]
      %v318 = vld [vmem:[%s214 + $0x2b8] sm:$0xff]
      %v319 = vld [vmem:[%s214 + $0x2c0] sm:$0xff]
      %v320 = vld [vmem:[%s214 + $0x2c8] sm:$0xff]
      %v321 = vld [vmem:[%s214 + $0x2d0] sm:$0xff]
      %v322 = vld [vmem:[%s214 + $0x2d8] sm:$0xff]
      %v323 = vld [vmem:[%s214 + $0x2e0] sm:$0xff]
      %v324 = vld [vmem:[%s214 + $0x2e8] sm:$0xff]
      %v325 = vld [vmem:[%s214 + $0x2f0] sm:$0xff]
      %v326 = vld [vmem:[%s214 + $0x2f8] sm:$0xff]
      %v327 = vld [vmem:[%s214 + $0x300] sm:$0xff]
      %v328 = vld [vmem:[%s214 + $0x308] sm:$0xff]
      %v329 = vld [vmem:[%s214 + $0x310] sm:$0xff]
      %v330 = vld [vmem:[%s214 + $0x318] sm:$0xff]
      %v331 = vld [vmem:[%s214 + $0x320] sm:$0xff]
      %v332 = vld [vmem:[%s214 + $0x328] sm:$0xff]
      %v333 = vld [vmem:[%s214 + $0x330] sm:$0xff]
      %v334 = vld [vmem:[%s214 + $0x338] sm:$0xff]
      %v335 = vld [vmem:[%s214 + $0x340] sm:$0xff]
      %v336 = vld [vmem:[%s214 + $0x348] sm:$0xff]
      %v337 = vld [vmem:[%s214 + $0x350] sm:$0xff]
      %v338 = vld [vmem:[%s214 + $0x358] sm:$0xff]
      %v339 = vld [vmem:[%s214 + $0x360] sm:$0xff]
      %v340 = vld [vmem:[%s214 + $0x368] sm:$0xff]
      %v341 = vld [vmem:[%s214 + $0x370] sm:$0xff]
      %v342 = vld [vmem:[%s214 + $0x378] sm:$0xff]
      %v343 = vld [vmem:[%s214 + $0x380] sm:$0xff]
      %v344 = vld [vmem:[%s214 + $0x388] sm:$0xff]
      %v345 = vld [vmem:[%s214 + $0x390] sm:$0xff]
      %v346 = vld [vmem:[%s214 + $0x398] sm:$0xff]
      %v347 = vld [vmem:[%s214 + $0x3a0] sm:$0xff]
      %v348 = vld [vmem:[%s214 + $0x3a8] sm:$0xff]
      %v349 = vld [vmem:[%s214 + $0x3b0] sm:$0xff]
      %v350 = vld [vmem:[%s214 + $0x3b8] sm:$0xff]
      %v351 = vld [vmem:[%s214 + $0x3c0] sm:$0xff]
      %v352 = vld [vmem:[%s214 + $0x3c8] sm:$0xff]
      %v353 = vld [vmem:[%s214 + $0x3d0] sm:$0xff]
      %v354 = vld [vmem:[%s214 + $0x3d8] sm:$0xff]
      %v355 = vld [vmem:[%s214 + $0x3e0] sm:$0xff]
      %v356 = vld [vmem:[%s214 + $0x3e8] sm:$0xff]
      %v357 = vld [vmem:[%s214 + $0x3f0] sm:$0xff]
      %v358 = vld [vmem:[%s214 + $0x3f8] sm:$0xff]
      %v359 = vld [vmem:[%s214 + $0x400] sm:$0xff]
      %v360 = vld [vmem:[%s214 + $0x408] sm:$0xff]
      %v361 = vld [vmem:[%s214 + $0x410] sm:$0xff]
      %v362 = vld [vmem:[%s214 + $0x418] sm:$0xff]
      %v363 = vld [vmem:[%s214 + $0x420] sm:$0xff]
      %v364 = vld [vmem:[%s214 + $0x428] sm:$0xff]
      %v365 = vld [vmem:[%s214 + $0x430] sm:$0xff]
      %v366 = vld [vmem:[%s214 + $0x438] sm:$0xff]
      %v367 = vld [vmem:[%s214 + $0x440] sm:$0xff]
      %v368 = vld [vmem:[%s214 + $0x448] sm:$0xff]
      %v369 = vld [vmem:[%s221] sm:$0xff]
      %v370 = vld [vmem:[%s221 + $0x8] sm:$0xff]
      %v371 = vld [vmem:[%s221 + $0x10] sm:$0xff]
      %v372 = vld [vmem:[%s221 + $0x18] sm:$0xff]
      %v373 = vld [vmem:[%s221 + $0x20] sm:$0xff]
      %v374 = vpack.c.bf16 %v232, %v231
      %v375 = vpack.c.bf16 %v234, %v233
      %v376 = vpack.c.bf16 %v236, %v235
      %v377 = vpack.c.bf16 %v238, %v237
      %v378 = vpack.c.bf16 %v240, %v239
      %v379 = vpack.c.bf16 %v242, %v241
      %v380 = vpack.c.bf16 %v244, %v243
      %v381 = vpack.c.bf16 %v246, %v245
      %v382 = vpack.c.bf16 %v248, %v247
      %v383 = vpack.c.bf16 %v250, %v249
      %v384 = vpack.c.bf16 %v252, %v251
      %v385 = vpack.c.bf16 %v254, %v253
      %v386 = vpack.c.bf16 %v256, %v255
      %v387 = vpack.c.bf16 %v258, %v257
      %v388 = vpack.c.bf16 %v260, %v259
      %v389 = vpack.c.bf16 %v262, %v261
      %v390 = vpack.c.bf16 %v264, %v263
      %v391 = vpack.c.bf16 %v266, %v265
      %v392 = vpack.c.bf16 %v268, %v267
      %v393 = vpack.c.bf16 %v270, %v269
      %v394 = vpack.c.bf16 %v272, %v271
      %v395 = vpack.c.bf16 %v274, %v273
      %v396 = vpack.c.bf16 %v276, %v275
      %v397 = vpack.c.bf16 %v278, %v277
      %v398 = vpack.c.bf16 %v280, %v279
      %v399 = vpack.c.bf16 %v282, %v281
      %v400 = vpack.c.bf16 %v284, %v283
      %v401 = vpack.c.bf16 %v286, %v285
      %v402 = vpack.c.bf16 %v288, %v287
      %v403 = vpack.c.bf16 %v290, %v289
      %v404 = vpack.c.bf16 %v292, %v291
      %v405 = vpack.c.bf16 %v294, %v293
      %v406 = vpack.c.bf16 %v296, %v295
      %v407 = vpack.c.bf16 %v298, %v297
      %v408 = vpack.c.bf16 %v300, %v299
      %v409 = vpack.c.bf16 %v302, %v301
      %v410 = vpack.c.bf16 %v304, %v303
      %v411 = vpack.c.bf16 %v306, %v305
      %v412 = vpack.c.bf16 %v308, %v307
      %v413 = vpack.c.bf16 %v310, %v309
      %v414 = vpack.c.bf16 %v312, %v311
      %v415 = vpack.c.bf16 %v314, %v313
      %v416 = vpack.c.bf16 %v316, %v315
      %v417 = vpack.c.bf16 %v318, %v317
      %v418 = vpack.c.bf16 %v320, %v319
      %v419 = vpack.c.bf16 %v322, %v321
      %v420 = vpack.c.bf16 %v324, %v323
      %v421 = vpack.c.bf16 %v326, %v325
      %v422 = vpack.c.bf16 %v328, %v327
      %v423 = vpack.c.bf16 %v330, %v329
      %v424 = vpack.c.bf16 %v332, %v331
      %v425 = vpack.c.bf16 %v334, %v333
      %v426 = vpack.c.bf16 %v336, %v335
      %v427 = vpack.c.bf16 %v338, %v337
      %v428 = vpack.c.bf16 %v340, %v339
      %v429 = vpack.c.bf16 %v342, %v341
      %v430 = vpack.c.bf16 %v344, %v343
      %v431 = vpack.c.bf16 %v346, %v345
      %v432 = vpack.c.bf16 %v348, %v347
      %v433 = vpack.c.bf16 %v350, %v349
      %v434 = vpack.c.bf16 %v352, %v351
      %v435 = vpack.c.bf16 %v354, %v353
      %v436 = vpack.c.bf16 %v356, %v355
      %v437 = vpack.c.bf16 %v358, %v357
      %v438 = vpack.c.bf16 %v360, %v359
      %v439 = vpack.c.bf16 %v362, %v361
      %v440 = vpack.c.bf16 %v364, %v363
      %v441 = vpack.c.bf16 %v366, %v365
      %v442 = vpack.c.bf16 %v368, %v367
      %v443 = vld [vmem:[%s2] sm:$0xf]
      %v444 = vld [vmem:[%s2 + $0x4] sm:$0xf]
      %v445 = vpack.c.bf16 %v369, %v369
      %s446 = scalar_lea.vmem %s2, 8
      %v447 = vld [vmem:[%s446] sm:$0xf]
      %v448 = vld [vmem:[%s446 + $0x4] sm:$0xf]
      %vm449 = vsmask.f32 7424
      %v451 = vshrl.u32 %v374, 16
      %v453 = vshll.u32 %v374, 16
      %v455 = vrot.slane %v453, 1
      %v456 = vor.u32 %v451, %v455
      %v458 = vshll.u32 %v375, 16
      %v460 = vrot.slane %v458, 1
      %v461 = vsel %vm449, %v456, %v460
      %v462 = vshrl.u32 %v375, 16
      %v464 = vor.u32 %v462, %v460
      %v466 = vshll.u32 %v376, 16
      %v468 = vrot.slane %v466, 1
      %v469 = vsel %vm449, %v464, %v468
      %v470 = vshrl.u32 %v376, 16
      %v472 = vor.u32 %v470, %v468
      %v474 = vshll.u32 %v377, 16
      %v476 = vrot.slane %v474, 1
      %v477 = vsel %vm449, %v472, %v476
      %v478 = vshrl.u32 %v377, 16
      %v480 = vor.u32 %v478, %v476
      %v482 = vshll.u32 %v378, 16
      %v484 = vrot.slane %v482, 1
      %v485 = vsel %vm449, %v480, %v484
      %v486 = vshrl.u32 %v378, 16
      %v488 = vor.u32 %v486, %v484
      %v490 = vshll.u32 %v379, 16
      %v492 = vrot.slane %v490, 1
      %v493 = vsel %vm449, %v488, %v492
      %v494 = vshrl.u32 %v379, 16
      %v496 = vor.u32 %v494, %v492
      %v498 = vshll.u32 %v380, 16
      %v500 = vrot.slane %v498, 1
      %v501 = vsel %vm449, %v496, %v500
      %v502 = vshrl.u32 %v380, 16
      %v504 = vor.u32 %v502, %v500
      %v506 = vshll.u32 %v381, 16
      %v508 = vrot.slane %v506, 1
      %v509 = vsel %vm449, %v504, %v508
      %v510 = vshrl.u32 %v381, 16
      %v512 = vor.u32 %v510, %v508
      %v514 = vshll.u32 %v382, 16
      %v516 = vrot.slane %v514, 1
      %v517 = vsel %vm449, %v512, %v516
      %v518 = vshrl.u32 %v382, 16
      %v520 = vor.u32 %v518, %v516
      %v522 = vshll.u32 %v383, 16
      %v524 = vrot.slane %v522, 1
      %v525 = vsel %vm449, %v520, %v524
      %v526 = vshrl.u32 %v383, 16
      %v528 = vor.u32 %v526, %v524
      %v530 = vshll.u32 %v384, 16
      %v532 = vrot.slane %v530, 1
      %v533 = vsel %vm449, %v528, %v532
      %v534 = vshrl.u32 %v384, 16
      %v536 = vor.u32 %v534, %v532
      %v538 = vshll.u32 %v385, 16
      %v540 = vrot.slane %v538, 1
      %v541 = vsel %vm449, %v536, %v540
      %v542 = vshrl.u32 %v385, 16
      %v544 = vor.u32 %v542, %v540
      %v546 = vshll.u32 %v386, 16
      %v548 = vrot.slane %v546, 1
      %v549 = vsel %vm449, %v544, %v548
      %v550 = vshrl.u32 %v386, 16
      %v552 = vor.u32 %v550, %v548
      %v554 = vshll.u32 %v387, 16
      %v556 = vrot.slane %v554, 1
      %v557 = vsel %vm449, %v552, %v556
      %v558 = vshrl.u32 %v387, 16
      %v560 = vor.u32 %v558, %v556
      %v562 = vshll.u32 %v388, 16
      %v564 = vrot.slane %v562, 1
      %v565 = vsel %vm449, %v560, %v564
      %v566 = vshrl.u32 %v388, 16
      %v568 = vor.u32 %v566, %v564
      %v570 = vshll.u32 %v389, 16
      %v572 = vrot.slane %v570, 1
      %v573 = vsel %vm449, %v568, %v572
      %v574 = vshrl.u32 %v389, 16
      %v576 = vor.u32 %v574, %v572
      %v578 = vshll.u32 %v390, 16
      %v580 = vrot.slane %v578, 1
      %v581 = vsel %vm449, %v576, %v580
      %v582 = vshrl.u32 %v390, 16
      %v584 = vor.u32 %v582, %v580
      %v586 = vshll.u32 %v391, 16
      %v588 = vrot.slane %v586, 1
      %v589 = vsel %vm449, %v584, %v588
      %v590 = vshrl.u32 %v391, 16
      %v592 = vor.u32 %v590, %v588
      %v594 = vshll.u32 %v392, 16
      %v596 = vrot.slane %v594, 1
      %v597 = vsel %vm449, %v592, %v596
      %v598 = vshrl.u32 %v392, 16
      %v600 = vor.u32 %v598, %v596
      %v602 = vshll.u32 %v393, 16
      %v604 = vrot.slane %v602, 1
      %v605 = vsel %vm449, %v600, %v604
      %v606 = vshrl.u32 %v393, 16
      %v608 = vor.u32 %v606, %v604
      %v610 = vshll.u32 %v394, 16
      %v612 = vrot.slane %v610, 1
      %v613 = vsel %vm449, %v608, %v612
      %v614 = vshrl.u32 %v394, 16
      %v616 = vor.u32 %v614, %v612
      %v618 = vshll.u32 %v395, 16
      %v620 = vrot.slane %v618, 1
      %v621 = vsel %vm449, %v616, %v620
      %v622 = vshrl.u32 %v395, 16
      %v624 = vor.u32 %v622, %v620
      %v626 = vshll.u32 %v396, 16
      %v628 = vrot.slane %v626, 1
      %v629 = vsel %vm449, %v624, %v628
      %v630 = vshrl.u32 %v396, 16
      %v632 = vor.u32 %v630, %v628
      %v634 = vshll.u32 %v397, 16
      %v636 = vrot.slane %v634, 1
      %v637 = vsel %vm449, %v632, %v636
      %v638 = vshrl.u32 %v397, 16
      %v640 = vor.u32 %v638, %v636
      %v642 = vshll.u32 %v398, 16
      %v644 = vrot.slane %v642, 1
      %v645 = vsel %vm449, %v640, %v644
      %v646 = vshrl.u32 %v398, 16
      %v648 = vor.u32 %v646, %v644
      %v650 = vshll.u32 %v399, 16
      %v652 = vrot.slane %v650, 1
      %v653 = vsel %vm449, %v648, %v652
      %v654 = vshrl.u32 %v399, 16
      %v656 = vor.u32 %v654, %v652
      %v658 = vshll.u32 %v400, 16
      %v660 = vrot.slane %v658, 1
      %v661 = vsel %vm449, %v656, %v660
      %v662 = vshrl.u32 %v400, 16
      %v664 = vor.u32 %v662, %v660
      %v666 = vshll.u32 %v401, 16
      %v668 = vrot.slane %v666, 1
      %v669 = vsel %vm449, %v664, %v668
      %v670 = vshrl.u32 %v401, 16
      %v672 = vor.u32 %v670, %v668
      %v674 = vshll.u32 %v402, 16
      %v676 = vrot.slane %v674, 1
      %v677 = vsel %vm449, %v672, %v676
      %v678 = vshrl.u32 %v402, 16
      %v680 = vor.u32 %v678, %v676
      %v682 = vshll.u32 %v403, 16
      %v684 = vrot.slane %v682, 1
      %v685 = vsel %vm449, %v680, %v684
      %v686 = vshrl.u32 %v403, 16
      %v688 = vor.u32 %v686, %v684
      %v690 = vshll.u32 %v404, 16
      %v692 = vrot.slane %v690, 1
      %v693 = vsel %vm449, %v688, %v692
      %v694 = vshrl.u32 %v404, 16
      %v696 = vor.u32 %v694, %v692
      %v698 = vshll.u32 %v405, 16
      %v700 = vrot.slane %v698, 1
      %v701 = vsel %vm449, %v696, %v700
      %v702 = vshrl.u32 %v405, 16
      %v704 = vor.u32 %v702, %v700
      %v706 = vshll.u32 %v406, 16
      %v708 = vrot.slane %v706, 1
      %v709 = vsel %vm449, %v704, %v708
      %v710 = vshrl.u32 %v406, 16
      %v712 = vor.u32 %v710, %v708
      %v714 = vshll.u32 %v407, 16
      %v716 = vrot.slane %v714, 1
      %v717 = vsel %vm449, %v712, %v716
      %v718 = vshrl.u32 %v407, 16
      %v720 = vor.u32 %v718, %v716
      %v722 = vshll.u32 %v408, 16
      %v724 = vrot.slane %v722, 1
      %v725 = vsel %vm449, %v720, %v724
      %v726 = vshrl.u32 %v408, 16
      %v728 = vor.u32 %v726, %v724
      %v730 = vshll.u32 %v409, 16
      %v732 = vrot.slane %v730, 1
      %v733 = vsel %vm449, %v728, %v732
      %v734 = vshrl.u32 %v409, 16
      %v736 = vor.u32 %v734, %v732
      %v738 = vshll.u32 %v410, 16
      %v740 = vrot.slane %v738, 1
      %v741 = vsel %vm449, %v736, %v740
      %v742 = vshrl.u32 %v410, 16
      %v744 = vor.u32 %v742, %v740
      %v746 = vshll.u32 %v411, 16
      %v748 = vrot.slane %v746, 1
      %v749 = vsel %vm449, %v744, %v748
      %v750 = vshrl.u32 %v411, 16
      %v752 = vor.u32 %v750, %v748
      %v754 = vshll.u32 %v412, 16
      %v756 = vrot.slane %v754, 1
      %v757 = vsel %vm449, %v752, %v756
      %v758 = vshrl.u32 %v412, 16
      %v760 = vor.u32 %v758, %v756
      %v762 = vshll.u32 %v413, 16
      %v764 = vrot.slane %v762, 1
      %v765 = vsel %vm449, %v760, %v764
      %v766 = vshrl.u32 %v413, 16
      %v768 = vor.u32 %v766, %v764
      %v770 = vshll.u32 %v414, 16
      %v772 = vrot.slane %v770, 1
      %v773 = vsel %vm449, %v768, %v772
      %v774 = vshrl.u32 %v414, 16
      %v776 = vor.u32 %v774, %v772
      %v778 = vshll.u32 %v415, 16
      %v780 = vrot.slane %v778, 1
      %v781 = vsel %vm449, %v776, %v780
      %v782 = vshrl.u32 %v415, 16
      %v784 = vor.u32 %v782, %v780
      %v786 = vshll.u32 %v416, 16
      %v788 = vrot.slane %v786, 1
      %v789 = vsel %vm449, %v784, %v788
      %v790 = vshrl.u32 %v416, 16
      %v792 = vor.u32 %v790, %v788
      %v794 = vshll.u32 %v417, 16
      %v796 = vrot.slane %v794, 1
      %v797 = vsel %vm449, %v792, %v796
      %v798 = vshrl.u32 %v417, 16
      %v800 = vor.u32 %v798, %v796
      %v802 = vshll.u32 %v418, 16
      %v804 = vrot.slane %v802, 1
      %v805 = vsel %vm449, %v800, %v804
      %v806 = vshrl.u32 %v418, 16
      %v808 = vor.u32 %v806, %v804
      %v810 = vshll.u32 %v419, 16
      %v812 = vrot.slane %v810, 1
      %v813 = vsel %vm449, %v808, %v812
      %v814 = vshrl.u32 %v419, 16
      %v816 = vor.u32 %v814, %v812
      %v818 = vshll.u32 %v420, 16
      %v820 = vrot.slane %v818, 1
      %v821 = vsel %vm449, %v816, %v820
      %v822 = vshrl.u32 %v420, 16
      %v824 = vor.u32 %v822, %v820
      %v826 = vshll.u32 %v421, 16
      %v828 = vrot.slane %v826, 1
      %v829 = vsel %vm449, %v824, %v828
      %v830 = vshrl.u32 %v421, 16
      %v832 = vor.u32 %v830, %v828
      %v834 = vshll.u32 %v422, 16
      %v836 = vrot.slane %v834, 1
      %v837 = vsel %vm449, %v832, %v836
      %v838 = vshrl.u32 %v422, 16
      %v840 = vor.u32 %v838, %v836
      %v842 = vshll.u32 %v423, 16
      %v844 = vrot.slane %v842, 1
      %v845 = vsel %vm449, %v840, %v844
      %v846 = vshrl.u32 %v423, 16
      %v848 = vor.u32 %v846, %v844
      %v850 = vshll.u32 %v424, 16
      %v852 = vrot.slane %v850, 1
      %v853 = vsel %vm449, %v848, %v852
      %v854 = vshrl.u32 %v424, 16
      %v856 = vor.u32 %v854, %v852
      %v858 = vshll.u32 %v425, 16
      %v860 = vrot.slane %v858, 1
      %v861 = vsel %vm449, %v856, %v860
      %v862 = vshrl.u32 %v425, 16
      %v864 = vor.u32 %v862, %v860
      %v866 = vshll.u32 %v426, 16
      %v868 = vrot.slane %v866, 1
      %v869 = vsel %vm449, %v864, %v868
      %v870 = vshrl.u32 %v426, 16
      %v872 = vor.u32 %v870, %v868
      %v874 = vshll.u32 %v427, 16
      %v876 = vrot.slane %v874, 1
      %v877 = vsel %vm449, %v872, %v876
      %v878 = vshrl.u32 %v427, 16
      %v880 = vor.u32 %v878, %v876
      %v882 = vshll.u32 %v428, 16
      %v884 = vrot.slane %v882, 1
      %v885 = vsel %vm449, %v880, %v884
      %v886 = vshrl.u32 %v428, 16
      %v888 = vor.u32 %v886, %v884
      %v890 = vshll.u32 %v429, 16
      %v892 = vrot.slane %v890, 1
      %v893 = vsel %vm449, %v888, %v892
      %v894 = vshrl.u32 %v429, 16
      %v896 = vor.u32 %v894, %v892
      %v898 = vshll.u32 %v430, 16
      %v900 = vrot.slane %v898, 1
      %v901 = vsel %vm449, %v896, %v900
      %v902 = vshrl.u32 %v430, 16
      %v904 = vor.u32 %v902, %v900
      %v906 = vshll.u32 %v431, 16
      %v908 = vrot.slane %v906, 1
      %v909 = vsel %vm449, %v904, %v908
      %v910 = vshrl.u32 %v431, 16
      %v912 = vor.u32 %v910, %v908
      %v914 = vshll.u32 %v432, 16
      %v916 = vrot.slane %v914, 1
      %v917 = vsel %vm449, %v912, %v916
      %v918 = vshrl.u32 %v432, 16
      %v920 = vor.u32 %v918, %v916
      %v922 = vshll.u32 %v433, 16
      %v924 = vrot.slane %v922, 1
      %v925 = vsel %vm449, %v920, %v924
      %v926 = vshrl.u32 %v433, 16
      %v928 = vor.u32 %v926, %v924
      %v930 = vshll.u32 %v434, 16
      %v932 = vrot.slane %v930, 1
      %v933 = vsel %vm449, %v928, %v932
      %v934 = vshrl.u32 %v434, 16
      %v936 = vor.u32 %v934, %v932
      %v938 = vshll.u32 %v435, 16
      %v940 = vrot.slane %v938, 1
      %v941 = vsel %vm449, %v936, %v940
      %v942 = vshrl.u32 %v435, 16
      %v944 = vor.u32 %v942, %v940
      %v946 = vshll.u32 %v436, 16
      %v948 = vrot.slane %v946, 1
      %v949 = vsel %vm449, %v944, %v948
      %v950 = vshrl.u32 %v436, 16
      %v952 = vor.u32 %v950, %v948
      %v954 = vshll.u32 %v437, 16
      %v956 = vrot.slane %v954, 1
      %v957 = vsel %vm449, %v952, %v956
      %v958 = vshrl.u32 %v437, 16
      %v960 = vor.u32 %v958, %v956
      %v962 = vshll.u32 %v438, 16
      %v964 = vrot.slane %v962, 1
      %v965 = vsel %vm449, %v960, %v964
      %v966 = vshrl.u32 %v438, 16
      %v968 = vor.u32 %v966, %v964
      %v970 = vshll.u32 %v439, 16
      %v972 = vrot.slane %v970, 1
      %v973 = vsel %vm449, %v968, %v972
      %v974 = vshrl.u32 %v439, 16
      %v976 = vor.u32 %v974, %v972
      %v978 = vshll.u32 %v440, 16
      %v980 = vrot.slane %v978, 1
      %v981 = vsel %vm449, %v976, %v980
      %v982 = vshrl.u32 %v440, 16
      %v984 = vor.u32 %v982, %v980
      %v986 = vshll.u32 %v441, 16
      %v988 = vrot.slane %v986, 1
      %v989 = vsel %vm449, %v984, %v988
      %v990 = vshrl.u32 %v441, 16
      %v992 = vor.u32 %v990, %v988
      %v994 = vshll.u32 %v442, 16
      %v996 = vrot.slane %v994, 1
      %v997 = vsel %vm449, %v992, %v996
      %v998 = vshrl.u32 %v442, 16
      %v1000 = vor.u32 %v998, %v996
      %v1002 = vshll.u32 %v445, 16
      %v1004 = vrot.slane %v1002, 1
      %v1005 = vsel %vm449, %v1000, %v1004
      %v1008 = vunpack.c.l.b16 %v447
      %v1009 = vunpack.c.l.b16 %v448
      %v1010 = vpack.c.b16 %v1009, %v1008
      %vm1012 = vcmask 130048
      %v1014 = vsel %vm1012, %v461, 0
      %v1017 = vsel %vm1012, %v469, 0
      %v1020 = vsel %vm1012, %v477, 0
      %v1023 = vsel %vm1012, %v485, 0
      %v1026 = vsel %vm1012, %v493, 0
      %v1029 = vsel %vm1012, %v501, 0
      %v1032 = vsel %vm1012, %v509, 0
      %v1035 = vsel %vm1012, %v517, 0
      %v1038 = vsel %vm1012, %v525, 0
      %v1041 = vsel %vm1012, %v533, 0
      %v1044 = vsel %vm1012, %v541, 0
      %v1047 = vsel %vm1012, %v549, 0
      %v1050 = vsel %vm1012, %v557, 0
      %v1053 = vsel %vm1012, %v565, 0
      %v1056 = vsel %vm1012, %v573, 0
      %v1059 = vsel %vm1012, %v581, 0
      %v1062 = vsel %vm1012, %v589, 0
      %v1065 = vsel %vm1012, %v597, 0
      %v1068 = vsel %vm1012, %v605, 0
      %v1071 = vsel %vm1012, %v613, 0
      %v1074 = vsel %vm1012, %v621, 0
      %v1077 = vsel %vm1012, %v629, 0
      %v1080 = vsel %vm1012, %v637, 0
      %v1083 = vsel %vm1012, %v645, 0
      %v1086 = vsel %vm1012, %v653, 0
      %v1089 = vsel %vm1012, %v661, 0
      %v1092 = vsel %vm1012, %v669, 0
      %v1095 = vsel %vm1012, %v677, 0
      %v1098 = vsel %vm1012, %v685, 0
      %v1101 = vsel %vm1012, %v693, 0
      %v1104 = vsel %vm1012, %v701, 0
      %v1107 = vsel %vm1012, %v709, 0
      %v1110 = vsel %vm1012, %v717, 0
      %v1113 = vsel %vm1012, %v725, 0
      %v1116 = vsel %vm1012, %v733, 0
      %v1119 = vsel %vm1012, %v741, 0
      %v1122 = vsel %vm1012, %v749, 0
      %v1125 = vsel %vm1012, %v757, 0
      %v1128 = vsel %vm1012, %v765, 0
      %v1131 = vsel %vm1012, %v773, 0
      %v1134 = vsel %vm1012, %v781, 0
      %v1137 = vsel %vm1012, %v789, 0
      %v1140 = vsel %vm1012, %v797, 0
      %v1143 = vsel %vm1012, %v805, 0
      %v1146 = vsel %vm1012, %v813, 0
      %v1149 = vsel %vm1012, %v821, 0
      %v1152 = vsel %vm1012, %v829, 0
      %v1155 = vsel %vm1012, %v837, 0
      %v1158 = vsel %vm1012, %v845, 0
      %v1161 = vsel %vm1012, %v853, 0
      %v1164 = vsel %vm1012, %v861, 0
      %v1167 = vsel %vm1012, %v869, 0
      %v1170 = vsel %vm1012, %v877, 0
      %v1173 = vsel %vm1012, %v885, 0
      %v1176 = vsel %vm1012, %v893, 0
      %v1179 = vsel %vm1012, %v901, 0
      %v1182 = vsel %vm1012, %v909, 0
      %v1185 = vsel %vm1012, %v917, 0
      %v1188 = vsel %vm1012, %v925, 0
      %v1191 = vsel %vm1012, %v933, 0
      %v1194 = vsel %vm1012, %v941, 0
      %v1197 = vsel %vm1012, %v949, 0
      %v1200 = vsel %vm1012, %v957, 0
      %v1203 = vsel %vm1012, %v965, 0
      %v1206 = vsel %vm1012, %v973, 0
      %v1209 = vsel %vm1012, %v981, 0
      %v1212 = vsel %vm1012, %v989, 0
      %v1215 = vsel %vm1012, %v997, 0
      %v1218 = vsel %vm1012, %v1005, 0
      %1220 = vmatprep.subr.bf16.mxu0 0
      %1221 = vmatpush1.bf16.msra.mxu0 %v1010
      %1222 = vmatprep.subr.bf16.mxu0 0
      %1223 = vmatpush1.bf16.msra.mxu0 0
      %1224 = vmatprep.subr.bf16.mxu0 0
      %1225 = vmatpush1.bf16.msra.mxu0 0
      %1226 = vmatprep.subr.bf16.mxu0 0
      %1227 = vmatpush1.bf16.msra.mxu0 0
      %1228 = vmatprep.subr.bf16.mxu0 0
      %1229 = vmatpush1.bf16.msra.mxu0 0
      %1230 = vmatprep.subr.bf16.mxu0 0
      %1231 = vmatpush1.bf16.msra.mxu0 0
      %1232 = vmatprep.subr.bf16.mxu0 0
      %1233 = vmatpush1.bf16.msra.mxu0 0
      %1234 = vmatprep.subr.bf16.mxu0 0
      %1235 = vmatpush1.bf16.msra.mxu0 0
      %1236 = vmatprep.subr.bf16.mxu0 0
      %1237 = vmatpush1.bf16.msra.mxu0 0
      %1238 = vmatprep.subr.bf16.mxu0 0
      %1239 = vmatpush1.bf16.msra.mxu0 0
      %1240 = vmatprep.subr.bf16.mxu0 0
      %1241 = vmatpush1.bf16.msra.mxu0 0
      %1242 = vmatprep.subr.bf16.mxu0 0
      %1243 = vmatpush1.bf16.msra.mxu0 0
      %1244 = vmatprep.subr.bf16.mxu0 0
      %1245 = vmatpush1.bf16.msra.mxu0 0
      %1246 = vmatprep.subr.bf16.mxu0 0
      %1247 = vmatpush1.bf16.msra.mxu0 0
      %1248 = vmatprep.subr.bf16.mxu0 0
      %1249 = vmatpush1.bf16.msra.mxu0 0
      %1250 = vmatprep.subr.bf16.mxu0 0
      %1251 = vmatpush1.bf16.msra.mxu0 0
      %1252 = vmatprep.mubr.bf16.mxu0 0
      %1253 = vmatmul.mubr.bf16.gmra.mrb[0].mxu0 %v1014
      %v1254 = vpop.f32.mrb[0].mxu0
      %v1255 = vadd.f32 0.0, %v1254
      %v1256 = vpop.f32.mrb[0].mxu0
      %v1257 = vpop.f32.mrb[0].mxu0
      %v1258 = vadd.f32 0.0, %v1257
      %v1259 = vpop.f32.mrb[0].mxu0
      %1260 = vmatprep.mubr.bf16.mxu0 0
      %1261 = vmatmul.mubr.bf16.gmra.mrb[0].mxu0 %v1017
      %v1262 = vpop.f32.mrb[0].mxu0
      %v1263 = vadd.f32 0.0, %v1262
      %v1264 = vpop.f32.mrb[0].mxu0
      %v1265 = vpop.f32.mrb[0].mxu0
      %v1266 = vadd.f32 0.0, %v1265
      %v1267 = vpop.f32.mrb[0].mxu0
      %1268 = vmatprep.mubr.bf16.mxu0 0
      %1269 = vmatmul.mubr.bf16.gmra.mrb[0].mxu0 %v1020
      %v1270 = vpop.f32.mrb[0].mxu0
      %v1271 = vadd.f32 0.0, %v1270
      %v1272 = vpop.f32.mrb[0].mxu0
      %v1273 = vpop.f32.mrb[0].mxu0
      %v1274 = vadd.f32 0.0, %v1273
      %v1275 = vpop.f32.mrb[0].mxu0
      %1276 = vmatprep.mubr.bf16.mxu0 0
      %1277 = vmatmul.mubr.bf16.gmra.mrb[0].mxu0 %v1023
      %v1278 = vpop.f32.mrb[0].mxu0
      %v1279 = vadd.f32 0.0, %v1278
      %v1280 = vpop.f32.mrb[0].mxu0
      %v1281 = vpop.f32.mrb[0].mxu0
      %v1282 = vadd.f32 0.0, %v1281
      %v1283 = vpop.f32.mrb[0].mxu0
      %1284 = vmatprep.mubr.bf16.mxu0 0
      %1285 = vmatmul.mubr.bf16.gmra.mrb[0].mxu0 %v1026
      %v1286 = vpop.f32.mrb[0].mxu0
      %v1287 = vadd.f32 0.0, %v1286
      %v1288 = vpop.f32.mrb[0].mxu0
      %v1289 = vpop.f32.mrb[0].mxu0
      %v1290 = vadd.f32 0.0, %v1289
      %v1291 = vpop.f32.mrb[0].mxu0
      %1292 = vmatprep.mubr.bf16.mxu0 0
      %1293 = vmatmul.mubr.bf16.gmra.mrb[0].mxu0 %v1029
      %v1294 = vpop.f32.mrb[0].mxu0
      %v1295 = vadd.f32 0.0, %v1294
      %v1296 = vpop.f32.mrb[0].mxu0
      %v1297 = vpop.f32.mrb[0].mxu0
      %v1298 = vadd.f32 0.0, %v1297
      %v1299 = vpop.f32.mrb[0].mxu0
      %1300 = vmatprep.mubr.bf16.mxu0 0
      %1301 = vmatmul.mubr.bf16.gmra.mrb[0].mxu0 %v1032
      %v1302 = vpop.f32.mrb[0].mxu0
      %v1303 = vadd.f32 0.0, %v1302
      %v1304 = vpop.f32.mrb[0].mxu0
      %v1305 = vpop.f32.mrb[0].mxu0
      %v1306 = vadd.f32 0.0, %v1305
      %v1307 = vpop.f32.mrb[0].mxu0
      %1308 = vmatprep.mubr.bf16.mxu0 0
      %1309 = vmatmul.mubr.bf16.gmra.mrb[0].mxu0 %v1035
      %v1310 = vpop.f32.mrb[0].mxu0
      %v1311 = vadd.f32 0.0, %v1310
      %v1312 = vpop.f32.mrb[0].mxu0
      %v1313 = vpop.f32.mrb[0].mxu0
      %v1314 = vadd.f32 0.0, %v1313
      %v1315 = vpop.f32.mrb[0].mxu0
      %1316 = vmatprep.mubr.bf16.mxu0 0
      %1317 = vmatmul.mubr.bf16.gmra.mrb[0].mxu0 %v1038
      %v1318 = vpop.f32.mrb[0].mxu0
      %v1319 = vadd.f32 0.0, %v1318
      %v1320 = vpop.f32.mrb[0].mxu0
      %v1321 = vpop.f32.mrb[0].mxu0
      %v1322 = vadd.f32 0.0, %v1321
      %v1323 = vpop.f32.mrb[0].mxu0
      %1324 = vmatprep.mubr.bf16.mxu0 0
      %1325 = vmatmul.mubr.bf16.gmra.mrb[0].mxu0 %v1041
      %v1326 = vpop.f32.mrb[0].mxu0
      %v1327 = vadd.f32 0.0, %v1326
      %v1328 = vpop.f32.mrb[0].mxu0
      %v1329 = vpop.f32.mrb[0].mxu0
      %v1330 = vadd.f32 0.0, %v1329
      %v1331 = vpop.f32.mrb[0].mxu0
      %1332 = vmatprep.mubr.bf16.mxu0 0
      %1333 = vmatmul.mubr.bf16.gmra.mrb[0].mxu0 %v1044
      %v1334 = vpop.f32.mrb[0].mxu0
      %v1335 = vadd.f32 0.0, %v1334
      %v1336 = vpop.f32.mrb[0].mxu0
      %v1337 = vpop.f32.mrb[0].mxu0
      %v1338 = vadd.f32 0.0, %v1337
      %v1339 = vpop.f32.mrb[0].mxu0
      %1340 = vmatprep.mubr.bf16.mxu0 0
      %1341 = vmatmul.mubr.bf16.gmra.mrb[0].mxu0 %v1047
      %v1342 = vpop.f32.mrb[0].mxu0
      %v1343 = vadd.f32 0.0, %v1342
      %v1344 = vpop.f32.mrb[0].mxu0
      %v1345 = vpop.f32.mrb[0].mxu0
      %v1346 = vadd.f32 0.0, %v1345
      %v1347 = vpop.f32.mrb[0].mxu0
      %1348 = vmatprep.mubr.bf16.mxu0 0
      %1349 = vmatmul.mubr.bf16.gmra.mrb[0].mxu0 %v1050
      %v1350 = vpop.f32.mrb[0].mxu0
      %v1351 = vadd.f32 0.0, %v1350
      %v1352 = vpop.f32.mrb[0].mxu0
      %v1353 = vpop.f32.mrb[0].mxu0
      %v1354 = vadd.f32 0.0, %v1353
      %v1355 = vpop.f32.mrb[0].mxu0
      %1356 = vmatprep.mubr.bf16.mxu0 0
      %1357 = vmatmul.mubr.bf16.gmra.mrb[0].mxu0 %v1053
      %v1358 = vpop.f32.mrb[0].mxu0
      %v1359 = vadd.f32 0.0, %v1358
      %v1360 = vpop.f32.mrb[0].mxu0
      %v1361 = vpop.f32.mrb[0].mxu0
      %v1362 = vadd.f32 0.0, %v1361
      %v1363 = vpop.f32.mrb[0].mxu0
      %1364 = vmatprep.mubr.bf16.mxu0 0
      %1365 = vmatmul.mubr.bf16.gmra.mrb[0].mxu0 %v1056
      %v1366 = vpop.f32.mrb[0].mxu0
      %v1367 = vadd.f32 0.0, %v1366
      %v1368 = vpop.f32.mrb[0].mxu0
      %v1369 = vpop.f32.mrb[0].mxu0
      %v1370 = vadd.f32 0.0, %v1369
      %v1371 = vpop.f32.mrb[0].mxu0
      %1372 = vmatprep.mubr.bf16.mxu0 0
      %1373 = vmatmul.mubr.bf16.gmra.mrb[0].mxu0 %v1059
      %v1374 = vpop.f32.mrb[0].mxu0
      %v1375 = vadd.f32 0.0, %v1374
      %v1376 = vpop.f32.mrb[0].mxu0
      %v1377 = vpop.f32.mrb[0].mxu0
      %v1378 = vadd.f32 0.0, %v1377
      %v1379 = vpop.f32.mrb[0].mxu0
      %1380 = vmatprep.mubr.bf16.mxu0 0
      %1381 = vmatmul.mubr.bf16.gmra.mrb[0].mxu0 %v1062
      %v1382 = vpop.f32.mrb[0].mxu0
      %v1383 = vadd.f32 0.0, %v1382
      %v1384 = vpop.f32.mrb[0].mxu0
      %v1385 = vpop.f32.mrb[0].mxu0
      %v1386 = vadd.f32 0.0, %v1385
      %v1387 = vpop.f32.mrb[0].mxu0
      %1388 = vmatprep.mubr.bf16.mxu0 0
      %1389 = vmatmul.mubr.bf16.gmra.mrb[0].mxu0 %v1065
      %v1390 = vpop.f32.mrb[0].mxu0
      %v1391 = vadd.f32 0.0, %v1390
      %v1392 = vpop.f32.mrb[0].mxu0
      %v1393 = vpop.f32.mrb[0].mxu0
      %v1394 = vadd.f32 0.0, %v1393
      %v1395 = vpop.f32.mrb[0].mxu0
      %1396 = vmatprep.mubr.bf16.mxu0 0
      %1397 = vmatmul.mubr.bf16.gmra.mrb[0].mxu0 %v1068
      %v1398 = vpop.f32.mrb[0].mxu0
      %v1399 = vadd.f32 0.0, %v1398
      %v1400 = vpop.f32.mrb[0].mxu0
      %v1401 = vpop.f32.mrb[0].mxu0
      %v1402 = vadd.f32 0.0, %v1401
      %v1403 = vpop.f32.mrb[0].mxu0
      %1404 = vmatprep.mubr.bf16.mxu0 0
      %1405 = vmatmul.mubr.bf16.gmra.mrb[0].mxu0 %v1071
      %v1406 = vpop.f32.mrb[0].mxu0
      %v1407 = vadd.f32 0.0, %v1406
      %v1408 = vpop.f32.mrb[0].mxu0
      %v1409 = vpop.f32.mrb[0].mxu0
      %v1410 = vadd.f32 0.0, %v1409
      %v1411 = vpop.f32.mrb[0].mxu0
      %1412 = vmatprep.mubr.bf16.mxu0 0
      %1413 = vmatmul.mubr.bf16.gmra.mrb[0].mxu0 %v1074
      %v1414 = vpop.f32.mrb[0].mxu0
      %v1415 = vadd.f32 0.0, %v1414
      %v1416 = vpop.f32.mrb[0].mxu0
      %v1417 = vpop.f32.mrb[0].mxu0
      %v1418 = vadd.f32 0.0, %v1417
      %v1419 = vpop.f32.mrb[0].mxu0
      %1420 = vmatprep.mubr.bf16.mxu0 0
      %1421 = vmatmul.mubr.bf16.gmra.mrb[0].mxu0 %v1077
      %v1422 = vpop.f32.mrb[0].mxu0
      %v1423 = vadd.f32 0.0, %v1422
      %v1424 = vpop.f32.mrb[0].mxu0
      %v1425 = vpop.f32.mrb[0].mxu0
      %v1426 = vadd.f32 0.0, %v1425
      %v1427 = vpop.f32.mrb[0].mxu0
      %1428 = vmatprep.mubr.bf16.mxu0 0
      %1429 = vmatmul.mubr.bf16.gmra.mrb[0].mxu0 %v1080
      %v1430 = vpop.f32.mrb[0].mxu0
      %v1431 = vadd.f32 0.0, %v1430
      %v1432 = vpop.f32.mrb[0].mxu0
      %v1433 = vpop.f32.mrb[0].mxu0
      %v1434 = vadd.f32 0.0, %v1433
      %v1435 = vpop.f32.mrb[0].mxu0
      %1436 = vmatprep.mubr.bf16.mxu0 0
      %1437 = vmatmul.mubr.bf16.gmra.mrb[0].mxu0 %v1083
      %v1438 = vpop.f32.mrb[0].mxu0
      %v1439 = vadd.f32 0.0, %v1438
      %v1440 = vpop.f32.mrb[0].mxu0
      %v1441 = vpop.f32.mrb[0].mxu0
      %v1442 = vadd.f32 0.0, %v1441
      %v1443 = vpop.f32.mrb[0].mxu0
      %1444 = vmatprep.mubr.bf16.mxu0 0
      %1445 = vmatmul.mubr.bf16.gmra.mrb[0].mxu0 %v1086
      %v1446 = vpop.f32.mrb[0].mxu0
      %v1447 = vadd.f32 0.0, %v1446
      %v1448 = vpop.f32.mrb[0].mxu0
      %v1449 = vpop.f32.mrb[0].mxu0
      %v1450 = vadd.f32 0.0, %v1449
      %v1451 = vpop.f32.mrb[0].mxu0
      %1452 = vmatprep.mubr.bf16.mxu0 0
      %1453 = vmatmul.mubr.bf16.gmra.mrb[0].mxu0 %v1089
      %v1454 = vpop.f32.mrb[0].mxu0
      %v1455 = vadd.f32 0.0, %v1454
      %v1456 = vpop.f32.mrb[0].mxu0
      %v1457 = vpop.f32.mrb[0].mxu0
      %v1458 = vadd.f32 0.0, %v1457
      %v1459 = vpop.f32.mrb[0].mxu0
      %1460 = vmatprep.mubr.bf16.mxu0 0
      %1461 = vmatmul.mubr.bf16.gmra.mrb[0].mxu0 %v1092
      %v1462 = vpop.f32.mrb[0].mxu0
      %v1463 = vadd.f32 0.0, %v1462
      %v1464 = vpop.f32.mrb[0].mxu0
      %v1465 = vpop.f32.mrb[0].mxu0
      %v1466 = vadd.f32 0.0, %v1465
      %v1467 = vpop.f32.mrb[0].mxu0
      %1468 = vmatprep.mubr.bf16.mxu0 0
      %1469 = vmatmul.mubr.bf16.gmra.mrb[0].mxu0 %v1095
      %v1470 = vpop.f32.mrb[0].mxu0
      %v1471 = vadd.f32 0.0, %v1470
      %v1472 = vpop.f32.mrb[0].mxu0
      %v1473 = vpop.f32.mrb[0].mxu0
      %v1474 = vadd.f32 0.0, %v1473
      %v1475 = vpop.f32.mrb[0].mxu0
      %1476 = vmatprep.mubr.bf16.mxu0 0
      %1477 = vmatmul.mubr.bf16.gmra.mrb[0].mxu0 %v1098
      %v1478 = vpop.f32.mrb[0].mxu0
      %v1479 = vadd.f32 0.0, %v1478
      %v1480 = vpop.f32.mrb[0].mxu0
      %v1481 = vpop.f32.mrb[0].mxu0
      %v1482 = vadd.f32 0.0, %v1481
      %v1483 = vpop.f32.mrb[0].mxu0
      %1484 = vmatprep.mubr.bf16.mxu0 0
      %1485 = vmatmul.mubr.bf16.gmra.mrb[0].mxu0 %v1101
      %v1486 = vpop.f32.mrb[0].mxu0
      %v1487 = vadd.f32 0.0, %v1486
      %v1488 = vpop.f32.mrb[0].mxu0
      %v1489 = vpop.f32.mrb[0].mxu0
      %v1490 = vadd.f32 0.0, %v1489
      %v1491 = vpop.f32.mrb[0].mxu0
      %1492 = vmatprep.mubr.bf16.mxu0 0
      %1493 = vmatmul.mubr.bf16.gmra.mrb[0].mxu0 %v1104
      %v1494 = vpop.f32.mrb[0].mxu0
      %v1495 = vadd.f32 0.0, %v1494
      %v1496 = vpop.f32.mrb[0].mxu0
      %v1497 = vpop.f32.mrb[0].mxu0
      %v1498 = vadd.f32 0.0, %v1497
      %v1499 = vpop.f32.mrb[0].mxu0
      %1500 = vmatprep.mubr.bf16.mxu0 0
      %1501 = vmatmul.mubr.bf16.gmra.mrb[0].mxu0 %v1107
      %v1502 = vpop.f32.mrb[0].mxu0
      %v1503 = vadd.f32 0.0, %v1502
      %v1504 = vpop.f32.mrb[0].mxu0
      %v1505 = vpop.f32.mrb[0].mxu0
      %v1506 = vadd.f32 0.0, %v1505
      %v1507 = vpop.f32.mrb[0].mxu0
      %1508 = vmatprep.mubr.bf16.mxu0 0
      %1509 = vmatmul.mubr.bf16.gmra.mrb[0].mxu0 %v1110
      %v1510 = vpop.f32.mrb[0].mxu0
      %v1511 = vadd.f32 0.0, %v1510
      %v1512 = vpop.f32.mrb[0].mxu0
      %v1513 = vpop.f32.mrb[0].mxu0
      %v1514 = vadd.f32 0.0, %v1513
      %v1515 = vpop.f32.mrb[0].mxu0
      %1516 = vmatprep.mubr.bf16.mxu0 0
      %1517 = vmatmul.mubr.bf16.gmra.mrb[0].mxu0 %v1113
      %v1518 = vpop.f32.mrb[0].mxu0
      %v1519 = vadd.f32 0.0, %v1518
      %v1520 = vpop.f32.mrb[0].mxu0
      %v1521 = vpop.f32.mrb[0].mxu0
      %v1522 = vadd.f32 0.0, %v1521
      %v1523 = vpop.f32.mrb[0].mxu0
      %1524 = vmatprep.mubr.bf16.mxu0 0
      %1525 = vmatmul.mubr.bf16.gmra.mrb[0].mxu0 %v1116
      %v1526 = vpop.f32.mrb[0].mxu0
      %v1527 = vadd.f32 0.0, %v1526
      %v1528 = vpop.f32.mrb[0].mxu0
      %v1529 = vpop.f32.mrb[0].mxu0
      %v1530 = vadd.f32 0.0, %v1529
      %v1531 = vpop.f32.mrb[0].mxu0
      %1532 = vmatprep.mubr.bf16.mxu0 0
      %1533 = vmatmul.mubr.bf16.gmra.mrb[0].mxu0 %v1119
      %v1534 = vpop.f32.mrb[0].mxu0
      %v1535 = vadd.f32 0.0, %v1534
      %v1536 = vpop.f32.mrb[0].mxu0
      %v1537 = vpop.f32.mrb[0].mxu0
      %v1538 = vadd.f32 0.0, %v1537
      %v1539 = vpop.f32.mrb[0].mxu0
      %1540 = vmatprep.mubr.bf16.mxu0 0
      %1541 = vmatmul.mubr.bf16.gmra.mrb[0].mxu0 %v1122
      %v1542 = vpop.f32.mrb[0].mxu0
      %v1543 = vadd.f32 0.0, %v1542
      %v1544 = vpop.f32.mrb[0].mxu0
      %v1545 = vpop.f32.mrb[0].mxu0
      %v1546 = vadd.f32 0.0, %v1545
      %v1547 = vpop.f32.mrb[0].mxu0
      %1548 = vmatprep.mubr.bf16.mxu0 0
      %1549 = vmatmul.mubr.bf16.gmra.mrb[0].mxu0 %v1125
      %v1550 = vpop.f32.mrb[0].mxu0
      %v1551 = vadd.f32 0.0, %v1550
      %v1552 = vpop.f32.mrb[0].mxu0
      %v1553 = vpop.f32.mrb[0].mxu0
      %v1554 = vadd.f32 0.0, %v1553
      %v1555 = vpop.f32.mrb[0].mxu0
      %1556 = vmatprep.mubr.bf16.mxu0 0
      %1557 = vmatmul.mubr.bf16.gmra.mrb[0].mxu0 %v1128
      %v1558 = vpop.f32.mrb[0].mxu0
      %v1559 = vadd.f32 0.0, %v1558
      %v1560 = vpop.f32.mrb[0].mxu0
      %v1561 = vpop.f32.mrb[0].mxu0
      %v1562 = vadd.f32 0.0, %v1561
      %v1563 = vpop.f32.mrb[0].mxu0
      %1564 = vmatprep.mubr.bf16.mxu0 0
      %1565 = vmatmul.mubr.bf16.gmra.mrb[0].mxu0 %v1131
      %v1566 = vpop.f32.mrb[0].mxu0
      %v1567 = vadd.f32 0.0, %v1566
      %v1568 = vpop.f32.mrb[0].mxu0
      %v1569 = vpop.f32.mrb[0].mxu0
      %v1570 = vadd.f32 0.0, %v1569
      %v1571 = vpop.f32.mrb[0].mxu0
      %1572 = vmatprep.mubr.bf16.mxu0 0
      %1573 = vmatmul.mubr.bf16.gmra.mrb[0].mxu0 %v1134
      %v1574 = vpop.f32.mrb[0].mxu0
      %v1575 = vadd.f32 0.0, %v1574
      %v1576 = vpop.f32.mrb[0].mxu0
      %v1577 = vpop.f32.mrb[0].mxu0
      %v1578 = vadd.f32 0.0, %v1577
      %v1579 = vpop.f32.mrb[0].mxu0
      %1580 = vmatprep.mubr.bf16.mxu0 0
      %1581 = vmatmul.mubr.bf16.gmra.mrb[0].mxu0 %v1137
      %v1582 = vpop.f32.mrb[0].mxu0
      %v1583 = vadd.f32 0.0, %v1582
      %v1584 = vpop.f32.mrb[0].mxu0
      %v1585 = vpop.f32.mrb[0].mxu0
      %v1586 = vadd.f32 0.0, %v1585
      %v1587 = vpop.f32.mrb[0].mxu0
      %1588 = vmatprep.mubr.bf16.mxu0 0
      %1589 = vmatmul.mubr.bf16.gmra.mrb[0].mxu0 %v1140
      %v1590 = vpop.f32.mrb[0].mxu0
      %v1591 = vadd.f32 0.0, %v1590
      %v1592 = vpop.f32.mrb[0].mxu0
      %v1593 = vpop.f32.mrb[0].mxu0
      %v1594 = vadd.f32 0.0, %v1593
      %v1595 = vpop.f32.mrb[0].mxu0
      %1596 = vmatprep.mubr.bf16.mxu0 0
      %1597 = vmatmul.mubr.bf16.gmra.mrb[0].mxu0 %v1143
      %v1598 = vpop.f32.mrb[0].mxu0
      %v1599 = vadd.f32 0.0, %v1598
      %v1600 = vpop.f32.mrb[0].mxu0
      %v1601 = vpop.f32.mrb[0].mxu0
      %v1602 = vadd.f32 0.0, %v1601
      %v1603 = vpop.f32.mrb[0].mxu0
      %1604 = vmatprep.mubr.bf16.mxu0 0
      %1605 = vmatmul.mubr.bf16.gmra.mrb[0].mxu0 %v1146
      %v1606 = vpop.f32.mrb[0].mxu0
      %v1607 = vadd.f32 0.0, %v1606
      %v1608 = vpop.f32.mrb[0].mxu0
      %v1609 = vpop.f32.mrb[0].mxu0
      %v1610 = vadd.f32 0.0, %v1609
      %v1611 = vpop.f32.mrb[0].mxu0
      %1612 = vmatprep.mubr.bf16.mxu0 0
      %1613 = vmatmul.mubr.bf16.gmra.mrb[0].mxu0 %v1149
      %v1614 = vpop.f32.mrb[0].mxu0
      %v1615 = vadd.f32 0.0, %v1614
      %v1616 = vpop.f32.mrb[0].mxu0
      %v1617 = vpop.f32.mrb[0].mxu0
      %v1618 = vadd.f32 0.0, %v1617
      %v1619 = vpop.f32.mrb[0].mxu0
      %1620 = vmatprep.mubr.bf16.mxu0 0
      %1621 = vmatmul.mubr.bf16.gmra.mrb[0].mxu0 %v1152
      %v1622 = vpop.f32.mrb[0].mxu0
      %v1623 = vadd.f32 0.0, %v1622
      %v1624 = vpop.f32.mrb[0].mxu0
      %v1625 = vpop.f32.mrb[0].mxu0
      %v1626 = vadd.f32 0.0, %v1625
      %v1627 = vpop.f32.mrb[0].mxu0
      %1628 = vmatprep.mubr.bf16.mxu0 0
      %1629 = vmatmul.mubr.bf16.gmra.mrb[0].mxu0 %v1155
      %v1630 = vpop.f32.mrb[0].mxu0
      %v1631 = vadd.f32 0.0, %v1630
      %v1632 = vpop.f32.mrb[0].mxu0
      %v1633 = vpop.f32.mrb[0].mxu0
      %v1634 = vadd.f32 0.0, %v1633
      %v1635 = vpop.f32.mrb[0].mxu0
      %1636 = vmatprep.mubr.bf16.mxu0 0
      %1637 = vmatmul.mubr.bf16.gmra.mrb[0].mxu0 %v1158
      %v1638 = vpop.f32.mrb[0].mxu0
      %v1639 = vadd.f32 0.0, %v1638
      %v1640 = vpop.f32.mrb[0].mxu0
      %v1641 = vpop.f32.mrb[0].mxu0
      %v1642 = vadd.f32 0.0, %v1641
      %v1643 = vpop.f32.mrb[0].mxu0
      %1644 = vmatprep.mubr.bf16.mxu0 0
      %1645 = vmatmul.mubr.bf16.gmra.mrb[0].mxu0 %v1161
      %v1646 = vpop.f32.mrb[0].mxu0
      %v1647 = vadd.f32 0.0, %v1646
      %v1648 = vpop.f32.mrb[0].mxu0
      %v1649 = vpop.f32.mrb[0].mxu0
      %v1650 = vadd.f32 0.0, %v1649
      %v1651 = vpop.f32.mrb[0].mxu0
      %1652 = vmatprep.mubr.bf16.mxu0 0
      %1653 = vmatmul.mubr.bf16.gmra.mrb[0].mxu0 %v1164
      %v1654 = vpop.f32.mrb[0].mxu0
      %v1655 = vadd.f32 0.0, %v1654
      %v1656 = vpop.f32.mrb[0].mxu0
      %v1657 = vpop.f32.mrb[0].mxu0
      %v1658 = vadd.f32 0.0, %v1657
      %v1659 = vpop.f32.mrb[0].mxu0
      %1660 = vmatprep.mubr.bf16.mxu0 0
      %1661 = vmatmul.mubr.bf16.gmra.mrb[0].mxu0 %v1167
      %v1662 = vpop.f32.mrb[0].mxu0
      %v1663 = vadd.f32 0.0, %v1662
      %v1664 = vpop.f32.mrb[0].mxu0
      %v1665 = vpop.f32.mrb[0].mxu0
      %v1666 = vadd.f32 0.0, %v1665
      %v1667 = vpop.f32.mrb[0].mxu0
      %1668 = vmatprep.mubr.bf16.mxu0 0
      %1669 = vmatmul.mubr.bf16.gmra.mrb[0].mxu0 %v1170
      %v1670 = vpop.f32.mrb[0].mxu0
      %v1671 = vadd.f32 0.0, %v1670
      %v1672 = vpop.f32.mrb[0].mxu0
      %v1673 = vpop.f32.mrb[0].mxu0
      %v1674 = vadd.f32 0.0, %v1673
      %v1675 = vpop.f32.mrb[0].mxu0
      %1676 = vmatprep.mubr.bf16.mxu0 0
      %1677 = vmatmul.mubr.bf16.gmra.mrb[0].mxu0 %v1173
      %v1678 = vpop.f32.mrb[0].mxu0
      %v1679 = vadd.f32 0.0, %v1678
      %v1680 = vpop.f32.mrb[0].mxu0
      %v1681 = vpop.f32.mrb[0].mxu0
      %v1682 = vadd.f32 0.0, %v1681
      %v1683 = vpop.f32.mrb[0].mxu0
      %1684 = vmatprep.mubr.bf16.mxu0 0
      %1685 = vmatmul.mubr.bf16.gmra.mrb[0].mxu0 %v1176
      %v1686 = vpop.f32.mrb[0].mxu0
      %v1687 = vadd.f32 0.0, %v1686
      %v1688 = vpop.f32.mrb[0].mxu0
      %v1689 = vpop.f32.mrb[0].mxu0
      %v1690 = vadd.f32 0.0, %v1689
      %v1691 = vpop.f32.mrb[0].mxu0
      %1692 = vmatprep.mubr.bf16.mxu0 0
      %1693 = vmatmul.mubr.bf16.gmra.mrb[0].mxu0 %v1179
      %v1694 = vpop.f32.mrb[0].mxu0
      %v1695 = vadd.f32 0.0, %v1694
      %v1696 = vpop.f32.mrb[0].mxu0
      %v1697 = vpop.f32.mrb[0].mxu0
      %v1698 = vadd.f32 0.0, %v1697
      %v1699 = vpop.f32.mrb[0].mxu0
      %1700 = vmatprep.mubr.bf16.mxu0 0
      %1701 = vmatmul.mubr.bf16.gmra.mrb[0].mxu0 %v1182
      %v1702 = vpop.f32.mrb[0].mxu0
      %v1703 = vadd.f32 0.0, %v1702
      %v1704 = vpop.f32.mrb[0].mxu0
      %v1705 = vpop.f32.mrb[0].mxu0
      %v1706 = vadd.f32 0.0, %v1705
      %v1707 = vpop.f32.mrb[0].mxu0
      %1708 = vmatprep.mubr.bf16.mxu0 0
      %1709 = vmatmul.mubr.bf16.gmra.mrb[0].mxu0 %v1185
      %v1710 = vpop.f32.mrb[0].mxu0
      %v1711 = vadd.f32 0.0, %v1710
      %v1712 = vpop.f32.mrb[0].mxu0
      %v1713 = vpop.f32.mrb[0].mxu0
      %v1714 = vadd.f32 0.0, %v1713
      %v1715 = vpop.f32.mrb[0].mxu0
      %1716 = vmatprep.mubr.bf16.mxu0 0
      %1717 = vmatmul.mubr.bf16.gmra.mrb[0].mxu0 %v1188
      %v1718 = vpop.f32.mrb[0].mxu0
      %v1719 = vadd.f32 0.0, %v1718
      %v1720 = vpop.f32.mrb[0].mxu0
      %v1721 = vpop.f32.mrb[0].mxu0
      %v1722 = vadd.f32 0.0, %v1721
      %v1723 = vpop.f32.mrb[0].mxu0
      %1724 = vmatprep.mubr.bf16.mxu0 0
      %1725 = vmatmul.mubr.bf16.gmra.mrb[0].mxu0 %v1191
      %v1726 = vpop.f32.mrb[0].mxu0
      %v1727 = vadd.f32 0.0, %v1726
      %v1728 = vpop.f32.mrb[0].mxu0
      %v1729 = vpop.f32.mrb[0].mxu0
      %v1730 = vadd.f32 0.0, %v1729
      %v1731 = vpop.f32.mrb[0].mxu0
      %1732 = vmatprep.mubr.bf16.mxu0 0
      %1733 = vmatmul.mubr.bf16.gmra.mrb[0].mxu0 %v1194
      %v1734 = vpop.f32.mrb[0].mxu0
      %v1735 = vadd.f32 0.0, %v1734
      %v1736 = vpop.f32.mrb[0].mxu0
      %v1737 = vpop.f32.mrb[0].mxu0
      %v1738 = vadd.f32 0.0, %v1737
      %v1739 = vpop.f32.mrb[0].mxu0
      %1740 = vmatprep.mubr.bf16.mxu0 0
      %1741 = vmatmul.mubr.bf16.gmra.mrb[0].mxu0 %v1197
      %v1742 = vpop.f32.mrb[0].mxu0
      %v1743 = vadd.f32 0.0, %v1742
      %v1744 = vpop.f32.mrb[0].mxu0
      %v1745 = vpop.f32.mrb[0].mxu0
      %v1746 = vadd.f32 0.0, %v1745
      %v1747 = vpop.f32.mrb[0].mxu0
      %1748 = vmatprep.mubr.bf16.mxu0 0
      %1749 = vmatmul.mubr.bf16.gmra.mrb[0].mxu0 %v1200
      %v1750 = vpop.f32.mrb[0].mxu0
      %v1751 = vadd.f32 0.0, %v1750
      %v1752 = vpop.f32.mrb[0].mxu0
      %v1753 = vpop.f32.mrb[0].mxu0
      %v1754 = vadd.f32 0.0, %v1753
      %v1755 = vpop.f32.mrb[0].mxu0
      %1756 = vmatprep.mubr.bf16.mxu0 0
      %1757 = vmatmul.mubr.bf16.gmra.mrb[0].mxu0 %v1203
      %v1758 = vpop.f32.mrb[0].mxu0
      %v1759 = vadd.f32 0.0, %v1758
      %v1760 = vpop.f32.mrb[0].mxu0
      %v1761 = vpop.f32.mrb[0].mxu0
      %v1762 = vadd.f32 0.0, %v1761
      %v1763 = vpop.f32.mrb[0].mxu0
      %1764 = vmatprep.mubr.bf16.mxu0 0
      %1765 = vmatmul.mubr.bf16.gmra.mrb[0].mxu0 %v1206
      %v1766 = vpop.f32.mrb[0].mxu0
      %v1767 = vadd.f32 0.0, %v1766
      %v1768 = vpop.f32.mrb[0].mxu0
      %v1769 = vpop.f32.mrb[0].mxu0
      %v1770 = vadd.f32 0.0, %v1769
      %v1771 = vpop.f32.mrb[0].mxu0
      %1772 = vmatprep.mubr.bf16.mxu0 0
      %1773 = vmatmul.mubr.bf16.gmra.mrb[0].mxu0 %v1209
      %v1774 = vpop.f32.mrb[0].mxu0
      %v1775 = vadd.f32 0.0, %v1774
      %v1776 = vpop.f32.mrb[0].mxu0
      %v1777 = vpop.f32.mrb[0].mxu0
      %v1778 = vadd.f32 0.0, %v1777
      %v1779 = vpop.f32.mrb[0].mxu0
      %1780 = vmatprep.mubr.bf16.mxu0 0
      %1781 = vmatmul.mubr.bf16.gmra.mrb[0].mxu0 %v1212
      %v1782 = vpop.f32.mrb[0].mxu0
      %v1783 = vadd.f32 0.0, %v1782
      %v1784 = vpop.f32.mrb[0].mxu0
      %v1785 = vpop.f32.mrb[0].mxu0
      %v1786 = vadd.f32 0.0, %v1785
      %v1787 = vpop.f32.mrb[0].mxu0
      %1788 = vmatprep.mubr.bf16.mxu0 0
      %1789 = vmatmul.mubr.bf16.gmra.mrb[0].mxu0 %v1215
      %v1790 = vpop.f32.mrb[0].mxu0
      %v1791 = vadd.f32 0.0, %v1790
      %v1792 = vpop.f32.mrb[0].mxu0
      %v1793 = vpop.f32.mrb[0].mxu0
      %v1794 = vadd.f32 0.0, %v1793
      %v1795 = vpop.f32.mrb[0].mxu0
      %1796 = vmatprep.mubr.bf16.mxu0 0
      %1797 = vmatmul.mubr.bf16.gmra.mrb[0].mxu0 %v1218
      %v1798 = vpop.f32.mrb[0].mxu0
      %v1799 = vadd.f32 0.0, %v1798
      %v1800 = vpop.f32.mrb[0].mxu0
      %v1801 = vpop.f32.mrb[0].mxu0
      %v1802 = vadd.f32 0.0, %v1801
      %v1803 = vpop.f32.mrb[0].mxu0
      %1804 = vdwg.mxu0
      %v1807 = vunpack.c.l.b16 %v443
      %v1808 = vunpack.c.l.b16 %v444
      %v1809 = vpack.c.b16 %v1808, %v1807
      %v1811 = vsel %vm1012, %v374, 0
      %v1813 = vsel %vm1012, %v375, 0
      %v1815 = vsel %vm1012, %v376, 0
      %v1817 = vsel %vm1012, %v377, 0
      %v1819 = vsel %vm1012, %v378, 0
      %v1821 = vsel %vm1012, %v379, 0
      %v1823 = vsel %vm1012, %v380, 0
      %v1825 = vsel %vm1012, %v381, 0
      %v1827 = vsel %vm1012, %v382, 0
      %v1829 = vsel %vm1012, %v383, 0
      %v1831 = vsel %vm1012, %v384, 0
      %v1833 = vsel %vm1012, %v385, 0
      %v1835 = vsel %vm1012, %v386, 0
      %v1837 = vsel %vm1012, %v387, 0
      %v1839 = vsel %vm1012, %v388, 0
      %v1841 = vsel %vm1012, %v389, 0
      %v1843 = vsel %vm1012, %v390, 0
      %v1845 = vsel %vm1012, %v391, 0
      %v1847 = vsel %vm1012, %v392, 0
      %v1849 = vsel %vm1012, %v393, 0
      %v1851 = vsel %vm1012, %v394, 0
      %v1853 = vsel %vm1012, %v395, 0
      %v1855 = vsel %vm1012, %v396, 0
      %v1857 = vsel %vm1012, %v397, 0
      %v1859 = vsel %vm1012, %v398, 0
      %v1861 = vsel %vm1012, %v399, 0
      %v1863 = vsel %vm1012, %v400, 0
      %v1865 = vsel %vm1012, %v401, 0
      %v1867 = vsel %vm1012, %v402, 0
      %v1869 = vsel %vm1012, %v403, 0
      %v1871 = vsel %vm1012, %v404, 0
      %v1873 = vsel %vm1012, %v405, 0
      %v1875 = vsel %vm1012, %v406, 0
      %v1877 = vsel %vm1012, %v407, 0
      %v1879 = vsel %vm1012, %v408, 0
      %v1881 = vsel %vm1012, %v409, 0
      %v1883 = vsel %vm1012, %v410, 0
      %v1885 = vsel %vm1012, %v411, 0
      %v1887 = vsel %vm1012, %v412, 0
      %v1889 = vsel %vm1012, %v413, 0
      %v1891 = vsel %vm1012, %v414, 0
      %v1893 = vsel %vm1012, %v415, 0
      %v1895 = vsel %vm1012, %v416, 0
      %v1897 = vsel %vm1012, %v417, 0
      %v1899 = vsel %vm1012, %v418, 0
      %v1901 = vsel %vm1012, %v419, 0
      %v1903 = vsel %vm1012, %v420, 0
      %v1905 = vsel %vm1012, %v421, 0
      %v1907 = vsel %vm1012, %v422, 0
      %v1909 = vsel %vm1012, %v423, 0
      %v1911 = vsel %vm1012, %v424, 0
      %v1913 = vsel %vm1012, %v425, 0
      %v1915 = vsel %vm1012, %v426, 0
      %v1917 = vsel %vm1012, %v427, 0
      %v1919 = vsel %vm1012, %v428, 0
      %v1921 = vsel %vm1012, %v429, 0
      %v1923 = vsel %vm1012, %v430, 0
      %v1925 = vsel %vm1012, %v431, 0
      %v1927 = vsel %vm1012, %v432, 0
      %v1929 = vsel %vm1012, %v433, 0
      %v1931 = vsel %vm1012, %v434, 0
      %v1933 = vsel %vm1012, %v435, 0
      %v1935 = vsel %vm1012, %v436, 0
      %v1937 = vsel %vm1012, %v437, 0
      %v1939 = vsel %vm1012, %v438, 0
      %v1941 = vsel %vm1012, %v439, 0
      %v1943 = vsel %vm1012, %v440, 0
      %v1945 = vsel %vm1012, %v441, 0
      %v1947 = vsel %vm1012, %v442, 0
      %1949 = vmatprep.subr.bf16.mxu0 0
      %1950 = vmatpush1.bf16.msra.mxu0 %v1809
      %1951 = vmatprep.subr.bf16.mxu0 0
      %1952 = vmatpush1.bf16.msra.mxu0 0
      %1953 = vmatprep.subr.bf16.mxu0 0
      %1954 = vmatpush1.bf16.msra.mxu0 0
      %1955 = vmatprep.subr.bf16.mxu0 0
      %1956 = vmatpush1.bf16.msra.mxu0 0
      %1957 = vmatprep.subr.bf16.mxu0 0
      %1958 = vmatpush1.bf16.msra.mxu0 0
      %1959 = vmatprep.subr.bf16.mxu0 0
      %1960 = vmatpush1.bf16.msra.mxu0 0
      %1961 = vmatprep.subr.bf16.mxu0 0
      %1962 = vmatpush1.bf16.msra.mxu0 0
      %1963 = vmatprep.subr.bf16.mxu0 0
      %1964 = vmatpush1.bf16.msra.mxu0 0
      %1965 = vmatprep.subr.bf16.mxu0 0
      %1966 = vmatpush1.bf16.msra.mxu0 0
      %1967 = vmatprep.subr.bf16.mxu0 0
      %1968 = vmatpush1.bf16.msra.mxu0 0
      %1969 = vmatprep.subr.bf16.mxu0 0
      %1970 = vmatpush1.bf16.msra.mxu0 0
      %1971 = vmatprep.subr.bf16.mxu0 0
      %1972 = vmatpush1.bf16.msra.mxu0 0
      %1973 = vmatprep.subr.bf16.mxu0 0
      %1974 = vmatpush1.bf16.msra.mxu0 0
      %1975 = vmatprep.subr.bf16.mxu0 0
      %1976 = vmatpush1.bf16.msra.mxu0 0
      %1977 = vmatprep.subr.bf16.mxu0 0
      %1978 = vmatpush1.bf16.msra.mxu0 0
      %1979 = vmatprep.subr.bf16.mxu0 0
      %1980 = vmatpush1.bf16.msra.mxu0 0
      %1981 = vmatprep.mubr.bf16.mxu0 0
      %1982 = vmatmul.mubr.bf16.gmra.mrb[0].mxu0 %v1811
      %v1983 = vpop.f32.mrb[0].mxu0
      %v1984 = vadd.f32 %v1255, %v1983
      %v1985 = vpop.f32.mrb[0].mxu0
      %v1986 = vpop.f32.mrb[0].mxu0
      %v1987 = vadd.f32 %v1258, %v1986
      %v1988 = vpop.f32.mrb[0].mxu0
      %1989 = vmatprep.mubr.bf16.mxu0 0
      %1990 = vmatmul.mubr.bf16.gmra.mrb[0].mxu0 %v1813
      %v1991 = vpop.f32.mrb[0].mxu0
      %v1992 = vadd.f32 %v1263, %v1991
      %v1993 = vpop.f32.mrb[0].mxu0
      %v1994 = vpop.f32.mrb[0].mxu0
      %v1995 = vadd.f32 %v1266, %v1994
      %v1996 = vpop.f32.mrb[0].mxu0
      %1997 = vmatprep.mubr.bf16.mxu0 0
      %1998 = vmatmul.mubr.bf16.gmra.mrb[0].mxu0 %v1815
      %v1999 = vpop.f32.mrb[0].mxu0
      %v2000 = vadd.f32 %v1271, %v1999
      %v2001 = vpop.f32.mrb[0].mxu0
      %v2002 = vpop.f32.mrb[0].mxu0
      %v2003 = vadd.f32 %v1274, %v2002
      %v2004 = vpop.f32.mrb[0].mxu0
      %2005 = vmatprep.mubr.bf16.mxu0 0
      %2006 = vmatmul.mubr.bf16.gmra.mrb[0].mxu0 %v1817
      %v2007 = vpop.f32.mrb[0].mxu0
      %v2008 = vadd.f32 %v1279, %v2007
      %v2009 = vpop.f32.mrb[0].mxu0
      %v2010 = vpop.f32.mrb[0].mxu0
      %v2011 = vadd.f32 %v1282, %v2010
      %v2012 = vpop.f32.mrb[0].mxu0
      %2013 = vmatprep.mubr.bf16.mxu0 0
      %2014 = vmatmul.mubr.bf16.gmra.mrb[0].mxu0 %v1819
      %v2015 = vpop.f32.mrb[0].mxu0
      %v2016 = vadd.f32 %v1287, %v2015
      %v2017 = vpop.f32.mrb[0].mxu0
      %v2018 = vpop.f32.mrb[0].mxu0
      %v2019 = vadd.f32 %v1290, %v2018
      %v2020 = vpop.f32.mrb[0].mxu0
      %2021 = vmatprep.mubr.bf16.mxu0 0
      %2022 = vmatmul.mubr.bf16.gmra.mrb[0].mxu0 %v1821
      %v2023 = vpop.f32.mrb[0].mxu0
      %v2024 = vadd.f32 %v1295, %v2023
      %v2025 = vpop.f32.mrb[0].mxu0
      %v2026 = vpop.f32.mrb[0].mxu0
      %v2027 = vadd.f32 %v1298, %v2026
      %v2028 = vpop.f32.mrb[0].mxu0
      %2029 = vmatprep.mubr.bf16.mxu0 0
      %2030 = vmatmul.mubr.bf16.gmra.mrb[0].mxu0 %v1823
      %v2031 = vpop.f32.mrb[0].mxu0
      %v2032 = vadd.f32 %v1303, %v2031
      %v2033 = vpop.f32.mrb[0].mxu0
      %v2034 = vpop.f32.mrb[0].mxu0
      %v2035 = vadd.f32 %v1306, %v2034
      %v2036 = vpop.f32.mrb[0].mxu0
      %2037 = vmatprep.mubr.bf16.mxu0 0
      %2038 = vmatmul.mubr.bf16.gmra.mrb[0].mxu0 %v1825
      %v2039 = vpop.f32.mrb[0].mxu0
      %v2040 = vadd.f32 %v1311, %v2039
      %v2041 = vpop.f32.mrb[0].mxu0
      %v2042 = vpop.f32.mrb[0].mxu0
      %v2043 = vadd.f32 %v1314, %v2042
      %v2044 = vpop.f32.mrb[0].mxu0
      %2045 = vmatprep.mubr.bf16.mxu0 0
      %2046 = vmatmul.mubr.bf16.gmra.mrb[0].mxu0 %v1827
      %v2047 = vpop.f32.mrb[0].mxu0
      %v2048 = vadd.f32 %v1319, %v2047
      %v2049 = vpop.f32.mrb[0].mxu0
      %v2050 = vpop.f32.mrb[0].mxu0
      %v2051 = vadd.f32 %v1322, %v2050
      %v2052 = vpop.f32.mrb[0].mxu0
      %2053 = vmatprep.mubr.bf16.mxu0 0
      %2054 = vmatmul.mubr.bf16.gmra.mrb[0].mxu0 %v1829
      %v2055 = vpop.f32.mrb[0].mxu0
      %v2056 = vadd.f32 %v1327, %v2055
      %v2057 = vpop.f32.mrb[0].mxu0
      %v2058 = vpop.f32.mrb[0].mxu0
      %v2059 = vadd.f32 %v1330, %v2058
      %v2060 = vpop.f32.mrb[0].mxu0
      %2061 = vmatprep.mubr.bf16.mxu0 0
      %2062 = vmatmul.mubr.bf16.gmra.mrb[0].mxu0 %v1831
      %v2063 = vpop.f32.mrb[0].mxu0
      %v2064 = vadd.f32 %v1335, %v2063
      %v2065 = vpop.f32.mrb[0].mxu0
      %v2066 = vpop.f32.mrb[0].mxu0
      %v2067 = vadd.f32 %v1338, %v2066
      %v2068 = vpop.f32.mrb[0].mxu0
      %2069 = vmatprep.mubr.bf16.mxu0 0
      %2070 = vmatmul.mubr.bf16.gmra.mrb[0].mxu0 %v1833
      %v2071 = vpop.f32.mrb[0].mxu0
      %v2072 = vadd.f32 %v1343, %v2071
      %v2073 = vpop.f32.mrb[0].mxu0
      %v2074 = vpop.f32.mrb[0].mxu0
      %v2075 = vadd.f32 %v1346, %v2074
      %v2076 = vpop.f32.mrb[0].mxu0
      %2077 = vmatprep.mubr.bf16.mxu0 0
      %2078 = vmatmul.mubr.bf16.gmra.mrb[0].mxu0 %v1835
      %v2079 = vpop.f32.mrb[0].mxu0
      %v2080 = vadd.f32 %v1351, %v2079
      %v2081 = vpop.f32.mrb[0].mxu0
      %v2082 = vpop.f32.mrb[0].mxu0
      %v2083 = vadd.f32 %v1354, %v2082
      %v2084 = vpop.f32.mrb[0].mxu0
      %2085 = vmatprep.mubr.bf16.mxu0 0
      %2086 = vmatmul.mubr.bf16.gmra.mrb[0].mxu0 %v1837
      %v2087 = vpop.f32.mrb[0].mxu0
      %v2088 = vadd.f32 %v1359, %v2087
      %v2089 = vpop.f32.mrb[0].mxu0
      %v2090 = vpop.f32.mrb[0].mxu0
      %v2091 = vadd.f32 %v1362, %v2090
      %v2092 = vpop.f32.mrb[0].mxu0
      %2093 = vmatprep.mubr.bf16.mxu0 0
      %2094 = vmatmul.mubr.bf16.gmra.mrb[0].mxu0 %v1839
      %v2095 = vpop.f32.mrb[0].mxu0
      %v2096 = vadd.f32 %v1367, %v2095
      %v2097 = vpop.f32.mrb[0].mxu0
      %v2098 = vpop.f32.mrb[0].mxu0
      %v2099 = vadd.f32 %v1370, %v2098
      %v2100 = vpop.f32.mrb[0].mxu0
      %2101 = vmatprep.mubr.bf16.mxu0 0
      %2102 = vmatmul.mubr.bf16.gmra.mrb[0].mxu0 %v1841
      %v2103 = vpop.f32.mrb[0].mxu0
      %v2104 = vadd.f32 %v1375, %v2103
      %v2105 = vpop.f32.mrb[0].mxu0
      %v2106 = vpop.f32.mrb[0].mxu0
      %v2107 = vadd.f32 %v1378, %v2106
      %v2108 = vpop.f32.mrb[0].mxu0
      %2109 = vmatprep.mubr.bf16.mxu0 0
      %2110 = vmatmul.mubr.bf16.gmra.mrb[0].mxu0 %v1843
      %v2111 = vpop.f32.mrb[0].mxu0
      %v2112 = vadd.f32 %v1383, %v2111
      %v2113 = vpop.f32.mrb[0].mxu0
      %v2114 = vpop.f32.mrb[0].mxu0
      %v2115 = vadd.f32 %v1386, %v2114
      %v2116 = vpop.f32.mrb[0].mxu0
      %2117 = vmatprep.mubr.bf16.mxu0 0
      %2118 = vmatmul.mubr.bf16.gmra.mrb[0].mxu0 %v1845
      %v2119 = vpop.f32.mrb[0].mxu0
      %v2120 = vadd.f32 %v1391, %v2119
      %v2121 = vpop.f32.mrb[0].mxu0
      %v2122 = vpop.f32.mrb[0].mxu0
      %v2123 = vadd.f32 %v1394, %v2122
      %v2124 = vpop.f32.mrb[0].mxu0
      %2125 = vmatprep.mubr.bf16.mxu0 0
      %2126 = vmatmul.mubr.bf16.gmra.mrb[0].mxu0 %v1847
      %v2127 = vpop.f32.mrb[0].mxu0
      %v2128 = vadd.f32 %v1399, %v2127
      %v2129 = vpop.f32.mrb[0].mxu0
      %v2130 = vpop.f32.mrb[0].mxu0
      %v2131 = vadd.f32 %v1402, %v2130
      %v2132 = vpop.f32.mrb[0].mxu0
      %2133 = vmatprep.mubr.bf16.mxu0 0
      %2134 = vmatmul.mubr.bf16.gmra.mrb[0].mxu0 %v1849
      %v2135 = vpop.f32.mrb[0].mxu0
      %v2136 = vadd.f32 %v1407, %v2135
      %v2137 = vpop.f32.mrb[0].mxu0
      %v2138 = vpop.f32.mrb[0].mxu0
      %v2139 = vadd.f32 %v1410, %v2138
      %v2140 = vpop.f32.mrb[0].mxu0
      %2141 = vmatprep.mubr.bf16.mxu0 0
      %2142 = vmatmul.mubr.bf16.gmra.mrb[0].mxu0 %v1851
      %v2143 = vpop.f32.mrb[0].mxu0
      %v2144 = vadd.f32 %v1415, %v2143
      %v2145 = vpop.f32.mrb[0].mxu0
      %v2146 = vpop.f32.mrb[0].mxu0
      %v2147 = vadd.f32 %v1418, %v2146
      %v2148 = vpop.f32.mrb[0].mxu0
      %2149 = vmatprep.mubr.bf16.mxu0 0
      %2150 = vmatmul.mubr.bf16.gmra.mrb[0].mxu0 %v1853
      %v2151 = vpop.f32.mrb[0].mxu0
      %v2152 = vadd.f32 %v1423, %v2151
      %v2153 = vpop.f32.mrb[0].mxu0
      %v2154 = vpop.f32.mrb[0].mxu0
      %v2155 = vadd.f32 %v1426, %v2154
      %v2156 = vpop.f32.mrb[0].mxu0
      %2157 = vmatprep.mubr.bf16.mxu0 0
      %2158 = vmatmul.mubr.bf16.gmra.mrb[0].mxu0 %v1855
      %v2159 = vpop.f32.mrb[0].mxu0
      %v2160 = vadd.f32 %v1431, %v2159
      %v2161 = vpop.f32.mrb[0].mxu0
      %v2162 = vpop.f32.mrb[0].mxu0
      %v2163 = vadd.f32 %v1434, %v2162
      %v2164 = vpop.f32.mrb[0].mxu0
      %2165 = vmatprep.mubr.bf16.mxu0 0
      %2166 = vmatmul.mubr.bf16.gmra.mrb[0].mxu0 %v1857
      %v2167 = vpop.f32.mrb[0].mxu0
      %v2168 = vadd.f32 %v1439, %v2167
      %v2169 = vpop.f32.mrb[0].mxu0
      %v2170 = vpop.f32.mrb[0].mxu0
      %v2171 = vadd.f32 %v1442, %v2170
      %v2172 = vpop.f32.mrb[0].mxu0
      %2173 = vmatprep.mubr.bf16.mxu0 0
      %2174 = vmatmul.mubr.bf16.gmra.mrb[0].mxu0 %v1859
      %v2175 = vpop.f32.mrb[0].mxu0
      %v2176 = vadd.f32 %v1447, %v2175
      %v2177 = vpop.f32.mrb[0].mxu0
      %v2178 = vpop.f32.mrb[0].mxu0
      %v2179 = vadd.f32 %v1450, %v2178
      %v2180 = vpop.f32.mrb[0].mxu0
      %2181 = vmatprep.mubr.bf16.mxu0 0
      %2182 = vmatmul.mubr.bf16.gmra.mrb[0].mxu0 %v1861
      %v2183 = vpop.f32.mrb[0].mxu0
      %v2184 = vadd.f32 %v1455, %v2183
      %v2185 = vpop.f32.mrb[0].mxu0
      %v2186 = vpop.f32.mrb[0].mxu0
      %v2187 = vadd.f32 %v1458, %v2186
      %v2188 = vpop.f32.mrb[0].mxu0
      %2189 = vmatprep.mubr.bf16.mxu0 0
      %2190 = vmatmul.mubr.bf16.gmra.mrb[0].mxu0 %v1863
      %v2191 = vpop.f32.mrb[0].mxu0
      %v2192 = vadd.f32 %v1463, %v2191
      %v2193 = vpop.f32.mrb[0].mxu0
      %v2194 = vpop.f32.mrb[0].mxu0
      %v2195 = vadd.f32 %v1466, %v2194
      %v2196 = vpop.f32.mrb[0].mxu0
      %2197 = vmatprep.mubr.bf16.mxu0 0
      %2198 = vmatmul.mubr.bf16.gmra.mrb[0].mxu0 %v1865
      %v2199 = vpop.f32.mrb[0].mxu0
      %v2200 = vadd.f32 %v1471, %v2199
      %v2201 = vpop.f32.mrb[0].mxu0
      %v2202 = vpop.f32.mrb[0].mxu0
      %v2203 = vadd.f32 %v1474, %v2202
      %v2204 = vpop.f32.mrb[0].mxu0
      %2205 = vmatprep.mubr.bf16.mxu0 0
      %2206 = vmatmul.mubr.bf16.gmra.mrb[0].mxu0 %v1867
      %v2207 = vpop.f32.mrb[0].mxu0
      %v2208 = vadd.f32 %v1479, %v2207
      %v2209 = vpop.f32.mrb[0].mxu0
      %v2210 = vpop.f32.mrb[0].mxu0
      %v2211 = vadd.f32 %v1482, %v2210
      %v2212 = vpop.f32.mrb[0].mxu0
      %2213 = vmatprep.mubr.bf16.mxu0 0
      %2214 = vmatmul.mubr.bf16.gmra.mrb[0].mxu0 %v1869
      %v2215 = vpop.f32.mrb[0].mxu0
      %v2216 = vadd.f32 %v1487, %v2215
      %v2217 = vpop.f32.mrb[0].mxu0
      %v2218 = vpop.f32.mrb[0].mxu0
      %v2219 = vadd.f32 %v1490, %v2218
      %v2220 = vpop.f32.mrb[0].mxu0
      %2221 = vmatprep.mubr.bf16.mxu0 0
      %2222 = vmatmul.mubr.bf16.gmra.mrb[0].mxu0 %v1871
      %v2223 = vpop.f32.mrb[0].mxu0
      %v2224 = vadd.f32 %v1495, %v2223
      %v2225 = vpop.f32.mrb[0].mxu0
      %v2226 = vpop.f32.mrb[0].mxu0
      %v2227 = vadd.f32 %v1498, %v2226
      %v2228 = vpop.f32.mrb[0].mxu0
      %2229 = vmatprep.mubr.bf16.mxu0 0
      %2230 = vmatmul.mubr.bf16.gmra.mrb[0].mxu0 %v1873
      %v2231 = vpop.f32.mrb[0].mxu0
      %v2232 = vadd.f32 %v1503, %v2231
      %v2233 = vpop.f32.mrb[0].mxu0
      %v2234 = vpop.f32.mrb[0].mxu0
      %v2235 = vadd.f32 %v1506, %v2234
      %v2236 = vpop.f32.mrb[0].mxu0
      %2237 = vmatprep.mubr.bf16.mxu0 0
      %2238 = vmatmul.mubr.bf16.gmra.mrb[0].mxu0 %v1875
      %v2239 = vpop.f32.mrb[0].mxu0
      %v2240 = vadd.f32 %v1511, %v2239
      %v2241 = vpop.f32.mrb[0].mxu0
      %v2242 = vpop.f32.mrb[0].mxu0
      %v2243 = vadd.f32 %v1514, %v2242
      %v2244 = vpop.f32.mrb[0].mxu0
      %2245 = vmatprep.mubr.bf16.mxu0 0
      %2246 = vmatmul.mubr.bf16.gmra.mrb[0].mxu0 %v1877
      %v2247 = vpop.f32.mrb[0].mxu0
      %v2248 = vadd.f32 %v1519, %v2247
      %v2249 = vpop.f32.mrb[0].mxu0
      %v2250 = vpop.f32.mrb[0].mxu0
      %v2251 = vadd.f32 %v1522, %v2250
      %v2252 = vpop.f32.mrb[0].mxu0
      %2253 = vmatprep.mubr.bf16.mxu0 0
      %2254 = vmatmul.mubr.bf16.gmra.mrb[0].mxu0 %v1879
      %v2255 = vpop.f32.mrb[0].mxu0
      %v2256 = vadd.f32 %v1527, %v2255
      %v2257 = vpop.f32.mrb[0].mxu0
      %v2258 = vpop.f32.mrb[0].mxu0
      %v2259 = vadd.f32 %v1530, %v2258
      %v2260 = vpop.f32.mrb[0].mxu0
      %2261 = vmatprep.mubr.bf16.mxu0 0
      %2262 = vmatmul.mubr.bf16.gmra.mrb[0].mxu0 %v1881
      %v2263 = vpop.f32.mrb[0].mxu0
      %v2264 = vadd.f32 %v1535, %v2263
      %v2265 = vpop.f32.mrb[0].mxu0
      %v2266 = vpop.f32.mrb[0].mxu0
      %v2267 = vadd.f32 %v1538, %v2266
      %v2268 = vpop.f32.mrb[0].mxu0
      %2269 = vmatprep.mubr.bf16.mxu0 0
      %2270 = vmatmul.mubr.bf16.gmra.mrb[0].mxu0 %v1883
      %v2271 = vpop.f32.mrb[0].mxu0
      %v2272 = vadd.f32 %v1543, %v2271
      %v2273 = vpop.f32.mrb[0].mxu0
      %v2274 = vpop.f32.mrb[0].mxu0
      %v2275 = vadd.f32 %v1546, %v2274
      %v2276 = vpop.f32.mrb[0].mxu0
      %2277 = vmatprep.mubr.bf16.mxu0 0
      %2278 = vmatmul.mubr.bf16.gmra.mrb[0].mxu0 %v1885
      %v2279 = vpop.f32.mrb[0].mxu0
      %v2280 = vadd.f32 %v1551, %v2279
      %v2281 = vpop.f32.mrb[0].mxu0
      %v2282 = vpop.f32.mrb[0].mxu0
      %v2283 = vadd.f32 %v1554, %v2282
      %v2284 = vpop.f32.mrb[0].mxu0
      %2285 = vmatprep.mubr.bf16.mxu0 0
      %2286 = vmatmul.mubr.bf16.gmra.mrb[0].mxu0 %v1887
      %v2287 = vpop.f32.mrb[0].mxu0
      %v2288 = vadd.f32 %v1559, %v2287
      %v2289 = vpop.f32.mrb[0].mxu0
      %v2290 = vpop.f32.mrb[0].mxu0
      %v2291 = vadd.f32 %v1562, %v2290
      %v2292 = vpop.f32.mrb[0].mxu0
      %2293 = vmatprep.mubr.bf16.mxu0 0
      %2294 = vmatmul.mubr.bf16.gmra.mrb[0].mxu0 %v1889
      %v2295 = vpop.f32.mrb[0].mxu0
      %v2296 = vadd.f32 %v1567, %v2295
      %v2297 = vpop.f32.mrb[0].mxu0
      %v2298 = vpop.f32.mrb[0].mxu0
      %v2299 = vadd.f32 %v1570, %v2298
      %v2300 = vpop.f32.mrb[0].mxu0
      %2301 = vmatprep.mubr.bf16.mxu0 0
      %2302 = vmatmul.mubr.bf16.gmra.mrb[0].mxu0 %v1891
      %v2303 = vpop.f32.mrb[0].mxu0
      %v2304 = vadd.f32 %v1575, %v2303
      %v2305 = vpop.f32.mrb[0].mxu0
      %v2306 = vpop.f32.mrb[0].mxu0
      %v2307 = vadd.f32 %v1578, %v2306
      %v2308 = vpop.f32.mrb[0].mxu0
      %2309 = vmatprep.mubr.bf16.mxu0 0
      %2310 = vmatmul.mubr.bf16.gmra.mrb[0].mxu0 %v1893
      %v2311 = vpop.f32.mrb[0].mxu0
      %v2312 = vadd.f32 %v1583, %v2311
      %v2313 = vpop.f32.mrb[0].mxu0
      %v2314 = vpop.f32.mrb[0].mxu0
      %v2315 = vadd.f32 %v1586, %v2314
      %v2316 = vpop.f32.mrb[0].mxu0
      %2317 = vmatprep.mubr.bf16.mxu0 0
      %2318 = vmatmul.mubr.bf16.gmra.mrb[0].mxu0 %v1895
      %v2319 = vpop.f32.mrb[0].mxu0
      %v2320 = vadd.f32 %v1591, %v2319
      %v2321 = vpop.f32.mrb[0].mxu0
      %v2322 = vpop.f32.mrb[0].mxu0
      %v2323 = vadd.f32 %v1594, %v2322
      %v2324 = vpop.f32.mrb[0].mxu0
      %2325 = vmatprep.mubr.bf16.mxu0 0
      %2326 = vmatmul.mubr.bf16.gmra.mrb[0].mxu0 %v1897
      %v2327 = vpop.f32.mrb[0].mxu0
      %v2328 = vadd.f32 %v1599, %v2327
      %v2329 = vpop.f32.mrb[0].mxu0
      %v2330 = vpop.f32.mrb[0].mxu0
      %v2331 = vadd.f32 %v1602, %v2330
      %v2332 = vpop.f32.mrb[0].mxu0
      %2333 = vmatprep.mubr.bf16.mxu0 0
      %2334 = vmatmul.mubr.bf16.gmra.mrb[0].mxu0 %v1899
      %v2335 = vpop.f32.mrb[0].mxu0
      %v2336 = vadd.f32 %v1607, %v2335
      %v2337 = vpop.f32.mrb[0].mxu0
      %v2338 = vpop.f32.mrb[0].mxu0
      %v2339 = vadd.f32 %v1610, %v2338
      %v2340 = vpop.f32.mrb[0].mxu0
      %2341 = vmatprep.mubr.bf16.mxu0 0
      %2342 = vmatmul.mubr.bf16.gmra.mrb[0].mxu0 %v1901
      %v2343 = vpop.f32.mrb[0].mxu0
      %v2344 = vadd.f32 %v1615, %v2343
      %v2345 = vpop.f32.mrb[0].mxu0
      %v2346 = vpop.f32.mrb[0].mxu0
      %v2347 = vadd.f32 %v1618, %v2346
      %v2348 = vpop.f32.mrb[0].mxu0
      %2349 = vmatprep.mubr.bf16.mxu0 0
      %2350 = vmatmul.mubr.bf16.gmra.mrb[0].mxu0 %v1903
      %v2351 = vpop.f32.mrb[0].mxu0
      %v2352 = vadd.f32 %v1623, %v2351
      %v2353 = vpop.f32.mrb[0].mxu0
      %v2354 = vpop.f32.mrb[0].mxu0
      %v2355 = vadd.f32 %v1626, %v2354
      %v2356 = vpop.f32.mrb[0].mxu0
      %2357 = vmatprep.mubr.bf16.mxu0 0
      %2358 = vmatmul.mubr.bf16.gmra.mrb[0].mxu0 %v1905
      %v2359 = vpop.f32.mrb[0].mxu0
      %v2360 = vadd.f32 %v1631, %v2359
      %v2361 = vpop.f32.mrb[0].mxu0
      %v2362 = vpop.f32.mrb[0].mxu0
      %v2363 = vadd.f32 %v1634, %v2362
      %v2364 = vpop.f32.mrb[0].mxu0
      %2365 = vmatprep.mubr.bf16.mxu0 0
      %2366 = vmatmul.mubr.bf16.gmra.mrb[0].mxu0 %v1907
      %v2367 = vpop.f32.mrb[0].mxu0
      %v2368 = vadd.f32 %v1639, %v2367
      %v2369 = vpop.f32.mrb[0].mxu0
      %v2370 = vpop.f32.mrb[0].mxu0
      %v2371 = vadd.f32 %v1642, %v2370
      %v2372 = vpop.f32.mrb[0].mxu0
      %2373 = vmatprep.mubr.bf16.mxu0 0
      %2374 = vmatmul.mubr.bf16.gmra.mrb[0].mxu0 %v1909
      %v2375 = vpop.f32.mrb[0].mxu0
      %v2376 = vadd.f32 %v1647, %v2375
      %v2377 = vpop.f32.mrb[0].mxu0
      %v2378 = vpop.f32.mrb[0].mxu0
      %v2379 = vadd.f32 %v1650, %v2378
      %v2380 = vpop.f32.mrb[0].mxu0
      %2381 = vmatprep.mubr.bf16.mxu0 0
      %2382 = vmatmul.mubr.bf16.gmra.mrb[0].mxu0 %v1911
      %v2383 = vpop.f32.mrb[0].mxu0
      %v2384 = vadd.f32 %v1655, %v2383
      %v2385 = vpop.f32.mrb[0].mxu0
      %v2386 = vpop.f32.mrb[0].mxu0
      %v2387 = vadd.f32 %v1658, %v2386
      %v2388 = vpop.f32.mrb[0].mxu0
      %2389 = vmatprep.mubr.bf16.mxu0 0
      %2390 = vmatmul.mubr.bf16.gmra.mrb[0].mxu0 %v1913
      %v2391 = vpop.f32.mrb[0].mxu0
      %v2392 = vadd.f32 %v1663, %v2391
      %v2393 = vpop.f32.mrb[0].mxu0
      %v2394 = vpop.f32.mrb[0].mxu0
      %v2395 = vadd.f32 %v1666, %v2394
      %v2396 = vpop.f32.mrb[0].mxu0
      %2397 = vmatprep.mubr.bf16.mxu0 0
      %2398 = vmatmul.mubr.bf16.gmra.mrb[0].mxu0 %v1915
      %v2399 = vpop.f32.mrb[0].mxu0
      %v2400 = vadd.f32 %v1671, %v2399
      %v2401 = vpop.f32.mrb[0].mxu0
      %v2402 = vpop.f32.mrb[0].mxu0
      %v2403 = vadd.f32 %v1674, %v2402
      %v2404 = vpop.f32.mrb[0].mxu0
      %2405 = vmatprep.mubr.bf16.mxu0 0
      %2406 = vmatmul.mubr.bf16.gmra.mrb[0].mxu0 %v1917
      %v2407 = vpop.f32.mrb[0].mxu0
      %v2408 = vadd.f32 %v1679, %v2407
      %v2409 = vpop.f32.mrb[0].mxu0
      %v2410 = vpop.f32.mrb[0].mxu0
      %v2411 = vadd.f32 %v1682, %v2410
      %v2412 = vpop.f32.mrb[0].mxu0
      %2413 = vmatprep.mubr.bf16.mxu0 0
      %2414 = vmatmul.mubr.bf16.gmra.mrb[0].mxu0 %v1919
      %v2415 = vpop.f32.mrb[0].mxu0
      %v2416 = vadd.f32 %v1687, %v2415
      %v2417 = vpop.f32.mrb[0].mxu0
      %v2418 = vpop.f32.mrb[0].mxu0
      %v2419 = vadd.f32 %v1690, %v2418
      %v2420 = vpop.f32.mrb[0].mxu0
      %2421 = vmatprep.mubr.bf16.mxu0 0
      %2422 = vmatmul.mubr.bf16.gmra.mrb[0].mxu0 %v1921
      %v2423 = vpop.f32.mrb[0].mxu0
      %v2424 = vadd.f32 %v1695, %v2423
      %v2425 = vpop.f32.mrb[0].mxu0
      %v2426 = vpop.f32.mrb[0].mxu0
      %v2427 = vadd.f32 %v1698, %v2426
      %v2428 = vpop.f32.mrb[0].mxu0
      %2429 = vmatprep.mubr.bf16.mxu0 0
      %2430 = vmatmul.mubr.bf16.gmra.mrb[0].mxu0 %v1923
      %v2431 = vpop.f32.mrb[0].mxu0
      %v2432 = vadd.f32 %v1703, %v2431
      %v2433 = vpop.f32.mrb[0].mxu0
      %v2434 = vpop.f32.mrb[0].mxu0
      %v2435 = vadd.f32 %v1706, %v2434
      %v2436 = vpop.f32.mrb[0].mxu0
      %2437 = vmatprep.mubr.bf16.mxu0 0
      %2438 = vmatmul.mubr.bf16.gmra.mrb[0].mxu0 %v1925
      %v2439 = vpop.f32.mrb[0].mxu0
      %v2440 = vadd.f32 %v1711, %v2439
      %v2441 = vpop.f32.mrb[0].mxu0
      %v2442 = vpop.f32.mrb[0].mxu0
      %v2443 = vadd.f32 %v1714, %v2442
      %v2444 = vpop.f32.mrb[0].mxu0
      %2445 = vmatprep.mubr.bf16.mxu0 0
      %2446 = vmatmul.mubr.bf16.gmra.mrb[0].mxu0 %v1927
      %v2447 = vpop.f32.mrb[0].mxu0
      %v2448 = vadd.f32 %v1719, %v2447
      %v2449 = vpop.f32.mrb[0].mxu0
      %v2450 = vpop.f32.mrb[0].mxu0
      %v2451 = vadd.f32 %v1722, %v2450
      %v2452 = vpop.f32.mrb[0].mxu0
      %2453 = vmatprep.mubr.bf16.mxu0 0
      %2454 = vmatmul.mubr.bf16.gmra.mrb[0].mxu0 %v1929
      %v2455 = vpop.f32.mrb[0].mxu0
      %v2456 = vadd.f32 %v1727, %v2455
      %v2457 = vpop.f32.mrb[0].mxu0
      %v2458 = vpop.f32.mrb[0].mxu0
      %v2459 = vadd.f32 %v1730, %v2458
      %v2460 = vpop.f32.mrb[0].mxu0
      %2461 = vmatprep.mubr.bf16.mxu0 0
      %2462 = vmatmul.mubr.bf16.gmra.mrb[0].mxu0 %v1931
      %v2463 = vpop.f32.mrb[0].mxu0
      %v2464 = vadd.f32 %v1735, %v2463
      %v2465 = vpop.f32.mrb[0].mxu0
      %v2466 = vpop.f32.mrb[0].mxu0
      %v2467 = vadd.f32 %v1738, %v2466
      %v2468 = vpop.f32.mrb[0].mxu0
      %2469 = vmatprep.mubr.bf16.mxu0 0
      %2470 = vmatmul.mubr.bf16.gmra.mrb[0].mxu0 %v1933
      %v2471 = vpop.f32.mrb[0].mxu0
      %v2472 = vadd.f32 %v1743, %v2471
      %v2473 = vpop.f32.mrb[0].mxu0
      %v2474 = vpop.f32.mrb[0].mxu0
      %v2475 = vadd.f32 %v1746, %v2474
      %v2476 = vpop.f32.mrb[0].mxu0
      %2477 = vmatprep.mubr.bf16.mxu0 0
      %2478 = vmatmul.mubr.bf16.gmra.mrb[0].mxu0 %v1935
      %v2479 = vpop.f32.mrb[0].mxu0
      %v2480 = vadd.f32 %v1751, %v2479
      %v2481 = vpop.f32.mrb[0].mxu0
      %v2482 = vpop.f32.mrb[0].mxu0
      %v2483 = vadd.f32 %v1754, %v2482
      %v2484 = vpop.f32.mrb[0].mxu0
      %2485 = vmatprep.mubr.bf16.mxu0 0
      %2486 = vmatmul.mubr.bf16.gmra.mrb[0].mxu0 %v1937
      %v2487 = vpop.f32.mrb[0].mxu0
      %v2488 = vadd.f32 %v1759, %v2487
      %v2489 = vpop.f32.mrb[0].mxu0
      %v2490 = vpop.f32.mrb[0].mxu0
      %v2491 = vadd.f32 %v1762, %v2490
      %v2492 = vpop.f32.mrb[0].mxu0
      %2493 = vmatprep.mubr.bf16.mxu0 0
      %2494 = vmatmul.mubr.bf16.gmra.mrb[0].mxu0 %v1939
      %v2495 = vpop.f32.mrb[0].mxu0
      %v2496 = vadd.f32 %v1767, %v2495
      %v2497 = vpop.f32.mrb[0].mxu0
      %v2498 = vpop.f32.mrb[0].mxu0
      %v2499 = vadd.f32 %v1770, %v2498
      %v2500 = vpop.f32.mrb[0].mxu0
      %2501 = vmatprep.mubr.bf16.mxu0 0
      %2502 = vmatmul.mubr.bf16.gmra.mrb[0].mxu0 %v1941
      %v2503 = vpop.f32.mrb[0].mxu0
      %v2504 = vadd.f32 %v1775, %v2503
      %v2505 = vpop.f32.mrb[0].mxu0
      %v2506 = vpop.f32.mrb[0].mxu0
      %v2507 = vadd.f32 %v1778, %v2506
      %v2508 = vpop.f32.mrb[0].mxu0
      %2509 = vmatprep.mubr.bf16.mxu0 0
      %2510 = vmatmul.mubr.bf16.gmra.mrb[0].mxu0 %v1943
      %v2511 = vpop.f32.mrb[0].mxu0
      %v2512 = vadd.f32 %v1783, %v2511
      %v2513 = vpop.f32.mrb[0].mxu0
      %v2514 = vpop.f32.mrb[0].mxu0
      %v2515 = vadd.f32 %v1786, %v2514
      %v2516 = vpop.f32.mrb[0].mxu0
      %2517 = vmatprep.mubr.bf16.mxu0 0
      %2518 = vmatmul.mubr.bf16.gmra.mrb[0].mxu0 %v1945
      %v2519 = vpop.f32.mrb[0].mxu0
      %v2520 = vadd.f32 %v1791, %v2519
      %v2521 = vpop.f32.mrb[0].mxu0
      %v2522 = vpop.f32.mrb[0].mxu0
      %v2523 = vadd.f32 %v1794, %v2522
      %v2524 = vpop.f32.mrb[0].mxu0
      %2525 = vmatprep.mubr.bf16.mxu0 0
      %2526 = vmatmul.mubr.bf16.gmra.mrb[0].mxu0 %v1947
      %v2527 = vpop.f32.mrb[0].mxu0
      %v2528 = vadd.f32 %v1799, %v2527
      %v2529 = vpop.f32.mrb[0].mxu0
      %v2530 = vpop.f32.mrb[0].mxu0
      %v2531 = vadd.f32 %v1802, %v2530
      %v2532 = vpop.f32.mrb[0].mxu0
      %2533 = vdwg.mxu0
      %v2534 = vpack.c.bf16 %v370, %v369
      %v2535 = vpack.c.bf16 %v372, %v371
      %v2536 = vpack.c.bf16 %v373, %v373
      %s2537 = scalar_lea.vmem %s2, 16
      %v2538 = vld [vmem:[%s2537] sm:$0xf]
      %v2539 = vld [vmem:[%s2537 + $0x4] sm:$0xf]
      %v2541 = vshll.u32 %v2534, 16
      %v2543 = vrot.slane %v2541, 1
      %v2544 = vsel %vm449, %v1000, %v2543
      %v2545 = vshrl.u32 %v2534, 16
      %v2547 = vor.u32 %v2545, %v2543
      %v2549 = vshll.u32 %v2535, 16
      %v2551 = vrot.slane %v2549, 1
      %v2552 = vsel %vm449, %v2547, %v2551
      %v2553 = vshrl.u32 %v2535, 16
      %v2555 = vor.u32 %v2553, %v2551
      %v2557 = vshll.u32 %v2536, 16
      %v2559 = vrot.slane %v2557, 1
      %v2560 = vsel %vm449, %v2555, %v2559
      %v2563 = vunpack.c.l.b16 %v2538
      %v2564 = vunpack.c.l.b16 %v2539
      %v2565 = vpack.c.b16 %v2564, %v2563
      %v2568 = vsel %vm1012, %v2544, 0
      %v2571 = vsel %vm1012, %v2552, 0
      %v2574 = vsel %vm1012, %v2560, 0
      %2576 = vmatprep.subr.bf16.mxu0 0
      %2577 = vmatpush1.bf16.msra.mxu0 %v2565
      %2578 = vmatprep.subr.bf16.mxu0 0
      %2579 = vmatpush1.bf16.msra.mxu0 0
      %2580 = vmatprep.subr.bf16.mxu0 0
      %2581 = vmatpush1.bf16.msra.mxu0 0
      %2582 = vmatprep.subr.bf16.mxu0 0
      %2583 = vmatpush1.bf16.msra.mxu0 0
      %2584 = vmatprep.subr.bf16.mxu0 0
      %2585 = vmatpush1.bf16.msra.mxu0 0
      %2586 = vmatprep.subr.bf16.mxu0 0
      %2587 = vmatpush1.bf16.msra.mxu0 0
      %2588 = vmatprep.subr.bf16.mxu0 0
      %2589 = vmatpush1.bf16.msra.mxu0 0
      %2590 = vmatprep.subr.bf16.mxu0 0
      %2591 = vmatpush1.bf16.msra.mxu0 0
      %2592 = vmatprep.subr.bf16.mxu0 0
      %2593 = vmatpush1.bf16.msra.mxu0 0
      %2594 = vmatprep.subr.bf16.mxu0 0
      %2595 = vmatpush1.bf16.msra.mxu0 0
      %2596 = vmatprep.subr.bf16.mxu0 0
      %2597 = vmatpush1.bf16.msra.mxu0 0
      %2598 = vmatprep.subr.bf16.mxu0 0
      %2599 = vmatpush1.bf16.msra.mxu0 0
      %2600 = vmatprep.subr.bf16.mxu0 0
      %2601 = vmatpush1.bf16.msra.mxu0 0
      %2602 = vmatprep.subr.bf16.mxu0 0
      %2603 = vmatpush1.bf16.msra.mxu0 0
      %2604 = vmatprep.subr.bf16.mxu0 0
      %2605 = vmatpush1.bf16.msra.mxu0 0
      %2606 = vmatprep.subr.bf16.mxu0 0
      %2607 = vmatpush1.bf16.msra.mxu0 0
      %2608 = vmatprep.mubr.bf16.mxu0 0
      %2609 = vmatmul.mubr.bf16.gmra.mrb[0].mxu0 %v1020
      %v2610 = vpop.f32.mrb[0].mxu0
      %v2611 = vadd.f32 0.0, %v2610
      %v2612 = vpop.f32.mrb[0].mxu0
      %v2613 = vpop.f32.mrb[0].mxu0
      %v2614 = vadd.f32 0.0, %v2613
      %v2615 = vpop.f32.mrb[0].mxu0
      %2616 = vmatprep.mubr.bf16.mxu0 0
      %2617 = vmatmul.mubr.bf16.gmra.mrb[0].mxu0 %v1023
      %v2618 = vpop.f32.mrb[0].mxu0
      %v2619 = vadd.f32 0.0, %v2618
      %v2620 = vpop.f32.mrb[0].mxu0
      %v2621 = vpop.f32.mrb[0].mxu0
      %v2622 = vadd.f32 0.0, %v2621
      %v2623 = vpop.f32.mrb[0].mxu0
      %2624 = vmatprep.mubr.bf16.mxu0 0
      %2625 = vmatmul.mubr.bf16.gmra.mrb[0].mxu0 %v1026
      %v2626 = vpop.f32.mrb[0].mxu0
      %v2627 = vadd.f32 0.0, %v2626
      %v2628 = vpop.f32.mrb[0].mxu0
      %v2629 = vpop.f32.mrb[0].mxu0
      %v2630 = vadd.f32 0.0, %v2629
      %v2631 = vpop.f32.mrb[0].mxu0
      %2632 = vmatprep.mubr.bf16.mxu0 0
      %2633 = vmatmul.mubr.bf16.gmra.mrb[0].mxu0 %v1029
      %v2634 = vpop.f32.mrb[0].mxu0
      %v2635 = vadd.f32 0.0, %v2634
      %v2636 = vpop.f32.mrb[0].mxu0
      %v2637 = vpop.f32.mrb[0].mxu0
      %v2638 = vadd.f32 0.0, %v2637
      %v2639 = vpop.f32.mrb[0].mxu0
      %2640 = vmatprep.mubr.bf16.mxu0 0
      %2641 = vmatmul.mubr.bf16.gmra.mrb[0].mxu0 %v1032
      %v2642 = vpop.f32.mrb[0].mxu0
      %v2643 = vadd.f32 0.0, %v2642
      %v2644 = vpop.f32.mrb[0].mxu0
      %v2645 = vpop.f32.mrb[0].mxu0
      %v2646 = vadd.f32 0.0, %v2645
      %v2647 = vpop.f32.mrb[0].mxu0
      %2648 = vmatprep.mubr.bf16.mxu0 0
      %2649 = vmatmul.mubr.bf16.gmra.mrb[0].mxu0 %v1035
      %v2650 = vpop.f32.mrb[0].mxu0
      %v2651 = vadd.f32 0.0, %v2650
      %v2652 = vpop.f32.mrb[0].mxu0
      %v2653 = vpop.f32.mrb[0].mxu0
      %v2654 = vadd.f32 0.0, %v2653
      %v2655 = vpop.f32.mrb[0].mxu0
      %2656 = vmatprep.mubr.bf16.mxu0 0
      %2657 = vmatmul.mubr.bf16.gmra.mrb[0].mxu0 %v1038
      %v2658 = vpop.f32.mrb[0].mxu0
      %v2659 = vadd.f32 0.0, %v2658
      %v2660 = vpop.f32.mrb[0].mxu0
      %v2661 = vpop.f32.mrb[0].mxu0
      %v2662 = vadd.f32 0.0, %v2661
      %v2663 = vpop.f32.mrb[0].mxu0
      %2664 = vmatprep.mubr.bf16.mxu0 0
      %2665 = vmatmul.mubr.bf16.gmra.mrb[0].mxu0 %v1041
      %v2666 = vpop.f32.mrb[0].mxu0
      %v2667 = vadd.f32 0.0, %v2666
      %v2668 = vpop.f32.mrb[0].mxu0
      %v2669 = vpop.f32.mrb[0].mxu0
      %v2670 = vadd.f32 0.0, %v2669
      %v2671 = vpop.f32.mrb[0].mxu0
      %2672 = vmatprep.mubr.bf16.mxu0 0
      %2673 = vmatmul.mubr.bf16.gmra.mrb[0].mxu0 %v1044
      %v2674 = vpop.f32.mrb[0].mxu0
      %v2675 = vadd.f32 0.0, %v2674
      %v2676 = vpop.f32.mrb[0].mxu0
      %v2677 = vpop.f32.mrb[0].mxu0
      %v2678 = vadd.f32 0.0, %v2677
      %v2679 = vpop.f32.mrb[0].mxu0
      %2680 = vmatprep.mubr.bf16.mxu0 0
      %2681 = vmatmul.mubr.bf16.gmra.mrb[0].mxu0 %v1047
      %v2682 = vpop.f32.mrb[0].mxu0
      %v2683 = vadd.f32 0.0, %v2682
      %v2684 = vpop.f32.mrb[0].mxu0
      %v2685 = vpop.f32.mrb[0].mxu0
      %v2686 = vadd.f32 0.0, %v2685
      %v2687 = vpop.f32.mrb[0].mxu0
      %2688 = vmatprep.mubr.bf16.mxu0 0
      %2689 = vmatmul.mubr.bf16.gmra.mrb[0].mxu0 %v1050
      %v2690 = vpop.f32.mrb[0].mxu0
      %v2691 = vadd.f32 0.0, %v2690
      %v2692 = vpop.f32.mrb[0].mxu0
      %v2693 = vpop.f32.mrb[0].mxu0
      %v2694 = vadd.f32 0.0, %v2693
      %v2695 = vpop.f32.mrb[0].mxu0
      %2696 = vmatprep.mubr.bf16.mxu0 0
      %2697 = vmatmul.mubr.bf16.gmra.mrb[0].mxu0 %v1053
      %v2698 = vpop.f32.mrb[0].mxu0
      %v2699 = vadd.f32 0.0, %v2698
      %v2700 = vpop.f32.mrb[0].mxu0
      %v2701 = vpop.f32.mrb[0].mxu0
      %v2702 = vadd.f32 0.0, %v2701
      %v2703 = vpop.f32.mrb[0].mxu0
      %2704 = vmatprep.mubr.bf16.mxu0 0
      %2705 = vmatmul.mubr.bf16.gmra.mrb[0].mxu0 %v1056
      %v2706 = vpop.f32.mrb[0].mxu0
      %v2707 = vadd.f32 0.0, %v2706
      %v2708 = vpop.f32.mrb[0].mxu0
      %v2709 = vpop.f32.mrb[0].mxu0
      %v2710 = vadd.f32 0.0, %v2709
      %v2711 = vpop.f32.mrb[0].mxu0
      %2712 = vmatprep.mubr.bf16.mxu0 0
      %2713 = vmatmul.mubr.bf16.gmra.mrb[0].mxu0 %v1059
      %v2714 = vpop.f32.mrb[0].mxu0
      %v2715 = vadd.f32 0.0, %v2714
      %v2716 = vpop.f32.mrb[0].mxu0
      %v2717 = vpop.f32.mrb[0].mxu0
      %v2718 = vadd.f32 0.0, %v2717
      %v2719 = vpop.f32.mrb[0].mxu0
      %2720 = vmatprep.mubr.bf16.mxu0 0
      %2721 = vmatmul.mubr.bf16.gmra.mrb[0].mxu0 %v1062
      %v2722 = vpop.f32.mrb[0].mxu0
      %v2723 = vadd.f32 0.0, %v2722
      %v2724 = vpop.f32.mrb[0].mxu0
      %v2725 = vpop.f32.mrb[0].mxu0
      %v2726 = vadd.f32 0.0, %v2725
      %v2727 = vpop.f32.mrb[0].mxu0
      %2728 = vmatprep.mubr.bf16.mxu0 0
      %2729 = vmatmul.mubr.bf16.gmra.mrb[0].mxu0 %v1065
      %v2730 = vpop.f32.mrb[0].mxu0
      %v2731 = vadd.f32 0.0, %v2730
      %v2732 = vpop.f32.mrb[0].mxu0
      %v2733 = vpop.f32.mrb[0].mxu0
      %v2734 = vadd.f32 0.0, %v2733
      %v2735 = vpop.f32.mrb[0].mxu0
      %2736 = vmatprep.mubr.bf16.mxu0 0
      %2737 = vmatmul.mubr.bf16.gmra.mrb[0].mxu0 %v1068
      %v2738 = vpop.f32.mrb[0].mxu0
      %v2739 = vadd.f32 0.0, %v2738
      %v2740 = vpop.f32.mrb[0].mxu0
      %v2741 = vpop.f32.mrb[0].mxu0
      %v2742 = vadd.f32 0.0, %v2741
      %v2743 = vpop.f32.mrb[0].mxu0
      %2744 = vmatprep.mubr.bf16.mxu0 0
      %2745 = vmatmul.mubr.bf16.gmra.mrb[0].mxu0 %v1071
      %v2746 = vpop.f32.mrb[0].mxu0
      %v2747 = vadd.f32 0.0, %v2746
      %v2748 = vpop.f32.mrb[0].mxu0
      %v2749 = vpop.f32.mrb[0].mxu0
      %v2750 = vadd.f32 0.0, %v2749
      %v2751 = vpop.f32.mrb[0].mxu0
      %2752 = vmatprep.mubr.bf16.mxu0 0
      %2753 = vmatmul.mubr.bf16.gmra.mrb[0].mxu0 %v1074
      %v2754 = vpop.f32.mrb[0].mxu0
      %v2755 = vadd.f32 0.0, %v2754
      %v2756 = vpop.f32.mrb[0].mxu0
      %v2757 = vpop.f32.mrb[0].mxu0
      %v2758 = vadd.f32 0.0, %v2757
      %v2759 = vpop.f32.mrb[0].mxu0
      %2760 = vmatprep.mubr.bf16.mxu0 0
      %2761 = vmatmul.mubr.bf16.gmra.mrb[0].mxu0 %v1077
      %v2762 = vpop.f32.mrb[0].mxu0
      %v2763 = vadd.f32 0.0, %v2762
      %v2764 = vpop.f32.mrb[0].mxu0
      %v2765 = vpop.f32.mrb[0].mxu0
      %v2766 = vadd.f32 0.0, %v2765
      %v2767 = vpop.f32.mrb[0].mxu0
      %2768 = vmatprep.mubr.bf16.mxu0 0
      %2769 = vmatmul.mubr.bf16.gmra.mrb[0].mxu0 %v1080
      %v2770 = vpop.f32.mrb[0].mxu0
      %v2771 = vadd.f32 0.0, %v2770
      %v2772 = vpop.f32.mrb[0].mxu0
      %v2773 = vpop.f32.mrb[0].mxu0
      %v2774 = vadd.f32 0.0, %v2773
      %v2775 = vpop.f32.mrb[0].mxu0
      %2776 = vmatprep.mubr.bf16.mxu0 0
      %2777 = vmatmul.mubr.bf16.gmra.mrb[0].mxu0 %v1083
      %v2778 = vpop.f32.mrb[0].mxu0
      %v2779 = vadd.f32 0.0, %v2778
      %v2780 = vpop.f32.mrb[0].mxu0
      %v2781 = vpop.f32.mrb[0].mxu0
      %v2782 = vadd.f32 0.0, %v2781
      %v2783 = vpop.f32.mrb[0].mxu0
      %2784 = vmatprep.mubr.bf16.mxu0 0
      %2785 = vmatmul.mubr.bf16.gmra.mrb[0].mxu0 %v1086
      %v2786 = vpop.f32.mrb[0].mxu0
      %v2787 = vadd.f32 0.0, %v2786
      %v2788 = vpop.f32.mrb[0].mxu0
      %v2789 = vpop.f32.mrb[0].mxu0
      %v2790 = vadd.f32 0.0, %v2789
      %v2791 = vpop.f32.mrb[0].mxu0
      %2792 = vmatprep.mubr.bf16.mxu0 0
      %2793 = vmatmul.mubr.bf16.gmra.mrb[0].mxu0 %v1089
      %v2794 = vpop.f32.mrb[0].mxu0
      %v2795 = vadd.f32 0.0, %v2794
      %v2796 = vpop.f32.mrb[0].mxu0
      %v2797 = vpop.f32.mrb[0].mxu0
      %v2798 = vadd.f32 0.0, %v2797
      %v2799 = vpop.f32.mrb[0].mxu0
      %2800 = vmatprep.mubr.bf16.mxu0 0
      %2801 = vmatmul.mubr.bf16.gmra.mrb[0].mxu0 %v1092
      %v2802 = vpop.f32.mrb[0].mxu0
      %v2803 = vadd.f32 0.0, %v2802
      %v2804 = vpop.f32.mrb[0].mxu0
      %v2805 = vpop.f32.mrb[0].mxu0
      %v2806 = vadd.f32 0.0, %v2805
      %v2807 = vpop.f32.mrb[0].mxu0
      %2808 = vmatprep.mubr.bf16.mxu0 0
      %2809 = vmatmul.mubr.bf16.gmra.mrb[0].mxu0 %v1095
      %v2810 = vpop.f32.mrb[0].mxu0
      %v2811 = vadd.f32 0.0, %v2810
      %v2812 = vpop.f32.mrb[0].mxu0
      %v2813 = vpop.f32.mrb[0].mxu0
      %v2814 = vadd.f32 0.0, %v2813
      %v2815 = vpop.f32.mrb[0].mxu0
      %2816 = vmatprep.mubr.bf16.mxu0 0
      %2817 = vmatmul.mubr.bf16.gmra.mrb[0].mxu0 %v1098
      %v2818 = vpop.f32.mrb[0].mxu0
      %v2819 = vadd.f32 0.0, %v2818
      %v2820 = vpop.f32.mrb[0].mxu0
      %v2821 = vpop.f32.mrb[0].mxu0
      %v2822 = vadd.f32 0.0, %v2821
      %v2823 = vpop.f32.mrb[0].mxu0
      %2824 = vmatprep.mubr.bf16.mxu0 0
      %2825 = vmatmul.mubr.bf16.gmra.mrb[0].mxu0 %v1101
      %v2826 = vpop.f32.mrb[0].mxu0
      %v2827 = vadd.f32 0.0, %v2826
      %v2828 = vpop.f32.mrb[0].mxu0
      %v2829 = vpop.f32.mrb[0].mxu0
      %v2830 = vadd.f32 0.0, %v2829
      %v2831 = vpop.f32.mrb[0].mxu0
      %2832 = vmatprep.mubr.bf16.mxu0 0
      %2833 = vmatmul.mubr.bf16.gmra.mrb[0].mxu0 %v1104
      %v2834 = vpop.f32.mrb[0].mxu0
      %v2835 = vadd.f32 0.0, %v2834
      %v2836 = vpop.f32.mrb[0].mxu0
      %v2837 = vpop.f32.mrb[0].mxu0
      %v2838 = vadd.f32 0.0, %v2837
      %v2839 = vpop.f32.mrb[0].mxu0
      %2840 = vmatprep.mubr.bf16.mxu0 0
      %2841 = vmatmul.mubr.bf16.gmra.mrb[0].mxu0 %v1107
      %v2842 = vpop.f32.mrb[0].mxu0
      %v2843 = vadd.f32 0.0, %v2842
      %v2844 = vpop.f32.mrb[0].mxu0
      %v2845 = vpop.f32.mrb[0].mxu0
      %v2846 = vadd.f32 0.0, %v2845
      %v2847 = vpop.f32.mrb[0].mxu0
      %2848 = vmatprep.mubr.bf16.mxu0 0
      %2849 = vmatmul.mubr.bf16.gmra.mrb[0].mxu0 %v1110
      %v2850 = vpop.f32.mrb[0].mxu0
      %v2851 = vadd.f32 0.0, %v2850
      %v2852 = vpop.f32.mrb[0].mxu0
      %v2853 = vpop.f32.mrb[0].mxu0
      %v2854 = vadd.f32 0.0, %v2853
      %v2855 = vpop.f32.mrb[0].mxu0
      %2856 = vmatprep.mubr.bf16.mxu0 0
      %2857 = vmatmul.mubr.bf16.gmra.mrb[0].mxu0 %v1113
      %v2858 = vpop.f32.mrb[0].mxu0
      %v2859 = vadd.f32 0.0, %v2858
      %v2860 = vpop.f32.mrb[0].mxu0
      %v2861 = vpop.f32.mrb[0].mxu0
      %v2862 = vadd.f32 0.0, %v2861
      %v2863 = vpop.f32.mrb[0].mxu0
      %2864 = vmatprep.mubr.bf16.mxu0 0
      %2865 = vmatmul.mubr.bf16.gmra.mrb[0].mxu0 %v1116
      %v2866 = vpop.f32.mrb[0].mxu0
      %v2867 = vadd.f32 0.0, %v2866
      %v2868 = vpop.f32.mrb[0].mxu0
      %v2869 = vpop.f32.mrb[0].mxu0
      %v2870 = vadd.f32 0.0, %v2869
      %v2871 = vpop.f32.mrb[0].mxu0
      %2872 = vmatprep.mubr.bf16.mxu0 0
      %2873 = vmatmul.mubr.bf16.gmra.mrb[0].mxu0 %v1119
      %v2874 = vpop.f32.mrb[0].mxu0
      %v2875 = vadd.f32 0.0, %v2874
      %v2876 = vpop.f32.mrb[0].mxu0
      %v2877 = vpop.f32.mrb[0].mxu0
      %v2878 = vadd.f32 0.0, %v2877
      %v2879 = vpop.f32.mrb[0].mxu0
      %2880 = vmatprep.mubr.bf16.mxu0 0
      %2881 = vmatmul.mubr.bf16.gmra.mrb[0].mxu0 %v1122
      %v2882 = vpop.f32.mrb[0].mxu0
      %v2883 = vadd.f32 0.0, %v2882
      %v2884 = vpop.f32.mrb[0].mxu0
      %v2885 = vpop.f32.mrb[0].mxu0
      %v2886 = vadd.f32 0.0, %v2885
      %v2887 = vpop.f32.mrb[0].mxu0
      %2888 = vmatprep.mubr.bf16.mxu0 0
      %2889 = vmatmul.mubr.bf16.gmra.mrb[0].mxu0 %v1125
      %v2890 = vpop.f32.mrb[0].mxu0
      %v2891 = vadd.f32 0.0, %v2890
      %v2892 = vpop.f32.mrb[0].mxu0
      %v2893 = vpop.f32.mrb[0].mxu0
      %v2894 = vadd.f32 0.0, %v2893
      %v2895 = vpop.f32.mrb[0].mxu0
      %2896 = vmatprep.mubr.bf16.mxu0 0
      %2897 = vmatmul.mubr.bf16.gmra.mrb[0].mxu0 %v1128
      %v2898 = vpop.f32.mrb[0].mxu0
      %v2899 = vadd.f32 0.0, %v2898
      %v2900 = vpop.f32.mrb[0].mxu0
      %v2901 = vpop.f32.mrb[0].mxu0
      %v2902 = vadd.f32 0.0, %v2901
      %v2903 = vpop.f32.mrb[0].mxu0
      %2904 = vmatprep.mubr.bf16.mxu0 0
      %2905 = vmatmul.mubr.bf16.gmra.mrb[0].mxu0 %v1131
      %v2906 = vpop.f32.mrb[0].mxu0
      %v2907 = vadd.f32 0.0, %v2906
      %v2908 = vpop.f32.mrb[0].mxu0
      %v2909 = vpop.f32.mrb[0].mxu0
      %v2910 = vadd.f32 0.0, %v2909
      %v2911 = vpop.f32.mrb[0].mxu0
      %2912 = vmatprep.mubr.bf16.mxu0 0
      %2913 = vmatmul.mubr.bf16.gmra.mrb[0].mxu0 %v1134
      %v2914 = vpop.f32.mrb[0].mxu0
      %v2915 = vadd.f32 0.0, %v2914
      %v2916 = vpop.f32.mrb[0].mxu0
      %v2917 = vpop.f32.mrb[0].mxu0
      %v2918 = vadd.f32 0.0, %v2917
      %v2919 = vpop.f32.mrb[0].mxu0
      %2920 = vmatprep.mubr.bf16.mxu0 0
      %2921 = vmatmul.mubr.bf16.gmra.mrb[0].mxu0 %v1137
      %v2922 = vpop.f32.mrb[0].mxu0
      %v2923 = vadd.f32 0.0, %v2922
      %v2924 = vpop.f32.mrb[0].mxu0
      %v2925 = vpop.f32.mrb[0].mxu0
      %v2926 = vadd.f32 0.0, %v2925
      %v2927 = vpop.f32.mrb[0].mxu0
      %2928 = vmatprep.mubr.bf16.mxu0 0
      %2929 = vmatmul.mubr.bf16.gmra.mrb[0].mxu0 %v1140
      %v2930 = vpop.f32.mrb[0].mxu0
      %v2931 = vadd.f32 0.0, %v2930
      %v2932 = vpop.f32.mrb[0].mxu0
      %v2933 = vpop.f32.mrb[0].mxu0
      %v2934 = vadd.f32 0.0, %v2933
      %v2935 = vpop.f32.mrb[0].mxu0
      %2936 = vmatprep.mubr.bf16.mxu0 0
      %2937 = vmatmul.mubr.bf16.gmra.mrb[0].mxu0 %v1143
      %v2938 = vpop.f32.mrb[0].mxu0
      %v2939 = vadd.f32 0.0, %v2938
      %v2940 = vpop.f32.mrb[0].mxu0
      %v2941 = vpop.f32.mrb[0].mxu0
      %v2942 = vadd.f32 0.0, %v2941
      %v2943 = vpop.f32.mrb[0].mxu0
      %2944 = vmatprep.mubr.bf16.mxu0 0
      %2945 = vmatmul.mubr.bf16.gmra.mrb[0].mxu0 %v1146
      %v2946 = vpop.f32.mrb[0].mxu0
      %v2947 = vadd.f32 0.0, %v2946
      %v2948 = vpop.f32.mrb[0].mxu0
      %v2949 = vpop.f32.mrb[0].mxu0
      %v2950 = vadd.f32 0.0, %v2949
      %v2951 = vpop.f32.mrb[0].mxu0
      %2952 = vmatprep.mubr.bf16.mxu0 0
      %2953 = vmatmul.mubr.bf16.gmra.mrb[0].mxu0 %v1149
      %v2954 = vpop.f32.mrb[0].mxu0
      %v2955 = vadd.f32 0.0, %v2954
      %v2956 = vpop.f32.mrb[0].mxu0
      %v2957 = vpop.f32.mrb[0].mxu0
      %v2958 = vadd.f32 0.0, %v2957
      %v2959 = vpop.f32.mrb[0].mxu0
      %2960 = vmatprep.mubr.bf16.mxu0 0
      %2961 = vmatmul.mubr.bf16.gmra.mrb[0].mxu0 %v1152
      %v2962 = vpop.f32.mrb[0].mxu0
      %v2963 = vadd.f32 0.0, %v2962
      %v2964 = vpop.f32.mrb[0].mxu0
      %v2965 = vpop.f32.mrb[0].mxu0
      %v2966 = vadd.f32 0.0, %v2965
      %v2967 = vpop.f32.mrb[0].mxu0
      %2968 = vmatprep.mubr.bf16.mxu0 0
      %2969 = vmatmul.mubr.bf16.gmra.mrb[0].mxu0 %v1155
      %v2970 = vpop.f32.mrb[0].mxu0
      %v2971 = vadd.f32 0.0, %v2970
      %v2972 = vpop.f32.mrb[0].mxu0
      %v2973 = vpop.f32.mrb[0].mxu0
      %v2974 = vadd.f32 0.0, %v2973
      %v2975 = vpop.f32.mrb[0].mxu0
      %2976 = vmatprep.mubr.bf16.mxu0 0
      %2977 = vmatmul.mubr.bf16.gmra.mrb[0].mxu0 %v1158
      %v2978 = vpop.f32.mrb[0].mxu0
      %v2979 = vadd.f32 0.0, %v2978
      %v2980 = vpop.f32.mrb[0].mxu0
      %v2981 = vpop.f32.mrb[0].mxu0
      %v2982 = vadd.f32 0.0, %v2981
      %v2983 = vpop.f32.mrb[0].mxu0
      %2984 = vmatprep.mubr.bf16.mxu0 0
      %2985 = vmatmul.mubr.bf16.gmra.mrb[0].mxu0 %v1161
      %v2986 = vpop.f32.mrb[0].mxu0
      %v2987 = vadd.f32 0.0, %v2986
      %v2988 = vpop.f32.mrb[0].mxu0
      %v2989 = vpop.f32.mrb[0].mxu0
      %v2990 = vadd.f32 0.0, %v2989
      %v2991 = vpop.f32.mrb[0].mxu0
      %2992 = vmatprep.mubr.bf16.mxu0 0
      %2993 = vmatmul.mubr.bf16.gmra.mrb[0].mxu0 %v1164
      %v2994 = vpop.f32.mrb[0].mxu0
      %v2995 = vadd.f32 0.0, %v2994
      %v2996 = vpop.f32.mrb[0].mxu0
      %v2997 = vpop.f32.mrb[0].mxu0
      %v2998 = vadd.f32 0.0, %v2997
      %v2999 = vpop.f32.mrb[0].mxu0
      %3000 = vmatprep.mubr.bf16.mxu0 0
      %3001 = vmatmul.mubr.bf16.gmra.mrb[0].mxu0 %v1167
      %v3002 = vpop.f32.mrb[0].mxu0
      %v3003 = vadd.f32 0.0, %v3002
      %v3004 = vpop.f32.mrb[0].mxu0
      %v3005 = vpop.f32.mrb[0].mxu0
      %v3006 = vadd.f32 0.0, %v3005
      %v3007 = vpop.f32.mrb[0].mxu0
      %3008 = vmatprep.mubr.bf16.mxu0 0
      %3009 = vmatmul.mubr.bf16.gmra.mrb[0].mxu0 %v1170
      %v3010 = vpop.f32.mrb[0].mxu0
      %v3011 = vadd.f32 0.0, %v3010
      %v3012 = vpop.f32.mrb[0].mxu0
      %v3013 = vpop.f32.mrb[0].mxu0
      %v3014 = vadd.f32 0.0, %v3013
      %v3015 = vpop.f32.mrb[0].mxu0
      %3016 = vmatprep.mubr.bf16.mxu0 0
      %3017 = vmatmul.mubr.bf16.gmra.mrb[0].mxu0 %v1173
      %v3018 = vpop.f32.mrb[0].mxu0
      %v3019 = vadd.f32 0.0, %v3018
      %v3020 = vpop.f32.mrb[0].mxu0
      %v3021 = vpop.f32.mrb[0].mxu0
      %v3022 = vadd.f32 0.0, %v3021
      %v3023 = vpop.f32.mrb[0].mxu0
      %3024 = vmatprep.mubr.bf16.mxu0 0
      %3025 = vmatmul.mubr.bf16.gmra.mrb[0].mxu0 %v1176
      %v3026 = vpop.f32.mrb[0].mxu0
      %v3027 = vadd.f32 0.0, %v3026
      %v3028 = vpop.f32.mrb[0].mxu0
      %v3029 = vpop.f32.mrb[0].mxu0
      %v3030 = vadd.f32 0.0, %v3029
      %v3031 = vpop.f32.mrb[0].mxu0
      %3032 = vmatprep.mubr.bf16.mxu0 0
      %3033 = vmatmul.mubr.bf16.gmra.mrb[0].mxu0 %v1179
      %v3034 = vpop.f32.mrb[0].mxu0
      %v3035 = vadd.f32 0.0, %v3034
      %v3036 = vpop.f32.mrb[0].mxu0
      %v3037 = vpop.f32.mrb[0].mxu0
      %v3038 = vadd.f32 0.0, %v3037
      %v3039 = vpop.f32.mrb[0].mxu0
      %3040 = vmatprep.mubr.bf16.mxu0 0
      %3041 = vmatmul.mubr.bf16.gmra.mrb[0].mxu0 %v1182
      %v3042 = vpop.f32.mrb[0].mxu0
      %v3043 = vadd.f32 0.0, %v3042
      %v3044 = vpop.f32.mrb[0].mxu0
      %v3045 = vpop.f32.mrb[0].mxu0
      %v3046 = vadd.f32 0.0, %v3045
      %v3047 = vpop.f32.mrb[0].mxu0
      %3048 = vmatprep.mubr.bf16.mxu0 0
      %3049 = vmatmul.mubr.bf16.gmra.mrb[0].mxu0 %v1185
      %v3050 = vpop.f32.mrb[0].mxu0
      %v3051 = vadd.f32 0.0, %v3050
      %v3052 = vpop.f32.mrb[0].mxu0
      %v3053 = vpop.f32.mrb[0].mxu0
      %v3054 = vadd.f32 0.0, %v3053
      %v3055 = vpop.f32.mrb[0].mxu0
      %3056 = vmatprep.mubr.bf16.mxu0 0
      %3057 = vmatmul.mubr.bf16.gmra.mrb[0].mxu0 %v1188
      %v3058 = vpop.f32.mrb[0].mxu0
      %v3059 = vadd.f32 0.0, %v3058
      %v3060 = vpop.f32.mrb[0].mxu0
      %v3061 = vpop.f32.mrb[0].mxu0
      %v3062 = vadd.f32 0.0, %v3061
      %v3063 = vpop.f32.mrb[0].mxu0
      %3064 = vmatprep.mubr.bf16.mxu0 0
      %3065 = vmatmul.mubr.bf16.gmra.mrb[0].mxu0 %v1191
      %v3066 = vpop.f32.mrb[0].mxu0
      %v3067 = vadd.f32 0.0, %v3066
      %v3068 = vpop.f32.mrb[0].mxu0
      %v3069 = vpop.f32.mrb[0].mxu0
      %v3070 = vadd.f32 0.0, %v3069
      %v3071 = vpop.f32.mrb[0].mxu0
      %3072 = vmatprep.mubr.bf16.mxu0 0
      %3073 = vmatmul.mubr.bf16.gmra.mrb[0].mxu0 %v1194
      %v3074 = vpop.f32.mrb[0].mxu0
      %v3075 = vadd.f32 0.0, %v3074
      %v3076 = vpop.f32.mrb[0].mxu0
      %v3077 = vpop.f32.mrb[0].mxu0
      %v3078 = vadd.f32 0.0, %v3077
      %v3079 = vpop.f32.mrb[0].mxu0
      %3080 = vmatprep.mubr.bf16.mxu0 0
      %3081 = vmatmul.mubr.bf16.gmra.mrb[0].mxu0 %v1197
      %v3082 = vpop.f32.mrb[0].mxu0
      %v3083 = vadd.f32 0.0, %v3082
      %v3084 = vpop.f32.mrb[0].mxu0
      %v3085 = vpop.f32.mrb[0].mxu0
      %v3086 = vadd.f32 0.0, %v3085
      %v3087 = vpop.f32.mrb[0].mxu0
      %3088 = vmatprep.mubr.bf16.mxu0 0
      %3089 = vmatmul.mubr.bf16.gmra.mrb[0].mxu0 %v1200
      %v3090 = vpop.f32.mrb[0].mxu0
      %v3091 = vadd.f32 0.0, %v3090
      %v3092 = vpop.f32.mrb[0].mxu0
      %v3093 = vpop.f32.mrb[0].mxu0
      %v3094 = vadd.f32 0.0, %v3093
      %v3095 = vpop.f32.mrb[0].mxu0
      %3096 = vmatprep.mubr.bf16.mxu0 0
      %3097 = vmatmul.mubr.bf16.gmra.mrb[0].mxu0 %v1203
      %v3098 = vpop.f32.mrb[0].mxu0
      %v3099 = vadd.f32 0.0, %v3098
      %v3100 = vpop.f32.mrb[0].mxu0
      %v3101 = vpop.f32.mrb[0].mxu0
      %v3102 = vadd.f32 0.0, %v3101
      %v3103 = vpop.f32.mrb[0].mxu0
      %3104 = vmatprep.mubr.bf16.mxu0 0
      %3105 = vmatmul.mubr.bf16.gmra.mrb[0].mxu0 %v1206
      %v3106 = vpop.f32.mrb[0].mxu0
      %v3107 = vadd.f32 0.0, %v3106
      %v3108 = vpop.f32.mrb[0].mxu0
      %v3109 = vpop.f32.mrb[0].mxu0
      %v3110 = vadd.f32 0.0, %v3109
      %v3111 = vpop.f32.mrb[0].mxu0
      %3112 = vmatprep.mubr.bf16.mxu0 0
      %3113 = vmatmul.mubr.bf16.gmra.mrb[0].mxu0 %v1209
      %v3114 = vpop.f32.mrb[0].mxu0
      %v3115 = vadd.f32 0.0, %v3114
      %v3116 = vpop.f32.mrb[0].mxu0
      %v3117 = vpop.f32.mrb[0].mxu0
      %v3118 = vadd.f32 0.0, %v3117
      %v3119 = vpop.f32.mrb[0].mxu0
      %3120 = vmatprep.mubr.bf16.mxu0 0
      %3121 = vmatmul.mubr.bf16.gmra.mrb[0].mxu0 %v1212
      %v3122 = vpop.f32.mrb[0].mxu0
      %v3123 = vadd.f32 0.0, %v3122
      %v3124 = vpop.f32.mrb[0].mxu0
      %v3125 = vpop.f32.mrb[0].mxu0
      %v3126 = vadd.f32 0.0, %v3125
      %v3127 = vpop.f32.mrb[0].mxu0
      %3128 = vmatprep.mubr.bf16.mxu0 0
      %3129 = vmatmul.mubr.bf16.gmra.mrb[0].mxu0 %v1215
      %v3130 = vpop.f32.mrb[0].mxu0
      %v3131 = vadd.f32 0.0, %v3130
      %v3132 = vpop.f32.mrb[0].mxu0
      %v3133 = vpop.f32.mrb[0].mxu0
      %v3134 = vadd.f32 0.0, %v3133
      %v3135 = vpop.f32.mrb[0].mxu0
      %3136 = vmatprep.mubr.bf16.mxu0 0
      %3137 = vmatmul.mubr.bf16.gmra.mrb[0].mxu0 %v2568
      %v3138 = vpop.f32.mrb[0].mxu0
      %v3139 = vadd.f32 0.0, %v3138
      %v3140 = vpop.f32.mrb[0].mxu0
      %v3141 = vpop.f32.mrb[0].mxu0
      %v3142 = vadd.f32 0.0, %v3141
      %v3143 = vpop.f32.mrb[0].mxu0
      %3144 = vmatprep.mubr.bf16.mxu0 0
      %3145 = vmatmul.mubr.bf16.gmra.mrb[0].mxu0 %v2571
      %v3146 = vpop.f32.mrb[0].mxu0
      %v3147 = vadd.f32 0.0, %v3146
      %v3148 = vpop.f32.mrb[0].mxu0
      %v3149 = vpop.f32.mrb[0].mxu0
      %v3150 = vadd.f32 0.0, %v3149
      %v3151 = vpop.f32.mrb[0].mxu0
      %3152 = vmatprep.mubr.bf16.mxu0 0
      %3153 = vmatmul.mubr.bf16.gmra.mrb[0].mxu0 %v2574
      %v3154 = vpop.f32.mrb[0].mxu0
      %v3155 = vadd.f32 0.0, %v3154
      %v3156 = vpop.f32.mrb[0].mxu0
      %v3157 = vpop.f32.mrb[0].mxu0
      %v3158 = vadd.f32 0.0, %v3157
      %v3159 = vpop.f32.mrb[0].mxu0
      %3160 = vdwg.mxu0
      %v3161 = vadd.f32 %v1984, %v2611
      %v3162 = vadd.f32 %v1987, %v2614
      %v3163 = vadd.f32 %v1992, %v2619
      %v3164 = vadd.f32 %v1995, %v2622
      %v3165 = vadd.f32 %v2000, %v2627
      %v3166 = vadd.f32 %v2003, %v2630
      %v3167 = vadd.f32 %v2008, %v2635
      %v3168 = vadd.f32 %v2011, %v2638
      %v3169 = vadd.f32 %v2016, %v2643
      %v3170 = vadd.f32 %v2019, %v2646
      %v3171 = vadd.f32 %v2024, %v2651
      %v3172 = vadd.f32 %v2027, %v2654
      %v3173 = vadd.f32 %v2032, %v2659
      %v3174 = vadd.f32 %v2035, %v2662
      %v3175 = vadd.f32 %v2040, %v2667
      %v3176 = vadd.f32 %v2043, %v2670
      %v3177 = vadd.f32 %v2048, %v2675
      %v3178 = vadd.f32 %v2051, %v2678
      %v3179 = vadd.f32 %v2056, %v2683
      %v3180 = vadd.f32 %v2059, %v2686
      %v3181 = vadd.f32 %v2064, %v2691
      %v3182 = vadd.f32 %v2067, %v2694
      %v3183 = vadd.f32 %v2072, %v2699
      %v3184 = vadd.f32 %v2075, %v2702
      %v3185 = vadd.f32 %v2080, %v2707
      %v3186 = vadd.f32 %v2083, %v2710
      %v3187 = vadd.f32 %v2088, %v2715
      %v3188 = vadd.f32 %v2091, %v2718
      %v3189 = vadd.f32 %v2096, %v2723
      %v3190 = vadd.f32 %v2099, %v2726
      %v3191 = vadd.f32 %v2104, %v2731
      %v3192 = vadd.f32 %v2107, %v2734
      %v3193 = vadd.f32 %v2112, %v2739
      %v3194 = vadd.f32 %v2115, %v2742
      %v3195 = vadd.f32 %v2120, %v2747
      %v3196 = vadd.f32 %v2123, %v2750
      %v3197 = vadd.f32 %v2128, %v2755
      %v3198 = vadd.f32 %v2131, %v2758
      %v3199 = vadd.f32 %v2136, %v2763
      %v3200 = vadd.f32 %v2139, %v2766
      %v3201 = vadd.f32 %v2144, %v2771
      %v3202 = vadd.f32 %v2147, %v2774
      %v3203 = vadd.f32 %v2152, %v2779
      %v3204 = vadd.f32 %v2155, %v2782
      %v3205 = vadd.f32 %v2160, %v2787
      %v3206 = vadd.f32 %v2163, %v2790
      %v3207 = vadd.f32 %v2168, %v2795
      %v3208 = vadd.f32 %v2171, %v2798
      %v3209 = vadd.f32 %v2176, %v2803
      %v3210 = vadd.f32 %v2179, %v2806
      %v3211 = vadd.f32 %v2184, %v2811
      %v3212 = vadd.f32 %v2187, %v2814
      %v3213 = vadd.f32 %v2192, %v2819
      %v3214 = vadd.f32 %v2195, %v2822
      %v3215 = vadd.f32 %v2200, %v2827
      %v3216 = vadd.f32 %v2203, %v2830
      %v3217 = vadd.f32 %v2208, %v2835
      %v3218 = vadd.f32 %v2211, %v2838
      %v3219 = vadd.f32 %v2216, %v2843
      %v3220 = vadd.f32 %v2219, %v2846
      %v3221 = vadd.f32 %v2224, %v2851
      %v3222 = vadd.f32 %v2227, %v2854
      %v3223 = vadd.f32 %v2232, %v2859
      %v3224 = vadd.f32 %v2235, %v2862
      %v3225 = vadd.f32 %v2240, %v2867
      %v3226 = vadd.f32 %v2243, %v2870
      %v3227 = vadd.f32 %v2248, %v2875
      %v3228 = vadd.f32 %v2251, %v2878
      %v3229 = vadd.f32 %v2256, %v2883
      %v3230 = vadd.f32 %v2259, %v2886
      %v3231 = vadd.f32 %v2264, %v2891
      %v3232 = vadd.f32 %v2267, %v2894
      %v3233 = vadd.f32 %v2272, %v2899
      %v3234 = vadd.f32 %v2275, %v2902
      %v3235 = vadd.f32 %v2280, %v2907
      %v3236 = vadd.f32 %v2283, %v2910
      %v3237 = vadd.f32 %v2288, %v2915
      %v3238 = vadd.f32 %v2291, %v2918
      %v3239 = vadd.f32 %v2296, %v2923
      %v3240 = vadd.f32 %v2299, %v2926
      %v3241 = vadd.f32 %v2304, %v2931
      %v3242 = vadd.f32 %v2307, %v2934
      %v3243 = vadd.f32 %v2312, %v2939
      %v3244 = vadd.f32 %v2315, %v2942
      %v3245 = vadd.f32 %v2320, %v2947
      %v3246 = vadd.f32 %v2323, %v2950
      %v3247 = vadd.f32 %v2328, %v2955
      %v3248 = vadd.f32 %v2331, %v2958
      %v3249 = vadd.f32 %v2336, %v2963
      %v3250 = vadd.f32 %v2339, %v2966
      %v3251 = vadd.f32 %v2344, %v2971
      %v3252 = vadd.f32 %v2347, %v2974
      %v3253 = vadd.f32 %v2352, %v2979
      %v3254 = vadd.f32 %v2355, %v2982
      %v3255 = vadd.f32 %v2360, %v2987
      %v3256 = vadd.f32 %v2363, %v2990
      %v3257 = vadd.f32 %v2368, %v2995
      %v3258 = vadd.f32 %v2371, %v2998
      %v3259 = vadd.f32 %v2376, %v3003
      %v3260 = vadd.f32 %v2379, %v3006
      %v3261 = vadd.f32 %v2384, %v3011
      %v3262 = vadd.f32 %v2387, %v3014
      %v3263 = vadd.f32 %v2392, %v3019
      %v3264 = vadd.f32 %v2395, %v3022
      %v3265 = vadd.f32 %v2400, %v3027
      %v3266 = vadd.f32 %v2403, %v3030
      %v3267 = vadd.f32 %v2408, %v3035
      %v3268 = vadd.f32 %v2411, %v3038
      %v3269 = vadd.f32 %v2416, %v3043
      %v3270 = vadd.f32 %v2419, %v3046
      %v3271 = vadd.f32 %v2424, %v3051
      %v3272 = vadd.f32 %v2427, %v3054
      %v3273 = vadd.f32 %v2432, %v3059
      %v3274 = vadd.f32 %v2435, %v3062
      %v3275 = vadd.f32 %v2440, %v3067
      %v3276 = vadd.f32 %v2443, %v3070
      %v3277 = vadd.f32 %v2448, %v3075
      %v3278 = vadd.f32 %v2451, %v3078
      %v3279 = vadd.f32 %v2456, %v3083
      %v3280 = vadd.f32 %v2459, %v3086
      %v3281 = vadd.f32 %v2464, %v3091
      %v3282 = vadd.f32 %v2467, %v3094
      %v3283 = vadd.f32 %v2472, %v3099
      %v3284 = vadd.f32 %v2475, %v3102
      %v3285 = vadd.f32 %v2480, %v3107
      %v3286 = vadd.f32 %v2483, %v3110
      %v3287 = vadd.f32 %v2488, %v3115
      %v3288 = vadd.f32 %v2491, %v3118
      %v3289 = vadd.f32 %v2496, %v3123
      %v3290 = vadd.f32 %v2499, %v3126
      %v3291 = vadd.f32 %v2504, %v3131
      %v3292 = vadd.f32 %v2507, %v3134
      %v3293 = vadd.f32 %v2512, %v3139
      %v3294 = vadd.f32 %v2515, %v3142
      %v3295 = vadd.f32 %v2520, %v3147
      %v3296 = vadd.f32 %v2523, %v3150
      %v3297 = vadd.f32 %v2528, %v3155
      %v3298 = vadd.f32 %v2531, %v3158
      %s3299 = scalar_lea.vmem %s2, 24
      %v3300 = vld [vmem:[%s3299] sm:$0xf]
      %v3301 = vld [vmem:[%s3299 + $0x4] sm:$0xf]
      %vm3372 = vcmask 1046528
      %v3373 = vrot.slane %v376, 1
      %v3374 = vrot.slane %v377, 1
      %v3375 = vsel %vm3372, %v3373, %v3374
      %v3376 = vrot.slane %v378, 1
      %v3377 = vsel %vm3372, %v3374, %v3376
      %v3378 = vrot.slane %v379, 1
      %v3379 = vsel %vm3372, %v3376, %v3378
      %v3380 = vrot.slane %v380, 1
      %v3381 = vsel %vm3372, %v3378, %v3380
      %v3382 = vrot.slane %v381, 1
      %v3383 = vsel %vm3372, %v3380, %v3382
      %v3384 = vrot.slane %v382, 1
      %v3385 = vsel %vm3372, %v3382, %v3384
      %v3386 = vrot.slane %v383, 1
      %v3387 = vsel %vm3372, %v3384, %v3386
      %v3388 = vrot.slane %v384, 1
      %v3389 = vsel %vm3372, %v3386, %v3388
      %v3390 = vrot.slane %v385, 1
      %v3391 = vsel %vm3372, %v3388, %v3390
      %v3392 = vrot.slane %v386, 1
      %v3393 = vsel %vm3372, %v3390, %v3392
      %v3394 = vrot.slane %v387, 1
      %v3395 = vsel %vm3372, %v3392, %v3394
      %v3396 = vrot.slane %v388, 1
      %v3397 = vsel %vm3372, %v3394, %v3396
      %v3398 = vrot.slane %v389, 1
      %v3399 = vsel %vm3372, %v3396, %v3398
      %v3400 = vrot.slane %v390, 1
      %v3401 = vsel %vm3372, %v3398, %v3400
      %v3402 = vrot.slane %v391, 1
      %v3403 = vsel %vm3372, %v3400, %v3402
      %v3404 = vrot.slane %v392, 1
      %v3405 = vsel %vm3372, %v3402, %v3404
      %v3406 = vrot.slane %v393, 1
      %v3407 = vsel %vm3372, %v3404, %v3406
      %v3408 = vrot.slane %v394, 1
      %v3409 = vsel %vm3372, %v3406, %v3408
      %v3410 = vrot.slane %v395, 1
      %v3411 = vsel %vm3372, %v3408, %v3410
      %v3412 = vrot.slane %v396, 1
      %v3413 = vsel %vm3372, %v3410, %v3412
      %v3414 = vrot.slane %v397, 1
      %v3415 = vsel %vm3372, %v3412, %v3414
      %v3416 = vrot.slane %v398, 1
      %v3417 = vsel %vm3372, %v3414, %v3416
      %v3418 = vrot.slane %v399, 1
      %v3419 = vsel %vm3372, %v3416, %v3418
      %v3420 = vrot.slane %v400, 1
      %v3421 = vsel %vm3372, %v3418, %v3420
      %v3422 = vrot.slane %v401, 1
      %v3423 = vsel %vm3372, %v3420, %v3422
      %v3424 = vrot.slane %v402, 1
      %v3425 = vsel %vm3372, %v3422, %v3424
      %v3426 = vrot.slane %v403, 1
      %v3427 = vsel %vm3372, %v3424, %v3426
      %v3428 = vrot.slane %v404, 1
      %v3429 = vsel %vm3372, %v3426, %v3428
      %v3430 = vrot.slane %v405, 1
      %v3431 = vsel %vm3372, %v3428, %v3430
      %v3432 = vrot.slane %v406, 1
      %v3433 = vsel %vm3372, %v3430, %v3432
      %v3434 = vrot.slane %v407, 1
      %v3435 = vsel %vm3372, %v3432, %v3434
      %v3436 = vrot.slane %v408, 1
      %v3437 = vsel %vm3372, %v3434, %v3436
      %v3438 = vrot.slane %v409, 1
      %v3439 = vsel %vm3372, %v3436, %v3438
      %v3440 = vrot.slane %v410, 1
      %v3441 = vsel %vm3372, %v3438, %v3440
      %v3442 = vrot.slane %v411, 1
      %v3443 = vsel %vm3372, %v3440, %v3442
      %v3444 = vrot.slane %v412, 1
      %v3445 = vsel %vm3372, %v3442, %v3444
      %v3446 = vrot.slane %v413, 1
      %v3447 = vsel %vm3372, %v3444, %v3446
      %v3448 = vrot.slane %v414, 1
      %v3449 = vsel %vm3372, %v3446, %v3448
      %v3450 = vrot.slane %v415, 1
      %v3451 = vsel %vm3372, %v3448, %v3450
      %v3452 = vrot.slane %v416, 1
      %v3453 = vsel %vm3372, %v3450, %v3452
      %v3454 = vrot.slane %v417, 1
      %v3455 = vsel %vm3372, %v3452, %v3454
      %v3456 = vrot.slane %v418, 1
      %v3457 = vsel %vm3372, %v3454, %v3456
      %v3458 = vrot.slane %v419, 1
      %v3459 = vsel %vm3372, %v3456, %v3458
      %v3460 = vrot.slane %v420, 1
      %v3461 = vsel %vm3372, %v3458, %v3460
      %v3462 = vrot.slane %v421, 1
      %v3463 = vsel %vm3372, %v3460, %v3462
      %v3464 = vrot.slane %v422, 1
      %v3465 = vsel %vm3372, %v3462, %v3464
      %v3466 = vrot.slane %v423, 1
      %v3467 = vsel %vm3372, %v3464, %v3466
      %v3468 = vrot.slane %v424, 1
      %v3469 = vsel %vm3372, %v3466, %v3468
      %v3470 = vrot.slane %v425, 1
      %v3471 = vsel %vm3372, %v3468, %v3470
      %v3472 = vrot.slane %v426, 1
      %v3473 = vsel %vm3372, %v3470, %v3472
      %v3474 = vrot.slane %v427, 1
      %v3475 = vsel %vm3372, %v3472, %v3474
      %v3476 = vrot.slane %v428, 1
      %v3477 = vsel %vm3372, %v3474, %v3476
      %v3478 = vrot.slane %v429, 1
      %v3479 = vsel %vm3372, %v3476, %v3478
      %v3480 = vrot.slane %v430, 1
      %v3481 = vsel %vm3372, %v3478, %v3480
      %v3482 = vrot.slane %v431, 1
      %v3483 = vsel %vm3372, %v3480, %v3482
      %v3484 = vrot.slane %v432, 1
      %v3485 = vsel %vm3372, %v3482, %v3484
      %v3486 = vrot.slane %v433, 1
      %v3487 = vsel %vm3372, %v3484, %v3486
      %v3488 = vrot.slane %v434, 1
      %v3489 = vsel %vm3372, %v3486, %v3488
      %v3490 = vrot.slane %v435, 1
      %v3491 = vsel %vm3372, %v3488, %v3490
      %v3492 = vrot.slane %v436, 1
      %v3493 = vsel %vm3372, %v3490, %v3492
      %v3494 = vrot.slane %v437, 1
      %v3495 = vsel %vm3372, %v3492, %v3494
      %v3496 = vrot.slane %v438, 1
      %v3497 = vsel %vm3372, %v3494, %v3496
      %v3498 = vrot.slane %v439, 1
      %v3499 = vsel %vm3372, %v3496, %v3498
      %v3500 = vrot.slane %v440, 1
      %v3501 = vsel %vm3372, %v3498, %v3500
      %v3502 = vrot.slane %v441, 1
      %v3503 = vsel %vm3372, %v3500, %v3502
      %v3504 = vrot.slane %v442, 1
      %v3505 = vsel %vm3372, %v3502, %v3504
      %v3506 = vrot.slane %v2534, 1
      %v3507 = vsel %vm3372, %v3504, %v3506
      %v3508 = vrot.slane %v2535, 1
      %v3509 = vsel %vm3372, %v3506, %v3508
      %v3510 = vrot.slane %v2536, 1
      %v3511 = vsel %vm3372, %v3508, %v3510
      %v3514 = vunpack.c.l.b16 %v3300
      %v3515 = vunpack.c.l.b16 %v3301
      %v3516 = vpack.c.b16 %v3515, %v3514
      %v3519 = vsel %vm1012, %v3375, 0
      %v3522 = vsel %vm1012, %v3377, 0
      %v3525 = vsel %vm1012, %v3379, 0
      %v3528 = vsel %vm1012, %v3381, 0
      %v3531 = vsel %vm1012, %v3383, 0
      %v3534 = vsel %vm1012, %v3385, 0
      %v3537 = vsel %vm1012, %v3387, 0
      %v3540 = vsel %vm1012, %v3389, 0
      %v3543 = vsel %vm1012, %v3391, 0
      %v3546 = vsel %vm1012, %v3393, 0
      %v3549 = vsel %vm1012, %v3395, 0
      %v3552 = vsel %vm1012, %v3397, 0
      %v3555 = vsel %vm1012, %v3399, 0
      %v3558 = vsel %vm1012, %v3401, 0
      %v3561 = vsel %vm1012, %v3403, 0
      %v3564 = vsel %vm1012, %v3405, 0
      %v3567 = vsel %vm1012, %v3407, 0
      %v3570 = vsel %vm1012, %v3409, 0
      %v3573 = vsel %vm1012, %v3411, 0
      %v3576 = vsel %vm1012, %v3413, 0
      %v3579 = vsel %vm1012, %v3415, 0
      %v3582 = vsel %vm1012, %v3417, 0
      %v3585 = vsel %vm1012, %v3419, 0
      %v3588 = vsel %vm1012, %v3421, 0
      %v3591 = vsel %vm1012, %v3423, 0
      %v3594 = vsel %vm1012, %v3425, 0
      %v3597 = vsel %vm1012, %v3427, 0
      %v3600 = vsel %vm1012, %v3429, 0
      %v3603 = vsel %vm1012, %v3431, 0
      %v3606 = vsel %vm1012, %v3433, 0
      %v3609 = vsel %vm1012, %v3435, 0
      %v3612 = vsel %vm1012, %v3437, 0
      %v3615 = vsel %vm1012, %v3439, 0
      %v3618 = vsel %vm1012, %v3441, 0
      %v3621 = vsel %vm1012, %v3443, 0
      %v3624 = vsel %vm1012, %v3445, 0
      %v3627 = vsel %vm1012, %v3447, 0
      %v3630 = vsel %vm1012, %v3449, 0
      %v3633 = vsel %vm1012, %v3451, 0
      %v3636 = vsel %vm1012, %v3453, 0
      %v3639 = vsel %vm1012, %v3455, 0
      %v3642 = vsel %vm1012, %v3457, 0
      %v3645 = vsel %vm1012, %v3459, 0
      %v3648 = vsel %vm1012, %v3461, 0
      %v3651 = vsel %vm1012, %v3463, 0
      %v3654 = vsel %vm1012, %v3465, 0
      %v3657 = vsel %vm1012, %v3467, 0
      %v3660 = vsel %vm1012, %v3469, 0
      %v3663 = vsel %vm1012, %v3471, 0
      %v3666 = vsel %vm1012, %v3473, 0
      %v3669 = vsel %vm1012, %v3475, 0
      %v3672 = vsel %vm1012, %v3477, 0
      %v3675 = vsel %vm1012, %v3479, 0
      %v3678 = vsel %vm1012, %v3481, 0
      %v3681 = vsel %vm1012, %v3483, 0
      %v3684 = vsel %vm1012, %v3485, 0
      %v3687 = vsel %vm1012, %v3487, 0
      %v3690 = vsel %vm1012, %v3489, 0
      %v3693 = vsel %vm1012, %v3491, 0
      %v3696 = vsel %vm1012, %v3493, 0
      %v3699 = vsel %vm1012, %v3495, 0
      %v3702 = vsel %vm1012, %v3497, 0
      %v3705 = vsel %vm1012, %v3499, 0
      %v3708 = vsel %vm1012, %v3501, 0
      %v3711 = vsel %vm1012, %v3503, 0
      %v3714 = vsel %vm1012, %v3505, 0
      %v3717 = vsel %vm1012, %v3507, 0
      %v3720 = vsel %vm1012, %v3509, 0
      %v3723 = vsel %vm1012, %v3511, 0
      %3725 = vmatprep.subr.bf16.mxu0 0
      %3726 = vmatpush1.bf16.msra.mxu0 %v3516
      %3727 = vmatprep.subr.bf16.mxu0 0
      %3728 = vmatpush1.bf16.msra.mxu0 0
      %3729 = vmatprep.subr.bf16.mxu0 0
      %3730 = vmatpush1.bf16.msra.mxu0 0
      %3731 = vmatprep.subr.bf16.mxu0 0
      %3732 = vmatpush1.bf16.msra.mxu0 0
      %3733 = vmatprep.subr.bf16.mxu0 0
      %3734 = vmatpush1.bf16.msra.mxu0 0
      %3735 = vmatprep.subr.bf16.mxu0 0
      %3736 = vmatpush1.bf16.msra.mxu0 0
      %3737 = vmatprep.subr.bf16.mxu0 0
      %3738 = vmatpush1.bf16.msra.mxu0 0
      %3739 = vmatprep.subr.bf16.mxu0 0
      %3740 = vmatpush1.bf16.msra.mxu0 0
      %3741 = vmatprep.subr.bf16.mxu0 0
      %3742 = vmatpush1.bf16.msra.mxu0 0
      %3743 = vmatprep.subr.bf16.mxu0 0
      %3744 = vmatpush1.bf16.msra.mxu0 0
      %3745 = vmatprep.subr.bf16.mxu0 0
      %3746 = vmatpush1.bf16.msra.mxu0 0
      %3747 = vmatprep.subr.bf16.mxu0 0
      %3748 = vmatpush1.bf16.msra.mxu0 0
      %3749 = vmatprep.subr.bf16.mxu0 0
      %3750 = vmatpush1.bf16.msra.mxu0 0
      %3751 = vmatprep.subr.bf16.mxu0 0
      %3752 = vmatpush1.bf16.msra.mxu0 0
      %3753 = vmatprep.subr.bf16.mxu0 0
      %3754 = vmatpush1.bf16.msra.mxu0 0
      %3755 = vmatprep.subr.bf16.mxu0 0
      %3756 = vmatpush1.bf16.msra.mxu0 0
      %3757 = vmatprep.mubr.bf16.mxu0 0
      %3758 = vmatmul.mubr.bf16.gmra.mrb[0].mxu0 %v3519
      %v3759 = vpop.f32.mrb[0].mxu0
      %v3760 = vadd.f32 0.0, %v3759
      %v3761 = vpop.f32.mrb[0].mxu0
      %v3762 = vpop.f32.mrb[0].mxu0
      %v3763 = vadd.f32 0.0, %v3762
      %v3764 = vpop.f32.mrb[0].mxu0
      %3765 = vmatprep.mubr.bf16.mxu0 0
      %3766 = vmatmul.mubr.bf16.gmra.mrb[0].mxu0 %v3522
      %v3767 = vpop.f32.mrb[0].mxu0
      %v3768 = vadd.f32 0.0, %v3767
      %v3769 = vpop.f32.mrb[0].mxu0
      %v3770 = vpop.f32.mrb[0].mxu0
      %v3771 = vadd.f32 0.0, %v3770
      %v3772 = vpop.f32.mrb[0].mxu0
      %3773 = vmatprep.mubr.bf16.mxu0 0
      %3774 = vmatmul.mubr.bf16.gmra.mrb[0].mxu0 %v3525
      %v3775 = vpop.f32.mrb[0].mxu0
      %v3776 = vadd.f32 0.0, %v3775
      %v3777 = vpop.f32.mrb[0].mxu0
      %v3778 = vpop.f32.mrb[0].mxu0
      %v3779 = vadd.f32 0.0, %v3778
      %v3780 = vpop.f32.mrb[0].mxu0
      %3781 = vmatprep.mubr.bf16.mxu0 0
      %3782 = vmatmul.mubr.bf16.gmra.mrb[0].mxu0 %v3528
      %v3783 = vpop.f32.mrb[0].mxu0
      %v3784 = vadd.f32 0.0, %v3783
      %v3785 = vpop.f32.mrb[0].mxu0
      %v3786 = vpop.f32.mrb[0].mxu0
      %v3787 = vadd.f32 0.0, %v3786
      %v3788 = vpop.f32.mrb[0].mxu0
      %3789 = vmatprep.mubr.bf16.mxu0 0
      %3790 = vmatmul.mubr.bf16.gmra.mrb[0].mxu0 %v3531
      %v3791 = vpop.f32.mrb[0].mxu0
      %v3792 = vadd.f32 0.0, %v3791
      %v3793 = vpop.f32.mrb[0].mxu0
      %v3794 = vpop.f32.mrb[0].mxu0
      %v3795 = vadd.f32 0.0, %v3794
      %v3796 = vpop.f32.mrb[0].mxu0
      %3797 = vmatprep.mubr.bf16.mxu0 0
      %3798 = vmatmul.mubr.bf16.gmra.mrb[0].mxu0 %v3534
      %v3799 = vpop.f32.mrb[0].mxu0
      %v3800 = vadd.f32 0.0, %v3799
      %v3801 = vpop.f32.mrb[0].mxu0
      %v3802 = vpop.f32.mrb[0].mxu0
      %v3803 = vadd.f32 0.0, %v3802
      %v3804 = vpop.f32.mrb[0].mxu0
      %3805 = vmatprep.mubr.bf16.mxu0 0
      %3806 = vmatmul.mubr.bf16.gmra.mrb[0].mxu0 %v3537
      %v3807 = vpop.f32.mrb[0].mxu0
      %v3808 = vadd.f32 0.0, %v3807
      %v3809 = vpop.f32.mrb[0].mxu0
      %v3810 = vpop.f32.mrb[0].mxu0
      %v3811 = vadd.f32 0.0, %v3810
      %v3812 = vpop.f32.mrb[0].mxu0
      %3813 = vmatprep.mubr.bf16.mxu0 0
      %3814 = vmatmul.mubr.bf16.gmra.mrb[0].mxu0 %v3540
      %v3815 = vpop.f32.mrb[0].mxu0
      %v3816 = vadd.f32 0.0, %v3815
      %v3817 = vpop.f32.mrb[0].mxu0
      %v3818 = vpop.f32.mrb[0].mxu0
      %v3819 = vadd.f32 0.0, %v3818
      %v3820 = vpop.f32.mrb[0].mxu0
      %3821 = vmatprep.mubr.bf16.mxu0 0
      %3822 = vmatmul.mubr.bf16.gmra.mrb[0].mxu0 %v3543
      %v3823 = vpop.f32.mrb[0].mxu0
      %v3824 = vadd.f32 0.0, %v3823
      %v3825 = vpop.f32.mrb[0].mxu0
      %v3826 = vpop.f32.mrb[0].mxu0
      %v3827 = vadd.f32 0.0, %v3826
      %v3828 = vpop.f32.mrb[0].mxu0
      %3829 = vmatprep.mubr.bf16.mxu0 0
      %3830 = vmatmul.mubr.bf16.gmra.mrb[0].mxu0 %v3546
      %v3831 = vpop.f32.mrb[0].mxu0
      %v3832 = vadd.f32 0.0, %v3831
      %v3833 = vpop.f32.mrb[0].mxu0
      %v3834 = vpop.f32.mrb[0].mxu0
      %v3835 = vadd.f32 0.0, %v3834
      %v3836 = vpop.f32.mrb[0].mxu0
      %3837 = vmatprep.mubr.bf16.mxu0 0
      %3838 = vmatmul.mubr.bf16.gmra.mrb[0].mxu0 %v3549
      %v3839 = vpop.f32.mrb[0].mxu0
      %v3840 = vadd.f32 0.0, %v3839
      %v3841 = vpop.f32.mrb[0].mxu0
      %v3842 = vpop.f32.mrb[0].mxu0
      %v3843 = vadd.f32 0.0, %v3842
      %v3844 = vpop.f32.mrb[0].mxu0
      %3845 = vmatprep.mubr.bf16.mxu0 0
      %3846 = vmatmul.mubr.bf16.gmra.mrb[0].mxu0 %v3552
      %v3847 = vpop.f32.mrb[0].mxu0
      %v3848 = vadd.f32 0.0, %v3847
      %v3849 = vpop.f32.mrb[0].mxu0
      %v3850 = vpop.f32.mrb[0].mxu0
      %v3851 = vadd.f32 0.0, %v3850
      %v3852 = vpop.f32.mrb[0].mxu0
      %3853 = vmatprep.mubr.bf16.mxu0 0
      %3854 = vmatmul.mubr.bf16.gmra.mrb[0].mxu0 %v3555
      %v3855 = vpop.f32.mrb[0].mxu0
      %v3856 = vadd.f32 0.0, %v3855
      %v3857 = vpop.f32.mrb[0].mxu0
      %v3858 = vpop.f32.mrb[0].mxu0
      %v3859 = vadd.f32 0.0, %v3858
      %v3860 = vpop.f32.mrb[0].mxu0
      %3861 = vmatprep.mubr.bf16.mxu0 0
      %3862 = vmatmul.mubr.bf16.gmra.mrb[0].mxu0 %v3558
      %v3863 = vpop.f32.mrb[0].mxu0
      %v3864 = vadd.f32 0.0, %v3863
      %v3865 = vpop.f32.mrb[0].mxu0
      %v3866 = vpop.f32.mrb[0].mxu0
      %v3867 = vadd.f32 0.0, %v3866
      %v3868 = vpop.f32.mrb[0].mxu0
      %3869 = vmatprep.mubr.bf16.mxu0 0
      %3870 = vmatmul.mubr.bf16.gmra.mrb[0].mxu0 %v3561
      %v3871 = vpop.f32.mrb[0].mxu0
      %v3872 = vadd.f32 0.0, %v3871
      %v3873 = vpop.f32.mrb[0].mxu0
      %v3874 = vpop.f32.mrb[0].mxu0
      %v3875 = vadd.f32 0.0, %v3874
      %v3876 = vpop.f32.mrb[0].mxu0
      %3877 = vmatprep.mubr.bf16.mxu0 0
      %3878 = vmatmul.mubr.bf16.gmra.mrb[0].mxu0 %v3564
      %v3879 = vpop.f32.mrb[0].mxu0
      %v3880 = vadd.f32 0.0, %v3879
      %v3881 = vpop.f32.mrb[0].mxu0
      %v3882 = vpop.f32.mrb[0].mxu0
      %v3883 = vadd.f32 0.0, %v3882
      %v3884 = vpop.f32.mrb[0].mxu0
      %3885 = vmatprep.mubr.bf16.mxu0 0
      %3886 = vmatmul.mubr.bf16.gmra.mrb[0].mxu0 %v3567
      %v3887 = vpop.f32.mrb[0].mxu0
      %v3888 = vadd.f32 0.0, %v3887
      %v3889 = vpop.f32.mrb[0].mxu0
      %v3890 = vpop.f32.mrb[0].mxu0
      %v3891 = vadd.f32 0.0, %v3890
      %v3892 = vpop.f32.mrb[0].mxu0
      %3893 = vmatprep.mubr.bf16.mxu0 0
      %3894 = vmatmul.mubr.bf16.gmra.mrb[0].mxu0 %v3570
      %v3895 = vpop.f32.mrb[0].mxu0
      %v3896 = vadd.f32 0.0, %v3895
      %v3897 = vpop.f32.mrb[0].mxu0
      %v3898 = vpop.f32.mrb[0].mxu0
      %v3899 = vadd.f32 0.0, %v3898
      %v3900 = vpop.f32.mrb[0].mxu0
      %3901 = vmatprep.mubr.bf16.mxu0 0
      %3902 = vmatmul.mubr.bf16.gmra.mrb[0].mxu0 %v3573
      %v3903 = vpop.f32.mrb[0].mxu0
      %v3904 = vadd.f32 0.0, %v3903
      %v3905 = vpop.f32.mrb[0].mxu0
      %v3906 = vpop.f32.mrb[0].mxu0
      %v3907 = vadd.f32 0.0, %v3906
      %v3908 = vpop.f32.mrb[0].mxu0
      %3909 = vmatprep.mubr.bf16.mxu0 0
      %3910 = vmatmul.mubr.bf16.gmra.mrb[0].mxu0 %v3576
      %v3911 = vpop.f32.mrb[0].mxu0
      %v3912 = vadd.f32 0.0, %v3911
      %v3913 = vpop.f32.mrb[0].mxu0
      %v3914 = vpop.f32.mrb[0].mxu0
      %v3915 = vadd.f32 0.0, %v3914
      %v3916 = vpop.f32.mrb[0].mxu0
      %3917 = vmatprep.mubr.bf16.mxu0 0
      %3918 = vmatmul.mubr.bf16.gmra.mrb[0].mxu0 %v3579
      %v3919 = vpop.f32.mrb[0].mxu0
      %v3920 = vadd.f32 0.0, %v3919
      %v3921 = vpop.f32.mrb[0].mxu0
      %v3922 = vpop.f32.mrb[0].mxu0
      %v3923 = vadd.f32 0.0, %v3922
      %v3924 = vpop.f32.mrb[0].mxu0
      %3925 = vmatprep.mubr.bf16.mxu0 0
      %3926 = vmatmul.mubr.bf16.gmra.mrb[0].mxu0 %v3582
      %v3927 = vpop.f32.mrb[0].mxu0
      %v3928 = vadd.f32 0.0, %v3927
      %v3929 = vpop.f32.mrb[0].mxu0
      %v3930 = vpop.f32.mrb[0].mxu0
      %v3931 = vadd.f32 0.0, %v3930
      %v3932 = vpop.f32.mrb[0].mxu0
      %3933 = vmatprep.mubr.bf16.mxu0 0
      %3934 = vmatmul.mubr.bf16.gmra.mrb[0].mxu0 %v3585
      %v3935 = vpop.f32.mrb[0].mxu0
      %v3936 = vadd.f32 0.0, %v3935
      %v3937 = vpop.f32.mrb[0].mxu0
      %v3938 = vpop.f32.mrb[0].mxu0
      %v3939 = vadd.f32 0.0, %v3938
      %v3940 = vpop.f32.mrb[0].mxu0
      %3941 = vmatprep.mubr.bf16.mxu0 0
      %3942 = vmatmul.mubr.bf16.gmra.mrb[0].mxu0 %v3588
      %v3943 = vpop.f32.mrb[0].mxu0
      %v3944 = vadd.f32 0.0, %v3943
      %v3945 = vpop.f32.mrb[0].mxu0
      %v3946 = vpop.f32.mrb[0].mxu0
      %v3947 = vadd.f32 0.0, %v3946
      %v3948 = vpop.f32.mrb[0].mxu0
      %3949 = vmatprep.mubr.bf16.mxu0 0
      %3950 = vmatmul.mubr.bf16.gmra.mrb[0].mxu0 %v3591
      %v3951 = vpop.f32.mrb[0].mxu0
      %v3952 = vadd.f32 0.0, %v3951
      %v3953 = vpop.f32.mrb[0].mxu0
      %v3954 = vpop.f32.mrb[0].mxu0
      %v3955 = vadd.f32 0.0, %v3954
      %v3956 = vpop.f32.mrb[0].mxu0
      %3957 = vmatprep.mubr.bf16.mxu0 0
      %3958 = vmatmul.mubr.bf16.gmra.mrb[0].mxu0 %v3594
      %v3959 = vpop.f32.mrb[0].mxu0
      %v3960 = vadd.f32 0.0, %v3959
      %v3961 = vpop.f32.mrb[0].mxu0
      %v3962 = vpop.f32.mrb[0].mxu0
      %v3963 = vadd.f32 0.0, %v3962
      %v3964 = vpop.f32.mrb[0].mxu0
      %3965 = vmatprep.mubr.bf16.mxu0 0
      %3966 = vmatmul.mubr.bf16.gmra.mrb[0].mxu0 %v3597
      %v3967 = vpop.f32.mrb[0].mxu0
      %v3968 = vadd.f32 0.0, %v3967
      %v3969 = vpop.f32.mrb[0].mxu0
      %v3970 = vpop.f32.mrb[0].mxu0
      %v3971 = vadd.f32 0.0, %v3970
      %v3972 = vpop.f32.mrb[0].mxu0
      %3973 = vmatprep.mubr.bf16.mxu0 0
      %3974 = vmatmul.mubr.bf16.gmra.mrb[0].mxu0 %v3600
      %v3975 = vpop.f32.mrb[0].mxu0
      %v3976 = vadd.f32 0.0, %v3975
      %v3977 = vpop.f32.mrb[0].mxu0
      %v3978 = vpop.f32.mrb[0].mxu0
      %v3979 = vadd.f32 0.0, %v3978
      %v3980 = vpop.f32.mrb[0].mxu0
      %3981 = vmatprep.mubr.bf16.mxu0 0
      %3982 = vmatmul.mubr.bf16.gmra.mrb[0].mxu0 %v3603
      %v3983 = vpop.f32.mrb[0].mxu0
      %v3984 = vadd.f32 0.0, %v3983
      %v3985 = vpop.f32.mrb[0].mxu0
      %v3986 = vpop.f32.mrb[0].mxu0
      %v3987 = vadd.f32 0.0, %v3986
      %v3988 = vpop.f32.mrb[0].mxu0
      %3989 = vmatprep.mubr.bf16.mxu0 0
      %3990 = vmatmul.mubr.bf16.gmra.mrb[0].mxu0 %v3606
      %v3991 = vpop.f32.mrb[0].mxu0
      %v3992 = vadd.f32 0.0, %v3991
      %v3993 = vpop.f32.mrb[0].mxu0
      %v3994 = vpop.f32.mrb[0].mxu0
      %v3995 = vadd.f32 0.0, %v3994
      %v3996 = vpop.f32.mrb[0].mxu0
      %3997 = vmatprep.mubr.bf16.mxu0 0
      %3998 = vmatmul.mubr.bf16.gmra.mrb[0].mxu0 %v3609
      %v3999 = vpop.f32.mrb[0].mxu0
      %v4000 = vadd.f32 0.0, %v3999
      %v4001 = vpop.f32.mrb[0].mxu0
      %v4002 = vpop.f32.mrb[0].mxu0
      %v4003 = vadd.f32 0.0, %v4002
      %v4004 = vpop.f32.mrb[0].mxu0
      %4005 = vmatprep.mubr.bf16.mxu0 0
      %4006 = vmatmul.mubr.bf16.gmra.mrb[0].mxu0 %v3612
      %v4007 = vpop.f32.mrb[0].mxu0
      %v4008 = vadd.f32 0.0, %v4007
      %v4009 = vpop.f32.mrb[0].mxu0
      %v4010 = vpop.f32.mrb[0].mxu0
      %v4011 = vadd.f32 0.0, %v4010
      %v4012 = vpop.f32.mrb[0].mxu0
      %4013 = vmatprep.mubr.bf16.mxu0 0
      %4014 = vmatmul.mubr.bf16.gmra.mrb[0].mxu0 %v3615
      %v4015 = vpop.f32.mrb[0].mxu0
      %v4016 = vadd.f32 0.0, %v4015
      %v4017 = vpop.f32.mrb[0].mxu0
      %v4018 = vpop.f32.mrb[0].mxu0
      %v4019 = vadd.f32 0.0, %v4018
      %v4020 = vpop.f32.mrb[0].mxu0
      %4021 = vmatprep.mubr.bf16.mxu0 0
      %4022 = vmatmul.mubr.bf16.gmra.mrb[0].mxu0 %v3618
      %v4023 = vpop.f32.mrb[0].mxu0
      %v4024 = vadd.f32 0.0, %v4023
      %v4025 = vpop.f32.mrb[0].mxu0
      %v4026 = vpop.f32.mrb[0].mxu0
      %v4027 = vadd.f32 0.0, %v4026
      %v4028 = vpop.f32.mrb[0].mxu0
      %4029 = vmatprep.mubr.bf16.mxu0 0
      %4030 = vmatmul.mubr.bf16.gmra.mrb[0].mxu0 %v3621
      %v4031 = vpop.f32.mrb[0].mxu0
      %v4032 = vadd.f32 0.0, %v4031
      %v4033 = vpop.f32.mrb[0].mxu0
      %v4034 = vpop.f32.mrb[0].mxu0
      %v4035 = vadd.f32 0.0, %v4034
      %v4036 = vpop.f32.mrb[0].mxu0
      %4037 = vmatprep.mubr.bf16.mxu0 0
      %4038 = vmatmul.mubr.bf16.gmra.mrb[0].mxu0 %v3624
      %v4039 = vpop.f32.mrb[0].mxu0
      %v4040 = vadd.f32 0.0, %v4039
      %v4041 = vpop.f32.mrb[0].mxu0
      %v4042 = vpop.f32.mrb[0].mxu0
      %v4043 = vadd.f32 0.0, %v4042
      %v4044 = vpop.f32.mrb[0].mxu0
      %4045 = vmatprep.mubr.bf16.mxu0 0
      %4046 = vmatmul.mubr.bf16.gmra.mrb[0].mxu0 %v3627
      %v4047 = vpop.f32.mrb[0].mxu0
      %v4048 = vadd.f32 0.0, %v4047
      %v4049 = vpop.f32.mrb[0].mxu0
      %v4050 = vpop.f32.mrb[0].mxu0
      %v4051 = vadd.f32 0.0, %v4050
      %v4052 = vpop.f32.mrb[0].mxu0
      %4053 = vmatprep.mubr.bf16.mxu0 0
      %4054 = vmatmul.mubr.bf16.gmra.mrb[0].mxu0 %v3630
      %v4055 = vpop.f32.mrb[0].mxu0
      %v4056 = vadd.f32 0.0, %v4055
      %v4057 = vpop.f32.mrb[0].mxu0
      %v4058 = vpop.f32.mrb[0].mxu0
      %v4059 = vadd.f32 0.0, %v4058
      %v4060 = vpop.f32.mrb[0].mxu0
      %4061 = vmatprep.mubr.bf16.mxu0 0
      %4062 = vmatmul.mubr.bf16.gmra.mrb[0].mxu0 %v3633
      %v4063 = vpop.f32.mrb[0].mxu0
      %v4064 = vadd.f32 0.0, %v4063
      %v4065 = vpop.f32.mrb[0].mxu0
      %v4066 = vpop.f32.mrb[0].mxu0
      %v4067 = vadd.f32 0.0, %v4066
      %v4068 = vpop.f32.mrb[0].mxu0
      %4069 = vmatprep.mubr.bf16.mxu0 0
      %4070 = vmatmul.mubr.bf16.gmra.mrb[0].mxu0 %v3636
      %v4071 = vpop.f32.mrb[0].mxu0
      %v4072 = vadd.f32 0.0, %v4071
      %v4073 = vpop.f32.mrb[0].mxu0
      %v4074 = vpop.f32.mrb[0].mxu0
      %v4075 = vadd.f32 0.0, %v4074
      %v4076 = vpop.f32.mrb[0].mxu0
      %4077 = vmatprep.mubr.bf16.mxu0 0
      %4078 = vmatmul.mubr.bf16.gmra.mrb[0].mxu0 %v3639
      %v4079 = vpop.f32.mrb[0].mxu0
      %v4080 = vadd.f32 0.0, %v4079
      %v4081 = vpop.f32.mrb[0].mxu0
      %v4082 = vpop.f32.mrb[0].mxu0
      %v4083 = vadd.f32 0.0, %v4082
      %v4084 = vpop.f32.mrb[0].mxu0
      %4085 = vmatprep.mubr.bf16.mxu0 0
      %4086 = vmatmul.mubr.bf16.gmra.mrb[0].mxu0 %v3642
      %v4087 = vpop.f32.mrb[0].mxu0
      %v4088 = vadd.f32 0.0, %v4087
      %v4089 = vpop.f32.mrb[0].mxu0
      %v4090 = vpop.f32.mrb[0].mxu0
      %v4091 = vadd.f32 0.0, %v4090
      %v4092 = vpop.f32.mrb[0].mxu0
      %4093 = vmatprep.mubr.bf16.mxu0 0
      %4094 = vmatmul.mubr.bf16.gmra.mrb[0].mxu0 %v3645
      %v4095 = vpop.f32.mrb[0].mxu0
      %v4096 = vadd.f32 0.0, %v4095
      %v4097 = vpop.f32.mrb[0].mxu0
      %v4098 = vpop.f32.mrb[0].mxu0
      %v4099 = vadd.f32 0.0, %v4098
      %v4100 = vpop.f32.mrb[0].mxu0
      %4101 = vmatprep.mubr.bf16.mxu0 0
      %4102 = vmatmul.mubr.bf16.gmra.mrb[0].mxu0 %v3648
      %v4103 = vpop.f32.mrb[0].mxu0
      %v4104 = vadd.f32 0.0, %v4103
      %v4105 = vpop.f32.mrb[0].mxu0
      %v4106 = vpop.f32.mrb[0].mxu0
      %v4107 = vadd.f32 0.0, %v4106
      %v4108 = vpop.f32.mrb[0].mxu0
      %4109 = vmatprep.mubr.bf16.mxu0 0
      %4110 = vmatmul.mubr.bf16.gmra.mrb[0].mxu0 %v3651
      %v4111 = vpop.f32.mrb[0].mxu0
      %v4112 = vadd.f32 0.0, %v4111
      %v4113 = vpop.f32.mrb[0].mxu0
      %v4114 = vpop.f32.mrb[0].mxu0
      %v4115 = vadd.f32 0.0, %v4114
      %v4116 = vpop.f32.mrb[0].mxu0
      %4117 = vmatprep.mubr.bf16.mxu0 0
      %4118 = vmatmul.mubr.bf16.gmra.mrb[0].mxu0 %v3654
      %v4119 = vpop.f32.mrb[0].mxu0
      %v4120 = vadd.f32 0.0, %v4119
      %v4121 = vpop.f32.mrb[0].mxu0
      %v4122 = vpop.f32.mrb[0].mxu0
      %v4123 = vadd.f32 0.0, %v4122
      %v4124 = vpop.f32.mrb[0].mxu0
      %4125 = vmatprep.mubr.bf16.mxu0 0
      %4126 = vmatmul.mubr.bf16.gmra.mrb[0].mxu0 %v3657
      %v4127 = vpop.f32.mrb[0].mxu0
      %v4128 = vadd.f32 0.0, %v4127
      %v4129 = vpop.f32.mrb[0].mxu0
      %v4130 = vpop.f32.mrb[0].mxu0
      %v4131 = vadd.f32 0.0, %v4130
      %v4132 = vpop.f32.mrb[0].mxu0
      %4133 = vmatprep.mubr.bf16.mxu0 0
      %4134 = vmatmul.mubr.bf16.gmra.mrb[0].mxu0 %v3660
      %v4135 = vpop.f32.mrb[0].mxu0
      %v4136 = vadd.f32 0.0, %v4135
      %v4137 = vpop.f32.mrb[0].mxu0
      %v4138 = vpop.f32.mrb[0].mxu0
      %v4139 = vadd.f32 0.0, %v4138
      %v4140 = vpop.f32.mrb[0].mxu0
      %4141 = vmatprep.mubr.bf16.mxu0 0
      %4142 = vmatmul.mubr.bf16.gmra.mrb[0].mxu0 %v3663
      %v4143 = vpop.f32.mrb[0].mxu0
      %v4144 = vadd.f32 0.0, %v4143
      %v4145 = vpop.f32.mrb[0].mxu0
      %v4146 = vpop.f32.mrb[0].mxu0
      %v4147 = vadd.f32 0.0, %v4146
      %v4148 = vpop.f32.mrb[0].mxu0
      %4149 = vmatprep.mubr.bf16.mxu0 0
      %4150 = vmatmul.mubr.bf16.gmra.mrb[0].mxu0 %v3666
      %v4151 = vpop.f32.mrb[0].mxu0
      %v4152 = vadd.f32 0.0, %v4151
      %v4153 = vpop.f32.mrb[0].mxu0
      %v4154 = vpop.f32.mrb[0].mxu0
      %v4155 = vadd.f32 0.0, %v4154
      %v4156 = vpop.f32.mrb[0].mxu0
      %4157 = vmatprep.mubr.bf16.mxu0 0
      %4158 = vmatmul.mubr.bf16.gmra.mrb[0].mxu0 %v3669
      %v4159 = vpop.f32.mrb[0].mxu0
      %v4160 = vadd.f32 0.0, %v4159
      %v4161 = vpop.f32.mrb[0].mxu0
      %v4162 = vpop.f32.mrb[0].mxu0
      %v4163 = vadd.f32 0.0, %v4162
      %v4164 = vpop.f32.mrb[0].mxu0
      %4165 = vmatprep.mubr.bf16.mxu0 0
      %4166 = vmatmul.mubr.bf16.gmra.mrb[0].mxu0 %v3672
      %v4167 = vpop.f32.mrb[0].mxu0
      %v4168 = vadd.f32 0.0, %v4167
      %v4169 = vpop.f32.mrb[0].mxu0
      %v4170 = vpop.f32.mrb[0].mxu0
      %v4171 = vadd.f32 0.0, %v4170
      %v4172 = vpop.f32.mrb[0].mxu0
      %4173 = vmatprep.mubr.bf16.mxu0 0
      %4174 = vmatmul.mubr.bf16.gmra.mrb[0].mxu0 %v3675
      %v4175 = vpop.f32.mrb[0].mxu0
      %v4176 = vadd.f32 0.0, %v4175
      %v4177 = vpop.f32.mrb[0].mxu0
      %v4178 = vpop.f32.mrb[0].mxu0
      %v4179 = vadd.f32 0.0, %v4178
      %v4180 = vpop.f32.mrb[0].mxu0
      %4181 = vmatprep.mubr.bf16.mxu0 0
      %4182 = vmatmul.mubr.bf16.gmra.mrb[0].mxu0 %v3678
      %v4183 = vpop.f32.mrb[0].mxu0
      %v4184 = vadd.f32 0.0, %v4183
      %v4185 = vpop.f32.mrb[0].mxu0
      %v4186 = vpop.f32.mrb[0].mxu0
      %v4187 = vadd.f32 0.0, %v4186
      %v4188 = vpop.f32.mrb[0].mxu0
      %4189 = vmatprep.mubr.bf16.mxu0 0
      %4190 = vmatmul.mubr.bf16.gmra.mrb[0].mxu0 %v3681
      %v4191 = vpop.f32.mrb[0].mxu0
      %v4192 = vadd.f32 0.0, %v4191
      %v4193 = vpop.f32.mrb[0].mxu0
      %v4194 = vpop.f32.mrb[0].mxu0
      %v4195 = vadd.f32 0.0, %v4194
      %v4196 = vpop.f32.mrb[0].mxu0
      %4197 = vmatprep.mubr.bf16.mxu0 0
      %4198 = vmatmul.mubr.bf16.gmra.mrb[0].mxu0 %v3684
      %v4199 = vpop.f32.mrb[0].mxu0
      %v4200 = vadd.f32 0.0, %v4199
      %v4201 = vpop.f32.mrb[0].mxu0
      %v4202 = vpop.f32.mrb[0].mxu0
      %v4203 = vadd.f32 0.0, %v4202
      %v4204 = vpop.f32.mrb[0].mxu0
      %4205 = vmatprep.mubr.bf16.mxu0 0
      %4206 = vmatmul.mubr.bf16.gmra.mrb[0].mxu0 %v3687
      %v4207 = vpop.f32.mrb[0].mxu0
      %v4208 = vadd.f32 0.0, %v4207
      %v4209 = vpop.f32.mrb[0].mxu0
      %v4210 = vpop.f32.mrb[0].mxu0
      %v4211 = vadd.f32 0.0, %v4210
      %v4212 = vpop.f32.mrb[0].mxu0
      %4213 = vmatprep.mubr.bf16.mxu0 0
      %4214 = vmatmul.mubr.bf16.gmra.mrb[0].mxu0 %v3690
      %v4215 = vpop.f32.mrb[0].mxu0
      %v4216 = vadd.f32 0.0, %v4215
      %v4217 = vpop.f32.mrb[0].mxu0
      %v4218 = vpop.f32.mrb[0].mxu0
      %v4219 = vadd.f32 0.0, %v4218
      %v4220 = vpop.f32.mrb[0].mxu0
      %4221 = vmatprep.mubr.bf16.mxu0 0
      %4222 = vmatmul.mubr.bf16.gmra.mrb[0].mxu0 %v3693
      %v4223 = vpop.f32.mrb[0].mxu0
      %v4224 = vadd.f32 0.0, %v4223
      %v4225 = vpop.f32.mrb[0].mxu0
      %v4226 = vpop.f32.mrb[0].mxu0
      %v4227 = vadd.f32 0.0, %v4226
      %v4228 = vpop.f32.mrb[0].mxu0
      %4229 = vmatprep.mubr.bf16.mxu0 0
      %4230 = vmatmul.mubr.bf16.gmra.mrb[0].mxu0 %v3696
      %v4231 = vpop.f32.mrb[0].mxu0
      %v4232 = vadd.f32 0.0, %v4231
      %v4233 = vpop.f32.mrb[0].mxu0
      %v4234 = vpop.f32.mrb[0].mxu0
      %v4235 = vadd.f32 0.0, %v4234
      %v4236 = vpop.f32.mrb[0].mxu0
      %4237 = vmatprep.mubr.bf16.mxu0 0
      %4238 = vmatmul.mubr.bf16.gmra.mrb[0].mxu0 %v3699
      %v4239 = vpop.f32.mrb[0].mxu0
      %v4240 = vadd.f32 0.0, %v4239
      %v4241 = vpop.f32.mrb[0].mxu0
      %v4242 = vpop.f32.mrb[0].mxu0
      %v4243 = vadd.f32 0.0, %v4242
      %v4244 = vpop.f32.mrb[0].mxu0
      %4245 = vmatprep.mubr.bf16.mxu0 0
      %4246 = vmatmul.mubr.bf16.gmra.mrb[0].mxu0 %v3702
      %v4247 = vpop.f32.mrb[0].mxu0
      %v4248 = vadd.f32 0.0, %v4247
      %v4249 = vpop.f32.mrb[0].mxu0
      %v4250 = vpop.f32.mrb[0].mxu0
      %v4251 = vadd.f32 0.0, %v4250
      %v4252 = vpop.f32.mrb[0].mxu0
      %4253 = vmatprep.mubr.bf16.mxu0 0
      %4254 = vmatmul.mubr.bf16.gmra.mrb[0].mxu0 %v3705
      %v4255 = vpop.f32.mrb[0].mxu0
      %v4256 = vadd.f32 0.0, %v4255
      %v4257 = vpop.f32.mrb[0].mxu0
      %v4258 = vpop.f32.mrb[0].mxu0
      %v4259 = vadd.f32 0.0, %v4258
      %v4260 = vpop.f32.mrb[0].mxu0
      %4261 = vmatprep.mubr.bf16.mxu0 0
      %4262 = vmatmul.mubr.bf16.gmra.mrb[0].mxu0 %v3708
      %v4263 = vpop.f32.mrb[0].mxu0
      %v4264 = vadd.f32 0.0, %v4263
      %v4265 = vpop.f32.mrb[0].mxu0
      %v4266 = vpop.f32.mrb[0].mxu0
      %v4267 = vadd.f32 0.0, %v4266
      %v4268 = vpop.f32.mrb[0].mxu0
      %4269 = vmatprep.mubr.bf16.mxu0 0
      %4270 = vmatmul.mubr.bf16.gmra.mrb[0].mxu0 %v3711
      %v4271 = vpop.f32.mrb[0].mxu0
      %v4272 = vadd.f32 0.0, %v4271
      %v4273 = vpop.f32.mrb[0].mxu0
      %v4274 = vpop.f32.mrb[0].mxu0
      %v4275 = vadd.f32 0.0, %v4274
      %v4276 = vpop.f32.mrb[0].mxu0
      %4277 = vmatprep.mubr.bf16.mxu0 0
      %4278 = vmatmul.mubr.bf16.gmra.mrb[0].mxu0 %v3714
      %v4279 = vpop.f32.mrb[0].mxu0
      %v4280 = vadd.f32 0.0, %v4279
      %v4281 = vpop.f32.mrb[0].mxu0
      %v4282 = vpop.f32.mrb[0].mxu0
      %v4283 = vadd.f32 0.0, %v4282
      %v4284 = vpop.f32.mrb[0].mxu0
      %4285 = vmatprep.mubr.bf16.mxu0 0
      %4286 = vmatmul.mubr.bf16.gmra.mrb[0].mxu0 %v3717
      %v4287 = vpop.f32.mrb[0].mxu0
      %v4288 = vadd.f32 0.0, %v4287
      %v4289 = vpop.f32.mrb[0].mxu0
      %v4290 = vpop.f32.mrb[0].mxu0
      %v4291 = vadd.f32 0.0, %v4290
      %v4292 = vpop.f32.mrb[0].mxu0
      %4293 = vmatprep.mubr.bf16.mxu0 0
      %4294 = vmatmul.mubr.bf16.gmra.mrb[0].mxu0 %v3720
      %v4295 = vpop.f32.mrb[0].mxu0
      %v4296 = vadd.f32 0.0, %v4295
      %v4297 = vpop.f32.mrb[0].mxu0
      %v4298 = vpop.f32.mrb[0].mxu0
      %v4299 = vadd.f32 0.0, %v4298
      %v4300 = vpop.f32.mrb[0].mxu0
      %4301 = vmatprep.mubr.bf16.mxu0 0
      %4302 = vmatmul.mubr.bf16.gmra.mrb[0].mxu0 %v3723
      %v4303 = vpop.f32.mrb[0].mxu0
      %v4304 = vadd.f32 0.0, %v4303
      %v4305 = vpop.f32.mrb[0].mxu0
      %v4306 = vpop.f32.mrb[0].mxu0
      %v4307 = vadd.f32 0.0, %v4306
      %v4308 = vpop.f32.mrb[0].mxu0
      %4309 = vdwg.mxu0
      %v4310 = vadd.f32 %v3161, %v3760
      %v4311 = vadd.f32 %v3162, %v3763
      %v4312 = vadd.f32 %v3163, %v3768
      %v4313 = vadd.f32 %v3164, %v3771
      %v4314 = vadd.f32 %v3165, %v3776
      %v4315 = vadd.f32 %v3166, %v3779
      %v4316 = vadd.f32 %v3167, %v3784
      %v4317 = vadd.f32 %v3168, %v3787
      %v4318 = vadd.f32 %v3169, %v3792
      %v4319 = vadd.f32 %v3170, %v3795
      %v4320 = vadd.f32 %v3171, %v3800
      %v4321 = vadd.f32 %v3172, %v3803
      %v4322 = vadd.f32 %v3173, %v3808
      %v4323 = vadd.f32 %v3174, %v3811
      %v4324 = vadd.f32 %v3175, %v3816
      %v4325 = vadd.f32 %v3176, %v3819
      %v4326 = vadd.f32 %v3177, %v3824
      %v4327 = vadd.f32 %v3178, %v3827
      %v4328 = vadd.f32 %v3179, %v3832
      %v4329 = vadd.f32 %v3180, %v3835
      %v4330 = vadd.f32 %v3181, %v3840
      %v4331 = vadd.f32 %v3182, %v3843
      %v4332 = vadd.f32 %v3183, %v3848
      %v4333 = vadd.f32 %v3184, %v3851
      %v4334 = vadd.f32 %v3185, %v3856
      %v4335 = vadd.f32 %v3186, %v3859
      %v4336 = vadd.f32 %v3187, %v3864
      %v4337 = vadd.f32 %v3188, %v3867
      %v4338 = vadd.f32 %v3189, %v3872
      %v4339 = vadd.f32 %v3190, %v3875
      %v4340 = vadd.f32 %v3191, %v3880
      %v4341 = vadd.f32 %v3192, %v3883
      %v4342 = vadd.f32 %v3193, %v3888
      %v4343 = vadd.f32 %v3194, %v3891
      %v4344 = vadd.f32 %v3195, %v3896
      %v4345 = vadd.f32 %v3196, %v3899
      %v4346 = vadd.f32 %v3197, %v3904
      %v4347 = vadd.f32 %v3198, %v3907
      %v4348 = vadd.f32 %v3199, %v3912
      %v4349 = vadd.f32 %v3200, %v3915
      %v4350 = vadd.f32 %v3201, %v3920
      %v4351 = vadd.f32 %v3202, %v3923
      %v4352 = vadd.f32 %v3203, %v3928
      %v4353 = vadd.f32 %v3204, %v3931
      %v4354 = vadd.f32 %v3205, %v3936
      %v4355 = vadd.f32 %v3206, %v3939
      %v4356 = vadd.f32 %v3207, %v3944
      %v4357 = vadd.f32 %v3208, %v3947
      %v4358 = vadd.f32 %v3209, %v3952
      %v4359 = vadd.f32 %v3210, %v3955
      %v4360 = vadd.f32 %v3211, %v3960
      %v4361 = vadd.f32 %v3212, %v3963
      %v4362 = vadd.f32 %v3213, %v3968
      %v4363 = vadd.f32 %v3214, %v3971
      %v4364 = vadd.f32 %v3215, %v3976
      %v4365 = vadd.f32 %v3216, %v3979
      %v4366 = vadd.f32 %v3217, %v3984
      %v4367 = vadd.f32 %v3218, %v3987
      %v4368 = vadd.f32 %v3219, %v3992
      %v4369 = vadd.f32 %v3220, %v3995
      %v4370 = vadd.f32 %v3221, %v4000
      %v4371 = vadd.f32 %v3222, %v4003
      %v4372 = vadd.f32 %v3223, %v4008
      %v4373 = vadd.f32 %v3224, %v4011
      %v4374 = vadd.f32 %v3225, %v4016
      %v4375 = vadd.f32 %v3226, %v4019
      %v4376 = vadd.f32 %v3227, %v4024
      %v4377 = vadd.f32 %v3228, %v4027
      %v4378 = vadd.f32 %v3229, %v4032
      %v4379 = vadd.f32 %v3230, %v4035
      %v4380 = vadd.f32 %v3231, %v4040
      %v4381 = vadd.f32 %v3232, %v4043
      %v4382 = vadd.f32 %v3233, %v4048
      %v4383 = vadd.f32 %v3234, %v4051
      %v4384 = vadd.f32 %v3235, %v4056
      %v4385 = vadd.f32 %v3236, %v4059
      %v4386 = vadd.f32 %v3237, %v4064
      %v4387 = vadd.f32 %v3238, %v4067
      %v4388 = vadd.f32 %v3239, %v4072
      %v4389 = vadd.f32 %v3240, %v4075
      %v4390 = vadd.f32 %v3241, %v4080
      %v4391 = vadd.f32 %v3242, %v4083
      %v4392 = vadd.f32 %v3243, %v4088
      %v4393 = vadd.f32 %v3244, %v4091
      %v4394 = vadd.f32 %v3245, %v4096
      %v4395 = vadd.f32 %v3246, %v4099
      %v4396 = vadd.f32 %v3247, %v4104
      %v4397 = vadd.f32 %v3248, %v4107
      %v4398 = vadd.f32 %v3249, %v4112
      %v4399 = vadd.f32 %v3250, %v4115
      %v4400 = vadd.f32 %v3251, %v4120
      %v4401 = vadd.f32 %v3252, %v4123
      %v4402 = vadd.f32 %v3253, %v4128
      %v4403 = vadd.f32 %v3254, %v4131
      %v4404 = vadd.f32 %v3255, %v4136
      %v4405 = vadd.f32 %v3256, %v4139
      %v4406 = vadd.f32 %v3257, %v4144
      %v4407 = vadd.f32 %v3258, %v4147
      %v4408 = vadd.f32 %v3259, %v4152
      %v4409 = vadd.f32 %v3260, %v4155
      %v4410 = vadd.f32 %v3261, %v4160
      %v4411 = vadd.f32 %v3262, %v4163
      %v4412 = vadd.f32 %v3263, %v4168
      %v4413 = vadd.f32 %v3264, %v4171
      %v4414 = vadd.f32 %v3265, %v4176
      %v4415 = vadd.f32 %v3266, %v4179
      %v4416 = vadd.f32 %v3267, %v4184
      %v4417 = vadd.f32 %v3268, %v4187
      %v4418 = vadd.f32 %v3269, %v4192
      %v4419 = vadd.f32 %v3270, %v4195
      %v4420 = vadd.f32 %v3271, %v4200
      %v4421 = vadd.f32 %v3272, %v4203
      %v4422 = vadd.f32 %v3273, %v4208
      %v4423 = vadd.f32 %v3274, %v4211
      %v4424 = vadd.f32 %v3275, %v4216
      %v4425 = vadd.f32 %v3276, %v4219
      %v4426 = vadd.f32 %v3277, %v4224
      %v4427 = vadd.f32 %v3278, %v4227
      %v4428 = vadd.f32 %v3279, %v4232
      %v4429 = vadd.f32 %v3280, %v4235
      %v4430 = vadd.f32 %v3281, %v4240
      %v4431 = vadd.f32 %v3282, %v4243
      %v4432 = vadd.f32 %v3283, %v4248
      %v4433 = vadd.f32 %v3284, %v4251
      %v4434 = vadd.f32 %v3285, %v4256
      %v4435 = vadd.f32 %v3286, %v4259
      %v4436 = vadd.f32 %v3287, %v4264
      %v4437 = vadd.f32 %v3288, %v4267
      %v4438 = vadd.f32 %v3289, %v4272
      %v4439 = vadd.f32 %v3290, %v4275
      %v4440 = vadd.f32 %v3291, %v4280
      %v4441 = vadd.f32 %v3292, %v4283
      %v4442 = vadd.f32 %v3293, %v4288
      %v4443 = vadd.f32 %v3294, %v4291
      %v4444 = vadd.f32 %v3295, %v4296
      %v4445 = vadd.f32 %v3296, %v4299
      %v4446 = vadd.f32 %v3297, %v4304
      %v4447 = vadd.f32 %v3298, %v4307
      %v4448 = vld [vmem:[%s3] sm:$0x1]
      %v4450 = vlaneseq
      %v4451 = vshrl.u32 %v4450, 7
      %v4452 = vsub.s32 0, %v4451
      %v4453 = vrot.slane %v4448, %v4452
      %v4455 = vadd.f32 %v4310, %v4453
      %v4456 = vadd.f32 %v4311, %v4453
      %v4457 = vadd.f32 %v4312, %v4453
      %v4458 = vadd.f32 %v4313, %v4453
      %v4459 = vadd.f32 %v4314, %v4453
      %v4460 = vadd.f32 %v4315, %v4453
      %v4461 = vadd.f32 %v4316, %v4453
      %v4462 = vadd.f32 %v4317, %v4453
      %v4463 = vadd.f32 %v4318, %v4453
      %v4464 = vadd.f32 %v4319, %v4453
      %v4465 = vadd.f32 %v4320, %v4453
      %v4466 = vadd.f32 %v4321, %v4453
      %v4467 = vadd.f32 %v4322, %v4453
      %v4468 = vadd.f32 %v4323, %v4453
      %v4469 = vadd.f32 %v4324, %v4453
      %v4470 = vadd.f32 %v4325, %v4453
      %v4471 = vadd.f32 %v4326, %v4453
      %v4472 = vadd.f32 %v4327, %v4453
      %v4473 = vadd.f32 %v4328, %v4453
      %v4474 = vadd.f32 %v4329, %v4453
      %v4475 = vadd.f32 %v4330, %v4453
      %v4476 = vadd.f32 %v4331, %v4453
      %v4477 = vadd.f32 %v4332, %v4453
      %v4478 = vadd.f32 %v4333, %v4453
      %v4479 = vadd.f32 %v4334, %v4453
      %v4480 = vadd.f32 %v4335, %v4453
      %v4481 = vadd.f32 %v4336, %v4453
      %v4482 = vadd.f32 %v4337, %v4453
      %v4483 = vadd.f32 %v4338, %v4453
      %v4484 = vadd.f32 %v4339, %v4453
      %v4485 = vadd.f32 %v4340, %v4453
      %v4486 = vadd.f32 %v4341, %v4453
      %v4487 = vadd.f32 %v4342, %v4453
      %v4488 = vadd.f32 %v4343, %v4453
      %v4489 = vadd.f32 %v4344, %v4453
      %v4490 = vadd.f32 %v4345, %v4453
      %v4491 = vadd.f32 %v4346, %v4453
      %v4492 = vadd.f32 %v4347, %v4453
      %v4493 = vadd.f32 %v4348, %v4453
      %v4494 = vadd.f32 %v4349, %v4453
      %v4495 = vadd.f32 %v4350, %v4453
      %v4496 = vadd.f32 %v4351, %v4453
      %v4497 = vadd.f32 %v4352, %v4453
      %v4498 = vadd.f32 %v4353, %v4453
      %v4499 = vadd.f32 %v4354, %v4453
      %v4500 = vadd.f32 %v4355, %v4453
      %v4501 = vadd.f32 %v4356, %v4453
      %v4502 = vadd.f32 %v4357, %v4453
      %v4503 = vadd.f32 %v4358, %v4453
      %v4504 = vadd.f32 %v4359, %v4453
      %v4505 = vadd.f32 %v4360, %v4453
      %v4506 = vadd.f32 %v4361, %v4453
      %v4507 = vadd.f32 %v4362, %v4453
      %v4508 = vadd.f32 %v4363, %v4453
      %v4509 = vadd.f32 %v4364, %v4453
      %v4510 = vadd.f32 %v4365, %v4453
      %v4511 = vadd.f32 %v4366, %v4453
      %v4512 = vadd.f32 %v4367, %v4453
      %v4513 = vadd.f32 %v4368, %v4453
      %v4514 = vadd.f32 %v4369, %v4453
      %v4515 = vadd.f32 %v4370, %v4453
      %v4516 = vadd.f32 %v4371, %v4453
      %v4517 = vadd.f32 %v4372, %v4453
      %v4518 = vadd.f32 %v4373, %v4453
      %v4519 = vadd.f32 %v4374, %v4453
      %v4520 = vadd.f32 %v4375, %v4453
      %v4521 = vadd.f32 %v4376, %v4453
      %v4522 = vadd.f32 %v4377, %v4453
      %v4523 = vadd.f32 %v4378, %v4453
      %v4524 = vadd.f32 %v4379, %v4453
      %v4525 = vadd.f32 %v4380, %v4453
      %v4526 = vadd.f32 %v4381, %v4453
      %v4527 = vadd.f32 %v4382, %v4453
      %v4528 = vadd.f32 %v4383, %v4453
      %v4529 = vadd.f32 %v4384, %v4453
      %v4530 = vadd.f32 %v4385, %v4453
      %v4531 = vadd.f32 %v4386, %v4453
      %v4532 = vadd.f32 %v4387, %v4453
      %v4533 = vadd.f32 %v4388, %v4453
      %v4534 = vadd.f32 %v4389, %v4453
      %v4535 = vadd.f32 %v4390, %v4453
      %v4536 = vadd.f32 %v4391, %v4453
      %v4537 = vadd.f32 %v4392, %v4453
      %v4538 = vadd.f32 %v4393, %v4453
      %v4539 = vadd.f32 %v4394, %v4453
      %v4540 = vadd.f32 %v4395, %v4453
      %v4541 = vadd.f32 %v4396, %v4453
      %v4542 = vadd.f32 %v4397, %v4453
      %v4543 = vadd.f32 %v4398, %v4453
      %v4544 = vadd.f32 %v4399, %v4453
      %v4545 = vadd.f32 %v4400, %v4453
      %v4546 = vadd.f32 %v4401, %v4453
      %v4547 = vadd.f32 %v4402, %v4453
      %v4548 = vadd.f32 %v4403, %v4453
      %v4549 = vadd.f32 %v4404, %v4453
      %v4550 = vadd.f32 %v4405, %v4453
      %v4551 = vadd.f32 %v4406, %v4453
      %v4552 = vadd.f32 %v4407, %v4453
      %v4553 = vadd.f32 %v4408, %v4453
      %v4554 = vadd.f32 %v4409, %v4453
      %v4555 = vadd.f32 %v4410, %v4453
      %v4556 = vadd.f32 %v4411, %v4453
      %v4557 = vadd.f32 %v4412, %v4453
      %v4558 = vadd.f32 %v4413, %v4453
      %v4559 = vadd.f32 %v4414, %v4453
      %v4560 = vadd.f32 %v4415, %v4453
      %v4561 = vadd.f32 %v4416, %v4453
      %v4562 = vadd.f32 %v4417, %v4453
      %v4563 = vadd.f32 %v4418, %v4453
      %v4564 = vadd.f32 %v4419, %v4453
      %v4565 = vadd.f32 %v4420, %v4453
      %v4566 = vadd.f32 %v4421, %v4453
      %v4567 = vadd.f32 %v4422, %v4453
      %v4568 = vadd.f32 %v4423, %v4453
      %v4569 = vadd.f32 %v4424, %v4453
      %v4570 = vadd.f32 %v4425, %v4453
      %v4571 = vadd.f32 %v4426, %v4453
      %v4572 = vadd.f32 %v4427, %v4453
      %v4573 = vadd.f32 %v4428, %v4453
      %v4574 = vadd.f32 %v4429, %v4453
      %v4575 = vadd.f32 %v4430, %v4453
      %v4576 = vadd.f32 %v4431, %v4453
      %v4577 = vadd.f32 %v4432, %v4453
      %v4578 = vadd.f32 %v4433, %v4453
      %v4579 = vadd.f32 %v4434, %v4453
      %v4580 = vadd.f32 %v4435, %v4453
      %v4581 = vadd.f32 %v4436, %v4453
      %v4582 = vadd.f32 %v4437, %v4453
      %v4583 = vadd.f32 %v4438, %v4453
      %v4584 = vadd.f32 %v4439, %v4453
      %v4585 = vadd.f32 %v4440, %v4453
      %v4586 = vadd.f32 %v4441, %v4453
      %v4587 = vadd.f32 %v4442, %v4453
      %v4588 = vadd.f32 %v4443, %v4453
      %v4589 = vadd.f32 %v4444, %v4453
      %v4590 = vadd.f32 %v4445, %v4453
      %v4591 = vadd.f32 %v4446, %v4453
      %v4592 = vadd.f32 %v4447, %v4453
      %v4593 = vxor.u32 %v4455, 2147483648
      %v4594 = vxor.u32 %v4456, 2147483648
      %v4595 = vxor.u32 %v4457, 2147483648
      %v4596 = vxor.u32 %v4458, 2147483648
      %v4597 = vxor.u32 %v4459, 2147483648
      %v4598 = vxor.u32 %v4460, 2147483648
      %v4599 = vxor.u32 %v4461, 2147483648
      %v4600 = vxor.u32 %v4462, 2147483648
      %v4601 = vxor.u32 %v4463, 2147483648
      %v4602 = vxor.u32 %v4464, 2147483648
      %v4603 = vxor.u32 %v4465, 2147483648
      %v4604 = vxor.u32 %v4466, 2147483648
      %v4605 = vxor.u32 %v4467, 2147483648
      %v4606 = vxor.u32 %v4468, 2147483648
      %v4607 = vxor.u32 %v4469, 2147483648
      %v4608 = vxor.u32 %v4470, 2147483648
      %v4609 = vxor.u32 %v4471, 2147483648
      %v4610 = vxor.u32 %v4472, 2147483648
      %v4611 = vxor.u32 %v4473, 2147483648
      %v4612 = vxor.u32 %v4474, 2147483648
      %v4613 = vxor.u32 %v4475, 2147483648
      %v4614 = vxor.u32 %v4476, 2147483648
      %v4615 = vxor.u32 %v4477, 2147483648
      %v4616 = vxor.u32 %v4478, 2147483648
      %v4617 = vxor.u32 %v4479, 2147483648
      %v4618 = vxor.u32 %v4480, 2147483648
      %v4619 = vxor.u32 %v4481, 2147483648
      %v4620 = vxor.u32 %v4482, 2147483648
      %v4621 = vxor.u32 %v4483, 2147483648
      %v4622 = vxor.u32 %v4484, 2147483648
      %v4623 = vxor.u32 %v4485, 2147483648
      %v4624 = vxor.u32 %v4486, 2147483648
      %v4625 = vxor.u32 %v4487, 2147483648
      %v4626 = vxor.u32 %v4488, 2147483648
      %v4627 = vxor.u32 %v4489, 2147483648
      %v4628 = vxor.u32 %v4490, 2147483648
      %v4629 = vxor.u32 %v4491, 2147483648
      %v4630 = vxor.u32 %v4492, 2147483648
      %v4631 = vxor.u32 %v4493, 2147483648
      %v4632 = vxor.u32 %v4494, 2147483648
      %v4633 = vxor.u32 %v4495, 2147483648
      %v4634 = vxor.u32 %v4496, 2147483648
      %v4635 = vxor.u32 %v4497, 2147483648
      %v4636 = vxor.u32 %v4498, 2147483648
      %v4637 = vxor.u32 %v4499, 2147483648
      %v4638 = vxor.u32 %v4500, 2147483648
      %v4639 = vxor.u32 %v4501, 2147483648
      %v4640 = vxor.u32 %v4502, 2147483648
      %v4641 = vxor.u32 %v4503, 2147483648
      %v4642 = vxor.u32 %v4504, 2147483648
      %v4643 = vxor.u32 %v4505, 2147483648
      %v4644 = vxor.u32 %v4506, 2147483648
      %v4645 = vxor.u32 %v4507, 2147483648
      %v4646 = vxor.u32 %v4508, 2147483648
      %v4647 = vxor.u32 %v4509, 2147483648
      %v4648 = vxor.u32 %v4510, 2147483648
      %v4649 = vxor.u32 %v4511, 2147483648
      %v4650 = vxor.u32 %v4512, 2147483648
      %v4651 = vxor.u32 %v4513, 2147483648
      %v4652 = vxor.u32 %v4514, 2147483648
      %v4653 = vxor.u32 %v4515, 2147483648
      %v4654 = vxor.u32 %v4516, 2147483648
      %v4655 = vxor.u32 %v4517, 2147483648
      %v4656 = vxor.u32 %v4518, 2147483648
      %v4657 = vxor.u32 %v4519, 2147483648
      %v4658 = vxor.u32 %v4520, 2147483648
      %v4659 = vxor.u32 %v4521, 2147483648
      %v4660 = vxor.u32 %v4522, 2147483648
      %v4661 = vxor.u32 %v4523, 2147483648
      %v4662 = vxor.u32 %v4524, 2147483648
      %v4663 = vxor.u32 %v4525, 2147483648
      %v4664 = vxor.u32 %v4526, 2147483648
      %v4665 = vxor.u32 %v4527, 2147483648
      %v4666 = vxor.u32 %v4528, 2147483648
      %v4667 = vxor.u32 %v4529, 2147483648
      %v4668 = vxor.u32 %v4530, 2147483648
      %v4669 = vxor.u32 %v4531, 2147483648
      %v4670 = vxor.u32 %v4532, 2147483648
      %v4671 = vxor.u32 %v4533, 2147483648
      %v4672 = vxor.u32 %v4534, 2147483648
      %v4673 = vxor.u32 %v4535, 2147483648
      %v4674 = vxor.u32 %v4536, 2147483648
      %v4675 = vxor.u32 %v4537, 2147483648
      %v4676 = vxor.u32 %v4538, 2147483648
      %v4677 = vxor.u32 %v4539, 2147483648
      %v4678 = vxor.u32 %v4540, 2147483648
      %v4679 = vxor.u32 %v4541, 2147483648
      %v4680 = vxor.u32 %v4542, 2147483648
      %v4681 = vxor.u32 %v4543, 2147483648
      %v4682 = vxor.u32 %v4544, 2147483648
      %v4683 = vxor.u32 %v4545, 2147483648
      %v4684 = vxor.u32 %v4546, 2147483648
      %v4685 = vxor.u32 %v4547, 2147483648
      %v4686 = vxor.u32 %v4548, 2147483648
      %v4687 = vxor.u32 %v4549, 2147483648
      %v4688 = vxor.u32 %v4550, 2147483648
      %v4689 = vxor.u32 %v4551, 2147483648
      %v4690 = vxor.u32 %v4552, 2147483648
      %v4691 = vxor.u32 %v4553, 2147483648
      %v4692 = vxor.u32 %v4554, 2147483648
      %v4693 = vxor.u32 %v4555, 2147483648
      %v4694 = vxor.u32 %v4556, 2147483648
      %v4695 = vxor.u32 %v4557, 2147483648
      %v4696 = vxor.u32 %v4558, 2147483648
      %v4697 = vxor.u32 %v4559, 2147483648
      %v4698 = vxor.u32 %v4560, 2147483648
      %v4699 = vxor.u32 %v4561, 2147483648
      %v4700 = vxor.u32 %v4562, 2147483648
      %v4701 = vxor.u32 %v4563, 2147483648
      %v4702 = vxor.u32 %v4564, 2147483648
      %v4703 = vxor.u32 %v4565, 2147483648
      %v4704 = vxor.u32 %v4566, 2147483648
      %v4705 = vxor.u32 %v4567, 2147483648
      %v4706 = vxor.u32 %v4568, 2147483648
      %v4707 = vxor.u32 %v4569, 2147483648
      %v4708 = vxor.u32 %v4570, 2147483648
      %v4709 = vxor.u32 %v4571, 2147483648
      %v4710 = vxor.u32 %v4572, 2147483648
      %v4711 = vxor.u32 %v4573, 2147483648
      %v4712 = vxor.u32 %v4574, 2147483648
      %v4713 = vxor.u32 %v4575, 2147483648
      %v4714 = vxor.u32 %v4576, 2147483648
      %v4715 = vxor.u32 %v4577, 2147483648
      %v4716 = vxor.u32 %v4578, 2147483648
      %v4717 = vxor.u32 %v4579, 2147483648
      %v4718 = vxor.u32 %v4580, 2147483648
      %v4719 = vxor.u32 %v4581, 2147483648
      %v4720 = vxor.u32 %v4582, 2147483648
      %v4721 = vxor.u32 %v4583, 2147483648
      %v4722 = vxor.u32 %v4584, 2147483648
      %v4723 = vxor.u32 %v4585, 2147483648
      %v4724 = vxor.u32 %v4586, 2147483648
      %v4725 = vxor.u32 %v4587, 2147483648
      %v4726 = vxor.u32 %v4588, 2147483648
      %v4727 = vxor.u32 %v4589, 2147483648
      %v4728 = vxor.u32 %v4590, 2147483648
      %v4729 = vxor.u32 %v4591, 2147483648
      %v4730 = vxor.u32 %v4592, 2147483648
      %v4731 = vmul.f32 %v4593, 1.442695
      %v4732 = vpow.pop %v4731
      %v4733 = vmul.f32 %v4594, 1.442695
      %v4734 = vpow.pop %v4733
      %v4735 = vmul.f32 %v4595, 1.442695
      %v4736 = vpow.pop %v4735
      %v4737 = vmul.f32 %v4596, 1.442695
      %v4738 = vpow.pop %v4737
      %v4739 = vmul.f32 %v4597, 1.442695
      %v4740 = vpow.pop %v4739
      %v4741 = vmul.f32 %v4598, 1.442695
      %v4742 = vpow.pop %v4741
      %v4743 = vmul.f32 %v4599, 1.442695
      %v4744 = vpow.pop %v4743
      %v4745 = vmul.f32 %v4600, 1.442695
      %v4746 = vpow.pop %v4745
      %v4747 = vmul.f32 %v4601, 1.442695
      %v4748 = vpow.pop %v4747
      %v4749 = vmul.f32 %v4602, 1.442695
      %v4750 = vpow.pop %v4749
      %v4751 = vmul.f32 %v4603, 1.442695
      %v4752 = vpow.pop %v4751
      %v4753 = vmul.f32 %v4604, 1.442695
      %v4754 = vpow.pop %v4753
      %v4755 = vmul.f32 %v4605, 1.442695
      %v4756 = vpow.pop %v4755
      %v4757 = vmul.f32 %v4606, 1.442695
      %v4758 = vpow.pop %v4757
      %v4759 = vmul.f32 %v4607, 1.442695
      %v4760 = vpow.pop %v4759
      %v4761 = vmul.f32 %v4608, 1.442695
      %v4762 = vpow.pop %v4761
      %v4763 = vmul.f32 %v4609, 1.442695
      %v4764 = vpow.pop %v4763
      %v4765 = vmul.f32 %v4610, 1.442695
      %v4766 = vpow.pop %v4765
      %v4767 = vmul.f32 %v4611, 1.442695
      %v4768 = vpow.pop %v4767
      %v4769 = vmul.f32 %v4612, 1.442695
      %v4770 = vpow.pop %v4769
      %v4771 = vmul.f32 %v4613, 1.442695
      %v4772 = vpow.pop %v4771
      %v4773 = vmul.f32 %v4614, 1.442695
      %v4774 = vpow.pop %v4773
      %v4775 = vmul.f32 %v4615, 1.442695
      %v4776 = vpow.pop %v4775
      %v4777 = vmul.f32 %v4616, 1.442695
      %v4778 = vpow.pop %v4777
      %v4779 = vmul.f32 %v4617, 1.442695
      %v4780 = vpow.pop %v4779
      %v4781 = vmul.f32 %v4618, 1.442695
      %v4782 = vpow.pop %v4781
      %v4783 = vmul.f32 %v4619, 1.442695
      %v4784 = vpow.pop %v4783
      %v4785 = vmul.f32 %v4620, 1.442695
      %v4786 = vpow.pop %v4785
      %v4787 = vmul.f32 %v4621, 1.442695
      %v4788 = vpow.pop %v4787
      %v4789 = vmul.f32 %v4622, 1.442695
      %v4790 = vpow.pop %v4789
      %v4791 = vmul.f32 %v4623, 1.442695
      %v4792 = vpow.pop %v4791
      %v4793 = vmul.f32 %v4624, 1.442695
      %v4794 = vpow.pop %v4793
      %v4795 = vmul.f32 %v4625, 1.442695
      %v4796 = vpow.pop %v4795
      %v4797 = vmul.f32 %v4626, 1.442695
      %v4798 = vpow.pop %v4797
      %v4799 = vmul.f32 %v4627, 1.442695
      %v4800 = vpow.pop %v4799
      %v4801 = vmul.f32 %v4628, 1.442695
      %v4802 = vpow.pop %v4801
      %v4803 = vmul.f32 %v4629, 1.442695
      %v4804 = vpow.pop %v4803
      %v4805 = vmul.f32 %v4630, 1.442695
      %v4806 = vpow.pop %v4805
      %v4807 = vmul.f32 %v4631, 1.442695
      %v4808 = vpow.pop %v4807
      %v4809 = vmul.f32 %v4632, 1.442695
      %v4810 = vpow.pop %v4809
      %v4811 = vmul.f32 %v4633, 1.442695
      %v4812 = vpow.pop %v4811
      %v4813 = vmul.f32 %v4634, 1.442695
      %v4814 = vpow.pop %v4813
      %v4815 = vmul.f32 %v4635, 1.442695
      %v4816 = vpow.pop %v4815
      %v4817 = vmul.f32 %v4636, 1.442695
      %v4818 = vpow.pop %v4817
      %v4819 = vmul.f32 %v4637, 1.442695
      %v4820 = vpow.pop %v4819
      %v4821 = vmul.f32 %v4638, 1.442695
      %v4822 = vpow.pop %v4821
      %v4823 = vmul.f32 %v4639, 1.442695
      %v4824 = vpow.pop %v4823
      %v4825 = vmul.f32 %v4640, 1.442695
      %v4826 = vpow.pop %v4825
      %v4827 = vmul.f32 %v4641, 1.442695
      %v4828 = vpow.pop %v4827
      %v4829 = vmul.f32 %v4642, 1.442695
      %v4830 = vpow.pop %v4829
      %v4831 = vmul.f32 %v4643, 1.442695
      %v4832 = vpow.pop %v4831
      %v4833 = vmul.f32 %v4644, 1.442695
      %v4834 = vpow.pop %v4833
      %v4835 = vmul.f32 %v4645, 1.442695
      %v4836 = vpow.pop %v4835
      %v4837 = vmul.f32 %v4646, 1.442695
      %v4838 = vpow.pop %v4837
      %v4839 = vmul.f32 %v4647, 1.442695
      %v4840 = vpow.pop %v4839
      %v4841 = vmul.f32 %v4648, 1.442695
      %v4842 = vpow.pop %v4841
      %v4843 = vmul.f32 %v4649, 1.442695
      %v4844 = vpow.pop %v4843
      %v4845 = vmul.f32 %v4650, 1.442695
      %v4846 = vpow.pop %v4845
      %v4847 = vmul.f32 %v4651, 1.442695
      %v4848 = vpow.pop %v4847
      %v4849 = vmul.f32 %v4652, 1.442695
      %v4850 = vpow.pop %v4849
      %v4851 = vmul.f32 %v4653, 1.442695
      %v4852 = vpow.pop %v4851
      %v4853 = vmul.f32 %v4654, 1.442695
      %v4854 = vpow.pop %v4853
      %v4855 = vmul.f32 %v4655, 1.442695
      %v4856 = vpow.pop %v4855
      %v4857 = vmul.f32 %v4656, 1.442695
      %v4858 = vpow.pop %v4857
      %v4859 = vmul.f32 %v4657, 1.442695
      %v4860 = vpow.pop %v4859
      %v4861 = vmul.f32 %v4658, 1.442695
      %v4862 = vpow.pop %v4861
      %v4863 = vmul.f32 %v4659, 1.442695
      %v4864 = vpow.pop %v4863
      %v4865 = vmul.f32 %v4660, 1.442695
      %v4866 = vpow.pop %v4865
      %v4867 = vmul.f32 %v4661, 1.442695
      %v4868 = vpow.pop %v4867
      %v4869 = vmul.f32 %v4662, 1.442695
      %v4870 = vpow.pop %v4869
      %v4871 = vmul.f32 %v4663, 1.442695
      %v4872 = vpow.pop %v4871
      %v4873 = vmul.f32 %v4664, 1.442695
      %v4874 = vpow.pop %v4873
      %v4875 = vmul.f32 %v4665, 1.442695
      %v4876 = vpow.pop %v4875
      %v4877 = vmul.f32 %v4666, 1.442695
      %v4878 = vpow.pop %v4877
      %v4879 = vmul.f32 %v4667, 1.442695
      %v4880 = vpow.pop %v4879
      %v4881 = vmul.f32 %v4668, 1.442695
      %v4882 = vpow.pop %v4881
      %v4883 = vmul.f32 %v4669, 1.442695
      %v4884 = vpow.pop %v4883
      %v4885 = vmul.f32 %v4670, 1.442695
      %v4886 = vpow.pop %v4885
      %v4887 = vmul.f32 %v4671, 1.442695
      %v4888 = vpow.pop %v4887
      %v4889 = vmul.f32 %v4672, 1.442695
      %v4890 = vpow.pop %v4889
      %v4891 = vmul.f32 %v4673, 1.442695
      %v4892 = vpow.pop %v4891
      %v4893 = vmul.f32 %v4674, 1.442695
      %v4894 = vpow.pop %v4893
      %v4895 = vmul.f32 %v4675, 1.442695
      %v4896 = vpow.pop %v4895
      %v4897 = vmul.f32 %v4676, 1.442695
      %v4898 = vpow.pop %v4897
      %v4899 = vmul.f32 %v4677, 1.442695
      %v4900 = vpow.pop %v4899
      %v4901 = vmul.f32 %v4678, 1.442695
      %v4902 = vpow.pop %v4901
      %v4903 = vmul.f32 %v4679, 1.442695
      %v4904 = vpow.pop %v4903
      %v4905 = vmul.f32 %v4680, 1.442695
      %v4906 = vpow.pop %v4905
      %v4907 = vmul.f32 %v4681, 1.442695
      %v4908 = vpow.pop %v4907
      %v4909 = vmul.f32 %v4682, 1.442695
      %v4910 = vpow.pop %v4909
      %v4911 = vmul.f32 %v4683, 1.442695
      %v4912 = vpow.pop %v4911
      %v4913 = vmul.f32 %v4684, 1.442695
      %v4914 = vpow.pop %v4913
      %v4915 = vmul.f32 %v4685, 1.442695
      %v4916 = vpow.pop %v4915
      %v4917 = vmul.f32 %v4686, 1.442695
      %v4918 = vpow.pop %v4917
      %v4919 = vmul.f32 %v4687, 1.442695
      %v4920 = vpow.pop %v4919
      %v4921 = vmul.f32 %v4688, 1.442695
      %v4922 = vpow.pop %v4921
      %v4923 = vmul.f32 %v4689, 1.442695
      %v4924 = vpow.pop %v4923
      %v4925 = vmul.f32 %v4690, 1.442695
      %v4926 = vpow.pop %v4925
      %v4927 = vmul.f32 %v4691, 1.442695
      %v4928 = vpow.pop %v4927
      %v4929 = vmul.f32 %v4692, 1.442695
      %v4930 = vpow.pop %v4929
      %v4931 = vmul.f32 %v4693, 1.442695
      %v4932 = vpow.pop %v4931
      %v4933 = vmul.f32 %v4694, 1.442695
      %v4934 = vpow.pop %v4933
      %v4935 = vmul.f32 %v4695, 1.442695
      %v4936 = vpow.pop %v4935
      %v4937 = vmul.f32 %v4696, 1.442695
      %v4938 = vpow.pop %v4937
      %v4939 = vmul.f32 %v4697, 1.442695
      %v4940 = vpow.pop %v4939
      %v4941 = vmul.f32 %v4698, 1.442695
      %v4942 = vpow.pop %v4941
      %v4943 = vmul.f32 %v4699, 1.442695
      %v4944 = vpow.pop %v4943
      %v4945 = vmul.f32 %v4700, 1.442695
      %v4946 = vpow.pop %v4945
      %v4947 = vmul.f32 %v4701, 1.442695
      %v4948 = vpow.pop %v4947
      %v4949 = vmul.f32 %v4702, 1.442695
      %v4950 = vpow.pop %v4949
      %v4951 = vmul.f32 %v4703, 1.442695
      %v4952 = vpow.pop %v4951
      %v4953 = vmul.f32 %v4704, 1.442695
      %v4954 = vpow.pop %v4953
      %v4955 = vmul.f32 %v4705, 1.442695
      %v4956 = vpow.pop %v4955
      %v4957 = vmul.f32 %v4706, 1.442695
      %v4958 = vpow.pop %v4957
      %v4959 = vmul.f32 %v4707, 1.442695
      %v4960 = vpow.pop %v4959
      %v4961 = vmul.f32 %v4708, 1.442695
      %v4962 = vpow.pop %v4961
      %v4963 = vmul.f32 %v4709, 1.442695
      %v4964 = vpow.pop %v4963
      %v4965 = vmul.f32 %v4710, 1.442695
      %v4966 = vpow.pop %v4965
      %v4967 = vmul.f32 %v4711, 1.442695
      %v4968 = vpow.pop %v4967
      %v4969 = vmul.f32 %v4712, 1.442695
      %v4970 = vpow.pop %v4969
      %v4971 = vmul.f32 %v4713, 1.442695
      %v4972 = vpow.pop %v4971
      %v4973 = vmul.f32 %v4714, 1.442695
      %v4974 = vpow.pop %v4973
      %v4975 = vmul.f32 %v4715, 1.442695
      %v4976 = vpow.pop %v4975
      %v4977 = vmul.f32 %v4716, 1.442695
      %v4978 = vpow.pop %v4977
      %v4979 = vmul.f32 %v4717, 1.442695
      %v4980 = vpow.pop %v4979
      %v4981 = vmul.f32 %v4718, 1.442695
      %v4982 = vpow.pop %v4981
      %v4983 = vmul.f32 %v4719, 1.442695
      %v4984 = vpow.pop %v4983
      %v4985 = vmul.f32 %v4720, 1.442695
      %v4986 = vpow.pop %v4985
      %v4987 = vmul.f32 %v4721, 1.442695
      %v4988 = vpow.pop %v4987
      %v4989 = vmul.f32 %v4722, 1.442695
      %v4990 = vpow.pop %v4989
      %v4991 = vmul.f32 %v4723, 1.442695
      %v4992 = vpow.pop %v4991
      %v4993 = vmul.f32 %v4724, 1.442695
      %v4994 = vpow.pop %v4993
      %v4995 = vmul.f32 %v4725, 1.442695
      %v4996 = vpow.pop %v4995
      %v4997 = vmul.f32 %v4726, 1.442695
      %v4998 = vpow.pop %v4997
      %v4999 = vmul.f32 %v4727, 1.442695
      %v5000 = vpow.pop %v4999
      %v5001 = vmul.f32 %v4728, 1.442695
      %v5002 = vpow.pop %v5001
      %v5003 = vmul.f32 %v4729, 1.442695
      %v5004 = vpow.pop %v5003
      %v5005 = vmul.f32 %v4730, 1.442695
      %v5006 = vpow.pop %v5005
      %v5007 = vadd.f32 %v4732, 1.0
      %v5008 = vadd.f32 %v4734, 1.0
      %v5009 = vadd.f32 %v4736, 1.0
      %v5010 = vadd.f32 %v4738, 1.0
      %v5011 = vadd.f32 %v4740, 1.0
      %v5012 = vadd.f32 %v4742, 1.0
      %v5013 = vadd.f32 %v4744, 1.0
      %v5014 = vadd.f32 %v4746, 1.0
      %v5015 = vadd.f32 %v4748, 1.0
      %v5016 = vadd.f32 %v4750, 1.0
      %v5017 = vadd.f32 %v4752, 1.0
      %v5018 = vadd.f32 %v4754, 1.0
      %v5019 = vadd.f32 %v4756, 1.0
      %v5020 = vadd.f32 %v4758, 1.0
      %v5021 = vadd.f32 %v4760, 1.0
      %v5022 = vadd.f32 %v4762, 1.0
      %v5023 = vadd.f32 %v4764, 1.0
      %v5024 = vadd.f32 %v4766, 1.0
      %v5025 = vadd.f32 %v4768, 1.0
      %v5026 = vadd.f32 %v4770, 1.0
      %v5027 = vadd.f32 %v4772, 1.0
      %v5028 = vadd.f32 %v4774, 1.0
      %v5029 = vadd.f32 %v4776, 1.0
      %v5030 = vadd.f32 %v4778, 1.0
      %v5031 = vadd.f32 %v4780, 1.0
      %v5032 = vadd.f32 %v4782, 1.0
      %v5033 = vadd.f32 %v4784, 1.0
      %v5034 = vadd.f32 %v4786, 1.0
      %v5035 = vadd.f32 %v4788, 1.0
      %v5036 = vadd.f32 %v4790, 1.0
      %v5037 = vadd.f32 %v4792, 1.0
      %v5038 = vadd.f32 %v4794, 1.0
      %v5039 = vadd.f32 %v4796, 1.0
      %v5040 = vadd.f32 %v4798, 1.0
      %v5041 = vadd.f32 %v4800, 1.0
      %v5042 = vadd.f32 %v4802, 1.0
      %v5043 = vadd.f32 %v4804, 1.0
      %v5044 = vadd.f32 %v4806, 1.0
      %v5045 = vadd.f32 %v4808, 1.0
      %v5046 = vadd.f32 %v4810, 1.0
      %v5047 = vadd.f32 %v4812, 1.0
      %v5048 = vadd.f32 %v4814, 1.0
      %v5049 = vadd.f32 %v4816, 1.0
      %v5050 = vadd.f32 %v4818, 1.0
      %v5051 = vadd.f32 %v4820, 1.0
      %v5052 = vadd.f32 %v4822, 1.0
      %v5053 = vadd.f32 %v4824, 1.0
      %v5054 = vadd.f32 %v4826, 1.0
      %v5055 = vadd.f32 %v4828, 1.0
      %v5056 = vadd.f32 %v4830, 1.0
      %v5057 = vadd.f32 %v4832, 1.0
      %v5058 = vadd.f32 %v4834, 1.0
      %v5059 = vadd.f32 %v4836, 1.0
      %v5060 = vadd.f32 %v4838, 1.0
      %v5061 = vadd.f32 %v4840, 1.0
      %v5062 = vadd.f32 %v4842, 1.0
      %v5063 = vadd.f32 %v4844, 1.0
      %v5064 = vadd.f32 %v4846, 1.0
      %v5065 = vadd.f32 %v4848, 1.0
      %v5066 = vadd.f32 %v4850, 1.0
      %v5067 = vadd.f32 %v4852, 1.0
      %v5068 = vadd.f32 %v4854, 1.0
      %v5069 = vadd.f32 %v4856, 1.0
      %v5070 = vadd.f32 %v4858, 1.0
      %v5071 = vadd.f32 %v4860, 1.0
      %v5072 = vadd.f32 %v4862, 1.0
      %v5073 = vadd.f32 %v4864, 1.0
      %v5074 = vadd.f32 %v4866, 1.0
      %v5075 = vadd.f32 %v4868, 1.0
      %v5076 = vadd.f32 %v4870, 1.0
      %v5077 = vadd.f32 %v4872, 1.0
      %v5078 = vadd.f32 %v4874, 1.0
      %v5079 = vadd.f32 %v4876, 1.0
      %v5080 = vadd.f32 %v4878, 1.0
      %v5081 = vadd.f32 %v4880, 1.0
      %v5082 = vadd.f32 %v4882, 1.0
      %v5083 = vadd.f32 %v4884, 1.0
      %v5084 = vadd.f32 %v4886, 1.0
      %v5085 = vadd.f32 %v4888, 1.0
      %v5086 = vadd.f32 %v4890, 1.0
      %v5087 = vadd.f32 %v4892, 1.0
      %v5088 = vadd.f32 %v4894, 1.0
      %v5089 = vadd.f32 %v4896, 1.0
      %v5090 = vadd.f32 %v4898, 1.0
      %v5091 = vadd.f32 %v4900, 1.0
      %v5092 = vadd.f32 %v4902, 1.0
      %v5093 = vadd.f32 %v4904, 1.0
      %v5094 = vadd.f32 %v4906, 1.0
      %v5095 = vadd.f32 %v4908, 1.0
      %v5096 = vadd.f32 %v4910, 1.0
      %v5097 = vadd.f32 %v4912, 1.0
      %v5098 = vadd.f32 %v4914, 1.0
      %v5099 = vadd.f32 %v4916, 1.0
      %v5100 = vadd.f32 %v4918, 1.0
      %v5101 = vadd.f32 %v4920, 1.0
      %v5102 = vadd.f32 %v4922, 1.0
      %v5103 = vadd.f32 %v4924, 1.0
      %v5104 = vadd.f32 %v4926, 1.0
      %v5105 = vadd.f32 %v4928, 1.0
      %v5106 = vadd.f32 %v4930, 1.0
      %v5107 = vadd.f32 %v4932, 1.0
      %v5108 = vadd.f32 %v4934, 1.0
      %v5109 = vadd.f32 %v4936, 1.0
      %v5110 = vadd.f32 %v4938, 1.0
      %v5111 = vadd.f32 %v4940, 1.0
      %v5112 = vadd.f32 %v4942, 1.0
      %v5113 = vadd.f32 %v4944, 1.0
      %v5114 = vadd.f32 %v4946, 1.0
      %v5115 = vadd.f32 %v4948, 1.0
      %v5116 = vadd.f32 %v4950, 1.0
      %v5117 = vadd.f32 %v4952, 1.0
      %v5118 = vadd.f32 %v4954, 1.0
      %v5119 = vadd.f32 %v4956, 1.0
      %v5120 = vadd.f32 %v4958, 1.0
      %v5121 = vadd.f32 %v4960, 1.0
      %v5122 = vadd.f32 %v4962, 1.0
      %v5123 = vadd.f32 %v4964, 1.0
      %v5124 = vadd.f32 %v4966, 1.0
      %v5125 = vadd.f32 %v4968, 1.0
      %v5126 = vadd.f32 %v4970, 1.0
      %v5127 = vadd.f32 %v4972, 1.0
      %v5128 = vadd.f32 %v4974, 1.0
      %v5129 = vadd.f32 %v4976, 1.0
      %v5130 = vadd.f32 %v4978, 1.0
      %v5131 = vadd.f32 %v4980, 1.0
      %v5132 = vadd.f32 %v4982, 1.0
      %v5133 = vadd.f32 %v4984, 1.0
      %v5134 = vadd.f32 %v4986, 1.0
      %v5135 = vadd.f32 %v4988, 1.0
      %v5136 = vadd.f32 %v4990, 1.0
      %v5137 = vadd.f32 %v4992, 1.0
      %v5138 = vadd.f32 %v4994, 1.0
      %v5139 = vadd.f32 %v4996, 1.0
      %v5140 = vadd.f32 %v4998, 1.0
      %v5141 = vadd.f32 %v5000, 1.0
      %v5142 = vadd.f32 %v5002, 1.0
      %v5143 = vadd.f32 %v5004, 1.0
      %v5144 = vadd.f32 %v5006, 1.0
      %v5145 = vrcp.pop %v5007
      %v5146 = vmul.f32 1.0, %v5145
      %v5147 = vrcp.pop %v5008
      %v5148 = vmul.f32 1.0, %v5147
      %v5149 = vrcp.pop %v5009
      %v5150 = vmul.f32 1.0, %v5149
      %v5151 = vrcp.pop %v5010
      %v5152 = vmul.f32 1.0, %v5151
      %v5153 = vrcp.pop %v5011
      %v5154 = vmul.f32 1.0, %v5153
      %v5155 = vrcp.pop %v5012
      %v5156 = vmul.f32 1.0, %v5155
      %v5157 = vrcp.pop %v5013
      %v5158 = vmul.f32 1.0, %v5157
      %v5159 = vrcp.pop %v5014
      %v5160 = vmul.f32 1.0, %v5159
      %v5161 = vrcp.pop %v5015
      %v5162 = vmul.f32 1.0, %v5161
      %v5163 = vrcp.pop %v5016
      %v5164 = vmul.f32 1.0, %v5163
      %v5165 = vrcp.pop %v5017
      %v5166 = vmul.f32 1.0, %v5165
      %v5167 = vrcp.pop %v5018
      %v5168 = vmul.f32 1.0, %v5167
      %v5169 = vrcp.pop %v5019
      %v5170 = vmul.f32 1.0, %v5169
      %v5171 = vrcp.pop %v5020
      %v5172 = vmul.f32 1.0, %v5171
      %v5173 = vrcp.pop %v5021
      %v5174 = vmul.f32 1.0, %v5173
      %v5175 = vrcp.pop %v5022
      %v5176 = vmul.f32 1.0, %v5175
      %v5177 = vrcp.pop %v5023
      %v5178 = vmul.f32 1.0, %v5177
      %v5179 = vrcp.pop %v5024
      %v5180 = vmul.f32 1.0, %v5179
      %v5181 = vrcp.pop %v5025
      %v5182 = vmul.f32 1.0, %v5181
      %v5183 = vrcp.pop %v5026
      %v5184 = vmul.f32 1.0, %v5183
      %v5185 = vrcp.pop %v5027
      %v5186 = vmul.f32 1.0, %v5185
      %v5187 = vrcp.pop %v5028
      %v5188 = vmul.f32 1.0, %v5187
      %v5189 = vrcp.pop %v5029
      %v5190 = vmul.f32 1.0, %v5189
      %v5191 = vrcp.pop %v5030
      %v5192 = vmul.f32 1.0, %v5191
      %v5193 = vrcp.pop %v5031
      %v5194 = vmul.f32 1.0, %v5193
      %v5195 = vrcp.pop %v5032
      %v5196 = vmul.f32 1.0, %v5195
      %v5197 = vrcp.pop %v5033
      %v5198 = vmul.f32 1.0, %v5197
      %v5199 = vrcp.pop %v5034
      %v5200 = vmul.f32 1.0, %v5199
      %v5201 = vrcp.pop %v5035
      %v5202 = vmul.f32 1.0, %v5201
      %v5203 = vrcp.pop %v5036
      %v5204 = vmul.f32 1.0, %v5203
      %v5205 = vrcp.pop %v5037
      %v5206 = vmul.f32 1.0, %v5205
      %v5207 = vrcp.pop %v5038
      %v5208 = vmul.f32 1.0, %v5207
      %v5209 = vrcp.pop %v5039
      %v5210 = vmul.f32 1.0, %v5209
      %v5211 = vrcp.pop %v5040
      %v5212 = vmul.f32 1.0, %v5211
      %v5213 = vrcp.pop %v5041
      %v5214 = vmul.f32 1.0, %v5213
      %v5215 = vrcp.pop %v5042
      %v5216 = vmul.f32 1.0, %v5215
      %v5217 = vrcp.pop %v5043
      %v5218 = vmul.f32 1.0, %v5217
      %v5219 = vrcp.pop %v5044
      %v5220 = vmul.f32 1.0, %v5219
      %v5221 = vrcp.pop %v5045
      %v5222 = vmul.f32 1.0, %v5221
      %v5223 = vrcp.pop %v5046
      %v5224 = vmul.f32 1.0, %v5223
      %v5225 = vrcp.pop %v5047
      %v5226 = vmul.f32 1.0, %v5225
      %v5227 = vrcp.pop %v5048
      %v5228 = vmul.f32 1.0, %v5227
      %v5229 = vrcp.pop %v5049
      %v5230 = vmul.f32 1.0, %v5229
      %v5231 = vrcp.pop %v5050
      %v5232 = vmul.f32 1.0, %v5231
      %v5233 = vrcp.pop %v5051
      %v5234 = vmul.f32 1.0, %v5233
      %v5235 = vrcp.pop %v5052
      %v5236 = vmul.f32 1.0, %v5235
      %v5237 = vrcp.pop %v5053
      %v5238 = vmul.f32 1.0, %v5237
      %v5239 = vrcp.pop %v5054
      %v5240 = vmul.f32 1.0, %v5239
      %v5241 = vrcp.pop %v5055
      %v5242 = vmul.f32 1.0, %v5241
      %v5243 = vrcp.pop %v5056
      %v5244 = vmul.f32 1.0, %v5243
      %v5245 = vrcp.pop %v5057
      %v5246 = vmul.f32 1.0, %v5245
      %v5247 = vrcp.pop %v5058
      %v5248 = vmul.f32 1.0, %v5247
      %v5249 = vrcp.pop %v5059
      %v5250 = vmul.f32 1.0, %v5249
      %v5251 = vrcp.pop %v5060
      %v5252 = vmul.f32 1.0, %v5251
      %v5253 = vrcp.pop %v5061
      %v5254 = vmul.f32 1.0, %v5253
      %v5255 = vrcp.pop %v5062
      %v5256 = vmul.f32 1.0, %v5255
      %v5257 = vrcp.pop %v5063
      %v5258 = vmul.f32 1.0, %v5257
      %v5259 = vrcp.pop %v5064
      %v5260 = vmul.f32 1.0, %v5259
      %v5261 = vrcp.pop %v5065
      %v5262 = vmul.f32 1.0, %v5261
      %v5263 = vrcp.pop %v5066
      %v5264 = vmul.f32 1.0, %v5263
      %v5265 = vrcp.pop %v5067
      %v5266 = vmul.f32 1.0, %v5265
      %v5267 = vrcp.pop %v5068
      %v5268 = vmul.f32 1.0, %v5267
      %v5269 = vrcp.pop %v5069
      %v5270 = vmul.f32 1.0, %v5269
      %v5271 = vrcp.pop %v5070
      %v5272 = vmul.f32 1.0, %v5271
      %v5273 = vrcp.pop %v5071
      %v5274 = vmul.f32 1.0, %v5273
      %v5275 = vrcp.pop %v5072
      %v5276 = vmul.f32 1.0, %v5275
      %v5277 = vrcp.pop %v5073
      %v5278 = vmul.f32 1.0, %v5277
      %v5279 = vrcp.pop %v5074
      %v5280 = vmul.f32 1.0, %v5279
      %v5281 = vrcp.pop %v5075
      %v5282 = vmul.f32 1.0, %v5281
      %v5283 = vrcp.pop %v5076
      %v5284 = vmul.f32 1.0, %v5283
      %v5285 = vrcp.pop %v5077
      %v5286 = vmul.f32 1.0, %v5285
      %v5287 = vrcp.pop %v5078
      %v5288 = vmul.f32 1.0, %v5287
      %v5289 = vrcp.pop %v5079
      %v5290 = vmul.f32 1.0, %v5289
      %v5291 = vrcp.pop %v5080
      %v5292 = vmul.f32 1.0, %v5291
      %v5293 = vrcp.pop %v5081
      %v5294 = vmul.f32 1.0, %v5293
      %v5295 = vrcp.pop %v5082
      %v5296 = vmul.f32 1.0, %v5295
      %v5297 = vrcp.pop %v5083
      %v5298 = vmul.f32 1.0, %v5297
      %v5299 = vrcp.pop %v5084
      %v5300 = vmul.f32 1.0, %v5299
      %v5301 = vrcp.pop %v5085
      %v5302 = vmul.f32 1.0, %v5301
      %v5303 = vrcp.pop %v5086
      %v5304 = vmul.f32 1.0, %v5303
      %v5305 = vrcp.pop %v5087
      %v5306 = vmul.f32 1.0, %v5305
      %v5307 = vrcp.pop %v5088
      %v5308 = vmul.f32 1.0, %v5307
      %v5309 = vrcp.pop %v5089
      %v5310 = vmul.f32 1.0, %v5309
      %v5311 = vrcp.pop %v5090
      %v5312 = vmul.f32 1.0, %v5311
      %v5313 = vrcp.pop %v5091
      %v5314 = vmul.f32 1.0, %v5313
      %v5315 = vrcp.pop %v5092
      %v5316 = vmul.f32 1.0, %v5315
      %v5317 = vrcp.pop %v5093
      %v5318 = vmul.f32 1.0, %v5317
      %v5319 = vrcp.pop %v5094
      %v5320 = vmul.f32 1.0, %v5319
      %v5321 = vrcp.pop %v5095
      %v5322 = vmul.f32 1.0, %v5321
      %v5323 = vrcp.pop %v5096
      %v5324 = vmul.f32 1.0, %v5323
      %v5325 = vrcp.pop %v5097
      %v5326 = vmul.f32 1.0, %v5325
      %v5327 = vrcp.pop %v5098
      %v5328 = vmul.f32 1.0, %v5327
      %v5329 = vrcp.pop %v5099
      %v5330 = vmul.f32 1.0, %v5329
      %v5331 = vrcp.pop %v5100
      %v5332 = vmul.f32 1.0, %v5331
      %v5333 = vrcp.pop %v5101
      %v5334 = vmul.f32 1.0, %v5333
      %v5335 = vrcp.pop %v5102
      %v5336 = vmul.f32 1.0, %v5335
      %v5337 = vrcp.pop %v5103
      %v5338 = vmul.f32 1.0, %v5337
      %v5339 = vrcp.pop %v5104
      %v5340 = vmul.f32 1.0, %v5339
      %v5341 = vrcp.pop %v5105
      %v5342 = vmul.f32 1.0, %v5341
      %v5343 = vrcp.pop %v5106
      %v5344 = vmul.f32 1.0, %v5343
      %v5345 = vrcp.pop %v5107
      %v5346 = vmul.f32 1.0, %v5345
      %v5347 = vrcp.pop %v5108
      %v5348 = vmul.f32 1.0, %v5347
      %v5349 = vrcp.pop %v5109
      %v5350 = vmul.f32 1.0, %v5349
      %v5351 = vrcp.pop %v5110
      %v5352 = vmul.f32 1.0, %v5351
      %v5353 = vrcp.pop %v5111
      %v5354 = vmul.f32 1.0, %v5353
      %v5355 = vrcp.pop %v5112
      %v5356 = vmul.f32 1.0, %v5355
      %v5357 = vrcp.pop %v5113
      %v5358 = vmul.f32 1.0, %v5357
      %v5359 = vrcp.pop %v5114
      %v5360 = vmul.f32 1.0, %v5359
      %v5361 = vrcp.pop %v5115
      %v5362 = vmul.f32 1.0, %v5361
      %v5363 = vrcp.pop %v5116
      %v5364 = vmul.f32 1.0, %v5363
      %v5365 = vrcp.pop %v5117
      %v5366 = vmul.f32 1.0, %v5365
      %v5367 = vrcp.pop %v5118
      %v5368 = vmul.f32 1.0, %v5367
      %v5369 = vrcp.pop %v5119
      %v5370 = vmul.f32 1.0, %v5369
      %v5371 = vrcp.pop %v5120
      %v5372 = vmul.f32 1.0, %v5371
      %v5373 = vrcp.pop %v5121
      %v5374 = vmul.f32 1.0, %v5373
      %v5375 = vrcp.pop %v5122
      %v5376 = vmul.f32 1.0, %v5375
      %v5377 = vrcp.pop %v5123
      %v5378 = vmul.f32 1.0, %v5377
      %v5379 = vrcp.pop %v5124
      %v5380 = vmul.f32 1.0, %v5379
      %v5381 = vrcp.pop %v5125
      %v5382 = vmul.f32 1.0, %v5381
      %v5383 = vrcp.pop %v5126
      %v5384 = vmul.f32 1.0, %v5383
      %v5385 = vrcp.pop %v5127
      %v5386 = vmul.f32 1.0, %v5385
      %v5387 = vrcp.pop %v5128
      %v5388 = vmul.f32 1.0, %v5387
      %v5389 = vrcp.pop %v5129
      %v5390 = vmul.f32 1.0, %v5389
      %v5391 = vrcp.pop %v5130
      %v5392 = vmul.f32 1.0, %v5391
      %v5393 = vrcp.pop %v5131
      %v5394 = vmul.f32 1.0, %v5393
      %v5395 = vrcp.pop %v5132
      %v5396 = vmul.f32 1.0, %v5395
      %v5397 = vrcp.pop %v5133
      %v5398 = vmul.f32 1.0, %v5397
      %v5399 = vrcp.pop %v5134
      %v5400 = vmul.f32 1.0, %v5399
      %v5401 = vrcp.pop %v5135
      %v5402 = vmul.f32 1.0, %v5401
      %v5403 = vrcp.pop %v5136
      %v5404 = vmul.f32 1.0, %v5403
      %v5405 = vrcp.pop %v5137
      %v5406 = vmul.f32 1.0, %v5405
      %v5407 = vrcp.pop %v5138
      %v5408 = vmul.f32 1.0, %v5407
      %v5409 = vrcp.pop %v5139
      %v5410 = vmul.f32 1.0, %v5409
      %v5411 = vrcp.pop %v5140
      %v5412 = vmul.f32 1.0, %v5411
      %v5413 = vrcp.pop %v5141
      %v5414 = vmul.f32 1.0, %v5413
      %v5415 = vrcp.pop %v5142
      %v5416 = vmul.f32 1.0, %v5415
      %v5417 = vrcp.pop %v5143
      %v5418 = vmul.f32 1.0, %v5417
      %v5419 = vrcp.pop %v5144
      %v5420 = vmul.f32 1.0, %v5419
      %5421 = vst [vmem:[%s228] sm:$0xff] %v5146
      %5422 = vst [vmem:[%s228 + $0x8] sm:$0xff] %v5148
      %5423 = vst [vmem:[%s228 + $0x10] sm:$0xff] %v5150
      %5424 = vst [vmem:[%s228 + $0x18] sm:$0xff] %v5152
      %5425 = vst [vmem:[%s228 + $0x20] sm:$0xff] %v5154
      %5426 = vst [vmem:[%s228 + $0x28] sm:$0xff] %v5156
      %5427 = vst [vmem:[%s228 + $0x30] sm:$0xff] %v5158
      %5428 = vst [vmem:[%s228 + $0x38] sm:$0xff] %v5160
      %5429 = vst [vmem:[%s228 + $0x40] sm:$0xff] %v5162
      %5430 = vst [vmem:[%s228 + $0x48] sm:$0xff] %v5164
      %5431 = vst [vmem:[%s228 + $0x50] sm:$0xff] %v5166
      %5432 = vst [vmem:[%s228 + $0x58] sm:$0xff] %v5168
      %5433 = vst [vmem:[%s228 + $0x60] sm:$0xff] %v5170
      %5434 = vst [vmem:[%s228 + $0x68] sm:$0xff] %v5172
      %5435 = vst [vmem:[%s228 + $0x70] sm:$0xff] %v5174
      %5436 = vst [vmem:[%s228 + $0x78] sm:$0xff] %v5176
      %5437 = vst [vmem:[%s228 + $0x80] sm:$0xff] %v5178
      %5438 = vst [vmem:[%s228 + $0x88] sm:$0xff] %v5180
      %5439 = vst [vmem:[%s228 + $0x90] sm:$0xff] %v5182
      %5440 = vst [vmem:[%s228 + $0x98] sm:$0xff] %v5184
      %5441 = vst [vmem:[%s228 + $0xa0] sm:$0xff] %v5186
      %5442 = vst [vmem:[%s228 + $0xa8] sm:$0xff] %v5188
      %5443 = vst [vmem:[%s228 + $0xb0] sm:$0xff] %v5190
      %5444 = vst [vmem:[%s228 + $0xb8] sm:$0xff] %v5192
      %5445 = vst [vmem:[%s228 + $0xc0] sm:$0xff] %v5194
      %5446 = vst [vmem:[%s228 + $0xc8] sm:$0xff] %v5196
      %5447 = vst [vmem:[%s228 + $0xd0] sm:$0xff] %v5198
      %5448 = vst [vmem:[%s228 + $0xd8] sm:$0xff] %v5200
      %5449 = vst [vmem:[%s228 + $0xe0] sm:$0xff] %v5202
      %5450 = vst [vmem:[%s228 + $0xe8] sm:$0xff] %v5204
      %5451 = vst [vmem:[%s228 + $0xf0] sm:$0xff] %v5206
      %5452 = vst [vmem:[%s228 + $0xf8] sm:$0xff] %v5208
      %5453 = vst [vmem:[%s228 + $0x100] sm:$0xff] %v5210
      %5454 = vst [vmem:[%s228 + $0x108] sm:$0xff] %v5212
      %5455 = vst [vmem:[%s228 + $0x110] sm:$0xff] %v5214
      %5456 = vst [vmem:[%s228 + $0x118] sm:$0xff] %v5216
      %5457 = vst [vmem:[%s228 + $0x120] sm:$0xff] %v5218
      %5458 = vst [vmem:[%s228 + $0x128] sm:$0xff] %v5220
      %5459 = vst [vmem:[%s228 + $0x130] sm:$0xff] %v5222
      %5460 = vst [vmem:[%s228 + $0x138] sm:$0xff] %v5224
      %5461 = vst [vmem:[%s228 + $0x140] sm:$0xff] %v5226
      %5462 = vst [vmem:[%s228 + $0x148] sm:$0xff] %v5228
      %5463 = vst [vmem:[%s228 + $0x150] sm:$0xff] %v5230
      %5464 = vst [vmem:[%s228 + $0x158] sm:$0xff] %v5232
      %5465 = vst [vmem:[%s228 + $0x160] sm:$0xff] %v5234
      %5466 = vst [vmem:[%s228 + $0x168] sm:$0xff] %v5236
      %5467 = vst [vmem:[%s228 + $0x170] sm:$0xff] %v5238
      %5468 = vst [vmem:[%s228 + $0x178] sm:$0xff] %v5240
      %5469 = vst [vmem:[%s228 + $0x180] sm:$0xff] %v5242
      %5470 = vst [vmem:[%s228 + $0x188] sm:$0xff] %v5244
      %5471 = vst [vmem:[%s228 + $0x190] sm:$0xff] %v5246
      %5472 = vst [vmem:[%s228 + $0x198] sm:$0xff] %v5248
      %5473 = vst [vmem:[%s228 + $0x1a0] sm:$0xff] %v5250
      %5474 = vst [vmem:[%s228 + $0x1a8] sm:$0xff] %v5252
      %5475 = vst [vmem:[%s228 + $0x1b0] sm:$0xff] %v5254
      %5476 = vst [vmem:[%s228 + $0x1b8] sm:$0xff] %v5256
      %5477 = vst [vmem:[%s228 + $0x1c0] sm:$0xff] %v5258
      %5478 = vst [vmem:[%s228 + $0x1c8] sm:$0xff] %v5260
      %5479 = vst [vmem:[%s228 + $0x1d0] sm:$0xff] %v5262
      %5480 = vst [vmem:[%s228 + $0x1d8] sm:$0xff] %v5264
      %5481 = vst [vmem:[%s228 + $0x1e0] sm:$0xff] %v5266
      %5482 = vst [vmem:[%s228 + $0x1e8] sm:$0xff] %v5268
      %5483 = vst [vmem:[%s228 + $0x1f0] sm:$0xff] %v5270
      %5484 = vst [vmem:[%s228 + $0x1f8] sm:$0xff] %v5272
      %5485 = vst [vmem:[%s228 + $0x200] sm:$0xff] %v5274
      %5486 = vst [vmem:[%s228 + $0x208] sm:$0xff] %v5276
      %5487 = vst [vmem:[%s228 + $0x210] sm:$0xff] %v5278
      %5488 = vst [vmem:[%s228 + $0x218] sm:$0xff] %v5280
      %5489 = vst [vmem:[%s228 + $0x220] sm:$0xff] %v5282
      %5490 = vst [vmem:[%s228 + $0x228] sm:$0xff] %v5284
      %5491 = vst [vmem:[%s228 + $0x230] sm:$0xff] %v5286
      %5492 = vst [vmem:[%s228 + $0x238] sm:$0xff] %v5288
      %5493 = vst [vmem:[%s228 + $0x240] sm:$0xff] %v5290
      %5494 = vst [vmem:[%s228 + $0x248] sm:$0xff] %v5292
      %5495 = vst [vmem:[%s228 + $0x250] sm:$0xff] %v5294
      %5496 = vst [vmem:[%s228 + $0x258] sm:$0xff] %v5296
      %5497 = vst [vmem:[%s228 + $0x260] sm:$0xff] %v5298
      %5498 = vst [vmem:[%s228 + $0x268] sm:$0xff] %v5300
      %5499 = vst [vmem:[%s228 + $0x270] sm:$0xff] %v5302
      %5500 = vst [vmem:[%s228 + $0x278] sm:$0xff] %v5304
      %5501 = vst [vmem:[%s228 + $0x280] sm:$0xff] %v5306
      %5502 = vst [vmem:[%s228 + $0x288] sm:$0xff] %v5308
      %5503 = vst [vmem:[%s228 + $0x290] sm:$0xff] %v5310
      %5504 = vst [vmem:[%s228 + $0x298] sm:$0xff] %v5312
      %5505 = vst [vmem:[%s228 + $0x2a0] sm:$0xff] %v5314
      %5506 = vst [vmem:[%s228 + $0x2a8] sm:$0xff] %v5316
      %5507 = vst [vmem:[%s228 + $0x2b0] sm:$0xff] %v5318
      %5508 = vst [vmem:[%s228 + $0x2b8] sm:$0xff] %v5320
      %5509 = vst [vmem:[%s228 + $0x2c0] sm:$0xff] %v5322
      %5510 = vst [vmem:[%s228 + $0x2c8] sm:$0xff] %v5324
      %5511 = vst [vmem:[%s228 + $0x2d0] sm:$0xff] %v5326
      %5512 = vst [vmem:[%s228 + $0x2d8] sm:$0xff] %v5328
      %5513 = vst [vmem:[%s228 + $0x2e0] sm:$0xff] %v5330
      %5514 = vst [vmem:[%s228 + $0x2e8] sm:$0xff] %v5332
      %5515 = vst [vmem:[%s228 + $0x2f0] sm:$0xff] %v5334
      %5516 = vst [vmem:[%s228 + $0x2f8] sm:$0xff] %v5336
      %5517 = vst [vmem:[%s228 + $0x300] sm:$0xff] %v5338
      %5518 = vst [vmem:[%s228 + $0x308] sm:$0xff] %v5340
      %5519 = vst [vmem:[%s228 + $0x310] sm:$0xff] %v5342
      %5520 = vst [vmem:[%s228 + $0x318] sm:$0xff] %v5344
      %5521 = vst [vmem:[%s228 + $0x320] sm:$0xff] %v5346
      %5522 = vst [vmem:[%s228 + $0x328] sm:$0xff] %v5348
      %5523 = vst [vmem:[%s228 + $0x330] sm:$0xff] %v5350
      %5524 = vst [vmem:[%s228 + $0x338] sm:$0xff] %v5352
      %5525 = vst [vmem:[%s228 + $0x340] sm:$0xff] %v5354
      %5526 = vst [vmem:[%s228 + $0x348] sm:$0xff] %v5356
      %5527 = vst [vmem:[%s228 + $0x350] sm:$0xff] %v5358
      %5528 = vst [vmem:[%s228 + $0x358] sm:$0xff] %v5360
      %5529 = vst [vmem:[%s228 + $0x360] sm:$0xff] %v5362
      %5530 = vst [vmem:[%s228 + $0x368] sm:$0xff] %v5364
      %5531 = vst [vmem:[%s228 + $0x370] sm:$0xff] %v5366
      %5532 = vst [vmem:[%s228 + $0x378] sm:$0xff] %v5368
      %5533 = vst [vmem:[%s228 + $0x380] sm:$0xff] %v5370
      %5534 = vst [vmem:[%s228 + $0x388] sm:$0xff] %v5372
      %5535 = vst [vmem:[%s228 + $0x390] sm:$0xff] %v5374
      %5536 = vst [vmem:[%s228 + $0x398] sm:$0xff] %v5376
      %5537 = vst [vmem:[%s228 + $0x3a0] sm:$0xff] %v5378
      %5538 = vst [vmem:[%s228 + $0x3a8] sm:$0xff] %v5380
      %5539 = vst [vmem:[%s228 + $0x3b0] sm:$0xff] %v5382
      %5540 = vst [vmem:[%s228 + $0x3b8] sm:$0xff] %v5384
      %5541 = vst [vmem:[%s228 + $0x3c0] sm:$0xff] %v5386
      %5542 = vst [vmem:[%s228 + $0x3c8] sm:$0xff] %v5388
      %5543 = vst [vmem:[%s228 + $0x3d0] sm:$0xff] %v5390
      %5544 = vst [vmem:[%s228 + $0x3d8] sm:$0xff] %v5392
      %5545 = vst [vmem:[%s228 + $0x3e0] sm:$0xff] %v5394
      %5546 = vst [vmem:[%s228 + $0x3e8] sm:$0xff] %v5396
      %5547 = vst [vmem:[%s228 + $0x3f0] sm:$0xff] %v5398
      %5548 = vst [vmem:[%s228 + $0x3f8] sm:$0xff] %v5400
      %5549 = vst [vmem:[%s228 + $0x400] sm:$0xff] %v5402
      %5550 = vst [vmem:[%s228 + $0x408] sm:$0xff] %v5404
      %5551 = vst [vmem:[%s228 + $0x410] sm:$0xff] %v5406
      %5552 = vst [vmem:[%s228 + $0x418] sm:$0xff] %v5408
      %5553 = vst [vmem:[%s228 + $0x420] sm:$0xff] %v5410
      %5554 = vst [vmem:[%s228 + $0x428] sm:$0xff] %v5412
      %5555 = vst [vmem:[%s228 + $0x430] sm:$0xff] %v5414
      %5556 = vst [vmem:[%s228 + $0x438] sm:$0xff] %v5416
      %5557 = vst [vmem:[%s228 + $0x440] sm:$0xff] %v5418
      %5558 = vst [vmem:[%s228 + $0x448] sm:$0xff] %v5420
      %s5559 = smul.u32 138, %s15
      %p5560 = scmp.lt.s32.totalorder %s5559, 275
      %s5561 = scalar_select %p5560, %s5559, 275
      %s5562 = smul.addr %s5561, 8
      %s5563 = scalar_lea.vmem %s4, %s5562
      // Predicated region
      $region37: #{decoder_forward.7} parent=35 // pred_check
        %p5564 = pneg %p129
      $region38: #{decoder_forward.7} parent=35 // pred_check_branch
        %5566 = sbr.rel (%p5564) target = $region40
      $region39: #{decoder_forward.7} parent=35 // pred_region
        %s5567 = smul.u32 138, %s15
      $region40: #{decoder_forward.7} parent=35 // pred_fallthru
        _
    $region36: #{decoder_forward.7} parent=5 // pred_fallthru
      _
    %p5568 = scmp.le.s32.totalorder 2, %s10
    // Predicated region
    $region41: #{decoder_forward.7} parent=5 // pred_check
      %p5569 = pneg %p5568
    $region42: #{decoder_forward.7} parent=5 // pred_check_branch
      %5571 = sbr.rel (%p5569) target = $region44
    $region43: #{decoder_forward.7} parent=5 // pred_region
      %s5572 = ssub.s32 %s10, 2
      // Predicated region
      $region45: #{decoder_forward.7} parent=43 // pred_check
        %p5573 = pneg %p135
      $region46: #{decoder_forward.7} parent=43 // pred_check_branch
        %5575 = sbr.rel (%p5573) target = $region48
      $region47: #{decoder_forward.7} parent=43 // pred_region
        %s5576 = smul.u32 138, %s16
        %p5577 = scmp.lt.s32.totalorder %s5576, 275
        %s5578 = scalar_select %p5577, %s5576, 275
        %s5579 = smul.addr %s5578, 8
        %s5580 = scalar_lea.vmem %s4, %s5579
      $region48: #{decoder_forward.7} parent=43 // pred_fallthru
        _
    $region44: #{decoder_forward.7} parent=5 // pred_fallthru
      _
  $region6: #{decoder_forward.7} parent=0 // loop_footer
    %s14 = sadd.s32 1, %s10
  $region7: #{decoder_forward.7} parent=0 // loop_footer_branch
    %9 = sbr.rel target = $region3
  $region8: #{decoder_forward.7} parent=0 // loop_exit
    _

</llo_original>
